<compile_context>
chip_gen: v7x
topology: tpu7x:2x2x1
jax: 0.10.0
libtpu: 0.0.40
codegen_flags: <defaults>
</compile_context>

<pallas_src>
import functools

import numpy as np
import jax
import jax.numpy as jnp
from jax.experimental import pallas as pl
from jax.experimental.pallas import tpu as pltpu


def _round_up(x, m):
    return (x + m - 1) // m * m


# ----------------------------------------------------------------------------
# Precomputed 0/1 gather matrices: G @ x[(h*w), c] == im2col blocks, exactly.
# Row (kk, oh, ow) selects the input pixel read by kernel offset kk at output
# position (oh, ow); rows that read padding stay all-zero.
# ----------------------------------------------------------------------------
def _gather_matrix(h_in, w_in, k, stride, pad):
    h_out = (h_in + 2 * pad - k) // stride + 1
    w_out = (w_in + 2 * pad - k) // stride + 1
    g = np.zeros((k * k * h_out * w_out, h_in * w_in), np.float32)
    for di in range(k):
        for dj in range(k):
            kk = di * k + dj
            for oh in range(h_out):
                for ow in range(w_out):
                    r = oh * stride + di - pad
                    c = ow * stride + dj - pad
                    if 0 <= r < h_in and 0 <= c < w_in:
                        g[kk * h_out * w_out + oh * w_out + ow, r * w_in + c] = 1.0
    return g


# ----------------------------------------------------------------------------
# The fused encoder kernel: one grid step == one batch sample.
# Everything below happens on VMEM-resident data; f32 MXU accumulation,
# bf16 operands, intermediates never leave the chip.
# ----------------------------------------------------------------------------
def _encoder_kernel(col1_ref, w1_ref, b1_ref, g2_ref, w2_ref, b2_ref,
                    g3_ref, w3_ref, b3_ref, wh_ref, bh_ref, out_ref):
    f32 = jnp.float32
    bf16 = jnp.bfloat16

    # ---- conv1: (196,16) @ (16,32) + bias, ReLU --------------------------
    h1 = jnp.dot(col1_ref[0], w1_ref[...], preferred_element_type=f32)
    h1 = jnp.maximum(h1 + b1_ref[...], 0.0).astype(bf16)            # (196, 32)

    # ---- conv2: in-kernel im2col via gather matmul, then one MXU matmul --
    n_pos2 = 49
    n_k2 = g2_ref.shape[0] // n_pos2                                 # 16
    cs2 = jnp.dot(g2_ref[...], h1, preferred_element_type=f32).astype(bf16)
    col2 = jnp.concatenate(                                          # (49, 512)
        [cs2[k * n_pos2:(k + 1) * n_pos2, :] for k in range(n_k2)], axis=1)
    h2 = jnp.dot(col2, w2_ref[...], preferred_element_type=f32)
    h2 = jnp.maximum(h2 + b2_ref[...], 0.0).astype(bf16)             # (49, 64)

    # ---- conv3 ------------------------------------------------------------
    n_pos3 = 49
    n_k3 = g3_ref.shape[0] // n_pos3                                 # 9
    cs3 = jnp.dot(g3_ref[...], h2, preferred_element_type=f32).astype(bf16)
    col3 = jnp.concatenate(                                          # (49, 576)
        [cs3[k * n_pos3:(k + 1) * n_pos3, :] for k in range(n_k3)], axis=1)
    h3 = jnp.dot(col3, w3_ref[...], preferred_element_type=f32)
    h3 = jnp.maximum(h3 + b3_ref[...], 0.0).astype(bf16)             # (49, 128)

    # ---- fused mu/logvar head ---------------------------------------------
    # Flatten (H*W, C) -> (1, H*W*C) by lane-concat of the 49 rows (each row
    # is already a full 128-lane vreg), then one lane-dense (N=128) matmul.
    h3_flat = jnp.concatenate(
        [h3[p:p + 1, :] for p in range(n_pos3)], axis=1)             # (1, 6272)
    out = jnp.dot(h3_flat, wh_ref[...], preferred_element_type=f32)
    out_ref[0] = out + bh_ref[...]                                   # (1, 128) f32


# ----------------------------------------------------------------------------
# One-time weight repacking (hoisted out of the forward path, per review).
# ----------------------------------------------------------------------------
def pack_params(params):
    def conv_w(w):                       # OIHW -> (kh*kw*Cin, Cout), bf16
        co, ci, kh, kw = w.shape
        return (jnp.transpose(w, (2, 3, 1, 0))
                .reshape(kh * kw * ci, co).astype(jnp.bfloat16))

    def bias(b):
        return b.reshape(1, -1).astype(jnp.float32)

    latent = params["b_mu"].shape[0]
    # Fused mu/logvar head.  PyTorch flattens NCHW -> index c*49 + p; the
    # in-kernel flatten is p*128 + c, so permute the weight rows here (free),
    # and zero-pad the output dim to a lane-dense N=128.
    w_cat = jnp.concatenate([params["w_mu"], params["w_lv"]], axis=0)  # (2L, 6272)
    wh = (w_cat.reshape(2 * latent, 128, 49)
          .transpose(2, 1, 0).reshape(49 * 128, 2 * latent))
    n_pad = _round_up(2 * latent, 128)
    wh = jnp.pad(wh, ((0, 0), (0, n_pad - 2 * latent))).astype(jnp.bfloat16)
    bh = jnp.pad(jnp.concatenate([params["b_mu"], params["b_lv"]]),
                 (0, n_pad - 2 * latent))

    return {
        "w1": conv_w(params["w1"]), "b1": bias(params["b1"]),
        "w2": conv_w(params["w2"]), "b2": bias(params["b2"]),
        "w3": conv_w(params["w3"]), "b3": bias(params["b3"]),
        "wh": wh, "bh": bh.reshape(1, -1).astype(jnp.float32),
        # 0/1 gather matrices for the in-kernel im2col of conv2 / conv3.
        "g2": jnp.asarray(_gather_matrix(14, 14, 4, 2, 1), jnp.bfloat16),
        "g3": jnp.asarray(_gather_matrix(7, 7, 3, 1, 1), jnp.bfloat16),
    }


# ----------------------------------------------------------------------------
# Forward pass: first-layer im2col (tiny plain-JAX glue) + ONE pallas_call.
# ----------------------------------------------------------------------------
def _im2col_conv1(x_nchw):
    """(B,1,28,28) -> (B, 196, 16) bf16, column order (kh, kw, Cin)."""
    x = jnp.transpose(x_nchw, (0, 2, 3, 1)).astype(jnp.bfloat16)     # NHWC
    B, H, W, C = x.shape
    kh = kw = 4
    stride, pad = 2, 1
    xp = jnp.pad(x, ((0, 0), (pad, pad), (pad, pad), (0, 0)))
    Ho = (H + 2 * pad - kh) // stride + 1
    Wo = (W + 2 * pad - kw) // stride + 1
    patches = []
    for i in range(kh):
        for j in range(kw):
            patches.append(xp[:, i:i + stride * Ho:stride, j:j + stride * Wo:stride, :])
    col = jnp.stack(patches, axis=3).reshape(B, Ho, Wo, kh * kw * C)
    return col.reshape(B, Ho * Wo, kh * kw * C)


def encoder_forward(x_nchw, packed, latent_dim):
    """Mirrors Encoder.forward: returns (mu, logvar)."""
    B = x_nchw.shape[0]
    col1 = _im2col_conv1(x_nchw)                                     # (B,196,16)
    n_head = packed["wh"].shape[1]                                   # 128

    out = pl.pallas_call(
        _encoder_kernel,
        out_shape=jax.ShapeDtypeStruct((B, 1, n_head), jnp.float32),
        grid=(B,),
        in_specs=[
            pl.BlockSpec((1, 196, 16), lambda i: (i, 0, 0)),  # per-sample patches
            pl.BlockSpec((16, 32), lambda i: (0, 0)),         # VMEM-resident weights
            pl.BlockSpec((1, 32), lambda i: (0, 0)),
            pl.BlockSpec((784, 196), lambda i: (0, 0)),       # conv2 gather matrix
            pl.BlockSpec((512, 64), lambda i: (0, 0)),
            pl.BlockSpec((1, 64), lambda i: (0, 0)),
            pl.BlockSpec((441, 49), lambda i: (0, 0)),        # conv3 gather matrix
            pl.BlockSpec((576, 128), lambda i: (0, 0)),
            pl.BlockSpec((1, 128), lambda i: (0, 0)),
            pl.BlockSpec((6272, n_head), lambda i: (0, 0)),   # fused head weight
            pl.BlockSpec((1, n_head), lambda i: (0, 0)),
        ],
        out_specs=pl.BlockSpec((1, 1, n_head), lambda i: (i, 0, 0)),
        compiler_params=pltpu.CompilerParams(
            dimension_semantics=("parallel",),   # batch split across TCs on v7x
        ),
    )(col1, packed["w1"], packed["b1"], packed["g2"], packed["w2"], packed["b2"],
      packed["g3"], packed["w3"], packed["b3"], packed["wh"], packed["bh"])

    out = out[:, 0, :]
    mu = out[:, :latent_dim]
    logvar = out[:, latent_dim:2 * latent_dim]
    return mu, logvar


# ----------------------------------------------------------------------------
# Deterministic parameter init (shapes from Encoder.__init__)
# ----------------------------------------------------------------------------
def init_params(key, latent_dim):
    ks = jax.random.split(key, 10)
    s = 0.05
    return {
        "w1": jax.random.normal(ks[0], (32, 1, 4, 4), jnp.float32) * s,
        "b1": jax.random.normal(ks[1], (32,), jnp.float32) * s,
        "w2": jax.random.normal(ks[2], (64, 32, 4, 4), jnp.float32) * s,
        "b2": jax.random.normal(ks[3], (64,), jnp.float32) * s,
        "w3": jax.random.normal(ks[4], (128, 64, 3, 3), jnp.float32) * s,
        "b3": jax.random.normal(ks[5], (128,), jnp.float32) * s,
        "w_mu": jax.random.normal(ks[6], (latent_dim, 128 * 7 * 7), jnp.float32) * s,
        "b_mu": jax.random.normal(ks[7], (latent_dim,), jnp.float32) * s,
        "w_lv": jax.random.normal(ks[8], (latent_dim, 128 * 7 * 7), jnp.float32) * s,
        "b_lv": jax.random.normal(ks[9], (latent_dim,), jnp.float32) * s,
    }


# ----------------------------------------------------------------------------
# Pure-JAX reference (for correctness check)
# ----------------------------------------------------------------------------
def reference_forward(x_nchw, params):
    def conv(x, w, b, stride, pad):
        y = jax.lax.conv_general_dilated(
            x, w, (stride, stride), [(pad, pad), (pad, pad)],
            dimension_numbers=("NCHW", "OIHW", "NCHW"),
        )
        return y + b[None, :, None, None]

    h = jax.nn.relu(conv(x_nchw, params["w1"], params["b1"], 2, 1))
    h = jax.nn.relu(conv(h, params["w2"], params["b2"], 2, 1))
    h = jax.nn.relu(conv(h, params["w3"], params["b3"], 1, 1))
    flat = h.reshape(x_nchw.shape[0], -1)
    mu = flat @ params["w_mu"].T + params["b_mu"]
    logvar = flat @ params["w_lv"].T + params["b_lv"]
    return mu, logvar


if __name__ == "__main__":
    latent_dim = 16
    key = jax.random.PRNGKey(0)
    k_x, k_p = jax.random.split(key)

    # The module's fc layers require 28x28 single-channel input (128*7*7 features).
    x = jax.random.normal(k_x, (2, 1, 28, 28), jnp.float32)
    params = init_params(k_p, latent_dim)

    packed = pack_params(params)               # one-time weight repack (hoisted)
    fwd = jax.jit(functools.partial(encoder_forward, latent_dim=latent_dim))
    mu, logvar = fwd(x, packed)
    jax.block_until_ready((mu, logvar))

    mu_ref, logvar_ref = reference_forward(x, params)
    assert mu.shape == (2, latent_dim) and logvar.shape == (2, latent_dim)
    assert jnp.allclose(mu, mu_ref, atol=2e-2, rtol=2e-2)
    assert jnp.allclose(logvar, logvar_ref, atol=2e-2, rtol=2e-2)

    print("KERNEL_OK")
</pallas_src>

<mosaic_0001>
module attributes {stable_mosaic.version = 11 : i64} {
  func.func @_encoder_kernel(%arg0: i32, %arg1: memref<1x196x16xbf16, #tpu.memory_space<vmem>>, %arg2: memref<16x32xbf16, #tpu.memory_space<vmem>>, %arg3: memref<1x32xf32, #tpu.memory_space<vmem>>, %arg4: memref<784x196xbf16, #tpu.memory_space<vmem>>, %arg5: memref<512x64xbf16, #tpu.memory_space<vmem>>, %arg6: memref<1x64xf32, #tpu.memory_space<vmem>>, %arg7: memref<441x49xbf16, #tpu.memory_space<vmem>>, %arg8: memref<576x128xbf16, #tpu.memory_space<vmem>>, %arg9: memref<1x128xf32, #tpu.memory_space<vmem>>, %arg10: memref<6272x128xbf16, #tpu.memory_space<vmem>>, %arg11: memref<1x128xf32, #tpu.memory_space<vmem>>, %arg12: memref<1x1x128xf32, #tpu.memory_space<vmem>>) attributes {dimension_semantics = [#tpu.dimension_semantics<parallel>], iteration_bounds = array<i64: 2>, scalar_prefetch = 0 : i64, scratch_operands = 0 : i64, tpu.core_type = #tpu.core_type<tc>, window_params = [{transform_indices = @transform_0, window_bounds = array<i64: 1, 196, 16>}, {pipeline_mode = #tpu.pipeline_mode<synchronous>, transform_indices = @transform_1, window_bounds = array<i64: 16, 32>}, {pipeline_mode = #tpu.pipeline_mode<synchronous>, transform_indices = @transform_2, window_bounds = array<i64: 1, 32>}, {pipeline_mode = #tpu.pipeline_mode<synchronous>, transform_indices = @transform_3, window_bounds = array<i64: 784, 196>}, {pipeline_mode = #tpu.pipeline_mode<synchronous>, transform_indices = @transform_4, window_bounds = array<i64: 512, 64>}, {pipeline_mode = #tpu.pipeline_mode<synchronous>, transform_indices = @transform_5, window_bounds = array<i64: 1, 64>}, {pipeline_mode = #tpu.pipeline_mode<synchronous>, transform_indices = @transform_6, window_bounds = array<i64: 441, 49>}, {pipeline_mode = #tpu.pipeline_mode<synchronous>, transform_indices = @transform_7, window_bounds = array<i64: 576, 128>}, {pipeline_mode = #tpu.pipeline_mode<synchronous>, transform_indices = @transform_8, window_bounds = array<i64: 1, 128>}, {pipeline_mode = #tpu.pipeline_mode<synchronous>, transform_indices = @transform_9, window_bounds = array<i64: 6272, 128>}, {pipeline_mode = #tpu.pipeline_mode<synchronous>, transform_indices = @transform_10, window_bounds = array<i64: 1, 128>}, {transform_indices = @transform_11, window_bounds = array<i64: 1, 1, 128>}]} {
    %c0 = arith.constant 0 : index
    %c0_0 = arith.constant 0 : index
    %c0_1 = arith.constant 0 : index
    %0 = vector.load %arg1[%c0, %c0_0, %c0_1] : memref<1x196x16xbf16, #tpu.memory_space<vmem>>, vector<1x196x16xbf16>
    %1 = vector.shape_cast %0 : vector<1x196x16xbf16> to vector<196x16xbf16>
    %c0_2 = arith.constant 0 : index
    %c0_3 = arith.constant 0 : index
    %2 = vector.load %arg2[%c0_2, %c0_3] : memref<16x32xbf16, #tpu.memory_space<vmem>>, vector<16x32xbf16>
    %cst = arith.constant dense<0.000000e+00> : vector<196x32xf32>
    %3 = tpu.matmul %1, %2, %cst {dimension_numbers = #tpu.dot_dimension_numbers<[1], [0], [0], [1], [0, 0, 1, 1], [], []>} : vector<196x16xbf16>, vector<16x32xbf16>, vector<196x32xf32> -> vector<196x32xf32>
    %c0_4 = arith.constant 0 : index
    %c0_5 = arith.constant 0 : index
    %4 = vector.load %arg3[%c0_4, %c0_5] : memref<1x32xf32, #tpu.memory_space<vmem>>, vector<1x32xf32>
    %5 = vector.broadcast %4 : vector<1x32xf32> to vector<196x32xf32>
    %6 = arith.addf %3, %5 : vector<196x32xf32>
    %cst_6 = arith.constant 0.000000e+00 : f32
    %7 = vector.broadcast %cst_6 : f32 to vector<196x32xf32>
    %8 = arith.maximumf %6, %7 : vector<196x32xf32>
    %9 = arith.truncf %8 : vector<196x32xf32> to vector<196x32xbf16>
    %c0_7 = arith.constant 0 : index
    %c0_8 = arith.constant 0 : index
    %10 = vector.load %arg4[%c0_7, %c0_8] : memref<784x196xbf16, #tpu.memory_space<vmem>>, vector<784x196xbf16>
    %cst_9 = arith.constant dense<0.000000e+00> : vector<784x32xf32>
    %11 = tpu.matmul %10, %9, %cst_9 {dimension_numbers = #tpu.dot_dimension_numbers<[1], [0], [0], [1], [0, 0, 1, 1], [], []>} : vector<784x196xbf16>, vector<196x32xbf16>, vector<784x32xf32> -> vector<784x32xf32>
    %12 = arith.truncf %11 : vector<784x32xf32> to vector<784x32xbf16>
    %13 = vector.extract_strided_slice %12 {offsets = [0, 0], sizes = [49, 32], strides = [1, 1]} : vector<784x32xbf16> to vector<49x32xbf16>
    %14 = vector.extract_strided_slice %12 {offsets = [49, 0], sizes = [49, 32], strides = [1, 1]} : vector<784x32xbf16> to vector<49x32xbf16>
    %15 = vector.extract_strided_slice %12 {offsets = [98, 0], sizes = [49, 32], strides = [1, 1]} : vector<784x32xbf16> to vector<49x32xbf16>
    %16 = vector.extract_strided_slice %12 {offsets = [147, 0], sizes = [49, 32], strides = [1, 1]} : vector<784x32xbf16> to vector<49x32xbf16>
    %17 = vector.extract_strided_slice %12 {offsets = [196, 0], sizes = [49, 32], strides = [1, 1]} : vector<784x32xbf16> to vector<49x32xbf16>
    %18 = vector.extract_strided_slice %12 {offsets = [245, 0], sizes = [49, 32], strides = [1, 1]} : vector<784x32xbf16> to vector<49x32xbf16>
    %19 = vector.extract_strided_slice %12 {offsets = [294, 0], sizes = [49, 32], strides = [1, 1]} : vector<784x32xbf16> to vector<49x32xbf16>
    %20 = vector.extract_strided_slice %12 {offsets = [343, 0], sizes = [49, 32], strides = [1, 1]} : vector<784x32xbf16> to vector<49x32xbf16>
    %21 = vector.extract_strided_slice %12 {offsets = [392, 0], sizes = [49, 32], strides = [1, 1]} : vector<784x32xbf16> to vector<49x32xbf16>
    %22 = vector.extract_strided_slice %12 {offsets = [441, 0], sizes = [49, 32], strides = [1, 1]} : vector<784x32xbf16> to vector<49x32xbf16>
    %23 = vector.extract_strided_slice %12 {offsets = [490, 0], sizes = [49, 32], strides = [1, 1]} : vector<784x32xbf16> to vector<49x32xbf16>
    %24 = vector.extract_strided_slice %12 {offsets = [539, 0], sizes = [49, 32], strides = [1, 1]} : vector<784x32xbf16> to vector<49x32xbf16>
    %25 = vector.extract_strided_slice %12 {offsets = [588, 0], sizes = [49, 32], strides = [1, 1]} : vector<784x32xbf16> to vector<49x32xbf16>
    %26 = vector.extract_strided_slice %12 {offsets = [637, 0], sizes = [49, 32], strides = [1, 1]} : vector<784x32xbf16> to vector<49x32xbf16>
    %27 = vector.extract_strided_slice %12 {offsets = [686, 0], sizes = [49, 32], strides = [1, 1]} : vector<784x32xbf16> to vector<49x32xbf16>
    %28 = vector.extract_strided_slice %12 {offsets = [735, 0], sizes = [49, 32], strides = [1, 1]} : vector<784x32xbf16> to vector<49x32xbf16>
    %29 = tpu.concatenate %13, %14, %15, %16, %17, %18, %19, %20, %21, %22, %23, %24, %25, %26, %27, %28 in 1 : vector<49x32xbf16>, vector<49x32xbf16>, vector<49x32xbf16>, vector<49x32xbf16>, vector<49x32xbf16>, vector<49x32xbf16>, vector<49x32xbf16>, vector<49x32xbf16>, vector<49x32xbf16>, vector<49x32xbf16>, vector<49x32xbf16>, vector<49x32xbf16>, vector<49x32xbf16>, vector<49x32xbf16>, vector<49x32xbf16>, vector<49x32xbf16> -> vector<49x512xbf16>
    %c0_10 = arith.constant 0 : index
    %c0_11 = arith.constant 0 : index
    %30 = vector.load %arg5[%c0_10, %c0_11] : memref<512x64xbf16, #tpu.memory_space<vmem>>, vector<512x64xbf16>
    %cst_12 = arith.constant dense<0.000000e+00> : vector<49x64xf32>
    %31 = tpu.matmul %29, %30, %cst_12 {dimension_numbers = #tpu.dot_dimension_numbers<[1], [0], [0], [1], [0, 0, 1, 1], [], []>} : vector<49x512xbf16>, vector<512x64xbf16>, vector<49x64xf32> -> vector<49x64xf32>
    %c0_13 = arith.constant 0 : index
    %c0_14 = arith.constant 0 : index
    %32 = vector.load %arg6[%c0_13, %c0_14] : memref<1x64xf32, #tpu.memory_space<vmem>>, vector<1x64xf32>
    %33 = vector.broadcast %32 : vector<1x64xf32> to vector<49x64xf32>
    %34 = arith.addf %31, %33 : vector<49x64xf32>
    %cst_15 = arith.constant 0.000000e+00 : f32
    %35 = vector.broadcast %cst_15 : f32 to vector<49x64xf32>
    %36 = arith.maximumf %34, %35 : vector<49x64xf32>
    %37 = arith.truncf %36 : vector<49x64xf32> to vector<49x64xbf16>
    %c0_16 = arith.constant 0 : index
    %c0_17 = arith.constant 0 : index
    %38 = vector.load %arg7[%c0_16, %c0_17] : memref<441x49xbf16, #tpu.memory_space<vmem>>, vector<441x49xbf16>
    %cst_18 = arith.constant dense<0.000000e+00> : vector<441x64xf32>
    %39 = tpu.matmul %38, %37, %cst_18 {dimension_numbers = #tpu.dot_dimension_numbers<[1], [0], [0], [1], [0, 0, 1, 1], [], []>} : vector<441x49xbf16>, vector<49x64xbf16>, vector<441x64xf32> -> vector<441x64xf32>
    %40 = arith.truncf %39 : vector<441x64xf32> to vector<441x64xbf16>
    %41 = vector.extract_strided_slice %40 {offsets = [0, 0], sizes = [49, 64], strides = [1, 1]} : vector<441x64xbf16> to vector<49x64xbf16>
    %42 = vector.extract_strided_slice %40 {offsets = [49, 0], sizes = [49, 64], strides = [1, 1]} : vector<441x64xbf16> to vector<49x64xbf16>
    %43 = vector.extract_strided_slice %40 {offsets = [98, 0], sizes = [49, 64], strides = [1, 1]} : vector<441x64xbf16> to vector<49x64xbf16>
    %44 = vector.extract_strided_slice %40 {offsets = [147, 0], sizes = [49, 64], strides = [1, 1]} : vector<441x64xbf16> to vector<49x64xbf16>
    %45 = vector.extract_strided_slice %40 {offsets = [196, 0], sizes = [49, 64], strides = [1, 1]} : vector<441x64xbf16> to vector<49x64xbf16>
    %46 = vector.extract_strided_slice %40 {offsets = [245, 0], sizes = [49, 64], strides = [1, 1]} : vector<441x64xbf16> to vector<49x64xbf16>
    %47 = vector.extract_strided_slice %40 {offsets = [294, 0], sizes = [49, 64], strides = [1, 1]} : vector<441x64xbf16> to vector<49x64xbf16>
    %48 = vector.extract_strided_slice %40 {offsets = [343, 0], sizes = [49, 64], strides = [1, 1]} : vector<441x64xbf16> to vector<49x64xbf16>
    %49 = vector.extract_strided_slice %40 {offsets = [392, 0], sizes = [49, 64], strides = [1, 1]} : vector<441x64xbf16> to vector<49x64xbf16>
    %50 = tpu.concatenate %41, %42, %43, %44, %45, %46, %47, %48, %49 in 1 : vector<49x64xbf16>, vector<49x64xbf16>, vector<49x64xbf16>, vector<49x64xbf16>, vector<49x64xbf16>, vector<49x64xbf16>, vector<49x64xbf16>, vector<49x64xbf16>, vector<49x64xbf16> -> vector<49x576xbf16>
    %c0_19 = arith.constant 0 : index
    %c0_20 = arith.constant 0 : index
    %51 = vector.load %arg8[%c0_19, %c0_20] : memref<576x128xbf16, #tpu.memory_space<vmem>>, vector<576x128xbf16>
    %cst_21 = arith.constant dense<0.000000e+00> : vector<49x128xf32>
    %52 = tpu.matmul %50, %51, %cst_21 {dimension_numbers = #tpu.dot_dimension_numbers<[1], [0], [0], [1], [0, 0, 1, 1], [], []>} : vector<49x576xbf16>, vector<576x128xbf16>, vector<49x128xf32> -> vector<49x128xf32>
    %c0_22 = arith.constant 0 : index
    %c0_23 = arith.constant 0 : index
    %53 = vector.load %arg9[%c0_22, %c0_23] : memref<1x128xf32, #tpu.memory_space<vmem>>, vector<1x128xf32>
    %54 = vector.broadcast %53 : vector<1x128xf32> to vector<49x128xf32>
    %55 = arith.addf %52, %54 : vector<49x128xf32>
    %cst_24 = arith.constant 0.000000e+00 : f32
    %56 = vector.broadcast %cst_24 : f32 to vector<49x128xf32>
    %57 = arith.maximumf %55, %56 : vector<49x128xf32>
    %58 = arith.truncf %57 : vector<49x128xf32> to vector<49x128xbf16>
    %59 = vector.extract_strided_slice %58 {offsets = [0, 0], sizes = [1, 128], strides = [1, 1]} : vector<49x128xbf16> to vector<1x128xbf16>
    %60 = vector.extract_strided_slice %58 {offsets = [1, 0], sizes = [1, 128], strides = [1, 1]} : vector<49x128xbf16> to vector<1x128xbf16>
    %61 = vector.extract_strided_slice %58 {offsets = [2, 0], sizes = [1, 128], strides = [1, 1]} : vector<49x128xbf16> to vector<1x128xbf16>
    %62 = vector.extract_strided_slice %58 {offsets = [3, 0], sizes = [1, 128], strides = [1, 1]} : vector<49x128xbf16> to vector<1x128xbf16>
    %63 = vector.extract_strided_slice %58 {offsets = [4, 0], sizes = [1, 128], strides = [1, 1]} : vector<49x128xbf16> to vector<1x128xbf16>
    %64 = vector.extract_strided_slice %58 {offsets = [5, 0], sizes = [1, 128], strides = [1, 1]} : vector<49x128xbf16> to vector<1x128xbf16>
    %65 = vector.extract_strided_slice %58 {offsets = [6, 0], sizes = [1, 128], strides = [1, 1]} : vector<49x128xbf16> to vector<1x128xbf16>
    %66 = vector.extract_strided_slice %58 {offsets = [7, 0], sizes = [1, 128], strides = [1, 1]} : vector<49x128xbf16> to vector<1x128xbf16>
    %67 = vector.extract_strided_slice %58 {offsets = [8, 0], sizes = [1, 128], strides = [1, 1]} : vector<49x128xbf16> to vector<1x128xbf16>
    %68 = vector.extract_strided_slice %58 {offsets = [9, 0], sizes = [1, 128], strides = [1, 1]} : vector<49x128xbf16> to vector<1x128xbf16>
    %69 = vector.extract_strided_slice %58 {offsets = [10, 0], sizes = [1, 128], strides = [1, 1]} : vector<49x128xbf16> to vector<1x128xbf16>
    %70 = vector.extract_strided_slice %58 {offsets = [11, 0], sizes = [1, 128], strides = [1, 1]} : vector<49x128xbf16> to vector<1x128xbf16>
    %71 = vector.extract_strided_slice %58 {offsets = [12, 0], sizes = [1, 128], strides = [1, 1]} : vector<49x128xbf16> to vector<1x128xbf16>
    %72 = vector.extract_strided_slice %58 {offsets = [13, 0], sizes = [1, 128], strides = [1, 1]} : vector<49x128xbf16> to vector<1x128xbf16>
    %73 = vector.extract_strided_slice %58 {offsets = [14, 0], sizes = [1, 128], strides = [1, 1]} : vector<49x128xbf16> to vector<1x128xbf16>
    %74 = vector.extract_strided_slice %58 {offsets = [15, 0], sizes = [1, 128], strides = [1, 1]} : vector<49x128xbf16> to vector<1x128xbf16>
    %75 = vector.extract_strided_slice %58 {offsets = [16, 0], sizes = [1, 128], strides = [1, 1]} : vector<49x128xbf16> to vector<1x128xbf16>
    %76 = vector.extract_strided_slice %58 {offsets = [17, 0], sizes = [1, 128], strides = [1, 1]} : vector<49x128xbf16> to vector<1x128xbf16>
    %77 = vector.extract_strided_slice %58 {offsets = [18, 0], sizes = [1, 128], strides = [1, 1]} : vector<49x128xbf16> to vector<1x128xbf16>
    %78 = vector.extract_strided_slice %58 {offsets = [19, 0], sizes = [1, 128], strides = [1, 1]} : vector<49x128xbf16> to vector<1x128xbf16>
    %79 = vector.extract_strided_slice %58 {offsets = [20, 0], sizes = [1, 128], strides = [1, 1]} : vector<49x128xbf16> to vector<1x128xbf16>
    %80 = vector.extract_strided_slice %58 {offsets = [21, 0], sizes = [1, 128], strides = [1, 1]} : vector<49x128xbf16> to vector<1x128xbf16>
    %81 = vector.extract_strided_slice %58 {offsets = [22, 0], sizes = [1, 128], strides = [1, 1]} : vector<49x128xbf16> to vector<1x128xbf16>
    %82 = vector.extract_strided_slice %58 {offsets = [23, 0], sizes = [1, 128], strides = [1, 1]} : vector<49x128xbf16> to vector<1x128xbf16>
    %83 = vector.extract_strided_slice %58 {offsets = [24, 0], sizes = [1, 128], strides = [1, 1]} : vector<49x128xbf16> to vector<1x128xbf16>
    %84 = vector.extract_strided_slice %58 {offsets = [25, 0], sizes = [1, 128], strides = [1, 1]} : vector<49x128xbf16> to vector<1x128xbf16>
    %85 = vector.extract_strided_slice %58 {offsets = [26, 0], sizes = [1, 128], strides = [1, 1]} : vector<49x128xbf16> to vector<1x128xbf16>
    %86 = vector.extract_strided_slice %58 {offsets = [27, 0], sizes = [1, 128], strides = [1, 1]} : vector<49x128xbf16> to vector<1x128xbf16>
    %87 = vector.extract_strided_slice %58 {offsets = [28, 0], sizes = [1, 128], strides = [1, 1]} : vector<49x128xbf16> to vector<1x128xbf16>
    %88 = vector.extract_strided_slice %58 {offsets = [29, 0], sizes = [1, 128], strides = [1, 1]} : vector<49x128xbf16> to vector<1x128xbf16>
    %89 = vector.extract_strided_slice %58 {offsets = [30, 0], sizes = [1, 128], strides = [1, 1]} : vector<49x128xbf16> to vector<1x128xbf16>
    %90 = vector.extract_strided_slice %58 {offsets = [31, 0], sizes = [1, 128], strides = [1, 1]} : vector<49x128xbf16> to vector<1x128xbf16>
    %91 = vector.extract_strided_slice %58 {offsets = [32, 0], sizes = [1, 128], strides = [1, 1]} : vector<49x128xbf16> to vector<1x128xbf16>
    %92 = vector.extract_strided_slice %58 {offsets = [33, 0], sizes = [1, 128], strides = [1, 1]} : vector<49x128xbf16> to vector<1x128xbf16>
    %93 = vector.extract_strided_slice %58 {offsets = [34, 0], sizes = [1, 128], strides = [1, 1]} : vector<49x128xbf16> to vector<1x128xbf16>
    %94 = vector.extract_strided_slice %58 {offsets = [35, 0], sizes = [1, 128], strides = [1, 1]} : vector<49x128xbf16> to vector<1x128xbf16>
    %95 = vector.extract_strided_slice %58 {offsets = [36, 0], sizes = [1, 128], strides = [1, 1]} : vector<49x128xbf16> to vector<1x128xbf16>
    %96 = vector.extract_strided_slice %58 {offsets = [37, 0], sizes = [1, 128], strides = [1, 1]} : vector<49x128xbf16> to vector<1x128xbf16>
    %97 = vector.extract_strided_slice %58 {offsets = [38, 0], sizes = [1, 128], strides = [1, 1]} : vector<49x128xbf16> to vector<1x128xbf16>
    %98 = vector.extract_strided_slice %58 {offsets = [39, 0], sizes = [1, 128], strides = [1, 1]} : vector<49x128xbf16> to vector<1x128xbf16>
    %99 = vector.extract_strided_slice %58 {offsets = [40, 0], sizes = [1, 128], strides = [1, 1]} : vector<49x128xbf16> to vector<1x128xbf16>
    %100 = vector.extract_strided_slice %58 {offsets = [41, 0], sizes = [1, 128], strides = [1, 1]} : vector<49x128xbf16> to vector<1x128xbf16>
    %101 = vector.extract_strided_slice %58 {offsets = [42, 0], sizes = [1, 128], strides = [1, 1]} : vector<49x128xbf16> to vector<1x128xbf16>
    %102 = vector.extract_strided_slice %58 {offsets = [43, 0], sizes = [1, 128], strides = [1, 1]} : vector<49x128xbf16> to vector<1x128xbf16>
    %103 = vector.extract_strided_slice %58 {offsets = [44, 0], sizes = [1, 128], strides = [1, 1]} : vector<49x128xbf16> to vector<1x128xbf16>
    %104 = vector.extract_strided_slice %58 {offsets = [45, 0], sizes = [1, 128], strides = [1, 1]} : vector<49x128xbf16> to vector<1x128xbf16>
    %105 = vector.extract_strided_slice %58 {offsets = [46, 0], sizes = [1, 128], strides = [1, 1]} : vector<49x128xbf16> to vector<1x128xbf16>
    %106 = vector.extract_strided_slice %58 {offsets = [47, 0], sizes = [1, 128], strides = [1, 1]} : vector<49x128xbf16> to vector<1x128xbf16>
    %107 = vector.extract_strided_slice %58 {offsets = [48, 0], sizes = [1, 128], strides = [1, 1]} : vector<49x128xbf16> to vector<1x128xbf16>
    %108 = tpu.concatenate %59, %60, %61, %62, %63, %64, %65, %66, %67, %68, %69, %70, %71, %72, %73, %74 in 1 : vector<1x128xbf16>, vector<1x128xbf16>, vector<1x128xbf16>, vector<1x128xbf16>, vector<1x128xbf16>, vector<1x128xbf16>, vector<1x128xbf16>, vector<1x128xbf16>, vector<1x128xbf16>, vector<1x128xbf16>, vector<1x128xbf16>, vector<1x128xbf16>, vector<1x128xbf16>, vector<1x128xbf16>, vector<1x128xbf16>, vector<1x128xbf16> -> vector<1x2048xbf16>
    %109 = tpu.concatenate %75, %76, %77, %78, %79, %80, %81, %82, %83, %84, %85, %86, %87, %88, %89, %90 in 1 : vector<1x128xbf16>, vector<1x128xbf16>, vector<1x128xbf16>, vector<1x128xbf16>, vector<1x128xbf16>, vector<1x128xbf16>, vector<1x128xbf16>, vector<1x128xbf16>, vector<1x128xbf16>, vector<1x128xbf16>, vector<1x128xbf16>, vector<1x128xbf16>, vector<1x128xbf16>, vector<1x128xbf16>, vector<1x128xbf16>, vector<1x128xbf16> -> vector<1x2048xbf16>
    %110 = tpu.concatenate %91, %92, %93, %94, %95, %96, %97, %98, %99, %100, %101, %102, %103, %104, %105, %106 in 1 : vector<1x128xbf16>, vector<1x128xbf16>, vector<1x128xbf16>, vector<1x128xbf16>, vector<1x128xbf16>, vector<1x128xbf16>, vector<1x128xbf16>, vector<1x128xbf16>, vector<1x128xbf16>, vector<1x128xbf16>, vector<1x128xbf16>, vector<1x128xbf16>, vector<1x128xbf16>, vector<1x128xbf16>, vector<1x128xbf16>, vector<1x128xbf16> -> vector<1x2048xbf16>
    %111 = tpu.concatenate %108, %109, %110, %107 in 1 : vector<1x2048xbf16>, vector<1x2048xbf16>, vector<1x2048xbf16>, vector<1x128xbf16> -> vector<1x6272xbf16>
    %c0_25 = arith.constant 0 : index
    %c0_26 = arith.constant 0 : index
    %112 = vector.load %arg10[%c0_25, %c0_26] : memref<6272x128xbf16, #tpu.memory_space<vmem>>, vector<6272x128xbf16>
    %cst_27 = arith.constant dense<0.000000e+00> : vector<1x128xf32>
    %113 = tpu.matmul %111, %112, %cst_27 {dimension_numbers = #tpu.dot_dimension_numbers<[1], [0], [0], [1], [0, 0, 1, 1], [], []>} : vector<1x6272xbf16>, vector<6272x128xbf16>, vector<1x128xf32> -> vector<1x128xf32>
    %c0_28 = arith.constant 0 : index
    %c0_29 = arith.constant 0 : index
    %114 = vector.load %arg11[%c0_28, %c0_29] : memref<1x128xf32, #tpu.memory_space<vmem>>, vector<1x128xf32>
    %115 = arith.addf %113, %114 : vector<1x128xf32>
    %c0_30 = arith.constant 0 : index
    %c0_31 = arith.constant 0 : index
    %c0_32 = arith.constant 0 : index
    %116 = vector.load %arg12[%c0_30, %c0_31, %c0_32] : memref<1x1x128xf32, #tpu.memory_space<vmem>>, vector<1x1x128xf32>
    %117 = vector.shape_cast %116 : vector<1x1x128xf32> to vector<1x128xf32>
    %118 = vector.shape_cast %115 : vector<1x128xf32> to vector<1x1x128xf32>
    tpu.vector_store %arg12[%c0_30, %c0_31, %c0_32], %118 {strides = array<i32>} : memref<1x1x128xf32, #tpu.memory_space<vmem>>, vector<1x1x128xf32>,
    return
  }
  func.func @transform_0(%arg0: i32) -> (i32, i32, i32) {
    %c0_i32 = arith.constant 0 : i32
    %c0_i32_0 = arith.constant 0 : i32
    %c0_i32_1 = arith.constant 0 : i32
    return %arg0, %c0_i32, %c0_i32_0 : i32, i32, i32
  }
  func.func @transform_1(%arg0: i32) -> (i32, i32) {
    %c0_i32 = arith.constant 0 : i32
    %c0_i32_0 = arith.constant 0 : i32
    %c0_i32_1 = arith.constant 0 : i32
    return %c0_i32, %c0_i32_0 : i32, i32
  }
  func.func @transform_2(%arg0: i32) -> (i32, i32) {
    %c0_i32 = arith.constant 0 : i32
    %c0_i32_0 = arith.constant 0 : i32
    %c0_i32_1 = arith.constant 0 : i32
    return %c0_i32, %c0_i32_0 : i32, i32
  }
  func.func @transform_3(%arg0: i32) -> (i32, i32) {
    %c0_i32 = arith.constant 0 : i32
    %c0_i32_0 = arith.constant 0 : i32
    %c0_i32_1 = arith.constant 0 : i32
    return %c0_i32, %c0_i32_0 : i32, i32
  }
  func.func @transform_4(%arg0: i32) -> (i32, i32) {
    %c0_i32 = arith.constant 0 : i32
    %c0_i32_0 = arith.constant 0 : i32
    %c0_i32_1 = arith.constant 0 : i32
    return %c0_i32, %c0_i32_0 : i32, i32
  }
  func.func @transform_5(%arg0: i32) -> (i32, i32) {
    %c0_i32 = arith.constant 0 : i32
    %c0_i32_0 = arith.constant 0 : i32
    %c0_i32_1 = arith.constant 0 : i32
    return %c0_i32, %c0_i32_0 : i32, i32
  }
  func.func @transform_6(%arg0: i32) -> (i32, i32) {
    %c0_i32 = arith.constant 0 : i32
    %c0_i32_0 = arith.constant 0 : i32
    %c0_i32_1 = arith.constant 0 : i32
    return %c0_i32, %c0_i32_0 : i32, i32
  }
  func.func @transform_7(%arg0: i32) -> (i32, i32) {
    %c0_i32 = arith.constant 0 : i32
    %c0_i32_0 = arith.constant 0 : i32
    %c0_i32_1 = arith.constant 0 : i32
    return %c0_i32, %c0_i32_0 : i32, i32
  }
  func.func @transform_8(%arg0: i32) -> (i32, i32) {
    %c0_i32 = arith.constant 0 : i32
    %c0_i32_0 = arith.constant 0 : i32
    %c0_i32_1 = arith.constant 0 : i32
    return %c0_i32, %c0_i32_0 : i32, i32
  }
  func.func @transform_9(%arg0: i32) -> (i32, i32) {
    %c0_i32 = arith.constant 0 : i32
    %c0_i32_0 = arith.constant 0 : i32
    %c0_i32_1 = arith.constant 0 : i32
    return %c0_i32, %c0_i32_0 : i32, i32
  }
  func.func @transform_10(%arg0: i32) -> (i32, i32) {
    %c0_i32 = arith.constant 0 : i32
    %c0_i32_0 = arith.constant 0 : i32
    %c0_i32_1 = arith.constant 0 : i32
    return %c0_i32, %c0_i32_0 : i32, i32
  }
  func.func @transform_11(%arg0: i32) -> (i32, i32, i32) {
    %c0_i32 = arith.constant 0 : i32
    %c0_i32_0 = arith.constant 0 : i32
    %c0_i32_1 = arith.constant 0 : i32
    return %arg0, %c0_i32, %c0_i32_0 : i32, i32, i32
  }
}

</mosaic_0001>

<llo_original>
// kernel: encoder_forward.1
$region0: #{encoder_forward.1}
  #allocation0 [shape = 'u32[]', space=smem, size = 0x4, offset = 0x4, fixed_abs, tag = 'smem constant byte address 0x4 - core index']
  #allocation1 [shape = 'u32[144,128]{1,0:T(1,128)}', space=vmem, size = 0x12000, scoped, tag = 'internal scratch']
  %s0 = inlined_call_operand.vmem [shape: bf16[2,196,16], index: 0, kind: input, shape index: {}]
  %s1 = inlined_call_operand.vmem [shape: bf16[16,32], index: 1, kind: input, shape index: {}]
  %s2 = inlined_call_operand.vmem [shape: f32[1,32], index: 2, kind: input, shape index: {}]
  %s3 = inlined_call_operand.vmem [shape: bf16[784,196], index: 3, kind: input, shape index: {}]
  %s4 = inlined_call_operand.vmem [shape: bf16[512,64], index: 4, kind: input, shape index: {}]
  %s5 = inlined_call_operand.vmem [shape: f32[1,64], index: 5, kind: input, shape index: {}]
  %s6 = inlined_call_operand.vmem [shape: bf16[441,49], index: 6, kind: input, shape index: {}]
  %s7 = inlined_call_operand.vmem [shape: bf16[576,128], index: 7, kind: input, shape index: {}]
  %s8 = inlined_call_operand.vmem [shape: f32[1,128], index: 8, kind: input, shape index: {}]
  %s9 = inlined_call_operand.vmem [shape: bf16[6272,128], index: 9, kind: input, shape index: {}]
  %s10 = inlined_call_operand.vmem [shape: f32[1,128], index: 10, kind: input, shape index: {}]
  %s11 = inlined_call_operand.vmem [shape: f32[2,1,128], index: 11, kind: output, shape index: {}]
  %s12 = sld [smem:[#allocation0]]
  $region77: #{encoder_forward.1} parent=0
    _
  %s14 = ssub.s32 1, %s12
  %s15 = scalar_select 0, %s14, %s12
  loop: start=0, step=1, limit=4
  $region2: #{encoder_forward.1} parent=0 // loop_pre_header
    _
  $region3: #{encoder_forward.1} parent=0 // loop_header
    %s17 = sphi 0, %s21
    %p18 = scmp.ge.s32.totalorder %s17, 4
    %s27 = sphi 0, %s29
    %s30 = sphi 0, %s27
    %s31 = sphi 0, %s30
    %s47 = sphi 0, %s31
    %s51 = sphi 0, %s51
    %s53 = sphi 0, %s51
    %s54 = sphi 0, %s53
    %s68 = sphi 0, %s54
    %s72 = sphi 0, %s72
    %s74 = sphi 0, %s72
    %s75 = sphi 0, %s74
    %s89 = sphi 0, %s75
    %s93 = sphi 0, %s93
    %s95 = sphi 0, %s93
    %s96 = sphi 0, %s95
    %s110 = sphi 0, %s96
    %s114 = sphi 0, %s114
    %s116 = sphi 0, %s114
    %s117 = sphi 0, %s116
    %s131 = sphi 0, %s117
    %s135 = sphi 0, %s135
    %s137 = sphi 0, %s135
    %s138 = sphi 0, %s137
    %s152 = sphi 0, %s138
    %s156 = sphi 0, %s156
    %s158 = sphi 0, %s156
    %s159 = sphi 0, %s158
    %s173 = sphi 0, %s159
    %s177 = sphi 0, %s177
    %s179 = sphi 0, %s177
    %s180 = sphi 0, %s179
    %s194 = sphi 0, %s180
    %s198 = sphi 0, %s198
    %s200 = sphi 0, %s198
    %s201 = sphi 0, %s200
    %s215 = sphi 0, %s201
    %s219 = sphi 0, %s219
    %s221 = sphi 0, %s219
    %s222 = sphi 0, %s221
    %s236 = sphi 0, %s222
    %s240 = sphi 0, %s240
    %s242 = sphi 0, %s240
    %s243 = sphi 0, %s242
    %s257 = sphi 0, %s243
    %s263 = sphi 0, %s265
    %s266 = sphi 0, %s263
    %s267 = sphi 0, %s266
    %s283 = sphi 0, %s267
  $region4: #{encoder_forward.1} parent=0 // loop_header_branch
    %20 = sbr.rel (%p18) target = $region8
  $region5: #{encoder_forward.1} parent=0 // loop_body
    %s22 = ssub.s32 %s17, 1
    %s23 = ssub.s32 %s17, 2
    %s24 = sadd.s32 %s17, 1
    %s25 = ssub.s32 %s17, %s24
    %p26 = scmp.eq.s32.totalorder %s25, 0
    %s28 = sadd.s32 %s27, 1
    %s29 = scalar_select %p26, %s27, %s28
    %p32 = pneg %p26
    %p33 = scmp.eq.s32.totalorder %s17, 1
    %p34 = por %p32, %p33
    %p35 = scmp.ne.s32.totalorder %s27, %s30
    %p36 = scmp.eq.s32.totalorder %s17, 0
    %p37 = por %p35, %p36
    %p38 = scmp.ne.s32.totalorder %s27, %s30
    %p39 = scmp.eq.s32.totalorder %s22, 1
    %p40 = por %p38, %p39
    %p41 = scmp.ne.s32.totalorder %s30, %s31
    %p42 = scmp.eq.s32.totalorder %s22, 0
    %p43 = por %p41, %p42
    %p44 = scmp.ne.s32.totalorder %s30, %s31
    %p45 = scmp.eq.s32.totalorder %s23, 1
    %p46 = por %p44, %p45
    %p48 = scmp.ne.s32.totalorder %s31, %s47
    %p49 = scmp.eq.s32.totalorder %s23, 0
    %p50 = por %p48, %p49
    %s52 = sadd.s32 %s51, 1
    %p55 = scmp.eq.s32.totalorder %s17, 1
    %p56 = scmp.ne.s32.totalorder %s51, %s53
    %p57 = scmp.eq.s32.totalorder %s17, 0
    %p58 = por %p56, %p57
    %p59 = scmp.ne.s32.totalorder %s51, %s53
    %p60 = scmp.eq.s32.totalorder %s22, 1
    %p61 = por %p59, %p60
    %p62 = scmp.ne.s32.totalorder %s53, %s54
    %p63 = scmp.eq.s32.totalorder %s22, 0
    %p64 = por %p62, %p63
    %p65 = scmp.ne.s32.totalorder %s53, %s54
    %p66 = scmp.eq.s32.totalorder %s23, 1
    %p67 = por %p65, %p66
    %p69 = scmp.ne.s32.totalorder %s54, %s68
    %p70 = scmp.eq.s32.totalorder %s23, 0
    %p71 = por %p69, %p70
    %s73 = sadd.s32 %s72, 1
    %p76 = scmp.eq.s32.totalorder %s17, 1
    %p77 = scmp.ne.s32.totalorder %s72, %s74
    %p78 = scmp.eq.s32.totalorder %s17, 0
    %p79 = por %p77, %p78
    %p80 = scmp.ne.s32.totalorder %s72, %s74
    %p81 = scmp.eq.s32.totalorder %s22, 1
    %p82 = por %p80, %p81
    %p83 = scmp.ne.s32.totalorder %s74, %s75
    %p84 = scmp.eq.s32.totalorder %s22, 0
    %p85 = por %p83, %p84
    %p86 = scmp.ne.s32.totalorder %s74, %s75
    %p87 = scmp.eq.s32.totalorder %s23, 1
    %p88 = por %p86, %p87
    %p90 = scmp.ne.s32.totalorder %s75, %s89
    %p91 = scmp.eq.s32.totalorder %s23, 0
    %p92 = por %p90, %p91
    %s94 = sadd.s32 %s93, 1
    %p97 = scmp.eq.s32.totalorder %s17, 1
    %p98 = scmp.ne.s32.totalorder %s93, %s95
    %p99 = scmp.eq.s32.totalorder %s17, 0
    %p100 = por %p98, %p99
    %p101 = scmp.ne.s32.totalorder %s93, %s95
    %p102 = scmp.eq.s32.totalorder %s22, 1
    %p103 = por %p101, %p102
    %p104 = scmp.ne.s32.totalorder %s95, %s96
    %p105 = scmp.eq.s32.totalorder %s22, 0
    %p106 = por %p104, %p105
    %p107 = scmp.ne.s32.totalorder %s95, %s96
    %p108 = scmp.eq.s32.totalorder %s23, 1
    %p109 = por %p107, %p108
    %p111 = scmp.ne.s32.totalorder %s96, %s110
    %p112 = scmp.eq.s32.totalorder %s23, 0
    %p113 = por %p111, %p112
    %s115 = sadd.s32 %s114, 1
    %p118 = scmp.eq.s32.totalorder %s17, 1
    %p119 = scmp.ne.s32.totalorder %s114, %s116
    %p120 = scmp.eq.s32.totalorder %s17, 0
    %p121 = por %p119, %p120
    %p122 = scmp.ne.s32.totalorder %s114, %s116
    %p123 = scmp.eq.s32.totalorder %s22, 1
    %p124 = por %p122, %p123
    %p125 = scmp.ne.s32.totalorder %s116, %s117
    %p126 = scmp.eq.s32.totalorder %s22, 0
    %p127 = por %p125, %p126
    %p128 = scmp.ne.s32.totalorder %s116, %s117
    %p129 = scmp.eq.s32.totalorder %s23, 1
    %p130 = por %p128, %p129
    %p132 = scmp.ne.s32.totalorder %s117, %s131
    %p133 = scmp.eq.s32.totalorder %s23, 0
    %p134 = por %p132, %p133
    %s136 = sadd.s32 %s135, 1
    %p139 = scmp.eq.s32.totalorder %s17, 1
    %p140 = scmp.ne.s32.totalorder %s135, %s137
    %p141 = scmp.eq.s32.totalorder %s17, 0
    %p142 = por %p140, %p141
    %p143 = scmp.ne.s32.totalorder %s135, %s137
    %p144 = scmp.eq.s32.totalorder %s22, 1
    %p145 = por %p143, %p144
    %p146 = scmp.ne.s32.totalorder %s137, %s138
    %p147 = scmp.eq.s32.totalorder %s22, 0
    %p148 = por %p146, %p147
    %p149 = scmp.ne.s32.totalorder %s137, %s138
    %p150 = scmp.eq.s32.totalorder %s23, 1
    %p151 = por %p149, %p150
    %p153 = scmp.ne.s32.totalorder %s138, %s152
    %p154 = scmp.eq.s32.totalorder %s23, 0
    %p155 = por %p153, %p154
    %s157 = sadd.s32 %s156, 1
    %p160 = scmp.eq.s32.totalorder %s17, 1
    %p161 = scmp.ne.s32.totalorder %s156, %s158
    %p162 = scmp.eq.s32.totalorder %s17, 0
    %p163 = por %p161, %p162
    %p164 = scmp.ne.s32.totalorder %s156, %s158
    %p165 = scmp.eq.s32.totalorder %s22, 1
    %p166 = por %p164, %p165
    %p167 = scmp.ne.s32.totalorder %s158, %s159
    %p168 = scmp.eq.s32.totalorder %s22, 0
    %p169 = por %p167, %p168
    %p170 = scmp.ne.s32.totalorder %s158, %s159
    %p171 = scmp.eq.s32.totalorder %s23, 1
    %p172 = por %p170, %p171
    %p174 = scmp.ne.s32.totalorder %s159, %s173
    %p175 = scmp.eq.s32.totalorder %s23, 0
    %p176 = por %p174, %p175
    %s178 = sadd.s32 %s177, 1
    %p181 = scmp.eq.s32.totalorder %s17, 1
    %p182 = scmp.ne.s32.totalorder %s177, %s179
    %p183 = scmp.eq.s32.totalorder %s17, 0
    %p184 = por %p182, %p183
    %p185 = scmp.ne.s32.totalorder %s177, %s179
    %p186 = scmp.eq.s32.totalorder %s22, 1
    %p187 = por %p185, %p186
    %p188 = scmp.ne.s32.totalorder %s179, %s180
    %p189 = scmp.eq.s32.totalorder %s22, 0
    %p190 = por %p188, %p189
    %p191 = scmp.ne.s32.totalorder %s179, %s180
    %p192 = scmp.eq.s32.totalorder %s23, 1
    %p193 = por %p191, %p192
    %p195 = scmp.ne.s32.totalorder %s180, %s194
    %p196 = scmp.eq.s32.totalorder %s23, 0
    %p197 = por %p195, %p196
    %s199 = sadd.s32 %s198, 1
    %p202 = scmp.eq.s32.totalorder %s17, 1
    %p203 = scmp.ne.s32.totalorder %s198, %s200
    %p204 = scmp.eq.s32.totalorder %s17, 0
    %p205 = por %p203, %p204
    %p206 = scmp.ne.s32.totalorder %s198, %s200
    %p207 = scmp.eq.s32.totalorder %s22, 1
    %p208 = por %p206, %p207
    %p209 = scmp.ne.s32.totalorder %s200, %s201
    %p210 = scmp.eq.s32.totalorder %s22, 0
    %p211 = por %p209, %p210
    %p212 = scmp.ne.s32.totalorder %s200, %s201
    %p213 = scmp.eq.s32.totalorder %s23, 1
    %p214 = por %p212, %p213
    %p216 = scmp.ne.s32.totalorder %s201, %s215
    %p217 = scmp.eq.s32.totalorder %s23, 0
    %p218 = por %p216, %p217
    %s220 = sadd.s32 %s219, 1
    %p223 = scmp.eq.s32.totalorder %s17, 1
    %p224 = scmp.ne.s32.totalorder %s219, %s221
    %p225 = scmp.eq.s32.totalorder %s17, 0
    %p226 = por %p224, %p225
    %p227 = scmp.ne.s32.totalorder %s219, %s221
    %p228 = scmp.eq.s32.totalorder %s22, 1
    %p229 = por %p227, %p228
    %p230 = scmp.ne.s32.totalorder %s221, %s222
    %p231 = scmp.eq.s32.totalorder %s22, 0
    %p232 = por %p230, %p231
    %p233 = scmp.ne.s32.totalorder %s221, %s222
    %p234 = scmp.eq.s32.totalorder %s23, 1
    %p235 = por %p233, %p234
    %p237 = scmp.ne.s32.totalorder %s222, %s236
    %p238 = scmp.eq.s32.totalorder %s23, 0
    %p239 = por %p237, %p238
    %s241 = sadd.s32 %s240, 1
    %p244 = scmp.eq.s32.totalorder %s17, 1
    %p245 = scmp.ne.s32.totalorder %s240, %s242
    %p246 = scmp.eq.s32.totalorder %s17, 0
    %p247 = por %p245, %p246
    %p248 = scmp.ne.s32.totalorder %s240, %s242
    %p249 = scmp.eq.s32.totalorder %s22, 1
    %p250 = por %p248, %p249
    %p251 = scmp.ne.s32.totalorder %s242, %s243
    %p252 = scmp.eq.s32.totalorder %s22, 0
    %p253 = por %p251, %p252
    %p254 = scmp.ne.s32.totalorder %s242, %s243
    %p255 = scmp.eq.s32.totalorder %s23, 1
    %p256 = por %p254, %p255
    %p258 = scmp.ne.s32.totalorder %s243, %s257
    %p259 = scmp.eq.s32.totalorder %s23, 0
    %p260 = por %p258, %p259
    %s261 = ssub.s32 %s17, %s24
    %p262 = scmp.eq.s32.totalorder %s261, 0
    %s264 = sadd.s32 %s263, 1
    %s265 = scalar_select %p262, %s263, %s264
    %p268 = pneg %p262
    %p269 = scmp.eq.s32.totalorder %s17, 1
    %p270 = por %p268, %p269
    %p271 = scmp.ne.s32.totalorder %s263, %s266
    %p272 = scmp.eq.s32.totalorder %s17, 0
    %p273 = por %p271, %p272
    %p274 = scmp.ne.s32.totalorder %s263, %s266
    %p275 = scmp.eq.s32.totalorder %s22, 1
    %p276 = por %p274, %p275
    %p277 = scmp.ne.s32.totalorder %s266, %s267
    %p278 = scmp.eq.s32.totalorder %s22, 0
    %p279 = por %p277, %p278
    %p280 = scmp.ne.s32.totalorder %s266, %s267
    %p281 = scmp.eq.s32.totalorder %s23, 1
    %p282 = por %p280, %p281
    %p284 = scmp.ne.s32.totalorder %s267, %s283
    %p285 = scmp.eq.s32.totalorder %s23, 0
    %p286 = por %p284, %p285
    %p287 = scmp.le.s32.totalorder 1, %s17
    %p288 = scmp.lt.s32.totalorder %s17, 3
    %p289 = pnand %p287, %p288
    %p290 = pneg %p289
    // Predicated region
    $region9: #{encoder_forward.1} parent=5 // pred_check
      _
    $region10: #{encoder_forward.1} parent=5 // pred_check_branch
      %292 = sbr.rel (%p289) target = $region12
    $region11: #{encoder_forward.1} parent=5 // pred_region
      %s293 = ssub.s32 %s17, 1
      // Predicated region
      $region13: #{encoder_forward.1} parent=11 // pred_check
        %p294 = pneg %p64
      $region14: #{encoder_forward.1} parent=11 // pred_check_branch
        %296 = sbr.rel (%p294) target = $region16
      $region15: #{encoder_forward.1} parent=11 // pred_region
        _
      $region16: #{encoder_forward.1} parent=11 // pred_fallthru
        _
      // Predicated region
      $region17: #{encoder_forward.1} parent=11 // pred_check
        %p297 = pneg %p85
      $region18: #{encoder_forward.1} parent=11 // pred_check_branch
        %299 = sbr.rel (%p297) target = $region20
      $region19: #{encoder_forward.1} parent=11 // pred_region
        _
      $region20: #{encoder_forward.1} parent=11 // pred_fallthru
        _
      // Predicated region
      $region21: #{encoder_forward.1} parent=11 // pred_check
        %p300 = pneg %p106
      $region22: #{encoder_forward.1} parent=11 // pred_check_branch
        %302 = sbr.rel (%p300) target = $region24
      $region23: #{encoder_forward.1} parent=11 // pred_region
        _
      $region24: #{encoder_forward.1} parent=11 // pred_fallthru
        _
      // Predicated region
      $region25: #{encoder_forward.1} parent=11 // pred_check
        %p303 = pneg %p127
      $region26: #{encoder_forward.1} parent=11 // pred_check_branch
        %305 = sbr.rel (%p303) target = $region28
      $region27: #{encoder_forward.1} parent=11 // pred_region
        _
      $region28: #{encoder_forward.1} parent=11 // pred_fallthru
        _
      // Predicated region
      $region29: #{encoder_forward.1} parent=11 // pred_check
        %p306 = pneg %p148
      $region30: #{encoder_forward.1} parent=11 // pred_check_branch
        %308 = sbr.rel (%p306) target = $region32
      $region31: #{encoder_forward.1} parent=11 // pred_region
        _
      $region32: #{encoder_forward.1} parent=11 // pred_fallthru
        _
      // Predicated region
      $region33: #{encoder_forward.1} parent=11 // pred_check
        %p309 = pneg %p169
      $region34: #{encoder_forward.1} parent=11 // pred_check_branch
        %311 = sbr.rel (%p309) target = $region36
      $region35: #{encoder_forward.1} parent=11 // pred_region
        _
      $region36: #{encoder_forward.1} parent=11 // pred_fallthru
        _
      // Predicated region
      $region37: #{encoder_forward.1} parent=11 // pred_check
        %p312 = pneg %p190
      $region38: #{encoder_forward.1} parent=11 // pred_check_branch
        %314 = sbr.rel (%p312) target = $region40
      $region39: #{encoder_forward.1} parent=11 // pred_region
        _
      $region40: #{encoder_forward.1} parent=11 // pred_fallthru
        _
      // Predicated region
      $region41: #{encoder_forward.1} parent=11 // pred_check
        %p315 = pneg %p211
      $region42: #{encoder_forward.1} parent=11 // pred_check_branch
        %317 = sbr.rel (%p315) target = $region44
      $region43: #{encoder_forward.1} parent=11 // pred_region
        _
      $region44: #{encoder_forward.1} parent=11 // pred_fallthru
        _
      // Predicated region
      $region45: #{encoder_forward.1} parent=11 // pred_check
        %p318 = pneg %p232
      $region46: #{encoder_forward.1} parent=11 // pred_check_branch
        %320 = sbr.rel (%p318) target = $region48
      $region47: #{encoder_forward.1} parent=11 // pred_region
        _
      $region48: #{encoder_forward.1} parent=11 // pred_fallthru
        _
      // Predicated region
      $region49: #{encoder_forward.1} parent=11 // pred_check
        %p321 = pneg %p253
      $region50: #{encoder_forward.1} parent=11 // pred_check_branch
        %323 = sbr.rel (%p321) target = $region52
      $region51: #{encoder_forward.1} parent=11 // pred_region
        _
      $region52: #{encoder_forward.1} parent=11 // pred_fallthru
        _
    $region12: #{encoder_forward.1} parent=5 // pred_fallthru
      _
    %p324 = scmp.lt.s32.totalorder %s17, 2
    // Predicated region
    $region53: #{encoder_forward.1} parent=5 // pred_check
      %p325 = pneg %p324
    $region54: #{encoder_forward.1} parent=5 // pred_check_branch
      %327 = sbr.rel (%p325) target = $region56
    $region55: #{encoder_forward.1} parent=5 // pred_region
      // Predicated region
      $region57: #{encoder_forward.1} parent=55 // pred_check
        %p328 = pneg %p37
      $region58: #{encoder_forward.1} parent=55 // pred_check_branch
        %330 = sbr.rel (%p328) target = $region60
      $region59: #{encoder_forward.1} parent=55 // pred_region
        %p331 = scmp.lt.s32.totalorder %s17, 1
        %s332 = scalar_select %p331, %s17, 1
        %s333 = smul.addr %s332, 25
        %s334 = smul.addr %s333, 4
        %s335 = scalar_lea.vmem %s0, %s334
      $region60: #{encoder_forward.1} parent=55 // pred_fallthru
        _
    $region56: #{encoder_forward.1} parent=5 // pred_fallthru
      _
    %p336 = scmp.le.s32.totalorder 1, %s17
    %p337 = scmp.lt.s32.totalorder %s17, 3
    %p338 = pnand %p336, %p337
    %p339 = pneg %p338
    // Predicated region
    $region61: #{encoder_forward.1} parent=5 // pred_check
      _
    $region62: #{encoder_forward.1} parent=5 // pred_check_branch
      %341 = sbr.rel (%p338) target = $region64
    $region63: #{encoder_forward.1} parent=5 // pred_region
      %s342 = ssub.s32 %s17, 1
      %p343 = scmp.lt.s32.totalorder %s22, 1
      %s344 = scalar_select %p343, %s22, 1
      %s345 = smul.addr %s344, 25
      %s346 = smul.addr %s345, 4
      %s347 = scalar_lea.vmem %s0, %s346
      %p348 = pneg %p43
      %p349 = pneg %p40
      %p350 = pneg %p64
      %p351 = pneg %p61
      %p352 = pneg %p85
      %p353 = pneg %p82
      %p354 = pneg %p106
      %p355 = pneg %p103
      %p356 = pneg %p127
      %p357 = pneg %p124
      %p358 = pneg %p148
      %p359 = pneg %p145
      %p360 = pneg %p169
      %p361 = pneg %p166
      %p362 = pneg %p190
      %p363 = pneg %p187
      %p364 = pneg %p211
      %p365 = pneg %p208
      %p366 = pneg %p232
      %p367 = pneg %p229
      %p368 = pneg %p253
      %p369 = pneg %p250
      %p370 = pneg %p279
      %p371 = pneg %p276
      %p372 = scmp.lt.s32.totalorder %s22, 1
      %s373 = scalar_select %p372, %s22, 1
      %s374 = scalar_lea.vmem %s11, %s373
      %p375 = scmp.lt.s32.totalorder %s22, 1
      %s376 = scalar_select %p375, %s22, 1
      %s377 = smul.addr %s376, 25
      %s378 = smul.addr %s377, 4
      %s379 = scalar_lea.vmem %s0, %s378
      %p380 = scmp.lt.s32.totalorder %s22, 1
      %s381 = scalar_select %p380, %s22, 1
      %s382 = scalar_lea.vmem %s11, %s381
      %v384 = vld [vmem:[%s379] sm:$0xf]
      %v385 = vld [vmem:[%s379 + $0x4] sm:$0xf]
      %v386 = vld [vmem:[%s379 + $0x8] sm:$0xf]
      %v387 = vld [vmem:[%s379 + $0xc] sm:$0xf]
      %v388 = vld [vmem:[%s379 + $0x10] sm:$0xf]
      %v389 = vld [vmem:[%s379 + $0x14] sm:$0xf]
      %v390 = vld [vmem:[%s379 + $0x18] sm:$0xf]
      %v391 = vld [vmem:[%s379 + $0x1c] sm:$0xf]
      %v392 = vld [vmem:[%s379 + $0x20] sm:$0xf]
      %v393 = vld [vmem:[%s379 + $0x24] sm:$0xf]
      %v394 = vld [vmem:[%s379 + $0x28] sm:$0xf]
      %v395 = vld [vmem:[%s379 + $0x2c] sm:$0xf]
      %v396 = vld [vmem:[%s379 + $0x30] sm:$0xf]
      %v397 = vld [vmem:[%s379 + $0x34] sm:$0xf]
      %v398 = vld [vmem:[%s379 + $0x38] sm:$0xf]
      %v399 = vld [vmem:[%s379 + $0x3c] sm:$0xf]
      %v400 = vld [vmem:[%s379 + $0x40] sm:$0xf]
      %v401 = vld [vmem:[%s379 + $0x44] sm:$0xf]
      %v402 = vld [vmem:[%s379 + $0x48] sm:$0xf]
      %v403 = vld [vmem:[%s379 + $0x4c] sm:$0xf]
      %v404 = vld [vmem:[%s379 + $0x50] sm:$0xf]
      %v405 = vld [vmem:[%s379 + $0x54] sm:$0xf]
      %v406 = vld [vmem:[%s379 + $0x58] sm:$0xf]
      %v407 = vld [vmem:[%s379 + $0x5c] sm:$0xf]
      %v408 = vld [vmem:[%s379 + $0x60] sm:$0x3]
      %v409 = vld [vmem:[%s1] sm:$0xf]
      %v410 = vld [vmem:[%s1 + $0x4] sm:$0xf]
      %v411 = vld [vmem:[%s2] sm:$0x1]
      %v413 = vlaneseq
      %v414 = vshrl.u32 %v413, 7
      %v415 = vsub.s32 0, %v414
      %v416 = vrot.slane %v411, %v415
      %v443 = vunpack.c.l.b16 %v384
      %v444 = vunpack.c.l.b16 %v385
      %v445 = vunpack.c.l.b16 %v386
      %v446 = vunpack.c.l.b16 %v387
      %v447 = vunpack.c.l.b16 %v388
      %v448 = vunpack.c.l.b16 %v389
      %v449 = vunpack.c.l.b16 %v390
      %v450 = vunpack.c.l.b16 %v391
      %v451 = vunpack.c.l.b16 %v392
      %v452 = vunpack.c.l.b16 %v393
      %v453 = vunpack.c.l.b16 %v394
      %v454 = vunpack.c.l.b16 %v395
      %v455 = vunpack.c.l.b16 %v396
      %v456 = vunpack.c.l.b16 %v397
      %v457 = vunpack.c.l.b16 %v398
      %v458 = vunpack.c.l.b16 %v399
      %v459 = vunpack.c.l.b16 %v400
      %v460 = vunpack.c.l.b16 %v401
      %v461 = vunpack.c.l.b16 %v402
      %v462 = vunpack.c.l.b16 %v403
      %v463 = vunpack.c.l.b16 %v404
      %v464 = vunpack.c.l.b16 %v405
      %v465 = vunpack.c.l.b16 %v406
      %v466 = vunpack.c.l.b16 %v407
      %v467 = vunpack.c.l.b16 %v408
      %v468 = vpack.c.b16 %v444, %v443
      %v469 = vpack.c.b16 %v446, %v445
      %v470 = vpack.c.b16 %v448, %v447
      %v471 = vpack.c.b16 %v450, %v449
      %v472 = vpack.c.b16 %v452, %v451
      %v473 = vpack.c.b16 %v454, %v453
      %v474 = vpack.c.b16 %v456, %v455
      %v475 = vpack.c.b16 %v458, %v457
      %v476 = vpack.c.b16 %v460, %v459
      %v477 = vpack.c.b16 %v462, %v461
      %v478 = vpack.c.b16 %v464, %v463
      %v479 = vpack.c.b16 %v466, %v465
      %v480 = vpack.c.b16 %v467, %v467
      %v483 = vunpack.c.l.b16 %v409
      %v484 = vunpack.c.l.b16 %v410
      %v485 = vpack.c.b16 %v484, %v483
      %vm487 = vcmask 130048
      %v489 = vsel %vm487, %v468, 0
      %v492 = vsel %vm487, %v469, 0
      %v495 = vsel %vm487, %v470, 0
      %v498 = vsel %vm487, %v471, 0
      %v501 = vsel %vm487, %v472, 0
      %v504 = vsel %vm487, %v473, 0
      %v507 = vsel %vm487, %v474, 0
      %v510 = vsel %vm487, %v475, 0
      %v513 = vsel %vm487, %v476, 0
      %v516 = vsel %vm487, %v477, 0
      %v519 = vsel %vm487, %v478, 0
      %v522 = vsel %vm487, %v479, 0
      %v525 = vsel %vm487, %v480, 0
      %527 = vmatprep.subr.bf16.mxu0 0
      %528 = vmatpush1.bf16.msra.mxu0 %v485
      %529 = vmatprep.subr.bf16.mxu0 0
      %530 = vmatpush1.bf16.msra.mxu0 0
      %531 = vmatprep.subr.bf16.mxu0 0
      %532 = vmatpush1.bf16.msra.mxu0 0
      %533 = vmatprep.subr.bf16.mxu0 0
      %534 = vmatpush1.bf16.msra.mxu0 0
      %535 = vmatprep.subr.bf16.mxu0 0
      %536 = vmatpush1.bf16.msra.mxu0 0
      %537 = vmatprep.subr.bf16.mxu0 0
      %538 = vmatpush1.bf16.msra.mxu0 0
      %539 = vmatprep.subr.bf16.mxu0 0
      %540 = vmatpush1.bf16.msra.mxu0 0
      %541 = vmatprep.subr.bf16.mxu0 0
      %542 = vmatpush1.bf16.msra.mxu0 0
      %543 = vmatprep.subr.bf16.mxu0 0
      %544 = vmatpush1.bf16.msra.mxu0 0
      %545 = vmatprep.subr.bf16.mxu0 0
      %546 = vmatpush1.bf16.msra.mxu0 0
      %547 = vmatprep.subr.bf16.mxu0 0
      %548 = vmatpush1.bf16.msra.mxu0 0
      %549 = vmatprep.subr.bf16.mxu0 0
      %550 = vmatpush1.bf16.msra.mxu0 0
      %551 = vmatprep.subr.bf16.mxu0 0
      %552 = vmatpush1.bf16.msra.mxu0 0
      %553 = vmatprep.subr.bf16.mxu0 0
      %554 = vmatpush1.bf16.msra.mxu0 0
      %555 = vmatprep.subr.bf16.mxu0 0
      %556 = vmatpush1.bf16.msra.mxu0 0
      %557 = vmatprep.subr.bf16.mxu0 0
      %558 = vmatpush1.bf16.msra.mxu0 0
      %559 = vmatprep.mubr.bf16.mxu0 0
      %560 = vmatmul.mubr.bf16.gmra.mrb[0].mxu0 %v489
      %v561 = vpop.f32.mrb[0].mxu0
      %v562 = vadd.f32 %v416, %v561
      %v563 = vpop.f32.mrb[0].mxu0
      %v564 = vpop.f32.mrb[0].mxu0
      %v565 = vadd.f32 %v416, %v564
      %v566 = vpop.f32.mrb[0].mxu0
      %567 = vmatprep.mubr.bf16.mxu0 0
      %568 = vmatmul.mubr.bf16.gmra.mrb[0].mxu0 %v492
      %v569 = vpop.f32.mrb[0].mxu0
      %v570 = vadd.f32 %v416, %v569
      %v571 = vpop.f32.mrb[0].mxu0
      %v572 = vpop.f32.mrb[0].mxu0
      %v573 = vadd.f32 %v416, %v572
      %v574 = vpop.f32.mrb[0].mxu0
      %575 = vmatprep.mubr.bf16.mxu0 0
      %576 = vmatmul.mubr.bf16.gmra.mrb[0].mxu0 %v495
      %v577 = vpop.f32.mrb[0].mxu0
      %v578 = vadd.f32 %v416, %v577
      %v579 = vpop.f32.mrb[0].mxu0
      %v580 = vpop.f32.mrb[0].mxu0
      %v581 = vadd.f32 %v416, %v580
      %v582 = vpop.f32.mrb[0].mxu0
      %583 = vmatprep.mubr.bf16.mxu0 0
      %584 = vmatmul.mubr.bf16.gmra.mrb[0].mxu0 %v498
      %v585 = vpop.f32.mrb[0].mxu0
      %v586 = vadd.f32 %v416, %v585
      %v587 = vpop.f32.mrb[0].mxu0
      %v588 = vpop.f32.mrb[0].mxu0
      %v589 = vadd.f32 %v416, %v588
      %v590 = vpop.f32.mrb[0].mxu0
      %591 = vmatprep.mubr.bf16.mxu0 0
      %592 = vmatmul.mubr.bf16.gmra.mrb[0].mxu0 %v501
      %v593 = vpop.f32.mrb[0].mxu0
      %v594 = vadd.f32 %v416, %v593
      %v595 = vpop.f32.mrb[0].mxu0
      %v596 = vpop.f32.mrb[0].mxu0
      %v597 = vadd.f32 %v416, %v596
      %v598 = vpop.f32.mrb[0].mxu0
      %599 = vmatprep.mubr.bf16.mxu0 0
      %600 = vmatmul.mubr.bf16.gmra.mrb[0].mxu0 %v504
      %v601 = vpop.f32.mrb[0].mxu0
      %v602 = vadd.f32 %v416, %v601
      %v603 = vpop.f32.mrb[0].mxu0
      %v604 = vpop.f32.mrb[0].mxu0
      %v605 = vadd.f32 %v416, %v604
      %v606 = vpop.f32.mrb[0].mxu0
      %607 = vmatprep.mubr.bf16.mxu0 0
      %608 = vmatmul.mubr.bf16.gmra.mrb[0].mxu0 %v507
      %v609 = vpop.f32.mrb[0].mxu0
      %v610 = vadd.f32 %v416, %v609
      %v611 = vpop.f32.mrb[0].mxu0
      %v612 = vpop.f32.mrb[0].mxu0
      %v613 = vadd.f32 %v416, %v612
      %v614 = vpop.f32.mrb[0].mxu0
      %615 = vmatprep.mubr.bf16.mxu0 0
      %616 = vmatmul.mubr.bf16.gmra.mrb[0].mxu0 %v510
      %v617 = vpop.f32.mrb[0].mxu0
      %v618 = vadd.f32 %v416, %v617
      %v619 = vpop.f32.mrb[0].mxu0
      %v620 = vpop.f32.mrb[0].mxu0
      %v621 = vadd.f32 %v416, %v620
      %v622 = vpop.f32.mrb[0].mxu0
      %623 = vmatprep.mubr.bf16.mxu0 0
      %624 = vmatmul.mubr.bf16.gmra.mrb[0].mxu0 %v513
      %v625 = vpop.f32.mrb[0].mxu0
      %v626 = vadd.f32 %v416, %v625
      %v627 = vpop.f32.mrb[0].mxu0
      %v628 = vpop.f32.mrb[0].mxu0
      %v629 = vadd.f32 %v416, %v628
      %v630 = vpop.f32.mrb[0].mxu0
      %631 = vmatprep.mubr.bf16.mxu0 0
      %632 = vmatmul.mubr.bf16.gmra.mrb[0].mxu0 %v516
      %v633 = vpop.f32.mrb[0].mxu0
      %v634 = vadd.f32 %v416, %v633
      %v635 = vpop.f32.mrb[0].mxu0
      %v636 = vpop.f32.mrb[0].mxu0
      %v637 = vadd.f32 %v416, %v636
      %v638 = vpop.f32.mrb[0].mxu0
      %639 = vmatprep.mubr.bf16.mxu0 0
      %640 = vmatmul.mubr.bf16.gmra.mrb[0].mxu0 %v519
      %v641 = vpop.f32.mrb[0].mxu0
      %v642 = vadd.f32 %v416, %v641
      %v643 = vpop.f32.mrb[0].mxu0
      %v644 = vpop.f32.mrb[0].mxu0
      %v645 = vadd.f32 %v416, %v644
      %v646 = vpop.f32.mrb[0].mxu0
      %647 = vmatprep.mubr.bf16.mxu0 0
      %648 = vmatmul.mubr.bf16.gmra.mrb[0].mxu0 %v522
      %v649 = vpop.f32.mrb[0].mxu0
      %v650 = vadd.f32 %v416, %v649
      %v651 = vpop.f32.mrb[0].mxu0
      %v652 = vpop.f32.mrb[0].mxu0
      %v653 = vadd.f32 %v416, %v652
      %v654 = vpop.f32.mrb[0].mxu0
      %655 = vmatprep.mubr.bf16.mxu0 0
      %656 = vmatmul.mubr.bf16.gmra.mrb[0].mxu0 %v525
      %v657 = vpop.f32.mrb[0].mxu0
      %v658 = vadd.f32 %v416, %v657
      %v659 = vpop.f32.mrb[0].mxu0
      %v660 = vpop.f32.mrb[0].mxu0
      %v661 = vpop.f32.mrb[0].mxu0
      %662 = vdwg.mxu0
      %v663 = vmax.f32 %v562, 0.0
      %v664 = vmax.f32 %v565, 0.0
      %v665 = vmax.f32 %v570, 0.0
      %v666 = vmax.f32 %v573, 0.0
      %v667 = vmax.f32 %v578, 0.0
      %v668 = vmax.f32 %v581, 0.0
      %v669 = vmax.f32 %v586, 0.0
      %v670 = vmax.f32 %v589, 0.0
      %v671 = vmax.f32 %v594, 0.0
      %v672 = vmax.f32 %v597, 0.0
      %v673 = vmax.f32 %v602, 0.0
      %v674 = vmax.f32 %v605, 0.0
      %v675 = vmax.f32 %v610, 0.0
      %v676 = vmax.f32 %v613, 0.0
      %v677 = vmax.f32 %v618, 0.0
      %v678 = vmax.f32 %v621, 0.0
      %v679 = vmax.f32 %v626, 0.0
      %v680 = vmax.f32 %v629, 0.0
      %v681 = vmax.f32 %v634, 0.0
      %v682 = vmax.f32 %v637, 0.0
      %v683 = vmax.f32 %v642, 0.0
      %v684 = vmax.f32 %v645, 0.0
      %v685 = vmax.f32 %v650, 0.0
      %v686 = vmax.f32 %v653, 0.0
      %v687 = vmax.f32 %v658, 0.0
      %v688 = vpack.c.bf16 %v664, %v663
      %v689 = vpack.c.bf16 %v666, %v665
      %v690 = vpack.c.bf16 %v668, %v667
      %v691 = vpack.c.bf16 %v670, %v669
      %v692 = vpack.c.bf16 %v672, %v671
      %v693 = vpack.c.bf16 %v674, %v673
      %v694 = vpack.c.bf16 %v676, %v675
      %v695 = vpack.c.bf16 %v678, %v677
      %v696 = vpack.c.bf16 %v680, %v679
      %v697 = vpack.c.bf16 %v682, %v681
      %v698 = vpack.c.bf16 %v684, %v683
      %v699 = vpack.c.bf16 %v686, %v685
      %v700 = vpack.c.bf16 %v687, %v687
      %v701 = vld [vmem:[%s3] sm:$0xff]
      %v702 = vld [vmem:[%s3 + $0x8] sm:$0xff]
      %v703 = vld [vmem:[%s3 + $0x10] sm:$0xff]
      %v704 = vld [vmem:[%s3 + $0x18] sm:$0xff]
      %v705 = vld [vmem:[%s3 + $0x20] sm:$0xff]
      %v706 = vld [vmem:[%s3 + $0x28] sm:$0xff]
      %v707 = vld [vmem:[%s3 + $0x30] sm:$0xff]
      %v708 = vld [vmem:[%s3 + $0x38] sm:$0xff]
      %v709 = vld [vmem:[%s3 + $0x40] sm:$0xff]
      %v710 = vld [vmem:[%s3 + $0x48] sm:$0xff]
      %v711 = vld [vmem:[%s3 + $0x50] sm:$0xff]
      %v712 = vld [vmem:[%s3 + $0x58] sm:$0xff]
      %v713 = vld [vmem:[%s3 + $0x60] sm:$0xff]
      %v714 = vld [vmem:[%s3 + $0x68] sm:$0xff]
      %v715 = vld [vmem:[%s3 + $0x70] sm:$0xff]
      %v716 = vld [vmem:[%s3 + $0x78] sm:$0xff]
      %v717 = vld [vmem:[%s3 + $0x80] sm:$0xff]
      %v718 = vld [vmem:[%s3 + $0x88] sm:$0xff]
      %v719 = vld [vmem:[%s3 + $0x90] sm:$0xff]
      %v720 = vld [vmem:[%s3 + $0x98] sm:$0xff]
      %v721 = vld [vmem:[%s3 + $0xa0] sm:$0xff]
      %v722 = vld [vmem:[%s3 + $0xa8] sm:$0xff]
      %v723 = vld [vmem:[%s3 + $0xb0] sm:$0xff]
      %v724 = vld [vmem:[%s3 + $0xb8] sm:$0xff]
      %v725 = vld [vmem:[%s3 + $0xc0] sm:$0xff]
      %v726 = vld [vmem:[%s3 + $0xc8] sm:$0xff]
      %v727 = vld [vmem:[%s3 + $0xd0] sm:$0xff]
      %v728 = vld [vmem:[%s3 + $0xd8] sm:$0xff]
      %v729 = vld [vmem:[%s3 + $0xe0] sm:$0xff]
      %v730 = vld [vmem:[%s3 + $0xe8] sm:$0xff]
      %v731 = vld [vmem:[%s3 + $0xf0] sm:$0xff]
      %v732 = vld [vmem:[%s3 + $0xf8] sm:$0xff]
      %v733 = vld [vmem:[%s3 + $0x100] sm:$0xff]
      %v734 = vld [vmem:[%s3 + $0x108] sm:$0xff]
      %v735 = vld [vmem:[%s3 + $0x110] sm:$0xff]
      %v736 = vld [vmem:[%s3 + $0x118] sm:$0xff]
      %v737 = vld [vmem:[%s3 + $0x120] sm:$0xff]
      %v738 = vld [vmem:[%s3 + $0x128] sm:$0xff]
      %v739 = vld [vmem:[%s3 + $0x130] sm:$0xff]
      %v740 = vld [vmem:[%s3 + $0x138] sm:$0xff]
      %v741 = vld [vmem:[%s3 + $0x140] sm:$0xff]
      %v742 = vld [vmem:[%s3 + $0x148] sm:$0xff]
      %v743 = vld [vmem:[%s3 + $0x150] sm:$0xff]
      %v744 = vld [vmem:[%s3 + $0x158] sm:$0xff]
      %v745 = vld [vmem:[%s3 + $0x160] sm:$0xff]
      %v746 = vld [vmem:[%s3 + $0x168] sm:$0xff]
      %v747 = vld [vmem:[%s3 + $0x170] sm:$0xff]
      %v748 = vld [vmem:[%s3 + $0x178] sm:$0xff]
      %v749 = vld [vmem:[%s3 + $0x180] sm:$0xff]
      %v750 = vld [vmem:[%s3 + $0x188] sm:$0xff]
      %v751 = vld [vmem:[%s3 + $0x190] sm:$0xff]
      %v752 = vld [vmem:[%s3 + $0x198] sm:$0xff]
      %v753 = vld [vmem:[%s3 + $0x1a0] sm:$0xff]
      %v754 = vld [vmem:[%s3 + $0x1a8] sm:$0xff]
      %v755 = vld [vmem:[%s3 + $0x1b0] sm:$0xff]
      %v756 = vld [vmem:[%s3 + $0x1b8] sm:$0xff]
      %v757 = vld [vmem:[%s3 + $0x1c0] sm:$0xff]
      %v758 = vld [vmem:[%s3 + $0x1c8] sm:$0xff]
      %v759 = vld [vmem:[%s3 + $0x1d0] sm:$0xff]
      %v760 = vld [vmem:[%s3 + $0x1d8] sm:$0xff]
      %v761 = vld [vmem:[%s3 + $0x1e0] sm:$0xff]
      %v762 = vld [vmem:[%s3 + $0x1e8] sm:$0xff]
      %v763 = vld [vmem:[%s3 + $0x1f0] sm:$0xff]
      %v764 = vld [vmem:[%s3 + $0x1f8] sm:$0xff]
      %v765 = vld [vmem:[%s3 + $0x200] sm:$0xff]
      %v766 = vld [vmem:[%s3 + $0x208] sm:$0xff]
      %v767 = vld [vmem:[%s3 + $0x210] sm:$0xff]
      %v768 = vld [vmem:[%s3 + $0x218] sm:$0xff]
      %v769 = vld [vmem:[%s3 + $0x220] sm:$0xff]
      %v770 = vld [vmem:[%s3 + $0x228] sm:$0xff]
      %v771 = vld [vmem:[%s3 + $0x230] sm:$0xff]
      %v772 = vld [vmem:[%s3 + $0x238] sm:$0xff]
      %v773 = vld [vmem:[%s3 + $0x240] sm:$0xff]
      %v774 = vld [vmem:[%s3 + $0x248] sm:$0xff]
      %v775 = vld [vmem:[%s3 + $0x250] sm:$0xff]
      %v776 = vld [vmem:[%s3 + $0x258] sm:$0xff]
      %v777 = vld [vmem:[%s3 + $0x260] sm:$0xff]
      %v778 = vld [vmem:[%s3 + $0x268] sm:$0xff]
      %v779 = vld [vmem:[%s3 + $0x270] sm:$0xff]
      %v780 = vld [vmem:[%s3 + $0x278] sm:$0xff]
      %v781 = vld [vmem:[%s3 + $0x280] sm:$0xff]
      %v782 = vld [vmem:[%s3 + $0x288] sm:$0xff]
      %v783 = vld [vmem:[%s3 + $0x290] sm:$0xff]
      %v784 = vld [vmem:[%s3 + $0x298] sm:$0xff]
      %v785 = vld [vmem:[%s3 + $0x2a0] sm:$0xff]
      %v786 = vld [vmem:[%s3 + $0x2a8] sm:$0xff]
      %v787 = vld [vmem:[%s3 + $0x2b0] sm:$0xff]
      %v788 = vld [vmem:[%s3 + $0x2b8] sm:$0xff]
      %v789 = vld [vmem:[%s3 + $0x2c0] sm:$0xff]
      %v790 = vld [vmem:[%s3 + $0x2c8] sm:$0xff]
      %v791 = vld [vmem:[%s3 + $0x2d0] sm:$0xff]
      %v792 = vld [vmem:[%s3 + $0x2d8] sm:$0xff]
      %v793 = vld [vmem:[%s3 + $0x2e0] sm:$0xff]
      %v794 = vld [vmem:[%s3 + $0x2e8] sm:$0xff]
      %v795 = vld [vmem:[%s3 + $0x2f0] sm:$0xff]
      %v796 = vld [vmem:[%s3 + $0x2f8] sm:$0xff]
      %v797 = vld [vmem:[%s3 + $0x300] sm:$0xff]
      %v798 = vld [vmem:[%s3 + $0x308] sm:$0xff]
      %v897 = vunpack.c.l.b16 %v701
      %v898 = vunpack.c.h.b16 %v701
      %v899 = vunpack.c.l.b16 %v702
      %v900 = vunpack.c.h.b16 %v702
      %v901 = vunpack.c.l.b16 %v703
      %v902 = vunpack.c.h.b16 %v703
      %v903 = vunpack.c.l.b16 %v704
      %v904 = vunpack.c.h.b16 %v704
      %v905 = vunpack.c.l.b16 %v705
      %v906 = vunpack.c.h.b16 %v705
      %v907 = vunpack.c.l.b16 %v706
      %v908 = vunpack.c.h.b16 %v706
      %v909 = vunpack.c.l.b16 %v707
      %v910 = vunpack.c.h.b16 %v707
      %v911 = vunpack.c.l.b16 %v708
      %v912 = vunpack.c.h.b16 %v708
      %v913 = vunpack.c.l.b16 %v709
      %v914 = vunpack.c.h.b16 %v709
      %v915 = vunpack.c.l.b16 %v710
      %v916 = vunpack.c.h.b16 %v710
      %v917 = vunpack.c.l.b16 %v711
      %v918 = vunpack.c.h.b16 %v711
      %v919 = vunpack.c.l.b16 %v712
      %v920 = vunpack.c.h.b16 %v712
      %v921 = vunpack.c.l.b16 %v713
      %v922 = vunpack.c.h.b16 %v713
      %v923 = vunpack.c.l.b16 %v714
      %v924 = vunpack.c.h.b16 %v714
      %v925 = vunpack.c.l.b16 %v715
      %v926 = vunpack.c.h.b16 %v715
      %v927 = vunpack.c.l.b16 %v716
      %v928 = vunpack.c.h.b16 %v716
      %v929 = vunpack.c.l.b16 %v717
      %v930 = vunpack.c.h.b16 %v717
      %v931 = vunpack.c.l.b16 %v718
      %v932 = vunpack.c.h.b16 %v718
      %v933 = vunpack.c.l.b16 %v719
      %v934 = vunpack.c.h.b16 %v719
      %v935 = vunpack.c.l.b16 %v720
      %v936 = vunpack.c.h.b16 %v720
      %v937 = vunpack.c.l.b16 %v721
      %v938 = vunpack.c.h.b16 %v721
      %v939 = vunpack.c.l.b16 %v722
      %v940 = vunpack.c.h.b16 %v722
      %v941 = vunpack.c.l.b16 %v723
      %v942 = vunpack.c.h.b16 %v723
      %v943 = vunpack.c.l.b16 %v724
      %v944 = vunpack.c.h.b16 %v724
      %v945 = vunpack.c.l.b16 %v725
      %v946 = vunpack.c.h.b16 %v725
      %v947 = vunpack.c.l.b16 %v726
      %v948 = vunpack.c.h.b16 %v726
      %v949 = vunpack.c.l.b16 %v727
      %v950 = vunpack.c.h.b16 %v727
      %v951 = vunpack.c.l.b16 %v728
      %v952 = vunpack.c.h.b16 %v728
      %v953 = vunpack.c.l.b16 %v729
      %v954 = vunpack.c.h.b16 %v729
      %v955 = vunpack.c.l.b16 %v730
      %v956 = vunpack.c.h.b16 %v730
      %v957 = vunpack.c.l.b16 %v731
      %v958 = vunpack.c.h.b16 %v731
      %v959 = vunpack.c.l.b16 %v732
      %v960 = vunpack.c.h.b16 %v732
      %v961 = vunpack.c.l.b16 %v733
      %v962 = vunpack.c.h.b16 %v733
      %v963 = vunpack.c.l.b16 %v734
      %v964 = vunpack.c.h.b16 %v734
      %v965 = vunpack.c.l.b16 %v735
      %v966 = vunpack.c.h.b16 %v735
      %v967 = vunpack.c.l.b16 %v736
      %v968 = vunpack.c.h.b16 %v736
      %v969 = vunpack.c.l.b16 %v737
      %v970 = vunpack.c.h.b16 %v737
      %v971 = vunpack.c.l.b16 %v738
      %v972 = vunpack.c.h.b16 %v738
      %v973 = vunpack.c.l.b16 %v739
      %v974 = vunpack.c.h.b16 %v739
      %v975 = vunpack.c.l.b16 %v740
      %v976 = vunpack.c.h.b16 %v740
      %v977 = vunpack.c.l.b16 %v741
      %v978 = vunpack.c.h.b16 %v741
      %v979 = vunpack.c.l.b16 %v742
      %v980 = vunpack.c.h.b16 %v742
      %v981 = vunpack.c.l.b16 %v743
      %v982 = vunpack.c.h.b16 %v743
      %v983 = vunpack.c.l.b16 %v744
      %v984 = vunpack.c.h.b16 %v744
      %v985 = vunpack.c.l.b16 %v745
      %v986 = vunpack.c.h.b16 %v745
      %v987 = vunpack.c.l.b16 %v746
      %v988 = vunpack.c.h.b16 %v746
      %v989 = vunpack.c.l.b16 %v747
      %v990 = vunpack.c.h.b16 %v747
      %v991 = vunpack.c.l.b16 %v748
      %v992 = vunpack.c.h.b16 %v748
      %v993 = vunpack.c.l.b16 %v749
      %v994 = vunpack.c.h.b16 %v749
      %v995 = vunpack.c.l.b16 %v750
      %v996 = vunpack.c.h.b16 %v750
      %v997 = vunpack.c.l.b16 %v751
      %v998 = vunpack.c.h.b16 %v751
      %v999 = vunpack.c.l.b16 %v752
      %v1000 = vunpack.c.h.b16 %v752
      %v1001 = vunpack.c.l.b16 %v753
      %v1002 = vunpack.c.h.b16 %v753
      %v1003 = vunpack.c.l.b16 %v754
      %v1004 = vunpack.c.h.b16 %v754
      %v1005 = vunpack.c.l.b16 %v755
      %v1006 = vunpack.c.h.b16 %v755
      %v1007 = vunpack.c.l.b16 %v756
      %v1008 = vunpack.c.h.b16 %v756
      %v1009 = vunpack.c.l.b16 %v757
      %v1010 = vunpack.c.h.b16 %v757
      %v1011 = vunpack.c.l.b16 %v758
      %v1012 = vunpack.c.h.b16 %v758
      %v1013 = vunpack.c.l.b16 %v759
      %v1014 = vunpack.c.h.b16 %v759
      %v1015 = vunpack.c.l.b16 %v760
      %v1016 = vunpack.c.h.b16 %v760
      %v1017 = vunpack.c.l.b16 %v761
      %v1018 = vunpack.c.h.b16 %v761
      %v1019 = vunpack.c.l.b16 %v762
      %v1020 = vunpack.c.h.b16 %v762
      %v1021 = vunpack.c.l.b16 %v763
      %v1022 = vunpack.c.h.b16 %v763
      %v1023 = vunpack.c.l.b16 %v764
      %v1024 = vunpack.c.h.b16 %v764
      %v1025 = vunpack.c.l.b16 %v765
      %v1026 = vunpack.c.h.b16 %v765
      %v1027 = vunpack.c.l.b16 %v766
      %v1028 = vunpack.c.h.b16 %v766
      %v1029 = vunpack.c.l.b16 %v767
      %v1030 = vunpack.c.h.b16 %v767
      %v1031 = vunpack.c.l.b16 %v768
      %v1032 = vunpack.c.h.b16 %v768
      %v1033 = vunpack.c.l.b16 %v769
      %v1034 = vunpack.c.h.b16 %v769
      %v1035 = vunpack.c.l.b16 %v770
      %v1036 = vunpack.c.h.b16 %v770
      %v1037 = vunpack.c.l.b16 %v771
      %v1038 = vunpack.c.h.b16 %v771
      %v1039 = vunpack.c.l.b16 %v772
      %v1040 = vunpack.c.h.b16 %v772
      %v1041 = vunpack.c.l.b16 %v773
      %v1042 = vunpack.c.h.b16 %v773
      %v1043 = vunpack.c.l.b16 %v774
      %v1044 = vunpack.c.h.b16 %v774
      %v1045 = vunpack.c.l.b16 %v775
      %v1046 = vunpack.c.h.b16 %v775
      %v1047 = vunpack.c.l.b16 %v776
      %v1048 = vunpack.c.h.b16 %v776
      %v1049 = vunpack.c.l.b16 %v777
      %v1050 = vunpack.c.h.b16 %v777
      %v1051 = vunpack.c.l.b16 %v778
      %v1052 = vunpack.c.h.b16 %v778
      %v1053 = vunpack.c.l.b16 %v779
      %v1054 = vunpack.c.h.b16 %v779
      %v1055 = vunpack.c.l.b16 %v780
      %v1056 = vunpack.c.h.b16 %v780
      %v1057 = vunpack.c.l.b16 %v781
      %v1058 = vunpack.c.h.b16 %v781
      %v1059 = vunpack.c.l.b16 %v782
      %v1060 = vunpack.c.h.b16 %v782
      %v1061 = vunpack.c.l.b16 %v783
      %v1062 = vunpack.c.h.b16 %v783
      %v1063 = vunpack.c.l.b16 %v784
      %v1064 = vunpack.c.h.b16 %v784
      %v1065 = vunpack.c.l.b16 %v785
      %v1066 = vunpack.c.h.b16 %v785
      %v1067 = vunpack.c.l.b16 %v786
      %v1068 = vunpack.c.h.b16 %v786
      %v1069 = vunpack.c.l.b16 %v787
      %v1070 = vunpack.c.h.b16 %v787
      %v1071 = vunpack.c.l.b16 %v788
      %v1072 = vunpack.c.h.b16 %v788
      %v1073 = vunpack.c.l.b16 %v789
      %v1074 = vunpack.c.h.b16 %v789
      %v1075 = vunpack.c.l.b16 %v790
      %v1076 = vunpack.c.h.b16 %v790
      %v1077 = vunpack.c.l.b16 %v791
      %v1078 = vunpack.c.h.b16 %v791
      %v1079 = vunpack.c.l.b16 %v792
      %v1080 = vunpack.c.h.b16 %v792
      %v1081 = vunpack.c.l.b16 %v793
      %v1082 = vunpack.c.h.b16 %v793
      %v1083 = vunpack.c.l.b16 %v794
      %v1084 = vunpack.c.h.b16 %v794
      %v1085 = vunpack.c.l.b16 %v795
      %v1086 = vunpack.c.h.b16 %v795
      %v1087 = vunpack.c.l.b16 %v796
      %v1088 = vunpack.c.h.b16 %v796
      %v1089 = vunpack.c.l.b16 %v797
      %v1090 = vunpack.c.h.b16 %v797
      %v1091 = vunpack.c.l.b16 %v798
      %v1092 = vunpack.c.h.b16 %v798
      %v1093 = vpack.c.b16 %v899, %v897
      %v1094 = vpack.c.b16 %v900, %v898
      %v1095 = vpack.c.b16 %v903, %v901
      %v1096 = vpack.c.b16 %v904, %v902
      %v1097 = vpack.c.b16 %v907, %v905
      %v1098 = vpack.c.b16 %v908, %v906
      %v1099 = vpack.c.b16 %v911, %v909
      %v1100 = vpack.c.b16 %v912, %v910
      %v1101 = vpack.c.b16 %v915, %v913
      %v1102 = vpack.c.b16 %v916, %v914
      %v1103 = vpack.c.b16 %v919, %v917
      %v1104 = vpack.c.b16 %v920, %v918
      %v1105 = vpack.c.b16 %v923, %v921
      %v1106 = vpack.c.b16 %v924, %v922
      %v1107 = vpack.c.b16 %v927, %v925
      %v1108 = vpack.c.b16 %v928, %v926
      %v1109 = vpack.c.b16 %v931, %v929
      %v1110 = vpack.c.b16 %v932, %v930
      %v1111 = vpack.c.b16 %v935, %v933
      %v1112 = vpack.c.b16 %v936, %v934
      %v1113 = vpack.c.b16 %v939, %v937
      %v1114 = vpack.c.b16 %v940, %v938
      %v1115 = vpack.c.b16 %v943, %v941
      %v1116 = vpack.c.b16 %v944, %v942
      %v1117 = vpack.c.b16 %v947, %v945
      %v1118 = vpack.c.b16 %v948, %v946
      %v1119 = vpack.c.b16 %v951, %v949
      %v1120 = vpack.c.b16 %v952, %v950
      %v1121 = vpack.c.b16 %v955, %v953
      %v1122 = vpack.c.b16 %v956, %v954
      %v1123 = vpack.c.b16 %v959, %v957
      %v1124 = vpack.c.b16 %v960, %v958
      %v1125 = vpack.c.b16 %v963, %v961
      %v1126 = vpack.c.b16 %v964, %v962
      %v1127 = vpack.c.b16 %v967, %v965
      %v1128 = vpack.c.b16 %v968, %v966
      %v1129 = vpack.c.b16 %v971, %v969
      %v1130 = vpack.c.b16 %v972, %v970
      %v1131 = vpack.c.b16 %v975, %v973
      %v1132 = vpack.c.b16 %v976, %v974
      %v1133 = vpack.c.b16 %v979, %v977
      %v1134 = vpack.c.b16 %v980, %v978
      %v1135 = vpack.c.b16 %v983, %v981
      %v1136 = vpack.c.b16 %v984, %v982
      %v1137 = vpack.c.b16 %v987, %v985
      %v1138 = vpack.c.b16 %v988, %v986
      %v1139 = vpack.c.b16 %v991, %v989
      %v1140 = vpack.c.b16 %v992, %v990
      %v1141 = vpack.c.b16 %v995, %v993
      %v1142 = vpack.c.b16 %v996, %v994
      %v1143 = vpack.c.b16 %v999, %v997
      %v1144 = vpack.c.b16 %v1000, %v998
      %v1145 = vpack.c.b16 %v1003, %v1001
      %v1146 = vpack.c.b16 %v1004, %v1002
      %v1147 = vpack.c.b16 %v1007, %v1005
      %v1148 = vpack.c.b16 %v1008, %v1006
      %v1149 = vpack.c.b16 %v1011, %v1009
      %v1150 = vpack.c.b16 %v1012, %v1010
      %v1151 = vpack.c.b16 %v1015, %v1013
      %v1152 = vpack.c.b16 %v1016, %v1014
      %v1153 = vpack.c.b16 %v1019, %v1017
      %v1154 = vpack.c.b16 %v1020, %v1018
      %v1155 = vpack.c.b16 %v1023, %v1021
      %v1156 = vpack.c.b16 %v1024, %v1022
      %v1157 = vpack.c.b16 %v1027, %v1025
      %v1158 = vpack.c.b16 %v1028, %v1026
      %v1159 = vpack.c.b16 %v1031, %v1029
      %v1160 = vpack.c.b16 %v1032, %v1030
      %v1161 = vpack.c.b16 %v1035, %v1033
      %v1162 = vpack.c.b16 %v1036, %v1034
      %v1163 = vpack.c.b16 %v1039, %v1037
      %v1164 = vpack.c.b16 %v1040, %v1038
      %v1165 = vpack.c.b16 %v1043, %v1041
      %v1166 = vpack.c.b16 %v1044, %v1042
      %v1167 = vpack.c.b16 %v1047, %v1045
      %v1168 = vpack.c.b16 %v1048, %v1046
      %v1169 = vpack.c.b16 %v1051, %v1049
      %v1170 = vpack.c.b16 %v1052, %v1050
      %v1171 = vpack.c.b16 %v1055, %v1053
      %v1172 = vpack.c.b16 %v1056, %v1054
      %v1173 = vpack.c.b16 %v1059, %v1057
      %v1174 = vpack.c.b16 %v1060, %v1058
      %v1175 = vpack.c.b16 %v1063, %v1061
      %v1176 = vpack.c.b16 %v1064, %v1062
      %v1177 = vpack.c.b16 %v1067, %v1065
      %v1178 = vpack.c.b16 %v1068, %v1066
      %v1179 = vpack.c.b16 %v1071, %v1069
      %v1180 = vpack.c.b16 %v1072, %v1070
      %v1181 = vpack.c.b16 %v1075, %v1073
      %v1182 = vpack.c.b16 %v1076, %v1074
      %v1183 = vpack.c.b16 %v1079, %v1077
      %v1184 = vpack.c.b16 %v1080, %v1078
      %v1185 = vpack.c.b16 %v1083, %v1081
      %v1186 = vpack.c.b16 %v1084, %v1082
      %v1187 = vpack.c.b16 %v1087, %v1085
      %v1188 = vpack.c.b16 %v1088, %v1086
      %v1189 = vpack.c.b16 %v1091, %v1089
      %v1190 = vpack.c.b16 %v1092, %v1090
      %vm1240 = vcmask 556032
      %v1242 = vsel %vm1240, %v1094, 0
      %v1245 = vsel %vm1240, %v1096, 0
      %v1248 = vsel %vm1240, %v1098, 0
      %v1251 = vsel %vm1240, %v1100, 0
      %v1254 = vsel %vm1240, %v1102, 0
      %v1257 = vsel %vm1240, %v1104, 0
      %v1260 = vsel %vm1240, %v1106, 0
      %v1263 = vsel %vm1240, %v1108, 0
      %v1266 = vsel %vm1240, %v1110, 0
      %v1269 = vsel %vm1240, %v1112, 0
      %v1272 = vsel %vm1240, %v1114, 0
      %v1275 = vsel %vm1240, %v1116, 0
      %v1278 = vsel %vm1240, %v1118, 0
      %v1281 = vsel %vm1240, %v1120, 0
      %v1284 = vsel %vm1240, %v1122, 0
      %v1287 = vsel %vm1240, %v1124, 0
      %v1290 = vsel %vm1240, %v1126, 0
      %v1293 = vsel %vm1240, %v1128, 0
      %v1296 = vsel %vm1240, %v1130, 0
      %v1299 = vsel %vm1240, %v1132, 0
      %v1302 = vsel %vm1240, %v1134, 0
      %v1305 = vsel %vm1240, %v1136, 0
      %v1308 = vsel %vm1240, %v1138, 0
      %v1311 = vsel %vm1240, %v1140, 0
      %v1314 = vsel %vm1240, %v1142, 0
      %v1317 = vsel %vm1240, %v1144, 0
      %v1320 = vsel %vm1240, %v1146, 0
      %v1323 = vsel %vm1240, %v1148, 0
      %v1326 = vsel %vm1240, %v1150, 0
      %v1329 = vsel %vm1240, %v1152, 0
      %v1332 = vsel %vm1240, %v1154, 0
      %v1335 = vsel %vm1240, %v1156, 0
      %v1338 = vsel %vm1240, %v1158, 0
      %v1341 = vsel %vm1240, %v1160, 0
      %v1344 = vsel %vm1240, %v1162, 0
      %v1347 = vsel %vm1240, %v1164, 0
      %v1350 = vsel %vm1240, %v1166, 0
      %v1353 = vsel %vm1240, %v1168, 0
      %v1356 = vsel %vm1240, %v1170, 0
      %v1359 = vsel %vm1240, %v1172, 0
      %v1362 = vsel %vm1240, %v1174, 0
      %v1365 = vsel %vm1240, %v1176, 0
      %v1368 = vsel %vm1240, %v1178, 0
      %v1371 = vsel %vm1240, %v1180, 0
      %v1374 = vsel %vm1240, %v1182, 0
      %v1377 = vsel %vm1240, %v1184, 0
      %v1380 = vsel %vm1240, %v1186, 0
      %v1383 = vsel %vm1240, %v1188, 0
      %v1386 = vsel %vm1240, %v1190, 0
      %vm1388 = vcmask 1041408
      %v1390 = vsel %vm1388, %v700, 0
      %1392 = vmatprep.subr.bf16.mxu0 0
      %1393 = vmatpush1.bf16.msra.mxu0 %v688
      %1394 = vmatprep.subr.bf16.mxu0 0
      %1395 = vmatpush1.bf16.msra.mxu0 %v689
      %1396 = vmatprep.subr.bf16.mxu0 0
      %1397 = vmatpush1.bf16.msra.mxu0 %v690
      %1398 = vmatprep.subr.bf16.mxu0 0
      %1399 = vmatpush1.bf16.msra.mxu0 %v691
      %1400 = vmatprep.subr.bf16.mxu0 0
      %1401 = vmatpush1.bf16.msra.mxu0 %v692
      %1402 = vmatprep.subr.bf16.mxu0 0
      %1403 = vmatpush1.bf16.msra.mxu0 %v693
      %1404 = vmatprep.subr.bf16.mxu0 0
      %1405 = vmatpush1.bf16.msra.mxu0 %v694
      %1406 = vmatprep.subr.bf16.mxu0 0
      %1407 = vmatpush1.bf16.msra.mxu0 %v695
      %1408 = vmatprep.subr.bf16.mxu0 0
      %1409 = vmatpush1.bf16.msra.mxu0 %v696
      %1410 = vmatprep.subr.bf16.mxu0 0
      %1411 = vmatpush1.bf16.msra.mxu0 %v697
      %1412 = vmatprep.subr.bf16.mxu0 0
      %1413 = vmatpush1.bf16.msra.mxu0 %v698
      %1414 = vmatprep.subr.bf16.mxu0 0
      %1415 = vmatpush1.bf16.msra.mxu0 %v699
      %1416 = vmatprep.subr.bf16.mxu0 0
      %1417 = vmatpush1.bf16.msra.mxu0 %v1390
      %1418 = vmatprep.subr.bf16.mxu0 0
      %1419 = vmatpush1.bf16.msra.mxu0 0
      %1420 = vmatprep.subr.bf16.mxu0 0
      %1421 = vmatpush1.bf16.msra.mxu0 0
      %1422 = vmatprep.subr.bf16.mxu0 0
      %1423 = vmatpush1.bf16.msra.mxu0 0
      %1424 = vmatprep.mubr.bf16.mxu0 %v1242
      %1425 = vmatmul.mubr.bf16.gmra.mrb[0].mxu0 %v1093
      %v1426 = vpop.f32.mrb[0].mxu0
      %v1427 = vadd.f32 0.0, %v1426
      %v1428 = vpop.f32.mrb[0].mxu0
      %v1429 = vpop.f32.mrb[0].mxu0
      %v1430 = vadd.f32 0.0, %v1429
      %v1431 = vpop.f32.mrb[0].mxu0
      %1432 = vmatprep.mubr.bf16.mxu0 %v1245
      %1433 = vmatmul.mubr.bf16.gmra.mrb[0].mxu0 %v1095
      %v1434 = vpop.f32.mrb[0].mxu0
      %v1435 = vadd.f32 0.0, %v1434
      %v1436 = vpop.f32.mrb[0].mxu0
      %v1437 = vpop.f32.mrb[0].mxu0
      %v1438 = vadd.f32 0.0, %v1437
      %v1439 = vpop.f32.mrb[0].mxu0
      %1440 = vmatprep.mubr.bf16.mxu0 %v1248
      %1441 = vmatmul.mubr.bf16.gmra.mrb[0].mxu0 %v1097
      %v1442 = vpop.f32.mrb[0].mxu0
      %v1443 = vadd.f32 0.0, %v1442
      %v1444 = vpop.f32.mrb[0].mxu0
      %v1445 = vpop.f32.mrb[0].mxu0
      %v1446 = vadd.f32 0.0, %v1445
      %v1447 = vpop.f32.mrb[0].mxu0
      %1448 = vmatprep.mubr.bf16.mxu0 %v1251
      %1449 = vmatmul.mubr.bf16.gmra.mrb[0].mxu0 %v1099
      %v1450 = vpop.f32.mrb[0].mxu0
      %v1451 = vadd.f32 0.0, %v1450
      %v1452 = vpop.f32.mrb[0].mxu0
      %v1453 = vpop.f32.mrb[0].mxu0
      %v1454 = vadd.f32 0.0, %v1453
      %v1455 = vpop.f32.mrb[0].mxu0
      %1456 = vmatprep.mubr.bf16.mxu0 %v1254
      %1457 = vmatmul.mubr.bf16.gmra.mrb[0].mxu0 %v1101
      %v1458 = vpop.f32.mrb[0].mxu0
      %v1459 = vadd.f32 0.0, %v1458
      %v1460 = vpop.f32.mrb[0].mxu0
      %v1461 = vpop.f32.mrb[0].mxu0
      %v1462 = vadd.f32 0.0, %v1461
      %v1463 = vpop.f32.mrb[0].mxu0
      %1464 = vmatprep.mubr.bf16.mxu0 %v1257
      %1465 = vmatmul.mubr.bf16.gmra.mrb[0].mxu0 %v1103
      %v1466 = vpop.f32.mrb[0].mxu0
      %v1467 = vadd.f32 0.0, %v1466
      %v1468 = vpop.f32.mrb[0].mxu0
      %v1469 = vpop.f32.mrb[0].mxu0
      %v1470 = vadd.f32 0.0, %v1469
      %v1471 = vpop.f32.mrb[0].mxu0
      %1472 = vmatprep.mubr.bf16.mxu0 %v1260
      %1473 = vmatmul.mubr.bf16.gmra.mrb[0].mxu0 %v1105
      %v1474 = vpop.f32.mrb[0].mxu0
      %v1475 = vadd.f32 0.0, %v1474
      %v1476 = vpop.f32.mrb[0].mxu0
      %v1477 = vpop.f32.mrb[0].mxu0
      %v1478 = vadd.f32 0.0, %v1477
      %v1479 = vpop.f32.mrb[0].mxu0
      %1480 = vmatprep.mubr.bf16.mxu0 %v1263
      %1481 = vmatmul.mubr.bf16.gmra.mrb[0].mxu0 %v1107
      %v1482 = vpop.f32.mrb[0].mxu0
      %v1483 = vadd.f32 0.0, %v1482
      %v1484 = vpop.f32.mrb[0].mxu0
      %v1485 = vpop.f32.mrb[0].mxu0
      %v1486 = vadd.f32 0.0, %v1485
      %v1487 = vpop.f32.mrb[0].mxu0
      %1488 = vmatprep.mubr.bf16.mxu0 %v1266
      %1489 = vmatmul.mubr.bf16.gmra.mrb[0].mxu0 %v1109
      %v1490 = vpop.f32.mrb[0].mxu0
      %v1491 = vadd.f32 0.0, %v1490
      %v1492 = vpop.f32.mrb[0].mxu0
      %v1493 = vpop.f32.mrb[0].mxu0
      %v1494 = vadd.f32 0.0, %v1493
      %v1495 = vpop.f32.mrb[0].mxu0
      %1496 = vmatprep.mubr.bf16.mxu0 %v1269
      %1497 = vmatmul.mubr.bf16.gmra.mrb[0].mxu0 %v1111
      %v1498 = vpop.f32.mrb[0].mxu0
      %v1499 = vadd.f32 0.0, %v1498
      %v1500 = vpop.f32.mrb[0].mxu0
      %v1501 = vpop.f32.mrb[0].mxu0
      %v1502 = vadd.f32 0.0, %v1501
      %v1503 = vpop.f32.mrb[0].mxu0
      %1504 = vmatprep.mubr.bf16.mxu0 %v1272
      %1505 = vmatmul.mubr.bf16.gmra.mrb[0].mxu0 %v1113
      %v1506 = vpop.f32.mrb[0].mxu0
      %v1507 = vadd.f32 0.0, %v1506
      %v1508 = vpop.f32.mrb[0].mxu0
      %v1509 = vpop.f32.mrb[0].mxu0
      %v1510 = vadd.f32 0.0, %v1509
      %v1511 = vpop.f32.mrb[0].mxu0
      %1512 = vmatprep.mubr.bf16.mxu0 %v1275
      %1513 = vmatmul.mubr.bf16.gmra.mrb[0].mxu0 %v1115
      %v1514 = vpop.f32.mrb[0].mxu0
      %v1515 = vadd.f32 0.0, %v1514
      %v1516 = vpop.f32.mrb[0].mxu0
      %v1517 = vpop.f32.mrb[0].mxu0
      %v1518 = vadd.f32 0.0, %v1517
      %v1519 = vpop.f32.mrb[0].mxu0
      %1520 = vmatprep.mubr.bf16.mxu0 %v1278
      %1521 = vmatmul.mubr.bf16.gmra.mrb[0].mxu0 %v1117
      %v1522 = vpop.f32.mrb[0].mxu0
      %v1523 = vadd.f32 0.0, %v1522
      %v1524 = vpop.f32.mrb[0].mxu0
      %v1525 = vpop.f32.mrb[0].mxu0
      %v1526 = vadd.f32 0.0, %v1525
      %v1527 = vpop.f32.mrb[0].mxu0
      %1528 = vmatprep.mubr.bf16.mxu0 %v1281
      %1529 = vmatmul.mubr.bf16.gmra.mrb[0].mxu0 %v1119
      %v1530 = vpop.f32.mrb[0].mxu0
      %v1531 = vadd.f32 0.0, %v1530
      %v1532 = vpop.f32.mrb[0].mxu0
      %v1533 = vpop.f32.mrb[0].mxu0
      %v1534 = vadd.f32 0.0, %v1533
      %v1535 = vpop.f32.mrb[0].mxu0
      %1536 = vmatprep.mubr.bf16.mxu0 %v1284
      %1537 = vmatmul.mubr.bf16.gmra.mrb[0].mxu0 %v1121
      %v1538 = vpop.f32.mrb[0].mxu0
      %v1539 = vadd.f32 0.0, %v1538
      %v1540 = vpop.f32.mrb[0].mxu0
      %v1541 = vpop.f32.mrb[0].mxu0
      %v1542 = vadd.f32 0.0, %v1541
      %v1543 = vpop.f32.mrb[0].mxu0
      %1544 = vmatprep.mubr.bf16.mxu0 %v1287
      %1545 = vmatmul.mubr.bf16.gmra.mrb[0].mxu0 %v1123
      %v1546 = vpop.f32.mrb[0].mxu0
      %v1547 = vadd.f32 0.0, %v1546
      %v1548 = vpop.f32.mrb[0].mxu0
      %v1549 = vpop.f32.mrb[0].mxu0
      %v1550 = vadd.f32 0.0, %v1549
      %v1551 = vpop.f32.mrb[0].mxu0
      %1552 = vmatprep.mubr.bf16.mxu0 %v1290
      %1553 = vmatmul.mubr.bf16.gmra.mrb[0].mxu0 %v1125
      %v1554 = vpop.f32.mrb[0].mxu0
      %v1555 = vadd.f32 0.0, %v1554
      %v1556 = vpop.f32.mrb[0].mxu0
      %v1557 = vpop.f32.mrb[0].mxu0
      %v1558 = vadd.f32 0.0, %v1557
      %v1559 = vpop.f32.mrb[0].mxu0
      %1560 = vmatprep.mubr.bf16.mxu0 %v1293
      %1561 = vmatmul.mubr.bf16.gmra.mrb[0].mxu0 %v1127
      %v1562 = vpop.f32.mrb[0].mxu0
      %v1563 = vadd.f32 0.0, %v1562
      %v1564 = vpop.f32.mrb[0].mxu0
      %v1565 = vpop.f32.mrb[0].mxu0
      %v1566 = vadd.f32 0.0, %v1565
      %v1567 = vpop.f32.mrb[0].mxu0
      %1568 = vmatprep.mubr.bf16.mxu0 %v1296
      %1569 = vmatmul.mubr.bf16.gmra.mrb[0].mxu0 %v1129
      %v1570 = vpop.f32.mrb[0].mxu0
      %v1571 = vadd.f32 0.0, %v1570
      %v1572 = vpop.f32.mrb[0].mxu0
      %v1573 = vpop.f32.mrb[0].mxu0
      %v1574 = vadd.f32 0.0, %v1573
      %v1575 = vpop.f32.mrb[0].mxu0
      %1576 = vmatprep.mubr.bf16.mxu0 %v1299
      %1577 = vmatmul.mubr.bf16.gmra.mrb[0].mxu0 %v1131
      %v1578 = vpop.f32.mrb[0].mxu0
      %v1579 = vadd.f32 0.0, %v1578
      %v1580 = vpop.f32.mrb[0].mxu0
      %v1581 = vpop.f32.mrb[0].mxu0
      %v1582 = vadd.f32 0.0, %v1581
      %v1583 = vpop.f32.mrb[0].mxu0
      %1584 = vmatprep.mubr.bf16.mxu0 %v1302
      %1585 = vmatmul.mubr.bf16.gmra.mrb[0].mxu0 %v1133
      %v1586 = vpop.f32.mrb[0].mxu0
      %v1587 = vadd.f32 0.0, %v1586
      %v1588 = vpop.f32.mrb[0].mxu0
      %v1589 = vpop.f32.mrb[0].mxu0
      %v1590 = vadd.f32 0.0, %v1589
      %v1591 = vpop.f32.mrb[0].mxu0
      %1592 = vmatprep.mubr.bf16.mxu0 %v1305
      %1593 = vmatmul.mubr.bf16.gmra.mrb[0].mxu0 %v1135
      %v1594 = vpop.f32.mrb[0].mxu0
      %v1595 = vadd.f32 0.0, %v1594
      %v1596 = vpop.f32.mrb[0].mxu0
      %v1597 = vpop.f32.mrb[0].mxu0
      %v1598 = vadd.f32 0.0, %v1597
      %v1599 = vpop.f32.mrb[0].mxu0
      %1600 = vmatprep.mubr.bf16.mxu0 %v1308
      %1601 = vmatmul.mubr.bf16.gmra.mrb[0].mxu0 %v1137
      %v1602 = vpop.f32.mrb[0].mxu0
      %v1603 = vadd.f32 0.0, %v1602
      %v1604 = vpop.f32.mrb[0].mxu0
      %v1605 = vpop.f32.mrb[0].mxu0
      %v1606 = vadd.f32 0.0, %v1605
      %v1607 = vpop.f32.mrb[0].mxu0
      %1608 = vmatprep.mubr.bf16.mxu0 %v1311
      %1609 = vmatmul.mubr.bf16.gmra.mrb[0].mxu0 %v1139
      %v1610 = vpop.f32.mrb[0].mxu0
      %v1611 = vadd.f32 0.0, %v1610
      %v1612 = vpop.f32.mrb[0].mxu0
      %v1613 = vpop.f32.mrb[0].mxu0
      %v1614 = vadd.f32 0.0, %v1613
      %v1615 = vpop.f32.mrb[0].mxu0
      %1616 = vmatprep.mubr.bf16.mxu0 %v1314
      %1617 = vmatmul.mubr.bf16.gmra.mrb[0].mxu0 %v1141
      %v1618 = vpop.f32.mrb[0].mxu0
      %v1619 = vadd.f32 0.0, %v1618
      %v1620 = vpop.f32.mrb[0].mxu0
      %v1621 = vpop.f32.mrb[0].mxu0
      %v1622 = vadd.f32 0.0, %v1621
      %v1623 = vpop.f32.mrb[0].mxu0
      %1624 = vmatprep.mubr.bf16.mxu0 %v1317
      %1625 = vmatmul.mubr.bf16.gmra.mrb[0].mxu0 %v1143
      %v1626 = vpop.f32.mrb[0].mxu0
      %v1627 = vadd.f32 0.0, %v1626
      %v1628 = vpop.f32.mrb[0].mxu0
      %v1629 = vpop.f32.mrb[0].mxu0
      %v1630 = vadd.f32 0.0, %v1629
      %v1631 = vpop.f32.mrb[0].mxu0
      %1632 = vmatprep.mubr.bf16.mxu0 %v1320
      %1633 = vmatmul.mubr.bf16.gmra.mrb[0].mxu0 %v1145
      %v1634 = vpop.f32.mrb[0].mxu0
      %v1635 = vadd.f32 0.0, %v1634
      %v1636 = vpop.f32.mrb[0].mxu0
      %v1637 = vpop.f32.mrb[0].mxu0
      %v1638 = vadd.f32 0.0, %v1637
      %v1639 = vpop.f32.mrb[0].mxu0
      %1640 = vmatprep.mubr.bf16.mxu0 %v1323
      %1641 = vmatmul.mubr.bf16.gmra.mrb[0].mxu0 %v1147
      %v1642 = vpop.f32.mrb[0].mxu0
      %v1643 = vadd.f32 0.0, %v1642
      %v1644 = vpop.f32.mrb[0].mxu0
      %v1645 = vpop.f32.mrb[0].mxu0
      %v1646 = vadd.f32 0.0, %v1645
      %v1647 = vpop.f32.mrb[0].mxu0
      %1648 = vmatprep.mubr.bf16.mxu0 %v1326
      %1649 = vmatmul.mubr.bf16.gmra.mrb[0].mxu0 %v1149
      %v1650 = vpop.f32.mrb[0].mxu0
      %v1651 = vadd.f32 0.0, %v1650
      %v1652 = vpop.f32.mrb[0].mxu0
      %v1653 = vpop.f32.mrb[0].mxu0
      %v1654 = vadd.f32 0.0, %v1653
      %v1655 = vpop.f32.mrb[0].mxu0
      %1656 = vmatprep.mubr.bf16.mxu0 %v1329
      %1657 = vmatmul.mubr.bf16.gmra.mrb[0].mxu0 %v1151
      %v1658 = vpop.f32.mrb[0].mxu0
      %v1659 = vadd.f32 0.0, %v1658
      %v1660 = vpop.f32.mrb[0].mxu0
      %v1661 = vpop.f32.mrb[0].mxu0
      %v1662 = vadd.f32 0.0, %v1661
      %v1663 = vpop.f32.mrb[0].mxu0
      %1664 = vmatprep.mubr.bf16.mxu0 %v1332
      %1665 = vmatmul.mubr.bf16.gmra.mrb[0].mxu0 %v1153
      %v1666 = vpop.f32.mrb[0].mxu0
      %v1667 = vadd.f32 0.0, %v1666
      %v1668 = vpop.f32.mrb[0].mxu0
      %v1669 = vpop.f32.mrb[0].mxu0
      %v1670 = vadd.f32 0.0, %v1669
      %v1671 = vpop.f32.mrb[0].mxu0
      %1672 = vmatprep.mubr.bf16.mxu0 %v1335
      %1673 = vmatmul.mubr.bf16.gmra.mrb[0].mxu0 %v1155
      %v1674 = vpop.f32.mrb[0].mxu0
      %v1675 = vadd.f32 0.0, %v1674
      %v1676 = vpop.f32.mrb[0].mxu0
      %v1677 = vpop.f32.mrb[0].mxu0
      %v1678 = vadd.f32 0.0, %v1677
      %v1679 = vpop.f32.mrb[0].mxu0
      %1680 = vmatprep.mubr.bf16.mxu0 %v1338
      %1681 = vmatmul.mubr.bf16.gmra.mrb[0].mxu0 %v1157
      %v1682 = vpop.f32.mrb[0].mxu0
      %v1683 = vadd.f32 0.0, %v1682
      %v1684 = vpop.f32.mrb[0].mxu0
      %v1685 = vpop.f32.mrb[0].mxu0
      %v1686 = vadd.f32 0.0, %v1685
      %v1687 = vpop.f32.mrb[0].mxu0
      %1688 = vmatprep.mubr.bf16.mxu0 %v1341
      %1689 = vmatmul.mubr.bf16.gmra.mrb[0].mxu0 %v1159
      %v1690 = vpop.f32.mrb[0].mxu0
      %v1691 = vadd.f32 0.0, %v1690
      %v1692 = vpop.f32.mrb[0].mxu0
      %v1693 = vpop.f32.mrb[0].mxu0
      %v1694 = vadd.f32 0.0, %v1693
      %v1695 = vpop.f32.mrb[0].mxu0
      %1696 = vmatprep.mubr.bf16.mxu0 %v1344
      %1697 = vmatmul.mubr.bf16.gmra.mrb[0].mxu0 %v1161
      %v1698 = vpop.f32.mrb[0].mxu0
      %v1699 = vadd.f32 0.0, %v1698
      %v1700 = vpop.f32.mrb[0].mxu0
      %v1701 = vpop.f32.mrb[0].mxu0
      %v1702 = vadd.f32 0.0, %v1701
      %v1703 = vpop.f32.mrb[0].mxu0
      %1704 = vmatprep.mubr.bf16.mxu0 %v1347
      %1705 = vmatmul.mubr.bf16.gmra.mrb[0].mxu0 %v1163
      %v1706 = vpop.f32.mrb[0].mxu0
      %v1707 = vadd.f32 0.0, %v1706
      %v1708 = vpop.f32.mrb[0].mxu0
      %v1709 = vpop.f32.mrb[0].mxu0
      %v1710 = vadd.f32 0.0, %v1709
      %v1711 = vpop.f32.mrb[0].mxu0
      %1712 = vmatprep.mubr.bf16.mxu0 %v1350
      %1713 = vmatmul.mubr.bf16.gmra.mrb[0].mxu0 %v1165
      %v1714 = vpop.f32.mrb[0].mxu0
      %v1715 = vadd.f32 0.0, %v1714
      %v1716 = vpop.f32.mrb[0].mxu0
      %v1717 = vpop.f32.mrb[0].mxu0
      %v1718 = vadd.f32 0.0, %v1717
      %v1719 = vpop.f32.mrb[0].mxu0
      %1720 = vmatprep.mubr.bf16.mxu0 %v1353
      %1721 = vmatmul.mubr.bf16.gmra.mrb[0].mxu0 %v1167
      %v1722 = vpop.f32.mrb[0].mxu0
      %v1723 = vadd.f32 0.0, %v1722
      %v1724 = vpop.f32.mrb[0].mxu0
      %v1725 = vpop.f32.mrb[0].mxu0
      %v1726 = vadd.f32 0.0, %v1725
      %v1727 = vpop.f32.mrb[0].mxu0
      %1728 = vmatprep.mubr.bf16.mxu0 %v1356
      %1729 = vmatmul.mubr.bf16.gmra.mrb[0].mxu0 %v1169
      %v1730 = vpop.f32.mrb[0].mxu0
      %v1731 = vadd.f32 0.0, %v1730
      %v1732 = vpop.f32.mrb[0].mxu0
      %v1733 = vpop.f32.mrb[0].mxu0
      %v1734 = vadd.f32 0.0, %v1733
      %v1735 = vpop.f32.mrb[0].mxu0
      %1736 = vmatprep.mubr.bf16.mxu0 %v1359
      %1737 = vmatmul.mubr.bf16.gmra.mrb[0].mxu0 %v1171
      %v1738 = vpop.f32.mrb[0].mxu0
      %v1739 = vadd.f32 0.0, %v1738
      %v1740 = vpop.f32.mrb[0].mxu0
      %v1741 = vpop.f32.mrb[0].mxu0
      %v1742 = vadd.f32 0.0, %v1741
      %v1743 = vpop.f32.mrb[0].mxu0
      %1744 = vmatprep.mubr.bf16.mxu0 %v1362
      %1745 = vmatmul.mubr.bf16.gmra.mrb[0].mxu0 %v1173
      %v1746 = vpop.f32.mrb[0].mxu0
      %v1747 = vadd.f32 0.0, %v1746
      %v1748 = vpop.f32.mrb[0].mxu0
      %v1749 = vpop.f32.mrb[0].mxu0
      %v1750 = vadd.f32 0.0, %v1749
      %v1751 = vpop.f32.mrb[0].mxu0
      %1752 = vmatprep.mubr.bf16.mxu0 %v1365
      %1753 = vmatmul.mubr.bf16.gmra.mrb[0].mxu0 %v1175
      %v1754 = vpop.f32.mrb[0].mxu0
      %v1755 = vadd.f32 0.0, %v1754
      %v1756 = vpop.f32.mrb[0].mxu0
      %v1757 = vpop.f32.mrb[0].mxu0
      %v1758 = vadd.f32 0.0, %v1757
      %v1759 = vpop.f32.mrb[0].mxu0
      %1760 = vmatprep.mubr.bf16.mxu0 %v1368
      %1761 = vmatmul.mubr.bf16.gmra.mrb[0].mxu0 %v1177
      %v1762 = vpop.f32.mrb[0].mxu0
      %v1763 = vadd.f32 0.0, %v1762
      %v1764 = vpop.f32.mrb[0].mxu0
      %v1765 = vpop.f32.mrb[0].mxu0
      %v1766 = vadd.f32 0.0, %v1765
      %v1767 = vpop.f32.mrb[0].mxu0
      %1768 = vmatprep.mubr.bf16.mxu0 %v1371
      %1769 = vmatmul.mubr.bf16.gmra.mrb[0].mxu0 %v1179
      %v1770 = vpop.f32.mrb[0].mxu0
      %v1771 = vadd.f32 0.0, %v1770
      %v1772 = vpop.f32.mrb[0].mxu0
      %v1773 = vpop.f32.mrb[0].mxu0
      %v1774 = vadd.f32 0.0, %v1773
      %v1775 = vpop.f32.mrb[0].mxu0
      %1776 = vmatprep.mubr.bf16.mxu0 %v1374
      %1777 = vmatmul.mubr.bf16.gmra.mrb[0].mxu0 %v1181
      %v1778 = vpop.f32.mrb[0].mxu0
      %v1779 = vadd.f32 0.0, %v1778
      %v1780 = vpop.f32.mrb[0].mxu0
      %v1781 = vpop.f32.mrb[0].mxu0
      %v1782 = vadd.f32 0.0, %v1781
      %v1783 = vpop.f32.mrb[0].mxu0
      %1784 = vmatprep.mubr.bf16.mxu0 %v1377
      %1785 = vmatmul.mubr.bf16.gmra.mrb[0].mxu0 %v1183
      %v1786 = vpop.f32.mrb[0].mxu0
      %v1787 = vadd.f32 0.0, %v1786
      %v1788 = vpop.f32.mrb[0].mxu0
      %v1789 = vpop.f32.mrb[0].mxu0
      %v1790 = vadd.f32 0.0, %v1789
      %v1791 = vpop.f32.mrb[0].mxu0
      %1792 = vmatprep.mubr.bf16.mxu0 %v1380
      %1793 = vmatmul.mubr.bf16.gmra.mrb[0].mxu0 %v1185
      %v1794 = vpop.f32.mrb[0].mxu0
      %v1795 = vadd.f32 0.0, %v1794
      %v1796 = vpop.f32.mrb[0].mxu0
      %v1797 = vpop.f32.mrb[0].mxu0
      %v1798 = vadd.f32 0.0, %v1797
      %v1799 = vpop.f32.mrb[0].mxu0
      %1800 = vmatprep.mubr.bf16.mxu0 %v1383
      %1801 = vmatmul.mubr.bf16.gmra.mrb[0].mxu0 %v1187
      %v1802 = vpop.f32.mrb[0].mxu0
      %v1803 = vadd.f32 0.0, %v1802
      %v1804 = vpop.f32.mrb[0].mxu0
      %v1805 = vpop.f32.mrb[0].mxu0
      %v1806 = vadd.f32 0.0, %v1805
      %v1807 = vpop.f32.mrb[0].mxu0
      %1808 = vmatprep.mubr.bf16.mxu0 %v1386
      %1809 = vmatmul.mubr.bf16.gmra.mrb[0].mxu0 %v1189
      %v1810 = vpop.f32.mrb[0].mxu0
      %v1811 = vadd.f32 0.0, %v1810
      %v1812 = vpop.f32.mrb[0].mxu0
      %v1813 = vpop.f32.mrb[0].mxu0
      %v1814 = vadd.f32 0.0, %v1813
      %v1815 = vpop.f32.mrb[0].mxu0
      %1816 = vdwg.mxu0
      %v1817 = vpack.c.bf16 %v1430, %v1427
      %v1818 = vpack.c.bf16 %v1438, %v1435
      %v1819 = vpack.c.bf16 %v1446, %v1443
      %v1820 = vpack.c.bf16 %v1454, %v1451
      %v1821 = vpack.c.bf16 %v1462, %v1459
      %v1822 = vpack.c.bf16 %v1470, %v1467
      %v1823 = vpack.c.bf16 %v1478, %v1475
      %v1824 = vpack.c.bf16 %v1486, %v1483
      %v1825 = vpack.c.bf16 %v1494, %v1491
      %v1826 = vpack.c.bf16 %v1502, %v1499
      %v1827 = vpack.c.bf16 %v1510, %v1507
      %v1828 = vpack.c.bf16 %v1518, %v1515
      %v1829 = vpack.c.bf16 %v1526, %v1523
      %v1830 = vpack.c.bf16 %v1534, %v1531
      %v1831 = vpack.c.bf16 %v1542, %v1539
      %v1832 = vpack.c.bf16 %v1550, %v1547
      %v1833 = vpack.c.bf16 %v1558, %v1555
      %v1834 = vpack.c.bf16 %v1566, %v1563
      %v1835 = vpack.c.bf16 %v1574, %v1571
      %v1836 = vpack.c.bf16 %v1582, %v1579
      %v1837 = vpack.c.bf16 %v1590, %v1587
      %v1838 = vpack.c.bf16 %v1598, %v1595
      %v1839 = vpack.c.bf16 %v1606, %v1603
      %v1840 = vpack.c.bf16 %v1614, %v1611
      %v1841 = vpack.c.bf16 %v1622, %v1619
      %v1842 = vpack.c.bf16 %v1630, %v1627
      %v1843 = vpack.c.bf16 %v1638, %v1635
      %v1844 = vpack.c.bf16 %v1646, %v1643
      %v1845 = vpack.c.bf16 %v1654, %v1651
      %v1846 = vpack.c.bf16 %v1662, %v1659
      %v1847 = vpack.c.bf16 %v1670, %v1667
      %v1848 = vpack.c.bf16 %v1678, %v1675
      %v1849 = vpack.c.bf16 %v1686, %v1683
      %v1850 = vpack.c.bf16 %v1694, %v1691
      %v1851 = vpack.c.bf16 %v1702, %v1699
      %v1852 = vpack.c.bf16 %v1710, %v1707
      %v1853 = vpack.c.bf16 %v1718, %v1715
      %v1854 = vpack.c.bf16 %v1726, %v1723
      %v1855 = vpack.c.bf16 %v1734, %v1731
      %v1856 = vpack.c.bf16 %v1742, %v1739
      %v1857 = vpack.c.bf16 %v1750, %v1747
      %v1858 = vpack.c.bf16 %v1758, %v1755
      %v1859 = vpack.c.bf16 %v1766, %v1763
      %v1860 = vpack.c.bf16 %v1774, %v1771
      %v1861 = vpack.c.bf16 %v1782, %v1779
      %v1862 = vpack.c.bf16 %v1790, %v1787
      %v1863 = vpack.c.bf16 %v1798, %v1795
      %v1864 = vpack.c.bf16 %v1806, %v1803
      %v1865 = vpack.c.bf16 %v1814, %v1811
      %vm1866 = vsmask.f32 7424
      %v1868 = vshrl.u32 %v1820, 16
      %v1870 = vshll.u32 %v1820, 16
      %v1872 = vrot.slane %v1870, 1
      %v1873 = vor.u32 %v1868, %v1872
      %v1875 = vshll.u32 %v1821, 16
      %v1877 = vrot.slane %v1875, 1
      %v1878 = vsel %vm1866, %v1873, %v1877
      %v1879 = vshrl.u32 %v1821, 16
      %v1881 = vor.u32 %v1879, %v1877
      %v1883 = vshll.u32 %v1822, 16
      %v1885 = vrot.slane %v1883, 1
      %v1886 = vsel %vm1866, %v1881, %v1885
      %v1887 = vshrl.u32 %v1822, 16
      %v1889 = vor.u32 %v1887, %v1885
      %v1891 = vshll.u32 %v1823, 16
      %v1893 = vrot.slane %v1891, 1
      %v1894 = vsel %vm1866, %v1889, %v1893
      %v1895 = vshrl.u32 %v1823, 16
      %1897 = vrot.lane.b32.xlu0 %v1878, 32
      %v1898 = vpop.permute.xlu0 %1897
      %1899 = vrot.lane.b32.xlu0 %v1886, 32
      %v1900 = vpop.permute.xlu0 %1899
      %1901 = vrot.lane.b32.xlu0 %v1894, 32
      %v1902 = vpop.permute.xlu0 %1901
      %1903 = vrot.lane.b32.xlu0 %v1895, 32
      %v1904 = vpop.permute.xlu0 %1903
      %vm1909 = vcmask 1046528
      %v1910 = vrot.slane %v1823, 1
      %v1911 = vrot.slane %v1824, 1
      %v1912 = vsel %vm1909, %v1910, %v1911
      %v1913 = vrot.slane %v1825, 1
      %v1914 = vsel %vm1909, %v1911, %v1913
      %v1915 = vrot.slane %v1826, 1
      %v1916 = vsel %vm1909, %v1913, %v1915
      %1917 = vrot.lane.b32.xlu0 %v1912, 64
      %v1918 = vpop.permute.xlu0 %1917
      %1919 = vrot.lane.b32.xlu0 %v1914, 64
      %v1920 = vpop.permute.xlu0 %1919
      %1921 = vrot.lane.b32.xlu0 %v1916, 64
      %v1922 = vpop.permute.xlu0 %1921
      %1923 = vrot.lane.b32.xlu0 %v1915, 64
      %v1924 = vpop.permute.xlu0 %1923
      %vm1925 = vsmask.f32 6400
      %v1927 = vshrl.u32 %v1826, 16
      %v1929 = vrot.slane %v1927, 1
      %v1930 = vshll.u32 %v1826, 16
      %v1932 = vrot.slane %v1930, 2
      %v1933 = vor.u32 %v1929, %v1932
      %v1935 = vshrl.u32 %v1827, 16
      %v1937 = vrot.slane %v1935, 1
      %v1938 = vshll.u32 %v1827, 16
      %v1940 = vrot.slane %v1938, 2
      %v1941 = vor.u32 %v1937, %v1940
      %v1942 = vsel %vm1925, %v1933, %v1941
      %v1944 = vshrl.u32 %v1828, 16
      %v1946 = vrot.slane %v1944, 1
      %v1947 = vshll.u32 %v1828, 16
      %v1949 = vrot.slane %v1947, 2
      %v1950 = vor.u32 %v1946, %v1949
      %v1951 = vsel %vm1925, %v1941, %v1950
      %v1953 = vshrl.u32 %v1829, 16
      %v1955 = vrot.slane %v1953, 1
      %v1956 = vshll.u32 %v1829, 16
      %v1958 = vrot.slane %v1956, 2
      %v1959 = vor.u32 %v1955, %v1958
      %v1960 = vsel %vm1925, %v1950, %v1959
      %1961 = vrot.lane.b32.xlu0 %v1942, 96
      %v1962 = vpop.permute.xlu0 %1961
      %1963 = vrot.lane.b32.xlu0 %v1951, 96
      %v1964 = vpop.permute.xlu0 %1963
      %1965 = vrot.lane.b32.xlu0 %v1960, 96
      %v1966 = vpop.permute.xlu0 %1965
      %1967 = vrot.lane.b32.xlu0 %v1955, 96
      %v1968 = vpop.permute.xlu0 %1967
      %vm1973 = vcmask 1045504
      %v1974 = vrot.slane %v1829, 2
      %v1975 = vrot.slane %v1830, 2
      %v1976 = vsel %vm1973, %v1974, %v1975
      %v1977 = vrot.slane %v1831, 2
      %v1978 = vsel %vm1973, %v1975, %v1977
      %v1979 = vrot.slane %v1832, 2
      %v1980 = vsel %vm1973, %v1977, %v1979
      %vm1981 = vsmask.f32 5376
      %v1983 = vshrl.u32 %v1832, 16
      %v1985 = vrot.slane %v1983, 2
      %v1986 = vshll.u32 %v1832, 16
      %v1988 = vrot.slane %v1986, 3
      %v1989 = vor.u32 %v1985, %v1988
      %v1991 = vshrl.u32 %v1833, 16
      %v1993 = vrot.slane %v1991, 2
      %v1994 = vshll.u32 %v1833, 16
      %v1996 = vrot.slane %v1994, 3
      %v1997 = vor.u32 %v1993, %v1996
      %v1998 = vsel %vm1981, %v1989, %v1997
      %v2000 = vshrl.u32 %v1834, 16
      %v2002 = vrot.slane %v2000, 2
      %v2003 = vshll.u32 %v1834, 16
      %v2005 = vrot.slane %v2003, 3
      %v2006 = vor.u32 %v2002, %v2005
      %v2007 = vsel %vm1981, %v1997, %v2006
      %v2009 = vshrl.u32 %v1835, 16
      %v2011 = vrot.slane %v2009, 2
      %v2012 = vshll.u32 %v1835, 16
      %v2014 = vrot.slane %v2012, 3
      %v2015 = vor.u32 %v2011, %v2014
      %v2016 = vsel %vm1981, %v2006, %v2015
      %2017 = vrot.lane.b32.xlu0 %v1998, 32
      %v2018 = vpop.permute.xlu0 %2017
      %2019 = vrot.lane.b32.xlu0 %v2007, 32
      %v2020 = vpop.permute.xlu0 %2019
      %2021 = vrot.lane.b32.xlu0 %v2016, 32
      %v2022 = vpop.permute.xlu0 %2021
      %2023 = vrot.lane.b32.xlu0 %v2011, 32
      %v2024 = vpop.permute.xlu0 %2023
      %vm2029 = vcmask 1044480
      %v2030 = vrot.slane %v1835, 3
      %v2031 = vrot.slane %v1836, 3
      %v2032 = vsel %vm2029, %v2030, %v2031
      %v2033 = vrot.slane %v1837, 3
      %v2034 = vsel %vm2029, %v2031, %v2033
      %v2035 = vrot.slane %v1838, 3
      %v2036 = vsel %vm2029, %v2033, %v2035
      %2037 = vrot.lane.b32.xlu0 %v2032, 64
      %v2038 = vpop.permute.xlu0 %2037
      %2039 = vrot.lane.b32.xlu0 %v2034, 64
      %v2040 = vpop.permute.xlu0 %2039
      %2041 = vrot.lane.b32.xlu0 %v2036, 64
      %v2042 = vpop.permute.xlu0 %2041
      %2043 = vrot.lane.b32.xlu0 %v2035, 64
      %v2044 = vpop.permute.xlu0 %2043
      %vm2045 = vsmask.f32 4352
      %v2047 = vshrl.u32 %v1838, 16
      %v2049 = vrot.slane %v2047, 3
      %v2050 = vshll.u32 %v1838, 16
      %v2052 = vrot.slane %v2050, 4
      %v2053 = vor.u32 %v2049, %v2052
      %v2055 = vshrl.u32 %v1839, 16
      %v2057 = vrot.slane %v2055, 3
      %v2058 = vshll.u32 %v1839, 16
      %v2060 = vrot.slane %v2058, 4
      %v2061 = vor.u32 %v2057, %v2060
      %v2062 = vsel %vm2045, %v2053, %v2061
      %v2064 = vshrl.u32 %v1840, 16
      %v2066 = vrot.slane %v2064, 3
      %v2067 = vshll.u32 %v1840, 16
      %v2069 = vrot.slane %v2067, 4
      %v2070 = vor.u32 %v2066, %v2069
      %v2071 = vsel %vm2045, %v2061, %v2070
      %v2073 = vshrl.u32 %v1841, 16
      %v2075 = vrot.slane %v2073, 3
      %v2076 = vshll.u32 %v1841, 16
      %v2078 = vrot.slane %v2076, 4
      %v2079 = vor.u32 %v2075, %v2078
      %v2080 = vsel %vm2045, %v2070, %v2079
      %2081 = vrot.lane.b32.xlu0 %v2062, 96
      %v2082 = vpop.permute.xlu0 %2081
      %2083 = vrot.lane.b32.xlu0 %v2071, 96
      %v2084 = vpop.permute.xlu0 %2083
      %2085 = vrot.lane.b32.xlu0 %v2080, 96
      %v2086 = vpop.permute.xlu0 %2085
      %2087 = vrot.lane.b32.xlu0 %v2075, 96
      %v2088 = vpop.permute.xlu0 %2087
      %vm2093 = vcmask 1043456
      %v2094 = vrot.slane %v1841, 4
      %v2095 = vrot.slane %v1842, 4
      %v2096 = vsel %vm2093, %v2094, %v2095
      %v2097 = vrot.slane %v1843, 4
      %v2098 = vsel %vm2093, %v2095, %v2097
      %v2099 = vrot.slane %v1844, 4
      %v2100 = vsel %vm2093, %v2097, %v2099
      %vm2101 = vsmask.f32 3328
      %v2103 = vshrl.u32 %v1844, 16
      %v2105 = vrot.slane %v2103, 4
      %v2106 = vshll.u32 %v1844, 16
      %v2108 = vrot.slane %v2106, 5
      %v2109 = vor.u32 %v2105, %v2108
      %v2111 = vshrl.u32 %v1845, 16
      %v2113 = vrot.slane %v2111, 4
      %v2114 = vshll.u32 %v1845, 16
      %v2116 = vrot.slane %v2114, 5
      %v2117 = vor.u32 %v2113, %v2116
      %v2118 = vsel %vm2101, %v2109, %v2117
      %v2120 = vshrl.u32 %v1846, 16
      %v2122 = vrot.slane %v2120, 4
      %v2123 = vshll.u32 %v1846, 16
      %v2125 = vrot.slane %v2123, 5
      %v2126 = vor.u32 %v2122, %v2125
      %v2127 = vsel %vm2101, %v2117, %v2126
      %v2129 = vshrl.u32 %v1847, 16
      %v2131 = vrot.slane %v2129, 4
      %v2132 = vshll.u32 %v1847, 16
      %v2134 = vrot.slane %v2132, 5
      %v2135 = vor.u32 %v2131, %v2134
      %v2136 = vsel %vm2101, %v2126, %v2135
      %2137 = vrot.lane.b32.xlu0 %v2118, 32
      %v2138 = vpop.permute.xlu0 %2137
      %2139 = vrot.lane.b32.xlu0 %v2127, 32
      %v2140 = vpop.permute.xlu0 %2139
      %2141 = vrot.lane.b32.xlu0 %v2136, 32
      %v2142 = vpop.permute.xlu0 %2141
      %2143 = vrot.lane.b32.xlu0 %v2131, 32
      %v2144 = vpop.permute.xlu0 %2143
      %vm2149 = vcmask 1042432
      %v2150 = vrot.slane %v1847, 5
      %v2151 = vrot.slane %v1848, 5
      %v2152 = vsel %vm2149, %v2150, %v2151
      %v2153 = vrot.slane %v1849, 5
      %v2154 = vsel %vm2149, %v2151, %v2153
      %v2155 = vrot.slane %v1850, 5
      %v2156 = vsel %vm2149, %v2153, %v2155
      %2157 = vrot.lane.b32.xlu0 %v2152, 64
      %v2158 = vpop.permute.xlu0 %2157
      %2159 = vrot.lane.b32.xlu0 %v2154, 64
      %v2160 = vpop.permute.xlu0 %2159
      %2161 = vrot.lane.b32.xlu0 %v2156, 64
      %v2162 = vpop.permute.xlu0 %2161
      %2163 = vrot.lane.b32.xlu0 %v2155, 64
      %v2164 = vpop.permute.xlu0 %2163
      %vm2165 = vsmask.f32 2304
      %v2167 = vshrl.u32 %v1850, 16
      %v2169 = vrot.slane %v2167, 5
      %v2170 = vshll.u32 %v1850, 16
      %v2172 = vrot.slane %v2170, 6
      %v2173 = vor.u32 %v2169, %v2172
      %v2175 = vshrl.u32 %v1851, 16
      %v2177 = vrot.slane %v2175, 5
      %v2178 = vshll.u32 %v1851, 16
      %v2180 = vrot.slane %v2178, 6
      %v2181 = vor.u32 %v2177, %v2180
      %v2182 = vsel %vm2165, %v2173, %v2181
      %v2184 = vshrl.u32 %v1852, 16
      %v2186 = vrot.slane %v2184, 5
      %v2187 = vshll.u32 %v1852, 16
      %v2189 = vrot.slane %v2187, 6
      %v2190 = vor.u32 %v2186, %v2189
      %v2191 = vsel %vm2165, %v2181, %v2190
      %v2193 = vshrl.u32 %v1853, 16
      %v2195 = vrot.slane %v2193, 5
      %v2196 = vshll.u32 %v1853, 16
      %v2198 = vrot.slane %v2196, 6
      %v2199 = vor.u32 %v2195, %v2198
      %v2200 = vsel %vm2165, %v2190, %v2199
      %2201 = vrot.lane.b32.xlu0 %v2182, 96
      %v2202 = vpop.permute.xlu0 %2201
      %2203 = vrot.lane.b32.xlu0 %v2191, 96
      %v2204 = vpop.permute.xlu0 %2203
      %2205 = vrot.lane.b32.xlu0 %v2200, 96
      %v2206 = vpop.permute.xlu0 %2205
      %2207 = vrot.lane.b32.xlu0 %v2195, 96
      %v2208 = vpop.permute.xlu0 %2207
      %vm2213 = vcmask 1041408
      %v2214 = vrot.slane %v1853, 6
      %v2215 = vrot.slane %v1854, 6
      %v2216 = vsel %vm2213, %v2214, %v2215
      %v2217 = vrot.slane %v1855, 6
      %v2218 = vsel %vm2213, %v2215, %v2217
      %v2219 = vrot.slane %v1856, 6
      %v2220 = vsel %vm2213, %v2217, %v2219
      %vm2221 = vsmask.f32 1280
      %v2223 = vshrl.u32 %v1856, 16
      %v2225 = vrot.slane %v2223, 6
      %v2226 = vshll.u32 %v1856, 16
      %v2228 = vrot.slane %v2226, 7
      %v2229 = vor.u32 %v2225, %v2228
      %v2231 = vshrl.u32 %v1857, 16
      %v2233 = vrot.slane %v2231, 6
      %v2234 = vshll.u32 %v1857, 16
      %v2236 = vrot.slane %v2234, 7
      %v2237 = vor.u32 %v2233, %v2236
      %v2238 = vsel %vm2221, %v2229, %v2237
      %v2240 = vshrl.u32 %v1858, 16
      %v2242 = vrot.slane %v2240, 6
      %v2243 = vshll.u32 %v1858, 16
      %v2245 = vrot.slane %v2243, 7
      %v2246 = vor.u32 %v2242, %v2245
      %v2247 = vsel %vm2221, %v2237, %v2246
      %v2249 = vshrl.u32 %v1859, 16
      %v2251 = vrot.slane %v2249, 6
      %v2252 = vshll.u32 %v1859, 16
      %v2254 = vrot.slane %v2252, 7
      %v2255 = vor.u32 %v2251, %v2254
      %v2256 = vsel %vm2221, %v2246, %v2255
      %2257 = vrot.lane.b32.xlu0 %v2238, 32
      %v2258 = vpop.permute.xlu0 %2257
      %2259 = vrot.lane.b32.xlu0 %v2247, 32
      %v2260 = vpop.permute.xlu0 %2259
      %2261 = vrot.lane.b32.xlu0 %v2256, 32
      %v2262 = vpop.permute.xlu0 %2261
      %2263 = vrot.lane.b32.xlu0 %v2251, 32
      %v2264 = vpop.permute.xlu0 %2263
      %vm2269 = vcmask 1040384
      %v2270 = vrot.slane %v1859, 7
      %v2271 = vrot.slane %v1860, 7
      %v2272 = vsel %vm2269, %v2270, %v2271
      %v2273 = vrot.slane %v1861, 7
      %v2274 = vsel %vm2269, %v2271, %v2273
      %v2275 = vrot.slane %v1862, 7
      %v2276 = vsel %vm2269, %v2273, %v2275
      %2277 = vrot.lane.b32.xlu0 %v2272, 64
      %v2278 = vpop.permute.xlu0 %2277
      %2279 = vrot.lane.b32.xlu0 %v2274, 64
      %v2280 = vpop.permute.xlu0 %2279
      %2281 = vrot.lane.b32.xlu0 %v2276, 64
      %v2282 = vpop.permute.xlu0 %2281
      %2283 = vrot.lane.b32.xlu0 %v2275, 64
      %v2284 = vpop.permute.xlu0 %2283
      %vm2285 = vsmask.f32 256
      %v2287 = vshrl.u32 %v1862, 16
      %v2289 = vrot.slane %v2287, 7
      %v2291 = vshrl.u32 %v1863, 16
      %v2293 = vrot.slane %v2291, 7
      %v2294 = vshll.u32 %v1863, 16
      %v2296 = vor.u32 %v2293, %v2294
      %v2297 = vsel %vm2285, %v2289, %v2296
      %v2299 = vshrl.u32 %v1864, 16
      %v2301 = vrot.slane %v2299, 7
      %v2302 = vshll.u32 %v1864, 16
      %v2304 = vor.u32 %v2301, %v2302
      %v2305 = vsel %vm2285, %v2293, %v2304
      %v2307 = vshrl.u32 %v1865, 16
      %v2309 = vrot.slane %v2307, 7
      %v2310 = vshll.u32 %v1865, 16
      %v2312 = vor.u32 %v2309, %v2310
      %v2313 = vsel %vm2285, %v2301, %v2312
      %2314 = vrot.lane.b32.xlu0 %v2297, 96
      %v2315 = vpop.permute.xlu0 %2314
      %2316 = vrot.lane.b32.xlu0 %v2305, 96
      %v2317 = vpop.permute.xlu0 %2316
      %2318 = vrot.lane.b32.xlu0 %v2313, 96
      %v2319 = vpop.permute.xlu0 %2318
      %2320 = vrot.lane.b32.xlu0 %v2309, 96
      %v2321 = vpop.permute.xlu0 %2320
      %vm2322 = vcmask 261120
      %v2325 = vsel %vm2322, %v1817, %v1898
      %v2328 = vsel %vm2322, %v1818, %v1900
      %v2331 = vsel %vm2322, %v1819, %v1902
      %v2333 = vsel %vm2322, %v1820, %v1904
      %vm2334 = vcmask 523264
      %v2336 = vsel %vm2334, %v2325, %v1918
      %v2338 = vsel %vm2334, %v2328, %v1920
      %v2340 = vsel %vm2334, %v2331, %v1922
      %v2342 = vsel %vm2334, %v2333, %v1924
      %vm2343 = vcmask 785408
      %v2345 = vsel %vm2343, %v2336, %v1962
      %v2348 = vsel %vm2343, %v2338, %v1964
      %v2351 = vsel %vm2343, %v2340, %v1966
      %v2354 = vsel %vm2343, %v2342, %v1968
      %v2358 = vsel %vm2322, %v1976, %v2018
      %v2361 = vsel %vm2322, %v1978, %v2020
      %v2364 = vsel %vm2322, %v1980, %v2022
      %v2367 = vsel %vm2322, %v1979, %v2024
      %v2369 = vsel %vm2334, %v2358, %v2038
      %v2371 = vsel %vm2334, %v2361, %v2040
      %v2373 = vsel %vm2334, %v2364, %v2042
      %v2375 = vsel %vm2334, %v2367, %v2044
      %v2377 = vsel %vm2343, %v2369, %v2082
      %v2380 = vsel %vm2343, %v2371, %v2084
      %v2383 = vsel %vm2343, %v2373, %v2086
      %v2386 = vsel %vm2343, %v2375, %v2088
      %v2390 = vsel %vm2322, %v2096, %v2138
      %v2393 = vsel %vm2322, %v2098, %v2140
      %v2396 = vsel %vm2322, %v2100, %v2142
      %v2399 = vsel %vm2322, %v2099, %v2144
      %v2401 = vsel %vm2334, %v2390, %v2158
      %v2403 = vsel %vm2334, %v2393, %v2160
      %v2405 = vsel %vm2334, %v2396, %v2162
      %v2407 = vsel %vm2334, %v2399, %v2164
      %v2409 = vsel %vm2343, %v2401, %v2202
      %v2412 = vsel %vm2343, %v2403, %v2204
      %v2415 = vsel %vm2343, %v2405, %v2206
      %v2418 = vsel %vm2343, %v2407, %v2208
      %v2422 = vsel %vm2322, %v2216, %v2258
      %v2425 = vsel %vm2322, %v2218, %v2260
      %v2428 = vsel %vm2322, %v2220, %v2262
      %v2431 = vsel %vm2322, %v2219, %v2264
      %v2433 = vsel %vm2334, %v2422, %v2278
      %v2435 = vsel %vm2334, %v2425, %v2280
      %v2437 = vsel %vm2334, %v2428, %v2282
      %v2439 = vsel %vm2334, %v2431, %v2284
      %v2441 = vsel %vm2343, %v2433, %v2315
      %v2444 = vsel %vm2343, %v2435, %v2317
      %v2447 = vsel %vm2343, %v2437, %v2319
      %v2450 = vsel %vm2343, %v2439, %v2321
      %v2452 = vld [vmem:[%s4] sm:$0xf]
      %v2453 = vld [vmem:[%s4 + $0x4] sm:$0xf]
      %v2454 = vld [vmem:[%s4 + $0x8] sm:$0xf]
      %v2455 = vld [vmem:[%s4 + $0xc] sm:$0xf]
      %v2456 = vld [vmem:[%s4 + $0x10] sm:$0xf]
      %v2457 = vld [vmem:[%s4 + $0x14] sm:$0xf]
      %v2458 = vld [vmem:[%s4 + $0x18] sm:$0xf]
      %v2459 = vld [vmem:[%s4 + $0x1c] sm:$0xf]
      %v2460 = vld [vmem:[%s4 + $0x20] sm:$0xf]
      %v2461 = vld [vmem:[%s4 + $0x24] sm:$0xf]
      %v2462 = vld [vmem:[%s4 + $0x28] sm:$0xf]
      %v2463 = vld [vmem:[%s4 + $0x2c] sm:$0xf]
      %v2464 = vld [vmem:[%s4 + $0x30] sm:$0xf]
      %v2465 = vld [vmem:[%s4 + $0x34] sm:$0xf]
      %v2466 = vld [vmem:[%s4 + $0x38] sm:$0xf]
      %v2467 = vld [vmem:[%s4 + $0x3c] sm:$0xf]
      %v2468 = vld [vmem:[%s4 + $0x40] sm:$0xf]
      %v2469 = vld [vmem:[%s4 + $0x44] sm:$0xf]
      %v2470 = vld [vmem:[%s4 + $0x48] sm:$0xf]
      %v2471 = vld [vmem:[%s4 + $0x4c] sm:$0xf]
      %v2472 = vld [vmem:[%s4 + $0x50] sm:$0xf]
      %v2473 = vld [vmem:[%s4 + $0x54] sm:$0xf]
      %v2474 = vld [vmem:[%s4 + $0x58] sm:$0xf]
      %v2475 = vld [vmem:[%s4 + $0x5c] sm:$0xf]
      %v2476 = vld [vmem:[%s4 + $0x60] sm:$0xf]
      %v2477 = vld [vmem:[%s4 + $0x64] sm:$0xf]
      %v2478 = vld [vmem:[%s4 + $0x68] sm:$0xf]
      %v2479 = vld [vmem:[%s4 + $0x6c] sm:$0xf]
      %v2480 = vld [vmem:[%s4 + $0x70] sm:$0xf]
      %v2481 = vld [vmem:[%s4 + $0x74] sm:$0xf]
      %v2482 = vld [vmem:[%s4 + $0x78] sm:$0xf]
      %v2483 = vld [vmem:[%s4 + $0x7c] sm:$0xf]
      %v2484 = vld [vmem:[%s4 + $0x80] sm:$0xf]
      %v2485 = vld [vmem:[%s4 + $0x84] sm:$0xf]
      %v2486 = vld [vmem:[%s4 + $0x88] sm:$0xf]
      %v2487 = vld [vmem:[%s4 + $0x8c] sm:$0xf]
      %v2488 = vld [vmem:[%s4 + $0x90] sm:$0xf]
      %v2489 = vld [vmem:[%s4 + $0x94] sm:$0xf]
      %v2490 = vld [vmem:[%s4 + $0x98] sm:$0xf]
      %v2491 = vld [vmem:[%s4 + $0x9c] sm:$0xf]
      %v2492 = vld [vmem:[%s4 + $0xa0] sm:$0xf]
      %v2493 = vld [vmem:[%s4 + $0xa4] sm:$0xf]
      %v2494 = vld [vmem:[%s4 + $0xa8] sm:$0xf]
      %v2495 = vld [vmem:[%s4 + $0xac] sm:$0xf]
      %v2496 = vld [vmem:[%s4 + $0xb0] sm:$0xf]
      %v2497 = vld [vmem:[%s4 + $0xb4] sm:$0xf]
      %v2498 = vld [vmem:[%s4 + $0xb8] sm:$0xf]
      %v2499 = vld [vmem:[%s4 + $0xbc] sm:$0xf]
      %v2500 = vld [vmem:[%s4 + $0xc0] sm:$0xf]
      %v2501 = vld [vmem:[%s4 + $0xc4] sm:$0xf]
      %v2502 = vld [vmem:[%s4 + $0xc8] sm:$0xf]
      %v2503 = vld [vmem:[%s4 + $0xcc] sm:$0xf]
      %v2504 = vld [vmem:[%s4 + $0xd0] sm:$0xf]
      %v2505 = vld [vmem:[%s4 + $0xd4] sm:$0xf]
      %v2506 = vld [vmem:[%s4 + $0xd8] sm:$0xf]
      %v2507 = vld [vmem:[%s4 + $0xdc] sm:$0xf]
      %v2508 = vld [vmem:[%s4 + $0xe0] sm:$0xf]
      %v2509 = vld [vmem:[%s4 + $0xe4] sm:$0xf]
      %v2510 = vld [vmem:[%s4 + $0xe8] sm:$0xf]
      %v2511 = vld [vmem:[%s4 + $0xec] sm:$0xf]
      %v2512 = vld [vmem:[%s4 + $0xf0] sm:$0xf]
      %v2513 = vld [vmem:[%s4 + $0xf4] sm:$0xf]
      %v2514 = vld [vmem:[%s4 + $0xf8] sm:$0xf]
      %v2515 = vld [vmem:[%s4 + $0xfc] sm:$0xf]
      %v2516 = vld [vmem:[%s5] sm:$0x1]
      %v2518 = vlaneseq
      %v2519 = vshrl.u32 %v2518, 7
      %v2520 = vsub.s32 0, %v2519
      %v2521 = vrot.slane %v2516, %v2520
      %v2587 = vunpack.c.l.b16 %v2452
      %v2588 = vunpack.c.l.b16 %v2453
      %v2589 = vunpack.c.l.b16 %v2454
      %v2590 = vunpack.c.l.b16 %v2455
      %v2591 = vunpack.c.l.b16 %v2456
      %v2592 = vunpack.c.l.b16 %v2457
      %v2593 = vunpack.c.l.b16 %v2458
      %v2594 = vunpack.c.l.b16 %v2459
      %v2595 = vunpack.c.l.b16 %v2460
      %v2596 = vunpack.c.l.b16 %v2461
      %v2597 = vunpack.c.l.b16 %v2462
      %v2598 = vunpack.c.l.b16 %v2463
      %v2599 = vunpack.c.l.b16 %v2464
      %v2600 = vunpack.c.l.b16 %v2465
      %v2601 = vunpack.c.l.b16 %v2466
      %v2602 = vunpack.c.l.b16 %v2467
      %v2603 = vunpack.c.l.b16 %v2468
      %v2604 = vunpack.c.l.b16 %v2469
      %v2605 = vunpack.c.l.b16 %v2470
      %v2606 = vunpack.c.l.b16 %v2471
      %v2607 = vunpack.c.l.b16 %v2472
      %v2608 = vunpack.c.l.b16 %v2473
      %v2609 = vunpack.c.l.b16 %v2474
      %v2610 = vunpack.c.l.b16 %v2475
      %v2611 = vunpack.c.l.b16 %v2476
      %v2612 = vunpack.c.l.b16 %v2477
      %v2613 = vunpack.c.l.b16 %v2478
      %v2614 = vunpack.c.l.b16 %v2479
      %v2615 = vunpack.c.l.b16 %v2480
      %v2616 = vunpack.c.l.b16 %v2481
      %v2617 = vunpack.c.l.b16 %v2482
      %v2618 = vunpack.c.l.b16 %v2483
      %v2619 = vunpack.c.l.b16 %v2484
      %v2620 = vunpack.c.l.b16 %v2485
      %v2621 = vunpack.c.l.b16 %v2486
      %v2622 = vunpack.c.l.b16 %v2487
      %v2623 = vunpack.c.l.b16 %v2488
      %v2624 = vunpack.c.l.b16 %v2489
      %v2625 = vunpack.c.l.b16 %v2490
      %v2626 = vunpack.c.l.b16 %v2491
      %v2627 = vunpack.c.l.b16 %v2492
      %v2628 = vunpack.c.l.b16 %v2493
      %v2629 = vunpack.c.l.b16 %v2494
      %v2630 = vunpack.c.l.b16 %v2495
      %v2631 = vunpack.c.l.b16 %v2496
      %v2632 = vunpack.c.l.b16 %v2497
      %v2633 = vunpack.c.l.b16 %v2498
      %v2634 = vunpack.c.l.b16 %v2499
      %v2635 = vunpack.c.l.b16 %v2500
      %v2636 = vunpack.c.l.b16 %v2501
      %v2637 = vunpack.c.l.b16 %v2502
      %v2638 = vunpack.c.l.b16 %v2503
      %v2639 = vunpack.c.l.b16 %v2504
      %v2640 = vunpack.c.l.b16 %v2505
      %v2641 = vunpack.c.l.b16 %v2506
      %v2642 = vunpack.c.l.b16 %v2507
      %v2643 = vunpack.c.l.b16 %v2508
      %v2644 = vunpack.c.l.b16 %v2509
      %v2645 = vunpack.c.l.b16 %v2510
      %v2646 = vunpack.c.l.b16 %v2511
      %v2647 = vunpack.c.l.b16 %v2512
      %v2648 = vunpack.c.l.b16 %v2513
      %v2649 = vunpack.c.l.b16 %v2514
      %v2650 = vunpack.c.l.b16 %v2515
      %v2651 = vpack.c.b16 %v2588, %v2587
      %v2652 = vpack.c.b16 %v2590, %v2589
      %v2653 = vpack.c.b16 %v2592, %v2591
      %v2654 = vpack.c.b16 %v2594, %v2593
      %v2655 = vpack.c.b16 %v2596, %v2595
      %v2656 = vpack.c.b16 %v2598, %v2597
      %v2657 = vpack.c.b16 %v2600, %v2599
      %v2658 = vpack.c.b16 %v2602, %v2601
      %v2659 = vpack.c.b16 %v2604, %v2603
      %v2660 = vpack.c.b16 %v2606, %v2605
      %v2661 = vpack.c.b16 %v2608, %v2607
      %v2662 = vpack.c.b16 %v2610, %v2609
      %v2663 = vpack.c.b16 %v2612, %v2611
      %v2664 = vpack.c.b16 %v2614, %v2613
      %v2665 = vpack.c.b16 %v2616, %v2615
      %v2666 = vpack.c.b16 %v2618, %v2617
      %v2667 = vpack.c.b16 %v2620, %v2619
      %v2668 = vpack.c.b16 %v2622, %v2621
      %v2669 = vpack.c.b16 %v2624, %v2623
      %v2670 = vpack.c.b16 %v2626, %v2625
      %v2671 = vpack.c.b16 %v2628, %v2627
      %v2672 = vpack.c.b16 %v2630, %v2629
      %v2673 = vpack.c.b16 %v2632, %v2631
      %v2674 = vpack.c.b16 %v2634, %v2633
      %v2675 = vpack.c.b16 %v2636, %v2635
      %v2676 = vpack.c.b16 %v2638, %v2637
      %v2677 = vpack.c.b16 %v2640, %v2639
      %v2678 = vpack.c.b16 %v2642, %v2641
      %v2679 = vpack.c.b16 %v2644, %v2643
      %v2680 = vpack.c.b16 %v2646, %v2645
      %v2681 = vpack.c.b16 %v2648, %v2647
      %v2682 = vpack.c.b16 %v2650, %v2649
      %2715 = vmatprep.subr.bf16.mxu0 0
      %2716 = vmatpush1.bf16.msra.mxu0 %v2651
      %2717 = vmatprep.subr.bf16.mxu0 0
      %2718 = vmatpush1.bf16.msra.mxu0 %v2652
      %2719 = vmatprep.subr.bf16.mxu0 0
      %2720 = vmatpush1.bf16.msra.mxu0 %v2653
      %2721 = vmatprep.subr.bf16.mxu0 0
      %2722 = vmatpush1.bf16.msra.mxu0 %v2654
      %2723 = vmatprep.subr.bf16.mxu0 0
      %2724 = vmatpush1.bf16.msra.mxu0 %v2655
      %2725 = vmatprep.subr.bf16.mxu0 0
      %2726 = vmatpush1.bf16.msra.mxu0 %v2656
      %2727 = vmatprep.subr.bf16.mxu0 0
      %2728 = vmatpush1.bf16.msra.mxu0 %v2657
      %2729 = vmatprep.subr.bf16.mxu0 0
      %2730 = vmatpush1.bf16.msra.mxu0 %v2658
      %2731 = vmatprep.subr.bf16.mxu0 0
      %2732 = vmatpush1.bf16.msra.mxu0 %v2659
      %2733 = vmatprep.subr.bf16.mxu0 0
      %2734 = vmatpush1.bf16.msra.mxu0 %v2660
      %2735 = vmatprep.subr.bf16.mxu0 0
      %2736 = vmatpush1.bf16.msra.mxu0 %v2661
      %2737 = vmatprep.subr.bf16.mxu0 0
      %2738 = vmatpush1.bf16.msra.mxu0 %v2662
      %2739 = vmatprep.subr.bf16.mxu0 0
      %2740 = vmatpush1.bf16.msra.mxu0 %v2663
      %2741 = vmatprep.subr.bf16.mxu0 0
      %2742 = vmatpush1.bf16.msra.mxu0 %v2664
      %2743 = vmatprep.subr.bf16.mxu0 0
      %2744 = vmatpush1.bf16.msra.mxu0 %v2665
      %2745 = vmatprep.subr.bf16.mxu0 0
      %2746 = vmatpush1.bf16.msra.mxu0 %v2666
      %2747 = vmatprep.mubr.bf16.mxu0 %v2377
      %2748 = vmatmul.mubr.bf16.gmra.mrb[0].mxu0 %v2345
      %v2749 = vpop.f32.mrb[0].mxu0
      %v2750 = vadd.f32 %v2521, %v2749
      %v2751 = vpop.f32.mrb[0].mxu0
      %v2752 = vpop.f32.mrb[0].mxu0
      %v2753 = vadd.f32 %v2521, %v2752
      %v2754 = vpop.f32.mrb[0].mxu0
      %2755 = vmatprep.mubr.bf16.mxu0 %v2380
      %2756 = vmatmul.mubr.bf16.gmra.mrb[0].mxu0 %v2348
      %v2757 = vpop.f32.mrb[0].mxu0
      %v2758 = vadd.f32 %v2521, %v2757
      %v2759 = vpop.f32.mrb[0].mxu0
      %v2760 = vpop.f32.mrb[0].mxu0
      %v2761 = vadd.f32 %v2521, %v2760
      %v2762 = vpop.f32.mrb[0].mxu0
      %2763 = vmatprep.mubr.bf16.mxu0 %v2383
      %2764 = vmatmul.mubr.bf16.gmra.mrb[0].mxu0 %v2351
      %v2765 = vpop.f32.mrb[0].mxu0
      %v2766 = vadd.f32 %v2521, %v2765
      %v2767 = vpop.f32.mrb[0].mxu0
      %v2768 = vpop.f32.mrb[0].mxu0
      %v2769 = vadd.f32 %v2521, %v2768
      %v2770 = vpop.f32.mrb[0].mxu0
      %2771 = vmatprep.mubr.bf16.mxu0 %v2386
      %2772 = vmatmul.mubr.bf16.gmra.mrb[0].mxu0 %v2354
      %v2773 = vpop.f32.mrb[0].mxu0
      %v2774 = vadd.f32 %v2521, %v2773
      %v2775 = vpop.f32.mrb[0].mxu0
      %v2776 = vpop.f32.mrb[0].mxu0
      %v2777 = vpop.f32.mrb[0].mxu0
      %2778 = vdwg.mxu0
      %2779 = vmatprep.subr.bf16.mxu0 0
      %2780 = vmatpush1.bf16.msra.mxu0 %v2667
      %2781 = vmatprep.subr.bf16.mxu0 0
      %2782 = vmatpush1.bf16.msra.mxu0 %v2668
      %2783 = vmatprep.subr.bf16.mxu0 0
      %2784 = vmatpush1.bf16.msra.mxu0 %v2669
      %2785 = vmatprep.subr.bf16.mxu0 0
      %2786 = vmatpush1.bf16.msra.mxu0 %v2670
      %2787 = vmatprep.subr.bf16.mxu0 0
      %2788 = vmatpush1.bf16.msra.mxu0 %v2671
      %2789 = vmatprep.subr.bf16.mxu0 0
      %2790 = vmatpush1.bf16.msra.mxu0 %v2672
      %2791 = vmatprep.subr.bf16.mxu0 0
      %2792 = vmatpush1.bf16.msra.mxu0 %v2673
      %2793 = vmatprep.subr.bf16.mxu0 0
      %2794 = vmatpush1.bf16.msra.mxu0 %v2674
      %2795 = vmatprep.subr.bf16.mxu0 0
      %2796 = vmatpush1.bf16.msra.mxu0 %v2675
      %2797 = vmatprep.subr.bf16.mxu0 0
      %2798 = vmatpush1.bf16.msra.mxu0 %v2676
      %2799 = vmatprep.subr.bf16.mxu0 0
      %2800 = vmatpush1.bf16.msra.mxu0 %v2677
      %2801 = vmatprep.subr.bf16.mxu0 0
      %2802 = vmatpush1.bf16.msra.mxu0 %v2678
      %2803 = vmatprep.subr.bf16.mxu0 0
      %2804 = vmatpush1.bf16.msra.mxu0 %v2679
      %2805 = vmatprep.subr.bf16.mxu0 0
      %2806 = vmatpush1.bf16.msra.mxu0 %v2680
      %2807 = vmatprep.subr.bf16.mxu0 0
      %2808 = vmatpush1.bf16.msra.mxu0 %v2681
      %2809 = vmatprep.subr.bf16.mxu0 0
      %2810 = vmatpush1.bf16.msra.mxu0 %v2682
      %2811 = vmatprep.mubr.bf16.mxu0 %v2441
      %2812 = vmatmul.mubr.bf16.gmra.mrb[0].mxu0 %v2409
      %v2813 = vpop.f32.mrb[0].mxu0
      %v2814 = vadd.f32 %v2750, %v2813
      %v2815 = vpop.f32.mrb[0].mxu0
      %v2816 = vpop.f32.mrb[0].mxu0
      %v2817 = vadd.f32 %v2753, %v2816
      %v2818 = vpop.f32.mrb[0].mxu0
      %2819 = vmatprep.mubr.bf16.mxu0 %v2444
      %2820 = vmatmul.mubr.bf16.gmra.mrb[0].mxu0 %v2412
      %v2821 = vpop.f32.mrb[0].mxu0
      %v2822 = vadd.f32 %v2758, %v2821
      %v2823 = vpop.f32.mrb[0].mxu0
      %v2824 = vpop.f32.mrb[0].mxu0
      %v2825 = vadd.f32 %v2761, %v2824
      %v2826 = vpop.f32.mrb[0].mxu0
      %2827 = vmatprep.mubr.bf16.mxu0 %v2447
      %2828 = vmatmul.mubr.bf16.gmra.mrb[0].mxu0 %v2415
      %v2829 = vpop.f32.mrb[0].mxu0
      %v2830 = vadd.f32 %v2766, %v2829
      %v2831 = vpop.f32.mrb[0].mxu0
      %v2832 = vpop.f32.mrb[0].mxu0
      %v2833 = vadd.f32 %v2769, %v2832
      %v2834 = vpop.f32.mrb[0].mxu0
      %2835 = vmatprep.mubr.bf16.mxu0 %v2450
      %2836 = vmatmul.mubr.bf16.gmra.mrb[0].mxu0 %v2418
      %v2837 = vpop.f32.mrb[0].mxu0
      %v2838 = vadd.f32 %v2774, %v2837
      %v2839 = vpop.f32.mrb[0].mxu0
      %v2840 = vpop.f32.mrb[0].mxu0
      %v2841 = vpop.f32.mrb[0].mxu0
      %2842 = vdwg.mxu0
      %v2843 = vmax.f32 %v2814, 0.0
      %v2844 = vmax.f32 %v2817, 0.0
      %v2845 = vmax.f32 %v2822, 0.0
      %v2846 = vmax.f32 %v2825, 0.0
      %v2847 = vmax.f32 %v2830, 0.0
      %v2848 = vmax.f32 %v2833, 0.0
      %v2849 = vmax.f32 %v2838, 0.0
      %v2850 = vpack.c.bf16 %v2844, %v2843
      %v2851 = vpack.c.bf16 %v2846, %v2845
      %v2852 = vpack.c.bf16 %v2848, %v2847
      %v2853 = vpack.c.bf16 %v2849, %v2849
      %v2854 = vld [vmem:[%s6] sm:$0xf]
      %v2855 = vld [vmem:[%s6 + $0x4] sm:$0xf]
      %v2856 = vld [vmem:[%s6 + $0x8] sm:$0xf]
      %v2857 = vld [vmem:[%s6 + $0xc] sm:$0xf]
      %v2858 = vld [vmem:[%s6 + $0x10] sm:$0xf]
      %v2859 = vld [vmem:[%s6 + $0x14] sm:$0xf]
      %v2860 = vld [vmem:[%s6 + $0x18] sm:$0xf]
      %v2861 = vld [vmem:[%s6 + $0x1c] sm:$0xf]
      %v2862 = vld [vmem:[%s6 + $0x20] sm:$0xf]
      %v2863 = vld [vmem:[%s6 + $0x24] sm:$0xf]
      %v2864 = vld [vmem:[%s6 + $0x28] sm:$0xf]
      %v2865 = vld [vmem:[%s6 + $0x2c] sm:$0xf]
      %v2866 = vld [vmem:[%s6 + $0x30] sm:$0xf]
      %v2867 = vld [vmem:[%s6 + $0x34] sm:$0xf]
      %v2868 = vld [vmem:[%s6 + $0x38] sm:$0xf]
      %v2869 = vld [vmem:[%s6 + $0x3c] sm:$0xf]
      %v2870 = vld [vmem:[%s6 + $0x40] sm:$0xf]
      %v2871 = vld [vmem:[%s6 + $0x44] sm:$0xf]
      %v2872 = vld [vmem:[%s6 + $0x48] sm:$0xf]
      %v2873 = vld [vmem:[%s6 + $0x4c] sm:$0xf]
      %v2874 = vld [vmem:[%s6 + $0x50] sm:$0xf]
      %v2875 = vld [vmem:[%s6 + $0x54] sm:$0xf]
      %v2876 = vld [vmem:[%s6 + $0x58] sm:$0xf]
      %v2877 = vld [vmem:[%s6 + $0x5c] sm:$0xf]
      %v2878 = vld [vmem:[%s6 + $0x60] sm:$0xf]
      %v2879 = vld [vmem:[%s6 + $0x64] sm:$0xf]
      %v2880 = vld [vmem:[%s6 + $0x68] sm:$0xf]
      %v2881 = vld [vmem:[%s6 + $0x6c] sm:$0xf]
      %v2882 = vld [vmem:[%s6 + $0x70] sm:$0xf]
      %v2883 = vld [vmem:[%s6 + $0x74] sm:$0xf]
      %v2884 = vld [vmem:[%s6 + $0x78] sm:$0xf]
      %v2885 = vld [vmem:[%s6 + $0x7c] sm:$0xf]
      %v2886 = vld [vmem:[%s6 + $0x80] sm:$0xf]
      %v2887 = vld [vmem:[%s6 + $0x84] sm:$0xf]
      %v2888 = vld [vmem:[%s6 + $0x88] sm:$0xf]
      %v2889 = vld [vmem:[%s6 + $0x8c] sm:$0xf]
      %v2890 = vld [vmem:[%s6 + $0x90] sm:$0xf]
      %v2891 = vld [vmem:[%s6 + $0x94] sm:$0xf]
      %v2892 = vld [vmem:[%s6 + $0x98] sm:$0xf]
      %v2893 = vld [vmem:[%s6 + $0x9c] sm:$0xf]
      %v2894 = vld [vmem:[%s6 + $0xa0] sm:$0xf]
      %v2895 = vld [vmem:[%s6 + $0xa4] sm:$0xf]
      %v2896 = vld [vmem:[%s6 + $0xa8] sm:$0xf]
      %v2897 = vld [vmem:[%s6 + $0xac] sm:$0xf]
      %v2898 = vld [vmem:[%s6 + $0xb0] sm:$0xf]
      %v2899 = vld [vmem:[%s6 + $0xb4] sm:$0xf]
      %v2900 = vld [vmem:[%s6 + $0xb8] sm:$0xf]
      %v2901 = vld [vmem:[%s6 + $0xbc] sm:$0xf]
      %v2902 = vld [vmem:[%s6 + $0xc0] sm:$0xf]
      %v2903 = vld [vmem:[%s6 + $0xc4] sm:$0xf]
      %v2904 = vld [vmem:[%s6 + $0xc8] sm:$0xf]
      %v2905 = vld [vmem:[%s6 + $0xcc] sm:$0xf]
      %v2906 = vld [vmem:[%s6 + $0xd0] sm:$0xf]
      %v2907 = vld [vmem:[%s6 + $0xd4] sm:$0xf]
      %v2908 = vld [vmem:[%s6 + $0xd8] sm:$0xf]
      %v2909 = vld [vmem:[%s6 + $0xdc] sm:$0x1]
      %v2966 = vunpack.c.l.b16 %v2854
      %v2967 = vunpack.c.l.b16 %v2855
      %v2968 = vunpack.c.l.b16 %v2856
      %v2969 = vunpack.c.l.b16 %v2857
      %v2970 = vunpack.c.l.b16 %v2858
      %v2971 = vunpack.c.l.b16 %v2859
      %v2972 = vunpack.c.l.b16 %v2860
      %v2973 = vunpack.c.l.b16 %v2861
      %v2974 = vunpack.c.l.b16 %v2862
      %v2975 = vunpack.c.l.b16 %v2863
      %v2976 = vunpack.c.l.b16 %v2864
      %v2977 = vunpack.c.l.b16 %v2865
      %v2978 = vunpack.c.l.b16 %v2866
      %v2979 = vunpack.c.l.b16 %v2867
      %v2980 = vunpack.c.l.b16 %v2868
      %v2981 = vunpack.c.l.b16 %v2869
      %v2982 = vunpack.c.l.b16 %v2870
      %v2983 = vunpack.c.l.b16 %v2871
      %v2984 = vunpack.c.l.b16 %v2872
      %v2985 = vunpack.c.l.b16 %v2873
      %v2986 = vunpack.c.l.b16 %v2874
      %v2987 = vunpack.c.l.b16 %v2875
      %v2988 = vunpack.c.l.b16 %v2876
      %v2989 = vunpack.c.l.b16 %v2877
      %v2990 = vunpack.c.l.b16 %v2878
      %v2991 = vunpack.c.l.b16 %v2879
      %v2992 = vunpack.c.l.b16 %v2880
      %v2993 = vunpack.c.l.b16 %v2881
      %v2994 = vunpack.c.l.b16 %v2882
      %v2995 = vunpack.c.l.b16 %v2883
      %v2996 = vunpack.c.l.b16 %v2884
      %v2997 = vunpack.c.l.b16 %v2885
      %v2998 = vunpack.c.l.b16 %v2886
      %v2999 = vunpack.c.l.b16 %v2887
      %v3000 = vunpack.c.l.b16 %v2888
      %v3001 = vunpack.c.l.b16 %v2889
      %v3002 = vunpack.c.l.b16 %v2890
      %v3003 = vunpack.c.l.b16 %v2891
      %v3004 = vunpack.c.l.b16 %v2892
      %v3005 = vunpack.c.l.b16 %v2893
      %v3006 = vunpack.c.l.b16 %v2894
      %v3007 = vunpack.c.l.b16 %v2895
      %v3008 = vunpack.c.l.b16 %v2896
      %v3009 = vunpack.c.l.b16 %v2897
      %v3010 = vunpack.c.l.b16 %v2898
      %v3011 = vunpack.c.l.b16 %v2899
      %v3012 = vunpack.c.l.b16 %v2900
      %v3013 = vunpack.c.l.b16 %v2901
      %v3014 = vunpack.c.l.b16 %v2902
      %v3015 = vunpack.c.l.b16 %v2903
      %v3016 = vunpack.c.l.b16 %v2904
      %v3017 = vunpack.c.l.b16 %v2905
      %v3018 = vunpack.c.l.b16 %v2906
      %v3019 = vunpack.c.l.b16 %v2907
      %v3020 = vunpack.c.l.b16 %v2908
      %v3021 = vunpack.c.l.b16 %v2909
      %v3022 = vpack.c.b16 %v2967, %v2966
      %v3023 = vpack.c.b16 %v2969, %v2968
      %v3024 = vpack.c.b16 %v2971, %v2970
      %v3025 = vpack.c.b16 %v2973, %v2972
      %v3026 = vpack.c.b16 %v2975, %v2974
      %v3027 = vpack.c.b16 %v2977, %v2976
      %v3028 = vpack.c.b16 %v2979, %v2978
      %v3029 = vpack.c.b16 %v2981, %v2980
      %v3030 = vpack.c.b16 %v2983, %v2982
      %v3031 = vpack.c.b16 %v2985, %v2984
      %v3032 = vpack.c.b16 %v2987, %v2986
      %v3033 = vpack.c.b16 %v2989, %v2988
      %v3034 = vpack.c.b16 %v2991, %v2990
      %v3035 = vpack.c.b16 %v2993, %v2992
      %v3036 = vpack.c.b16 %v2995, %v2994
      %v3037 = vpack.c.b16 %v2997, %v2996
      %v3038 = vpack.c.b16 %v2999, %v2998
      %v3039 = vpack.c.b16 %v3001, %v3000
      %v3040 = vpack.c.b16 %v3003, %v3002
      %v3041 = vpack.c.b16 %v3005, %v3004
      %v3042 = vpack.c.b16 %v3007, %v3006
      %v3043 = vpack.c.b16 %v3009, %v3008
      %v3044 = vpack.c.b16 %v3011, %v3010
      %v3045 = vpack.c.b16 %v3013, %v3012
      %v3046 = vpack.c.b16 %v3015, %v3014
      %v3047 = vpack.c.b16 %v3017, %v3016
      %v3048 = vpack.c.b16 %v3019, %v3018
      %v3049 = vpack.c.b16 %v3021, %v3020
      %vm3050 = vcmask 400384
      %v3052 = vsel %vm3050, %v3022, 0
      %v3055 = vsel %vm3050, %v3023, 0
      %v3058 = vsel %vm3050, %v3024, 0
      %v3061 = vsel %vm3050, %v3025, 0
      %v3064 = vsel %vm3050, %v3026, 0
      %v3067 = vsel %vm3050, %v3027, 0
      %v3070 = vsel %vm3050, %v3028, 0
      %v3073 = vsel %vm3050, %v3029, 0
      %v3076 = vsel %vm3050, %v3030, 0
      %v3079 = vsel %vm3050, %v3031, 0
      %v3082 = vsel %vm3050, %v3032, 0
      %v3085 = vsel %vm3050, %v3033, 0
      %v3088 = vsel %vm3050, %v3034, 0
      %v3091 = vsel %vm3050, %v3035, 0
      %v3094 = vsel %vm3050, %v3036, 0
      %v3097 = vsel %vm3050, %v3037, 0
      %v3100 = vsel %vm3050, %v3038, 0
      %v3103 = vsel %vm3050, %v3039, 0
      %v3106 = vsel %vm3050, %v3040, 0
      %v3109 = vsel %vm3050, %v3041, 0
      %v3112 = vsel %vm3050, %v3042, 0
      %v3115 = vsel %vm3050, %v3043, 0
      %v3118 = vsel %vm3050, %v3044, 0
      %v3121 = vsel %vm3050, %v3045, 0
      %v3124 = vsel %vm3050, %v3046, 0
      %v3127 = vsel %vm3050, %v3047, 0
      %v3130 = vsel %vm3050, %v3048, 0
      %v3133 = vsel %vm3050, %v3049, 0
      %vm3135 = vcmask 1040384
      %v3136 = vsel 0, 4294967295, 65535
      %v3137 = vsel %vm3135, %v3136, 0
      %v3139 = vand.u32 %v2853, %v3137
      %3141 = vmatprep.subr.bf16.mxu0 0
      %3142 = vmatpush1.bf16.msra.mxu0 %v2850
      %3143 = vmatprep.subr.bf16.mxu0 0
      %3144 = vmatpush1.bf16.msra.mxu0 %v2851
      %3145 = vmatprep.subr.bf16.mxu0 0
      %3146 = vmatpush1.bf16.msra.mxu0 %v2852
      %3147 = vmatprep.subr.bf16.mxu0 0
      %3148 = vmatpush1.bf16.msra.mxu0 %v3139
      %3149 = vmatprep.subr.bf16.mxu0 0
      %3150 = vmatpush1.bf16.msra.mxu0 0
      %3151 = vmatprep.subr.bf16.mxu0 0
      %3152 = vmatpush1.bf16.msra.mxu0 0
      %3153 = vmatprep.subr.bf16.mxu0 0
      %3154 = vmatpush1.bf16.msra.mxu0 0
      %3155 = vmatprep.subr.bf16.mxu0 0
      %3156 = vmatpush1.bf16.msra.mxu0 0
      %3157 = vmatprep.subr.bf16.mxu0 0
      %3158 = vmatpush1.bf16.msra.mxu0 0
      %3159 = vmatprep.subr.bf16.mxu0 0
      %3160 = vmatpush1.bf16.msra.mxu0 0
      %3161 = vmatprep.subr.bf16.mxu0 0
      %3162 = vmatpush1.bf16.msra.mxu0 0
      %3163 = vmatprep.subr.bf16.mxu0 0
      %3164 = vmatpush1.bf16.msra.mxu0 0
      %3165 = vmatprep.subr.bf16.mxu0 0
      %3166 = vmatpush1.bf16.msra.mxu0 0
      %3167 = vmatprep.subr.bf16.mxu0 0
      %3168 = vmatpush1.bf16.msra.mxu0 0
      %3169 = vmatprep.subr.bf16.mxu0 0
      %3170 = vmatpush1.bf16.msra.mxu0 0
      %3171 = vmatprep.subr.bf16.mxu0 0
      %3172 = vmatpush1.bf16.msra.mxu0 0
      %3173 = vmatprep.mubr.bf16.mxu0 0
      %3174 = vmatmul.mubr.bf16.gmra.mrb[0].mxu0 %v3052
      %v3175 = vpop.f32.mrb[0].mxu0
      %v3176 = vadd.f32 0.0, %v3175
      %v3177 = vpop.f32.mrb[0].mxu0
      %v3178 = vpop.f32.mrb[0].mxu0
      %v3179 = vadd.f32 0.0, %v3178
      %v3180 = vpop.f32.mrb[0].mxu0
      %3181 = vmatprep.mubr.bf16.mxu0 0
      %3182 = vmatmul.mubr.bf16.gmra.mrb[0].mxu0 %v3055
      %v3183 = vpop.f32.mrb[0].mxu0
      %v3184 = vadd.f32 0.0, %v3183
      %v3185 = vpop.f32.mrb[0].mxu0
      %v3186 = vpop.f32.mrb[0].mxu0
      %v3187 = vadd.f32 0.0, %v3186
      %v3188 = vpop.f32.mrb[0].mxu0
      %3189 = vmatprep.mubr.bf16.mxu0 0
      %3190 = vmatmul.mubr.bf16.gmra.mrb[0].mxu0 %v3058
      %v3191 = vpop.f32.mrb[0].mxu0
      %v3192 = vadd.f32 0.0, %v3191
      %v3193 = vpop.f32.mrb[0].mxu0
      %v3194 = vpop.f32.mrb[0].mxu0
      %v3195 = vadd.f32 0.0, %v3194
      %v3196 = vpop.f32.mrb[0].mxu0
      %3197 = vmatprep.mubr.bf16.mxu0 0
      %3198 = vmatmul.mubr.bf16.gmra.mrb[0].mxu0 %v3061
      %v3199 = vpop.f32.mrb[0].mxu0
      %v3200 = vadd.f32 0.0, %v3199
      %v3201 = vpop.f32.mrb[0].mxu0
      %v3202 = vpop.f32.mrb[0].mxu0
      %v3203 = vadd.f32 0.0, %v3202
      %v3204 = vpop.f32.mrb[0].mxu0
      %3205 = vmatprep.mubr.bf16.mxu0 0
      %3206 = vmatmul.mubr.bf16.gmra.mrb[0].mxu0 %v3064
      %v3207 = vpop.f32.mrb[0].mxu0
      %v3208 = vadd.f32 0.0, %v3207
      %v3209 = vpop.f32.mrb[0].mxu0
      %v3210 = vpop.f32.mrb[0].mxu0
      %v3211 = vadd.f32 0.0, %v3210
      %v3212 = vpop.f32.mrb[0].mxu0
      %3213 = vmatprep.mubr.bf16.mxu0 0
      %3214 = vmatmul.mubr.bf16.gmra.mrb[0].mxu0 %v3067
      %v3215 = vpop.f32.mrb[0].mxu0
      %v3216 = vadd.f32 0.0, %v3215
      %v3217 = vpop.f32.mrb[0].mxu0
      %v3218 = vpop.f32.mrb[0].mxu0
      %v3219 = vadd.f32 0.0, %v3218
      %v3220 = vpop.f32.mrb[0].mxu0
      %3221 = vmatprep.mubr.bf16.mxu0 0
      %3222 = vmatmul.mubr.bf16.gmra.mrb[0].mxu0 %v3070
      %v3223 = vpop.f32.mrb[0].mxu0
      %v3224 = vadd.f32 0.0, %v3223
      %v3225 = vpop.f32.mrb[0].mxu0
      %v3226 = vpop.f32.mrb[0].mxu0
      %v3227 = vadd.f32 0.0, %v3226
      %v3228 = vpop.f32.mrb[0].mxu0
      %3229 = vmatprep.mubr.bf16.mxu0 0
      %3230 = vmatmul.mubr.bf16.gmra.mrb[0].mxu0 %v3073
      %v3231 = vpop.f32.mrb[0].mxu0
      %v3232 = vadd.f32 0.0, %v3231
      %v3233 = vpop.f32.mrb[0].mxu0
      %v3234 = vpop.f32.mrb[0].mxu0
      %v3235 = vadd.f32 0.0, %v3234
      %v3236 = vpop.f32.mrb[0].mxu0
      %3237 = vmatprep.mubr.bf16.mxu0 0
      %3238 = vmatmul.mubr.bf16.gmra.mrb[0].mxu0 %v3076
      %v3239 = vpop.f32.mrb[0].mxu0
      %v3240 = vadd.f32 0.0, %v3239
      %v3241 = vpop.f32.mrb[0].mxu0
      %v3242 = vpop.f32.mrb[0].mxu0
      %v3243 = vadd.f32 0.0, %v3242
      %v3244 = vpop.f32.mrb[0].mxu0
      %3245 = vmatprep.mubr.bf16.mxu0 0
      %3246 = vmatmul.mubr.bf16.gmra.mrb[0].mxu0 %v3079
      %v3247 = vpop.f32.mrb[0].mxu0
      %v3248 = vadd.f32 0.0, %v3247
      %v3249 = vpop.f32.mrb[0].mxu0
      %v3250 = vpop.f32.mrb[0].mxu0
      %v3251 = vadd.f32 0.0, %v3250
      %v3252 = vpop.f32.mrb[0].mxu0
      %3253 = vmatprep.mubr.bf16.mxu0 0
      %3254 = vmatmul.mubr.bf16.gmra.mrb[0].mxu0 %v3082
      %v3255 = vpop.f32.mrb[0].mxu0
      %v3256 = vadd.f32 0.0, %v3255
      %v3257 = vpop.f32.mrb[0].mxu0
      %v3258 = vpop.f32.mrb[0].mxu0
      %v3259 = vadd.f32 0.0, %v3258
      %v3260 = vpop.f32.mrb[0].mxu0
      %3261 = vmatprep.mubr.bf16.mxu0 0
      %3262 = vmatmul.mubr.bf16.gmra.mrb[0].mxu0 %v3085
      %v3263 = vpop.f32.mrb[0].mxu0
      %v3264 = vadd.f32 0.0, %v3263
      %v3265 = vpop.f32.mrb[0].mxu0
      %v3266 = vpop.f32.mrb[0].mxu0
      %v3267 = vadd.f32 0.0, %v3266
      %v3268 = vpop.f32.mrb[0].mxu0
      %3269 = vmatprep.mubr.bf16.mxu0 0
      %3270 = vmatmul.mubr.bf16.gmra.mrb[0].mxu0 %v3088
      %v3271 = vpop.f32.mrb[0].mxu0
      %v3272 = vadd.f32 0.0, %v3271
      %v3273 = vpop.f32.mrb[0].mxu0
      %v3274 = vpop.f32.mrb[0].mxu0
      %v3275 = vadd.f32 0.0, %v3274
      %v3276 = vpop.f32.mrb[0].mxu0
      %3277 = vmatprep.mubr.bf16.mxu0 0
      %3278 = vmatmul.mubr.bf16.gmra.mrb[0].mxu0 %v3091
      %v3279 = vpop.f32.mrb[0].mxu0
      %v3280 = vadd.f32 0.0, %v3279
      %v3281 = vpop.f32.mrb[0].mxu0
      %v3282 = vpop.f32.mrb[0].mxu0
      %v3283 = vadd.f32 0.0, %v3282
      %v3284 = vpop.f32.mrb[0].mxu0
      %3285 = vmatprep.mubr.bf16.mxu0 0
      %3286 = vmatmul.mubr.bf16.gmra.mrb[0].mxu0 %v3094
      %v3287 = vpop.f32.mrb[0].mxu0
      %v3288 = vadd.f32 0.0, %v3287
      %v3289 = vpop.f32.mrb[0].mxu0
      %v3290 = vpop.f32.mrb[0].mxu0
      %v3291 = vadd.f32 0.0, %v3290
      %v3292 = vpop.f32.mrb[0].mxu0
      %3293 = vmatprep.mubr.bf16.mxu0 0
      %3294 = vmatmul.mubr.bf16.gmra.mrb[0].mxu0 %v3097
      %v3295 = vpop.f32.mrb[0].mxu0
      %v3296 = vadd.f32 0.0, %v3295
      %v3297 = vpop.f32.mrb[0].mxu0
      %v3298 = vpop.f32.mrb[0].mxu0
      %v3299 = vadd.f32 0.0, %v3298
      %v3300 = vpop.f32.mrb[0].mxu0
      %3301 = vmatprep.mubr.bf16.mxu0 0
      %3302 = vmatmul.mubr.bf16.gmra.mrb[0].mxu0 %v3100
      %v3303 = vpop.f32.mrb[0].mxu0
      %v3304 = vadd.f32 0.0, %v3303
      %v3305 = vpop.f32.mrb[0].mxu0
      %v3306 = vpop.f32.mrb[0].mxu0
      %v3307 = vadd.f32 0.0, %v3306
      %v3308 = vpop.f32.mrb[0].mxu0
      %3309 = vmatprep.mubr.bf16.mxu0 0
      %3310 = vmatmul.mubr.bf16.gmra.mrb[0].mxu0 %v3103
      %v3311 = vpop.f32.mrb[0].mxu0
      %v3312 = vadd.f32 0.0, %v3311
      %v3313 = vpop.f32.mrb[0].mxu0
      %v3314 = vpop.f32.mrb[0].mxu0
      %v3315 = vadd.f32 0.0, %v3314
      %v3316 = vpop.f32.mrb[0].mxu0
      %3317 = vmatprep.mubr.bf16.mxu0 0
      %3318 = vmatmul.mubr.bf16.gmra.mrb[0].mxu0 %v3106
      %v3319 = vpop.f32.mrb[0].mxu0
      %v3320 = vadd.f32 0.0, %v3319
      %v3321 = vpop.f32.mrb[0].mxu0
      %v3322 = vpop.f32.mrb[0].mxu0
      %v3323 = vadd.f32 0.0, %v3322
      %v3324 = vpop.f32.mrb[0].mxu0
      %3325 = vmatprep.mubr.bf16.mxu0 0
      %3326 = vmatmul.mubr.bf16.gmra.mrb[0].mxu0 %v3109
      %v3327 = vpop.f32.mrb[0].mxu0
      %v3328 = vadd.f32 0.0, %v3327
      %v3329 = vpop.f32.mrb[0].mxu0
      %v3330 = vpop.f32.mrb[0].mxu0
      %v3331 = vadd.f32 0.0, %v3330
      %v3332 = vpop.f32.mrb[0].mxu0
      %3333 = vmatprep.mubr.bf16.mxu0 0
      %3334 = vmatmul.mubr.bf16.gmra.mrb[0].mxu0 %v3112
      %v3335 = vpop.f32.mrb[0].mxu0
      %v3336 = vadd.f32 0.0, %v3335
      %v3337 = vpop.f32.mrb[0].mxu0
      %v3338 = vpop.f32.mrb[0].mxu0
      %v3339 = vadd.f32 0.0, %v3338
      %v3340 = vpop.f32.mrb[0].mxu0
      %3341 = vmatprep.mubr.bf16.mxu0 0
      %3342 = vmatmul.mubr.bf16.gmra.mrb[0].mxu0 %v3115
      %v3343 = vpop.f32.mrb[0].mxu0
      %v3344 = vadd.f32 0.0, %v3343
      %v3345 = vpop.f32.mrb[0].mxu0
      %v3346 = vpop.f32.mrb[0].mxu0
      %v3347 = vadd.f32 0.0, %v3346
      %v3348 = vpop.f32.mrb[0].mxu0
      %3349 = vmatprep.mubr.bf16.mxu0 0
      %3350 = vmatmul.mubr.bf16.gmra.mrb[0].mxu0 %v3118
      %v3351 = vpop.f32.mrb[0].mxu0
      %v3352 = vadd.f32 0.0, %v3351
      %v3353 = vpop.f32.mrb[0].mxu0
      %v3354 = vpop.f32.mrb[0].mxu0
      %v3355 = vadd.f32 0.0, %v3354
      %v3356 = vpop.f32.mrb[0].mxu0
      %3357 = vmatprep.mubr.bf16.mxu0 0
      %3358 = vmatmul.mubr.bf16.gmra.mrb[0].mxu0 %v3121
      %v3359 = vpop.f32.mrb[0].mxu0
      %v3360 = vadd.f32 0.0, %v3359
      %v3361 = vpop.f32.mrb[0].mxu0
      %v3362 = vpop.f32.mrb[0].mxu0
      %v3363 = vadd.f32 0.0, %v3362
      %v3364 = vpop.f32.mrb[0].mxu0
      %3365 = vmatprep.mubr.bf16.mxu0 0
      %3366 = vmatmul.mubr.bf16.gmra.mrb[0].mxu0 %v3124
      %v3367 = vpop.f32.mrb[0].mxu0
      %v3368 = vadd.f32 0.0, %v3367
      %v3369 = vpop.f32.mrb[0].mxu0
      %v3370 = vpop.f32.mrb[0].mxu0
      %v3371 = vadd.f32 0.0, %v3370
      %v3372 = vpop.f32.mrb[0].mxu0
      %3373 = vmatprep.mubr.bf16.mxu0 0
      %3374 = vmatmul.mubr.bf16.gmra.mrb[0].mxu0 %v3127
      %v3375 = vpop.f32.mrb[0].mxu0
      %v3376 = vadd.f32 0.0, %v3375
      %v3377 = vpop.f32.mrb[0].mxu0
      %v3378 = vpop.f32.mrb[0].mxu0
      %v3379 = vadd.f32 0.0, %v3378
      %v3380 = vpop.f32.mrb[0].mxu0
      %3381 = vmatprep.mubr.bf16.mxu0 0
      %3382 = vmatmul.mubr.bf16.gmra.mrb[0].mxu0 %v3130
      %v3383 = vpop.f32.mrb[0].mxu0
      %v3384 = vadd.f32 0.0, %v3383
      %v3385 = vpop.f32.mrb[0].mxu0
      %v3386 = vpop.f32.mrb[0].mxu0
      %v3387 = vadd.f32 0.0, %v3386
      %v3388 = vpop.f32.mrb[0].mxu0
      %3389 = vmatprep.mubr.bf16.mxu0 0
      %3390 = vmatmul.mubr.bf16.gmra.mrb[0].mxu0 %v3133
      %v3391 = vpop.f32.mrb[0].mxu0
      %v3392 = vadd.f32 0.0, %v3391
      %v3393 = vpop.f32.mrb[0].mxu0
      %v3394 = vpop.f32.mrb[0].mxu0
      %v3395 = vadd.f32 0.0, %v3394
      %v3396 = vpop.f32.mrb[0].mxu0
      %3397 = vdwg.mxu0
      %v3398 = vpack.c.bf16 %v3179, %v3176
      %v3399 = vpack.c.bf16 %v3187, %v3184
      %v3400 = vpack.c.bf16 %v3195, %v3192
      %v3401 = vpack.c.bf16 %v3203, %v3200
      %v3402 = vpack.c.bf16 %v3211, %v3208
      %v3403 = vpack.c.bf16 %v3219, %v3216
      %v3404 = vpack.c.bf16 %v3227, %v3224
      %v3405 = vpack.c.bf16 %v3235, %v3232
      %v3406 = vpack.c.bf16 %v3243, %v3240
      %v3407 = vpack.c.bf16 %v3251, %v3248
      %v3408 = vpack.c.bf16 %v3259, %v3256
      %v3409 = vpack.c.bf16 %v3267, %v3264
      %v3410 = vpack.c.bf16 %v3275, %v3272
      %v3411 = vpack.c.bf16 %v3283, %v3280
      %v3412 = vpack.c.bf16 %v3291, %v3288
      %v3413 = vpack.c.bf16 %v3299, %v3296
      %v3414 = vpack.c.bf16 %v3307, %v3304
      %v3415 = vpack.c.bf16 %v3315, %v3312
      %v3416 = vpack.c.bf16 %v3323, %v3320
      %v3417 = vpack.c.bf16 %v3331, %v3328
      %v3418 = vpack.c.bf16 %v3339, %v3336
      %v3419 = vpack.c.bf16 %v3347, %v3344
      %v3420 = vpack.c.bf16 %v3355, %v3352
      %v3421 = vpack.c.bf16 %v3363, %v3360
      %v3422 = vpack.c.bf16 %v3371, %v3368
      %v3423 = vpack.c.bf16 %v3379, %v3376
      %v3424 = vpack.c.bf16 %v3387, %v3384
      %v3425 = vpack.c.bf16 %v3395, %v3392
      %v3427 = vshrl.u32 %v3401, 16
      %v3429 = vshll.u32 %v3401, 16
      %v3431 = vrot.slane %v3429, 1
      %v3432 = vor.u32 %v3427, %v3431
      %v3434 = vshll.u32 %v3402, 16
      %v3436 = vrot.slane %v3434, 1
      %v3437 = vsel %vm1866, %v3432, %v3436
      %v3438 = vshrl.u32 %v3402, 16
      %v3440 = vor.u32 %v3438, %v3436
      %v3442 = vshll.u32 %v3403, 16
      %v3444 = vrot.slane %v3442, 1
      %v3445 = vsel %vm1866, %v3440, %v3444
      %v3446 = vshrl.u32 %v3403, 16
      %v3448 = vor.u32 %v3446, %v3444
      %v3450 = vshll.u32 %v3404, 16
      %v3452 = vrot.slane %v3450, 1
      %v3453 = vsel %vm1866, %v3448, %v3452
      %v3454 = vshrl.u32 %v3404, 16
      %3456 = vrot.lane.b32.xlu0 %v3437, 64
      %v3457 = vpop.permute.xlu0 %3456
      %3458 = vrot.lane.b32.xlu0 %v3445, 64
      %v3459 = vpop.permute.xlu0 %3458
      %3460 = vrot.lane.b32.xlu0 %v3453, 64
      %v3461 = vpop.permute.xlu0 %3460
      %3462 = vrot.lane.b32.xlu0 %v3454, 64
      %v3463 = vpop.permute.xlu0 %3462
      %v3468 = vrot.slane %v3404, 1
      %v3469 = vrot.slane %v3405, 1
      %v3470 = vsel %vm1909, %v3468, %v3469
      %v3471 = vrot.slane %v3406, 1
      %v3472 = vsel %vm1909, %v3469, %v3471
      %v3473 = vrot.slane %v3407, 1
      %v3474 = vsel %vm1909, %v3471, %v3473
      %v3476 = vshrl.u32 %v3407, 16
      %v3478 = vrot.slane %v3476, 1
      %v3479 = vshll.u32 %v3407, 16
      %v3481 = vrot.slane %v3479, 2
      %v3482 = vor.u32 %v3478, %v3481
      %v3484 = vshrl.u32 %v3408, 16
      %v3486 = vrot.slane %v3484, 1
      %v3487 = vshll.u32 %v3408, 16
      %v3489 = vrot.slane %v3487, 2
      %v3490 = vor.u32 %v3486, %v3489
      %v3491 = vsel %vm1925, %v3482, %v3490
      %v3493 = vshrl.u32 %v3409, 16
      %v3495 = vrot.slane %v3493, 1
      %v3496 = vshll.u32 %v3409, 16
      %v3498 = vrot.slane %v3496, 2
      %v3499 = vor.u32 %v3495, %v3498
      %v3500 = vsel %vm1925, %v3490, %v3499
      %v3502 = vshrl.u32 %v3410, 16
      %v3504 = vrot.slane %v3502, 1
      %v3505 = vshll.u32 %v3410, 16
      %v3507 = vrot.slane %v3505, 2
      %v3508 = vor.u32 %v3504, %v3507
      %v3509 = vsel %vm1925, %v3499, %v3508
      %3510 = vrot.lane.b32.xlu0 %v3491, 64
      %v3511 = vpop.permute.xlu0 %3510
      %3512 = vrot.lane.b32.xlu0 %v3500, 64
      %v3513 = vpop.permute.xlu0 %3512
      %3514 = vrot.lane.b32.xlu0 %v3509, 64
      %v3515 = vpop.permute.xlu0 %3514
      %3516 = vrot.lane.b32.xlu0 %v3504, 64
      %v3517 = vpop.permute.xlu0 %3516
      %v3522 = vrot.slane %v3410, 2
      %v3523 = vrot.slane %v3411, 2
      %v3524 = vsel %vm1973, %v3522, %v3523
      %v3525 = vrot.slane %v3412, 2
      %v3526 = vsel %vm1973, %v3523, %v3525
      %v3527 = vrot.slane %v3413, 2
      %v3528 = vsel %vm1973, %v3525, %v3527
      %v3530 = vshrl.u32 %v3413, 16
      %v3532 = vrot.slane %v3530, 2
      %v3533 = vshll.u32 %v3413, 16
      %v3535 = vrot.slane %v3533, 3
      %v3536 = vor.u32 %v3532, %v3535
      %v3538 = vshrl.u32 %v3414, 16
      %v3540 = vrot.slane %v3538, 2
      %v3541 = vshll.u32 %v3414, 16
      %v3543 = vrot.slane %v3541, 3
      %v3544 = vor.u32 %v3540, %v3543
      %v3545 = vsel %vm1981, %v3536, %v3544
      %v3547 = vshrl.u32 %v3415, 16
      %v3549 = vrot.slane %v3547, 2
      %v3550 = vshll.u32 %v3415, 16
      %v3552 = vrot.slane %v3550, 3
      %v3553 = vor.u32 %v3549, %v3552
      %v3554 = vsel %vm1981, %v3544, %v3553
      %v3556 = vshrl.u32 %v3416, 16
      %v3558 = vrot.slane %v3556, 2
      %v3559 = vshll.u32 %v3416, 16
      %v3561 = vrot.slane %v3559, 3
      %v3562 = vor.u32 %v3558, %v3561
      %v3563 = vsel %vm1981, %v3553, %v3562
      %3564 = vrot.lane.b32.xlu0 %v3545, 64
      %v3565 = vpop.permute.xlu0 %3564
      %3566 = vrot.lane.b32.xlu0 %v3554, 64
      %v3567 = vpop.permute.xlu0 %3566
      %3568 = vrot.lane.b32.xlu0 %v3563, 64
      %v3569 = vpop.permute.xlu0 %3568
      %3570 = vrot.lane.b32.xlu0 %v3558, 64
      %v3571 = vpop.permute.xlu0 %3570
      %v3576 = vrot.slane %v3416, 3
      %v3577 = vrot.slane %v3417, 3
      %v3578 = vsel %vm2029, %v3576, %v3577
      %v3579 = vrot.slane %v3418, 3
      %v3580 = vsel %vm2029, %v3577, %v3579
      %v3581 = vrot.slane %v3419, 3
      %v3582 = vsel %vm2029, %v3579, %v3581
      %v3584 = vshrl.u32 %v3419, 16
      %v3586 = vrot.slane %v3584, 3
      %v3587 = vshll.u32 %v3419, 16
      %v3589 = vrot.slane %v3587, 4
      %v3590 = vor.u32 %v3586, %v3589
      %v3592 = vshrl.u32 %v3420, 16
      %v3594 = vrot.slane %v3592, 3
      %v3595 = vshll.u32 %v3420, 16
      %v3597 = vrot.slane %v3595, 4
      %v3598 = vor.u32 %v3594, %v3597
      %v3599 = vsel %vm2045, %v3590, %v3598
      %v3601 = vshrl.u32 %v3421, 16
      %v3603 = vrot.slane %v3601, 3
      %v3604 = vshll.u32 %v3421, 16
      %v3606 = vrot.slane %v3604, 4
      %v3607 = vor.u32 %v3603, %v3606
      %v3608 = vsel %vm2045, %v3598, %v3607
      %v3610 = vshrl.u32 %v3422, 16
      %v3612 = vrot.slane %v3610, 3
      %v3613 = vshll.u32 %v3422, 16
      %v3615 = vrot.slane %v3613, 4
      %v3616 = vor.u32 %v3612, %v3615
      %v3617 = vsel %vm2045, %v3607, %v3616
      %3618 = vrot.lane.b32.xlu0 %v3599, 64
      %v3619 = vpop.permute.xlu0 %3618
      %3620 = vrot.lane.b32.xlu0 %v3608, 64
      %v3621 = vpop.permute.xlu0 %3620
      %3622 = vrot.lane.b32.xlu0 %v3617, 64
      %v3623 = vpop.permute.xlu0 %3622
      %3624 = vrot.lane.b32.xlu0 %v3612, 64
      %v3625 = vpop.permute.xlu0 %3624
      %v3630 = vrot.slane %v3422, 4
      %v3631 = vrot.slane %v3423, 4
      %v3632 = vsel %vm2093, %v3630, %v3631
      %v3633 = vrot.slane %v3424, 4
      %v3634 = vsel %vm2093, %v3631, %v3633
      %v3635 = vrot.slane %v3425, 4
      %v3636 = vsel %vm2093, %v3633, %v3635
      %v3639 = vsel %vm2334, %v3398, %v3457
      %v3643 = vsel %vm2334, %v3399, %v3459
      %v3647 = vsel %vm2334, %v3400, %v3461
      %v3650 = vsel %vm2334, %v3401, %v3463
      %v3654 = vsel %vm2334, %v3470, %v3511
      %v3658 = vsel %vm2334, %v3472, %v3513
      %v3662 = vsel %vm2334, %v3474, %v3515
      %v3666 = vsel %vm2334, %v3473, %v3517
      %v3670 = vsel %vm2334, %v3524, %v3565
      %v3674 = vsel %vm2334, %v3526, %v3567
      %v3678 = vsel %vm2334, %v3528, %v3569
      %v3682 = vsel %vm2334, %v3527, %v3571
      %v3686 = vsel %vm2334, %v3578, %v3619
      %v3690 = vsel %vm2334, %v3580, %v3621
      %v3694 = vsel %vm2334, %v3582, %v3623
      %v3698 = vsel %vm2334, %v3581, %v3625
      %v3700 = vld [vmem:[%s7] sm:$0xf]
      %v3701 = vld [vmem:[%s7 + $0x4] sm:$0xf]
      %v3702 = vld [vmem:[%s7 + $0x8] sm:$0xf]
      %v3703 = vld [vmem:[%s7 + $0xc] sm:$0xf]
      %v3704 = vld [vmem:[%s7 + $0x10] sm:$0xf]
      %v3705 = vld [vmem:[%s7 + $0x14] sm:$0xf]
      %v3706 = vld [vmem:[%s7 + $0x18] sm:$0xf]
      %v3707 = vld [vmem:[%s7 + $0x1c] sm:$0xf]
      %v3708 = vld [vmem:[%s7 + $0x20] sm:$0xf]
      %v3709 = vld [vmem:[%s7 + $0x24] sm:$0xf]
      %v3710 = vld [vmem:[%s7 + $0x28] sm:$0xf]
      %v3711 = vld [vmem:[%s7 + $0x2c] sm:$0xf]
      %v3712 = vld [vmem:[%s7 + $0x30] sm:$0xf]
      %v3713 = vld [vmem:[%s7 + $0x34] sm:$0xf]
      %v3714 = vld [vmem:[%s7 + $0x38] sm:$0xf]
      %v3715 = vld [vmem:[%s7 + $0x3c] sm:$0xf]
      %v3716 = vld [vmem:[%s7 + $0x40] sm:$0xf]
      %v3717 = vld [vmem:[%s7 + $0x44] sm:$0xf]
      %v3718 = vld [vmem:[%s7 + $0x48] sm:$0xf]
      %v3719 = vld [vmem:[%s7 + $0x4c] sm:$0xf]
      %v3720 = vld [vmem:[%s7 + $0x50] sm:$0xf]
      %v3721 = vld [vmem:[%s7 + $0x54] sm:$0xf]
      %v3722 = vld [vmem:[%s7 + $0x58] sm:$0xf]
      %v3723 = vld [vmem:[%s7 + $0x5c] sm:$0xf]
      %v3724 = vld [vmem:[%s7 + $0x60] sm:$0xf]
      %v3725 = vld [vmem:[%s7 + $0x64] sm:$0xf]
      %v3726 = vld [vmem:[%s7 + $0x68] sm:$0xf]
      %v3727 = vld [vmem:[%s7 + $0x6c] sm:$0xf]
      %v3728 = vld [vmem:[%s7 + $0x70] sm:$0xf]
      %v3729 = vld [vmem:[%s7 + $0x74] sm:$0xf]
      %v3730 = vld [vmem:[%s7 + $0x78] sm:$0xf]
      %v3731 = vld [vmem:[%s7 + $0x7c] sm:$0xf]
      %v3732 = vld [vmem:[%s7 + $0x80] sm:$0xf]
      %v3733 = vld [vmem:[%s7 + $0x84] sm:$0xf]
      %v3734 = vld [vmem:[%s7 + $0x88] sm:$0xf]
      %v3735 = vld [vmem:[%s7 + $0x8c] sm:$0xf]
      %v3736 = vld [vmem:[%s7 + $0x90] sm:$0xf]
      %v3737 = vld [vmem:[%s7 + $0x94] sm:$0xf]
      %v3738 = vld [vmem:[%s7 + $0x98] sm:$0xf]
      %v3739 = vld [vmem:[%s7 + $0x9c] sm:$0xf]
      %v3740 = vld [vmem:[%s7 + $0xa0] sm:$0xf]
      %v3741 = vld [vmem:[%s7 + $0xa4] sm:$0xf]
      %v3742 = vld [vmem:[%s7 + $0xa8] sm:$0xf]
      %v3743 = vld [vmem:[%s7 + $0xac] sm:$0xf]
      %v3744 = vld [vmem:[%s7 + $0xb0] sm:$0xf]
      %v3745 = vld [vmem:[%s7 + $0xb4] sm:$0xf]
      %v3746 = vld [vmem:[%s7 + $0xb8] sm:$0xf]
      %v3747 = vld [vmem:[%s7 + $0xbc] sm:$0xf]
      %v3748 = vld [vmem:[%s7 + $0xc0] sm:$0xf]
      %v3749 = vld [vmem:[%s7 + $0xc4] sm:$0xf]
      %v3750 = vld [vmem:[%s7 + $0xc8] sm:$0xf]
      %v3751 = vld [vmem:[%s7 + $0xcc] sm:$0xf]
      %v3752 = vld [vmem:[%s7 + $0xd0] sm:$0xf]
      %v3753 = vld [vmem:[%s7 + $0xd4] sm:$0xf]
      %v3754 = vld [vmem:[%s7 + $0xd8] sm:$0xf]
      %v3755 = vld [vmem:[%s7 + $0xdc] sm:$0xf]
      %v3756 = vld [vmem:[%s7 + $0xe0] sm:$0xf]
      %v3757 = vld [vmem:[%s7 + $0xe4] sm:$0xf]
      %v3758 = vld [vmem:[%s7 + $0xe8] sm:$0xf]
      %v3759 = vld [vmem:[%s7 + $0xec] sm:$0xf]
      %v3760 = vld [vmem:[%s7 + $0xf0] sm:$0xf]
      %v3761 = vld [vmem:[%s7 + $0xf4] sm:$0xf]
      %v3762 = vld [vmem:[%s7 + $0xf8] sm:$0xf]
      %v3763 = vld [vmem:[%s7 + $0xfc] sm:$0xf]
      %v3764 = vld [vmem:[%s7 + $0x100] sm:$0xf]
      %v3765 = vld [vmem:[%s7 + $0x104] sm:$0xf]
      %v3766 = vld [vmem:[%s7 + $0x108] sm:$0xf]
      %v3767 = vld [vmem:[%s7 + $0x10c] sm:$0xf]
      %v3768 = vld [vmem:[%s7 + $0x110] sm:$0xf]
      %v3769 = vld [vmem:[%s7 + $0x114] sm:$0xf]
      %v3770 = vld [vmem:[%s7 + $0x118] sm:$0xf]
      %v3771 = vld [vmem:[%s7 + $0x11c] sm:$0xf]
      %v3772 = vld [vmem:[%s8] sm:$0x1]
      %v3774 = vlaneseq
      %v3775 = vshrl.u32 %v3774, 7
      %v3776 = vsub.s32 0, %v3775
      %v3777 = vrot.slane %v3772, %v3776
      %v3851 = vunpack.c.l.b16 %v3700
      %v3852 = vunpack.c.l.b16 %v3701
      %v3853 = vunpack.c.l.b16 %v3702
      %v3854 = vunpack.c.l.b16 %v3703
      %v3855 = vunpack.c.l.b16 %v3704
      %v3856 = vunpack.c.l.b16 %v3705
      %v3857 = vunpack.c.l.b16 %v3706
      %v3858 = vunpack.c.l.b16 %v3707
      %v3859 = vunpack.c.l.b16 %v3708
      %v3860 = vunpack.c.l.b16 %v3709
      %v3861 = vunpack.c.l.b16 %v3710
      %v3862 = vunpack.c.l.b16 %v3711
      %v3863 = vunpack.c.l.b16 %v3712
      %v3864 = vunpack.c.l.b16 %v3713
      %v3865 = vunpack.c.l.b16 %v3714
      %v3866 = vunpack.c.l.b16 %v3715
      %v3867 = vunpack.c.l.b16 %v3716
      %v3868 = vunpack.c.l.b16 %v3717
      %v3869 = vunpack.c.l.b16 %v3718
      %v3870 = vunpack.c.l.b16 %v3719
      %v3871 = vunpack.c.l.b16 %v3720
      %v3872 = vunpack.c.l.b16 %v3721
      %v3873 = vunpack.c.l.b16 %v3722
      %v3874 = vunpack.c.l.b16 %v3723
      %v3875 = vunpack.c.l.b16 %v3724
      %v3876 = vunpack.c.l.b16 %v3725
      %v3877 = vunpack.c.l.b16 %v3726
      %v3878 = vunpack.c.l.b16 %v3727
      %v3879 = vunpack.c.l.b16 %v3728
      %v3880 = vunpack.c.l.b16 %v3729
      %v3881 = vunpack.c.l.b16 %v3730
      %v3882 = vunpack.c.l.b16 %v3731
      %v3883 = vunpack.c.l.b16 %v3732
      %v3884 = vunpack.c.l.b16 %v3733
      %v3885 = vunpack.c.l.b16 %v3734
      %v3886 = vunpack.c.l.b16 %v3735
      %v3887 = vunpack.c.l.b16 %v3736
      %v3888 = vunpack.c.l.b16 %v3737
      %v3889 = vunpack.c.l.b16 %v3738
      %v3890 = vunpack.c.l.b16 %v3739
      %v3891 = vunpack.c.l.b16 %v3740
      %v3892 = vunpack.c.l.b16 %v3741
      %v3893 = vunpack.c.l.b16 %v3742
      %v3894 = vunpack.c.l.b16 %v3743
      %v3895 = vunpack.c.l.b16 %v3744
      %v3896 = vunpack.c.l.b16 %v3745
      %v3897 = vunpack.c.l.b16 %v3746
      %v3898 = vunpack.c.l.b16 %v3747
      %v3899 = vunpack.c.l.b16 %v3748
      %v3900 = vunpack.c.l.b16 %v3749
      %v3901 = vunpack.c.l.b16 %v3750
      %v3902 = vunpack.c.l.b16 %v3751
      %v3903 = vunpack.c.l.b16 %v3752
      %v3904 = vunpack.c.l.b16 %v3753
      %v3905 = vunpack.c.l.b16 %v3754
      %v3906 = vunpack.c.l.b16 %v3755
      %v3907 = vunpack.c.l.b16 %v3756
      %v3908 = vunpack.c.l.b16 %v3757
      %v3909 = vunpack.c.l.b16 %v3758
      %v3910 = vunpack.c.l.b16 %v3759
      %v3911 = vunpack.c.l.b16 %v3760
      %v3912 = vunpack.c.l.b16 %v3761
      %v3913 = vunpack.c.l.b16 %v3762
      %v3914 = vunpack.c.l.b16 %v3763
      %v3915 = vunpack.c.l.b16 %v3764
      %v3916 = vunpack.c.l.b16 %v3765
      %v3917 = vunpack.c.l.b16 %v3766
      %v3918 = vunpack.c.l.b16 %v3767
      %v3919 = vunpack.c.l.b16 %v3768
      %v3920 = vunpack.c.l.b16 %v3769
      %v3921 = vunpack.c.l.b16 %v3770
      %v3922 = vunpack.c.l.b16 %v3771
      %v3923 = vpack.c.b16 %v3852, %v3851
      %v3924 = vpack.c.b16 %v3854, %v3853
      %v3925 = vpack.c.b16 %v3856, %v3855
      %v3926 = vpack.c.b16 %v3858, %v3857
      %v3927 = vpack.c.b16 %v3860, %v3859
      %v3928 = vpack.c.b16 %v3862, %v3861
      %v3929 = vpack.c.b16 %v3864, %v3863
      %v3930 = vpack.c.b16 %v3866, %v3865
      %v3931 = vpack.c.b16 %v3868, %v3867
      %v3932 = vpack.c.b16 %v3870, %v3869
      %v3933 = vpack.c.b16 %v3872, %v3871
      %v3934 = vpack.c.b16 %v3874, %v3873
      %v3935 = vpack.c.b16 %v3876, %v3875
      %v3936 = vpack.c.b16 %v3878, %v3877
      %v3937 = vpack.c.b16 %v3880, %v3879
      %v3938 = vpack.c.b16 %v3882, %v3881
      %v3939 = vpack.c.b16 %v3884, %v3883
      %v3940 = vpack.c.b16 %v3886, %v3885
      %v3941 = vpack.c.b16 %v3888, %v3887
      %v3942 = vpack.c.b16 %v3890, %v3889
      %v3943 = vpack.c.b16 %v3892, %v3891
      %v3944 = vpack.c.b16 %v3894, %v3893
      %v3945 = vpack.c.b16 %v3896, %v3895
      %v3946 = vpack.c.b16 %v3898, %v3897
      %v3947 = vpack.c.b16 %v3900, %v3899
      %v3948 = vpack.c.b16 %v3902, %v3901
      %v3949 = vpack.c.b16 %v3904, %v3903
      %v3950 = vpack.c.b16 %v3906, %v3905
      %v3951 = vpack.c.b16 %v3908, %v3907
      %v3952 = vpack.c.b16 %v3910, %v3909
      %v3953 = vpack.c.b16 %v3912, %v3911
      %v3954 = vpack.c.b16 %v3914, %v3913
      %v3955 = vpack.c.b16 %v3916, %v3915
      %v3956 = vpack.c.b16 %v3918, %v3917
      %v3957 = vpack.c.b16 %v3920, %v3919
      %v3958 = vpack.c.b16 %v3922, %v3921
      %v3996 = vsel %vm2334, %v3632, 0
      %v3999 = vsel %vm2334, %v3634, 0
      %v4002 = vsel %vm2334, %v3636, 0
      %v4005 = vsel %vm2334, %v3635, 0
      %4007 = vmatprep.subr.bf16.mxu0 0
      %4008 = vmatpush1.bf16.msra.mxu0 %v3923
      %4009 = vmatprep.subr.bf16.mxu0 0
      %4010 = vmatpush1.bf16.msra.mxu0 %v3924
      %4011 = vmatprep.subr.bf16.mxu0 0
      %4012 = vmatpush1.bf16.msra.mxu0 %v3925
      %4013 = vmatprep.subr.bf16.mxu0 0
      %4014 = vmatpush1.bf16.msra.mxu0 %v3926
      %4015 = vmatprep.subr.bf16.mxu0 0
      %4016 = vmatpush1.bf16.msra.mxu0 %v3927
      %4017 = vmatprep.subr.bf16.mxu0 0
      %4018 = vmatpush1.bf16.msra.mxu0 %v3928
      %4019 = vmatprep.subr.bf16.mxu0 0
      %4020 = vmatpush1.bf16.msra.mxu0 %v3929
      %4021 = vmatprep.subr.bf16.mxu0 0
      %4022 = vmatpush1.bf16.msra.mxu0 %v3930
      %4023 = vmatprep.subr.bf16.mxu0 0
      %4024 = vmatpush1.bf16.msra.mxu0 %v3931
      %4025 = vmatprep.subr.bf16.mxu0 0
      %4026 = vmatpush1.bf16.msra.mxu0 %v3932
      %4027 = vmatprep.subr.bf16.mxu0 0
      %4028 = vmatpush1.bf16.msra.mxu0 %v3933
      %4029 = vmatprep.subr.bf16.mxu0 0
      %4030 = vmatpush1.bf16.msra.mxu0 %v3934
      %4031 = vmatprep.subr.bf16.mxu0 0
      %4032 = vmatpush1.bf16.msra.mxu0 %v3935
      %4033 = vmatprep.subr.bf16.mxu0 0
      %4034 = vmatpush1.bf16.msra.mxu0 %v3936
      %4035 = vmatprep.subr.bf16.mxu0 0
      %4036 = vmatpush1.bf16.msra.mxu0 %v3937
      %4037 = vmatprep.subr.bf16.mxu0 0
      %4038 = vmatpush1.bf16.msra.mxu0 %v3938
      %4039 = vmatprep.mubr.bf16.mxu0 %v3654
      %4040 = vmatmul.mubr.bf16.gmra.mrb[0].mxu0 %v3639
      %v4041 = vpop.f32.mrb[0].mxu0
      %v4042 = vadd.f32 %v3777, %v4041
      %v4043 = vpop.f32.mrb[0].mxu0
      %v4044 = vpop.f32.mrb[0].mxu0
      %v4045 = vadd.f32 %v3777, %v4044
      %v4046 = vpop.f32.mrb[0].mxu0
      %4047 = vmatprep.mubr.bf16.mxu0 %v3658
      %4048 = vmatmul.mubr.bf16.gmra.mrb[0].mxu0 %v3643
      %v4049 = vpop.f32.mrb[0].mxu0
      %v4050 = vadd.f32 %v3777, %v4049
      %v4051 = vpop.f32.mrb[0].mxu0
      %v4052 = vpop.f32.mrb[0].mxu0
      %v4053 = vadd.f32 %v3777, %v4052
      %v4054 = vpop.f32.mrb[0].mxu0
      %4055 = vmatprep.mubr.bf16.mxu0 %v3662
      %4056 = vmatmul.mubr.bf16.gmra.mrb[0].mxu0 %v3647
      %v4057 = vpop.f32.mrb[0].mxu0
      %v4058 = vadd.f32 %v3777, %v4057
      %v4059 = vpop.f32.mrb[0].mxu0
      %v4060 = vpop.f32.mrb[0].mxu0
      %v4061 = vadd.f32 %v3777, %v4060
      %v4062 = vpop.f32.mrb[0].mxu0
      %4063 = vmatprep.mubr.bf16.mxu0 %v3666
      %4064 = vmatmul.mubr.bf16.gmra.mrb[0].mxu0 %v3650
      %v4065 = vpop.f32.mrb[0].mxu0
      %v4066 = vadd.f32 %v3777, %v4065
      %v4067 = vpop.f32.mrb[0].mxu0
      %v4068 = vpop.f32.mrb[0].mxu0
      %v4069 = vpop.f32.mrb[0].mxu0
      %4070 = vdwg.mxu0
      %4071 = vmatprep.subr.bf16.mxu0 0
      %4072 = vmatpush1.bf16.msra.mxu0 %v3939
      %4073 = vmatprep.subr.bf16.mxu0 0
      %4074 = vmatpush1.bf16.msra.mxu0 %v3940
      %4075 = vmatprep.subr.bf16.mxu0 0
      %4076 = vmatpush1.bf16.msra.mxu0 %v3941
      %4077 = vmatprep.subr.bf16.mxu0 0
      %4078 = vmatpush1.bf16.msra.mxu0 %v3942
      %4079 = vmatprep.subr.bf16.mxu0 0
      %4080 = vmatpush1.bf16.msra.mxu0 %v3943
      %4081 = vmatprep.subr.bf16.mxu0 0
      %4082 = vmatpush1.bf16.msra.mxu0 %v3944
      %4083 = vmatprep.subr.bf16.mxu0 0
      %4084 = vmatpush1.bf16.msra.mxu0 %v3945
      %4085 = vmatprep.subr.bf16.mxu0 0
      %4086 = vmatpush1.bf16.msra.mxu0 %v3946
      %4087 = vmatprep.subr.bf16.mxu0 0
      %4088 = vmatpush1.bf16.msra.mxu0 %v3947
      %4089 = vmatprep.subr.bf16.mxu0 0
      %4090 = vmatpush1.bf16.msra.mxu0 %v3948
      %4091 = vmatprep.subr.bf16.mxu0 0
      %4092 = vmatpush1.bf16.msra.mxu0 %v3949
      %4093 = vmatprep.subr.bf16.mxu0 0
      %4094 = vmatpush1.bf16.msra.mxu0 %v3950
      %4095 = vmatprep.subr.bf16.mxu0 0
      %4096 = vmatpush1.bf16.msra.mxu0 %v3951
      %4097 = vmatprep.subr.bf16.mxu0 0
      %4098 = vmatpush1.bf16.msra.mxu0 %v3952
      %4099 = vmatprep.subr.bf16.mxu0 0
      %4100 = vmatpush1.bf16.msra.mxu0 %v3953
      %4101 = vmatprep.subr.bf16.mxu0 0
      %4102 = vmatpush1.bf16.msra.mxu0 %v3954
      %4103 = vmatprep.mubr.bf16.mxu0 %v3686
      %4104 = vmatmul.mubr.bf16.gmra.mrb[0].mxu0 %v3670
      %v4105 = vpop.f32.mrb[0].mxu0
      %v4106 = vadd.f32 %v4042, %v4105
      %v4107 = vpop.f32.mrb[0].mxu0
      %v4108 = vpop.f32.mrb[0].mxu0
      %v4109 = vadd.f32 %v4045, %v4108
      %v4110 = vpop.f32.mrb[0].mxu0
      %4111 = vmatprep.mubr.bf16.mxu0 %v3690
      %4112 = vmatmul.mubr.bf16.gmra.mrb[0].mxu0 %v3674
      %v4113 = vpop.f32.mrb[0].mxu0
      %v4114 = vadd.f32 %v4050, %v4113
      %v4115 = vpop.f32.mrb[0].mxu0
      %v4116 = vpop.f32.mrb[0].mxu0
      %v4117 = vadd.f32 %v4053, %v4116
      %v4118 = vpop.f32.mrb[0].mxu0
      %4119 = vmatprep.mubr.bf16.mxu0 %v3694
      %4120 = vmatmul.mubr.bf16.gmra.mrb[0].mxu0 %v3678
      %v4121 = vpop.f32.mrb[0].mxu0
      %v4122 = vadd.f32 %v4058, %v4121
      %v4123 = vpop.f32.mrb[0].mxu0
      %v4124 = vpop.f32.mrb[0].mxu0
      %v4125 = vadd.f32 %v4061, %v4124
      %v4126 = vpop.f32.mrb[0].mxu0
      %4127 = vmatprep.mubr.bf16.mxu0 %v3698
      %4128 = vmatmul.mubr.bf16.gmra.mrb[0].mxu0 %v3682
      %v4129 = vpop.f32.mrb[0].mxu0
      %v4130 = vadd.f32 %v4066, %v4129
      %v4131 = vpop.f32.mrb[0].mxu0
      %v4132 = vpop.f32.mrb[0].mxu0
      %v4133 = vpop.f32.mrb[0].mxu0
      %4134 = vdwg.mxu0
      %4135 = vmatprep.subr.bf16.mxu0 0
      %4136 = vmatpush1.bf16.msra.mxu0 %v3955
      %4137 = vmatprep.subr.bf16.mxu0 0
      %4138 = vmatpush1.bf16.msra.mxu0 %v3956
      %4139 = vmatprep.subr.bf16.mxu0 0
      %4140 = vmatpush1.bf16.msra.mxu0 %v3957
      %4141 = vmatprep.subr.bf16.mxu0 0
      %4142 = vmatpush1.bf16.msra.mxu0 %v3958
      %4143 = vmatprep.subr.bf16.mxu0 0
      %4144 = vmatpush1.bf16.msra.mxu0 0
      %4145 = vmatprep.subr.bf16.mxu0 0
      %4146 = vmatpush1.bf16.msra.mxu0 0
      %4147 = vmatprep.subr.bf16.mxu0 0
      %4148 = vmatpush1.bf16.msra.mxu0 0
      %4149 = vmatprep.subr.bf16.mxu0 0
      %4150 = vmatpush1.bf16.msra.mxu0 0
      %4151 = vmatprep.subr.bf16.mxu0 0
      %4152 = vmatpush1.bf16.msra.mxu0 0
      %4153 = vmatprep.subr.bf16.mxu0 0
      %4154 = vmatpush1.bf16.msra.mxu0 0
      %4155 = vmatprep.subr.bf16.mxu0 0
      %4156 = vmatpush1.bf16.msra.mxu0 0
      %4157 = vmatprep.subr.bf16.mxu0 0
      %4158 = vmatpush1.bf16.msra.mxu0 0
      %4159 = vmatprep.subr.bf16.mxu0 0
      %4160 = vmatpush1.bf16.msra.mxu0 0
      %4161 = vmatprep.subr.bf16.mxu0 0
      %4162 = vmatpush1.bf16.msra.mxu0 0
      %4163 = vmatprep.subr.bf16.mxu0 0
      %4164 = vmatpush1.bf16.msra.mxu0 0
      %4165 = vmatprep.subr.bf16.mxu0 0
      %4166 = vmatpush1.bf16.msra.mxu0 0
      %4167 = vmatprep.mubr.bf16.mxu0 0
      %4168 = vmatmul.mubr.bf16.gmra.mrb[0].mxu0 %v3996
      %v4169 = vpop.f32.mrb[0].mxu0
      %v4170 = vadd.f32 %v4106, %v4169
      %v4171 = vpop.f32.mrb[0].mxu0
      %v4172 = vpop.f32.mrb[0].mxu0
      %v4173 = vadd.f32 %v4109, %v4172
      %v4174 = vpop.f32.mrb[0].mxu0
      %4175 = vmatprep.mubr.bf16.mxu0 0
      %4176 = vmatmul.mubr.bf16.gmra.mrb[0].mxu0 %v3999
      %v4177 = vpop.f32.mrb[0].mxu0
      %v4178 = vadd.f32 %v4114, %v4177
      %v4179 = vpop.f32.mrb[0].mxu0
      %v4180 = vpop.f32.mrb[0].mxu0
      %v4181 = vadd.f32 %v4117, %v4180
      %v4182 = vpop.f32.mrb[0].mxu0
      %4183 = vmatprep.mubr.bf16.mxu0 0
      %4184 = vmatmul.mubr.bf16.gmra.mrb[0].mxu0 %v4002
      %v4185 = vpop.f32.mrb[0].mxu0
      %v4186 = vadd.f32 %v4122, %v4185
      %v4187 = vpop.f32.mrb[0].mxu0
      %v4188 = vpop.f32.mrb[0].mxu0
      %v4189 = vadd.f32 %v4125, %v4188
      %v4190 = vpop.f32.mrb[0].mxu0
      %4191 = vmatprep.mubr.bf16.mxu0 0
      %4192 = vmatmul.mubr.bf16.gmra.mrb[0].mxu0 %v4005
      %v4193 = vpop.f32.mrb[0].mxu0
      %v4194 = vadd.f32 %v4130, %v4193
      %v4195 = vpop.f32.mrb[0].mxu0
      %v4196 = vpop.f32.mrb[0].mxu0
      %v4197 = vpop.f32.mrb[0].mxu0
      %4198 = vdwg.mxu0
      %v4199 = vmax.f32 %v4170, 0.0
      %v4200 = vmax.f32 %v4173, 0.0
      %v4201 = vmax.f32 %v4178, 0.0
      %v4202 = vmax.f32 %v4181, 0.0
      %v4203 = vmax.f32 %v4186, 0.0
      %v4204 = vmax.f32 %v4189, 0.0
      %v4205 = vmax.f32 %v4194, 0.0
      %v4206 = vpack.c.bf16 %v4200, %v4199
      %v4207 = vpack.c.bf16 %v4202, %v4201
      %v4208 = vpack.c.bf16 %v4204, %v4203
      %v4209 = vpack.c.bf16 %v4205, %v4205
      %v4211 = vshrl.u32 %v4206, 16
      %v4215 = vrot.slane %v4206, 1
      %v4217 = vrot.slane %v4211, 1
      %v4219 = vrot.slane %v4206, 2
      %v4221 = vrot.slane %v4211, 2
      %v4223 = vrot.slane %v4206, 3
      %v4225 = vrot.slane %v4211, 3
      %v4227 = vrot.slane %v4206, 4
      %v4229 = vrot.slane %v4211, 4
      %v4231 = vrot.slane %v4206, 5
      %v4233 = vrot.slane %v4211, 5
      %v4235 = vrot.slane %v4206, 6
      %v4237 = vrot.slane %v4211, 6
      %v4239 = vrot.slane %v4206, 7
      %v4241 = vrot.slane %v4211, 7
      %v4244 = vshrl.u32 %v4207, 16
      %v4248 = vrot.slane %v4207, 1
      %v4250 = vrot.slane %v4244, 1
      %v4252 = vrot.slane %v4207, 2
      %v4254 = vrot.slane %v4244, 2
      %v4256 = vrot.slane %v4207, 3
      %v4258 = vrot.slane %v4244, 3
      %v4260 = vrot.slane %v4207, 4
      %v4262 = vrot.slane %v4244, 4
      %v4264 = vrot.slane %v4207, 5
      %v4266 = vrot.slane %v4244, 5
      %v4268 = vrot.slane %v4207, 6
      %v4270 = vrot.slane %v4244, 6
      %v4272 = vrot.slane %v4207, 7
      %v4274 = vrot.slane %v4244, 7
      %v4277 = vshrl.u32 %v4208, 16
      %v4281 = vrot.slane %v4208, 1
      %v4283 = vrot.slane %v4277, 1
      %v4285 = vrot.slane %v4208, 2
      %v4287 = vrot.slane %v4277, 2
      %v4289 = vrot.slane %v4208, 3
      %v4291 = vrot.slane %v4277, 3
      %v4293 = vrot.slane %v4208, 4
      %v4295 = vrot.slane %v4277, 4
      %v4297 = vrot.slane %v4208, 5
      %v4299 = vrot.slane %v4277, 5
      %v4301 = vrot.slane %v4208, 6
      %v4303 = vrot.slane %v4277, 6
      %v4305 = vrot.slane %v4208, 7
      %v4307 = vrot.slane %v4277, 7
      %v4309 = vld [vmem:[%s9] sm:$0xf]
      %v4310 = vld [vmem:[%s9 + $0x4] sm:$0xf]
      %v4311 = vld [vmem:[%s9 + $0x8] sm:$0xf]
      %v4312 = vld [vmem:[%s9 + $0xc] sm:$0xf]
      %v4313 = vld [vmem:[%s9 + $0x10] sm:$0xf]
      %v4314 = vld [vmem:[%s9 + $0x14] sm:$0xf]
      %v4315 = vld [vmem:[%s9 + $0x18] sm:$0xf]
      %v4316 = vld [vmem:[%s9 + $0x1c] sm:$0xf]
      %v4317 = vld [vmem:[%s9 + $0x20] sm:$0xf]
      %v4318 = vld [vmem:[%s9 + $0x24] sm:$0xf]
      %v4319 = vld [vmem:[%s9 + $0x28] sm:$0xf]
      %v4320 = vld [vmem:[%s9 + $0x2c] sm:$0xf]
      %v4321 = vld [vmem:[%s9 + $0x30] sm:$0xf]
      %v4322 = vld [vmem:[%s9 + $0x34] sm:$0xf]
      %v4323 = vld [vmem:[%s9 + $0x38] sm:$0xf]
      %v4324 = vld [vmem:[%s9 + $0x3c] sm:$0xf]
      %v4325 = vld [vmem:[%s9 + $0x40] sm:$0xf]
      %v4326 = vld [vmem:[%s9 + $0x44] sm:$0xf]
      %v4327 = vld [vmem:[%s9 + $0x48] sm:$0xf]
      %v4328 = vld [vmem:[%s9 + $0x4c] sm:$0xf]
      %v4329 = vld [vmem:[%s9 + $0x50] sm:$0xf]
      %v4330 = vld [vmem:[%s9 + $0x54] sm:$0xf]
      %v4331 = vld [vmem:[%s9 + $0x58] sm:$0xf]
      %v4332 = vld [vmem:[%s9 + $0x5c] sm:$0xf]
      %v4333 = vld [vmem:[%s9 + $0x60] sm:$0xf]
      %v4334 = vld [vmem:[%s9 + $0x64] sm:$0xf]
      %v4335 = vld [vmem:[%s9 + $0x68] sm:$0xf]
      %v4336 = vld [vmem:[%s9 + $0x6c] sm:$0xf]
      %v4337 = vld [vmem:[%s9 + $0x70] sm:$0xf]
      %v4338 = vld [vmem:[%s9 + $0x74] sm:$0xf]
      %v4339 = vld [vmem:[%s9 + $0x78] sm:$0xf]
      %v4340 = vld [vmem:[%s9 + $0x7c] sm:$0xf]
      %v4341 = vld [vmem:[%s9 + $0x80] sm:$0xf]
      %v4342 = vld [vmem:[%s9 + $0x84] sm:$0xf]
      %v4343 = vld [vmem:[%s9 + $0x88] sm:$0xf]
      %v4344 = vld [vmem:[%s9 + $0x8c] sm:$0xf]
      %v4345 = vld [vmem:[%s9 + $0x90] sm:$0xf]
      %v4346 = vld [vmem:[%s9 + $0x94] sm:$0xf]
      %v4347 = vld [vmem:[%s9 + $0x98] sm:$0xf]
      %v4348 = vld [vmem:[%s9 + $0x9c] sm:$0xf]
      %v4349 = vld [vmem:[%s9 + $0xa0] sm:$0xf]
      %v4350 = vld [vmem:[%s9 + $0xa4] sm:$0xf]
      %v4351 = vld [vmem:[%s9 + $0xa8] sm:$0xf]
      %v4352 = vld [vmem:[%s9 + $0xac] sm:$0xf]
      %v4353 = vld [vmem:[%s9 + $0xb0] sm:$0xf]
      %v4354 = vld [vmem:[%s9 + $0xb4] sm:$0xf]
      %v4355 = vld [vmem:[%s9 + $0xb8] sm:$0xf]
      %v4356 = vld [vmem:[%s9 + $0xbc] sm:$0xf]
      %v4357 = vld [vmem:[%s9 + $0xc0] sm:$0xf]
      %v4358 = vld [vmem:[%s9 + $0xc4] sm:$0xf]
      %v4359 = vld [vmem:[%s9 + $0xc8] sm:$0xf]
      %v4360 = vld [vmem:[%s9 + $0xcc] sm:$0xf]
      %v4361 = vld [vmem:[%s9 + $0xd0] sm:$0xf]
      %v4362 = vld [vmem:[%s9 + $0xd4] sm:$0xf]
      %v4363 = vld [vmem:[%s9 + $0xd8] sm:$0xf]
      %v4364 = vld [vmem:[%s9 + $0xdc] sm:$0xf]
      %v4365 = vld [vmem:[%s9 + $0xe0] sm:$0xf]
      %v4366 = vld [vmem:[%s9 + $0xe4] sm:$0xf]
      %v4367 = vld [vmem:[%s9 + $0xe8] sm:$0xf]
      %v4368 = vld [vmem:[%s9 + $0xec] sm:$0xf]
      %v4369 = vld [vmem:[%s9 + $0xf0] sm:$0xf]
      %v4370 = vld [vmem:[%s9 + $0xf4] sm:$0xf]
      %v4371 = vld [vmem:[%s9 + $0xf8] sm:$0xf]
      %v4372 = vld [vmem:[%s9 + $0xfc] sm:$0xf]
      %v4373 = vld [vmem:[%s9 + $0x100] sm:$0xf]
      %v4374 = vld [vmem:[%s9 + $0x104] sm:$0xf]
      %v4375 = vld [vmem:[%s9 + $0x108] sm:$0xf]
      %v4376 = vld [vmem:[%s9 + $0x10c] sm:$0xf]
      %v4377 = vld [vmem:[%s9 + $0x110] sm:$0xf]
      %v4378 = vld [vmem:[%s9 + $0x114] sm:$0xf]
      %v4379 = vld [vmem:[%s9 + $0x118] sm:$0xf]
      %v4380 = vld [vmem:[%s9 + $0x11c] sm:$0xf]
      %v4381 = vld [vmem:[%s9 + $0x120] sm:$0xf]
      %v4382 = vld [vmem:[%s9 + $0x124] sm:$0xf]
      %v4383 = vld [vmem:[%s9 + $0x128] sm:$0xf]
      %v4384 = vld [vmem:[%s9 + $0x12c] sm:$0xf]
      %v4385 = vld [vmem:[%s9 + $0x130] sm:$0xf]
      %v4386 = vld [vmem:[%s9 + $0x134] sm:$0xf]
      %v4387 = vld [vmem:[%s9 + $0x138] sm:$0xf]
      %v4388 = vld [vmem:[%s9 + $0x13c] sm:$0xf]
      %v4389 = vld [vmem:[%s9 + $0x140] sm:$0xf]
      %v4390 = vld [vmem:[%s9 + $0x144] sm:$0xf]
      %v4391 = vld [vmem:[%s9 + $0x148] sm:$0xf]
      %v4392 = vld [vmem:[%s9 + $0x14c] sm:$0xf]
      %v4393 = vld [vmem:[%s9 + $0x150] sm:$0xf]
      %v4394 = vld [vmem:[%s9 + $0x154] sm:$0xf]
      %v4395 = vld [vmem:[%s9 + $0x158] sm:$0xf]
      %v4396 = vld [vmem:[%s9 + $0x15c] sm:$0xf]
      %v4397 = vld [vmem:[%s9 + $0x160] sm:$0xf]
      %v4398 = vld [vmem:[%s9 + $0x164] sm:$0xf]
      %v4399 = vld [vmem:[%s9 + $0x168] sm:$0xf]
      %v4400 = vld [vmem:[%s9 + $0x16c] sm:$0xf]
      %v4401 = vld [vmem:[%s9 + $0x170] sm:$0xf]
      %v4402 = vld [vmem:[%s9 + $0x174] sm:$0xf]
      %v4403 = vld [vmem:[%s9 + $0x178] sm:$0xf]
      %v4404 = vld [vmem:[%s9 + $0x17c] sm:$0xf]
      %v4405 = vld [vmem:[%s9 + $0x180] sm:$0xf]
      %v4406 = vld [vmem:[%s9 + $0x184] sm:$0xf]
      %v4407 = vld [vmem:[%s9 + $0x188] sm:$0xf]
      %v4408 = vld [vmem:[%s9 + $0x18c] sm:$0xf]
      %v4409 = vld [vmem:[%s9 + $0x190] sm:$0xf]
      %v4410 = vld [vmem:[%s9 + $0x194] sm:$0xf]
      %v4411 = vld [vmem:[%s9 + $0x198] sm:$0xf]
      %v4412 = vld [vmem:[%s9 + $0x19c] sm:$0xf]
      %v4413 = vld [vmem:[%s9 + $0x1a0] sm:$0xf]
      %v4414 = vld [vmem:[%s9 + $0x1a4] sm:$0xf]
      %v4415 = vld [vmem:[%s9 + $0x1a8] sm:$0xf]
      %v4416 = vld [vmem:[%s9 + $0x1ac] sm:$0xf]
      %v4417 = vld [vmem:[%s9 + $0x1b0] sm:$0xf]
      %v4418 = vld [vmem:[%s9 + $0x1b4] sm:$0xf]
      %v4419 = vld [vmem:[%s9 + $0x1b8] sm:$0xf]
      %v4420 = vld [vmem:[%s9 + $0x1bc] sm:$0xf]
      %v4421 = vld [vmem:[%s9 + $0x1c0] sm:$0xf]
      %v4422 = vld [vmem:[%s9 + $0x1c4] sm:$0xf]
      %v4423 = vld [vmem:[%s9 + $0x1c8] sm:$0xf]
      %v4424 = vld [vmem:[%s9 + $0x1cc] sm:$0xf]
      %v4425 = vld [vmem:[%s9 + $0x1d0] sm:$0xf]
      %v4426 = vld [vmem:[%s9 + $0x1d4] sm:$0xf]
      %v4427 = vld [vmem:[%s9 + $0x1d8] sm:$0xf]
      %v4428 = vld [vmem:[%s9 + $0x1dc] sm:$0xf]
      %v4429 = vld [vmem:[%s9 + $0x1e0] sm:$0xf]
      %v4430 = vld [vmem:[%s9 + $0x1e4] sm:$0xf]
      %v4431 = vld [vmem:[%s9 + $0x1e8] sm:$0xf]
      %v4432 = vld [vmem:[%s9 + $0x1ec] sm:$0xf]
      %v4433 = vld [vmem:[%s9 + $0x1f0] sm:$0xf]
      %v4434 = vld [vmem:[%s9 + $0x1f4] sm:$0xf]
      %v4435 = vld [vmem:[%s9 + $0x1f8] sm:$0xf]
      %v4436 = vld [vmem:[%s9 + $0x1fc] sm:$0xf]
      %v4437 = vld [vmem:[%s9 + $0x200] sm:$0xf]
      %v4438 = vld [vmem:[%s9 + $0x204] sm:$0xf]
      %v4439 = vld [vmem:[%s9 + $0x208] sm:$0xf]
      %v4440 = vld [vmem:[%s9 + $0x20c] sm:$0xf]
      %v4441 = vld [vmem:[%s9 + $0x210] sm:$0xf]
      %v4442 = vld [vmem:[%s9 + $0x214] sm:$0xf]
      %v4443 = vld [vmem:[%s9 + $0x218] sm:$0xf]
      %v4444 = vld [vmem:[%s9 + $0x21c] sm:$0xf]
      %v4445 = vld [vmem:[%s9 + $0x220] sm:$0xf]
      %v4446 = vld [vmem:[%s9 + $0x224] sm:$0xf]
      %v4447 = vld [vmem:[%s9 + $0x228] sm:$0xf]
      %v4448 = vld [vmem:[%s9 + $0x22c] sm:$0xf]
      %v4449 = vld [vmem:[%s9 + $0x230] sm:$0xf]
      %v4450 = vld [vmem:[%s9 + $0x234] sm:$0xf]
      %v4451 = vld [vmem:[%s9 + $0x238] sm:$0xf]
      %v4452 = vld [vmem:[%s9 + $0x23c] sm:$0xf]
      %v4453 = vld [vmem:[%s9 + $0x240] sm:$0xf]
      %v4454 = vld [vmem:[%s9 + $0x244] sm:$0xf]
      %v4455 = vld [vmem:[%s9 + $0x248] sm:$0xf]
      %v4456 = vld [vmem:[%s9 + $0x24c] sm:$0xf]
      %v4457 = vld [vmem:[%s9 + $0x250] sm:$0xf]
      %v4458 = vld [vmem:[%s9 + $0x254] sm:$0xf]
      %v4459 = vld [vmem:[%s9 + $0x258] sm:$0xf]
      %v4460 = vld [vmem:[%s9 + $0x25c] sm:$0xf]
      %v4461 = vld [vmem:[%s9 + $0x260] sm:$0xf]
      %v4462 = vld [vmem:[%s9 + $0x264] sm:$0xf]
      %v4463 = vld [vmem:[%s9 + $0x268] sm:$0xf]
      %v4464 = vld [vmem:[%s9 + $0x26c] sm:$0xf]
      %v4465 = vld [vmem:[%s9 + $0x270] sm:$0xf]
      %v4466 = vld [vmem:[%s9 + $0x274] sm:$0xf]
      %v4467 = vld [vmem:[%s9 + $0x278] sm:$0xf]
      %v4468 = vld [vmem:[%s9 + $0x27c] sm:$0xf]
      %v4469 = vld [vmem:[%s9 + $0x280] sm:$0xf]
      %v4470 = vld [vmem:[%s9 + $0x284] sm:$0xf]
      %v4471 = vld [vmem:[%s9 + $0x288] sm:$0xf]
      %v4472 = vld [vmem:[%s9 + $0x28c] sm:$0xf]
      %v4473 = vld [vmem:[%s9 + $0x290] sm:$0xf]
      %v4474 = vld [vmem:[%s9 + $0x294] sm:$0xf]
      %v4475 = vld [vmem:[%s9 + $0x298] sm:$0xf]
      %v4476 = vld [vmem:[%s9 + $0x29c] sm:$0xf]
      %v4477 = vld [vmem:[%s9 + $0x2a0] sm:$0xf]
      %v4478 = vld [vmem:[%s9 + $0x2a4] sm:$0xf]
      %v4479 = vld [vmem:[%s9 + $0x2a8] sm:$0xf]
      %v4480 = vld [vmem:[%s9 + $0x2ac] sm:$0xf]
      %v4481 = vld [vmem:[%s9 + $0x2b0] sm:$0xf]
      %v4482 = vld [vmem:[%s9 + $0x2b4] sm:$0xf]
      %v4483 = vld [vmem:[%s9 + $0x2b8] sm:$0xf]
      %v4484 = vld [vmem:[%s9 + $0x2bc] sm:$0xf]
      %v4485 = vld [vmem:[%s9 + $0x2c0] sm:$0xf]
      %v4486 = vld [vmem:[%s9 + $0x2c4] sm:$0xf]
      %v4487 = vld [vmem:[%s9 + $0x2c8] sm:$0xf]
      %v4488 = vld [vmem:[%s9 + $0x2cc] sm:$0xf]
      %v4489 = vld [vmem:[%s9 + $0x2d0] sm:$0xf]
      %v4490 = vld [vmem:[%s9 + $0x2d4] sm:$0xf]
      %v4491 = vld [vmem:[%s9 + $0x2d8] sm:$0xf]
      %v4492 = vld [vmem:[%s9 + $0x2dc] sm:$0xf]
      %v4493 = vld [vmem:[%s9 + $0x2e0] sm:$0xf]
      %v4494 = vld [vmem:[%s9 + $0x2e4] sm:$0xf]
      %v4495 = vld [vmem:[%s9 + $0x2e8] sm:$0xf]
      %v4496 = vld [vmem:[%s9 + $0x2ec] sm:$0xf]
      %v4497 = vld [vmem:[%s9 + $0x2f0] sm:$0xf]
      %v4498 = vld [vmem:[%s9 + $0x2f4] sm:$0xf]
      %v4499 = vld [vmem:[%s9 + $0x2f8] sm:$0xf]
      %v4500 = vld [vmem:[%s9 + $0x2fc] sm:$0xf]
      %v4501 = vld [vmem:[%s9 + $0x300] sm:$0xf]
      %v4502 = vld [vmem:[%s9 + $0x304] sm:$0xf]
      %v4503 = vld [vmem:[%s9 + $0x308] sm:$0xf]
      %v4504 = vld [vmem:[%s9 + $0x30c] sm:$0xf]
      %v4505 = vld [vmem:[%s9 + $0x310] sm:$0xf]
      %v4506 = vld [vmem:[%s9 + $0x314] sm:$0xf]
      %v4507 = vld [vmem:[%s9 + $0x318] sm:$0xf]
      %v4508 = vld [vmem:[%s9 + $0x31c] sm:$0xf]
      %v4509 = vld [vmem:[%s9 + $0x320] sm:$0xf]
      %v4510 = vld [vmem:[%s9 + $0x324] sm:$0xf]
      %v4511 = vld [vmem:[%s9 + $0x328] sm:$0xf]
      %v4512 = vld [vmem:[%s9 + $0x32c] sm:$0xf]
      %v4513 = vld [vmem:[%s9 + $0x330] sm:$0xf]
      %v4514 = vld [vmem:[%s9 + $0x334] sm:$0xf]
      %v4515 = vld [vmem:[%s9 + $0x338] sm:$0xf]
      %v4516 = vld [vmem:[%s9 + $0x33c] sm:$0xf]
      %v4517 = vld [vmem:[%s9 + $0x340] sm:$0xf]
      %v4518 = vld [vmem:[%s9 + $0x344] sm:$0xf]
      %v4519 = vld [vmem:[%s9 + $0x348] sm:$0xf]
      %v4520 = vld [vmem:[%s9 + $0x34c] sm:$0xf]
      %v4521 = vld [vmem:[%s9 + $0x350] sm:$0xf]
      %v4522 = vld [vmem:[%s9 + $0x354] sm:$0xf]
      %v4523 = vld [vmem:[%s9 + $0x358] sm:$0xf]
      %v4524 = vld [vmem:[%s9 + $0x35c] sm:$0xf]
      %v4525 = vld [vmem:[%s9 + $0x360] sm:$0xf]
      %v4526 = vld [vmem:[%s9 + $0x364] sm:$0xf]
      %v4527 = vld [vmem:[%s9 + $0x368] sm:$0xf]
      %v4528 = vld [vmem:[%s9 + $0x36c] sm:$0xf]
      %v4529 = vld [vmem:[%s9 + $0x370] sm:$0xf]
      %v4530 = vld [vmem:[%s9 + $0x374] sm:$0xf]
      %v4531 = vld [vmem:[%s9 + $0x378] sm:$0xf]
      %v4532 = vld [vmem:[%s9 + $0x37c] sm:$0xf]
      %v4533 = vld [vmem:[%s9 + $0x380] sm:$0xf]
      %v4534 = vld [vmem:[%s9 + $0x384] sm:$0xf]
      %v4535 = vld [vmem:[%s9 + $0x388] sm:$0xf]
      %v4536 = vld [vmem:[%s9 + $0x38c] sm:$0xf]
      %v4537 = vld [vmem:[%s9 + $0x390] sm:$0xf]
      %v4538 = vld [vmem:[%s9 + $0x394] sm:$0xf]
      %v4539 = vld [vmem:[%s9 + $0x398] sm:$0xf]
      %v4540 = vld [vmem:[%s9 + $0x39c] sm:$0xf]
      %v4541 = vld [vmem:[%s9 + $0x3a0] sm:$0xf]
      %v4542 = vld [vmem:[%s9 + $0x3a4] sm:$0xf]
      %v4543 = vld [vmem:[%s9 + $0x3a8] sm:$0xf]
      %v4544 = vld [vmem:[%s9 + $0x3ac] sm:$0xf]
      %v4545 = vld [vmem:[%s9 + $0x3b0] sm:$0xf]
      %v4546 = vld [vmem:[%s9 + $0x3b4] sm:$0xf]
      %v4547 = vld [vmem:[%s9 + $0x3b8] sm:$0xf]
      %v4548 = vld [vmem:[%s9 + $0x3bc] sm:$0xf]
      %v4549 = vld [vmem:[%s9 + $0x3c0] sm:$0xf]
      %v4550 = vld [vmem:[%s9 + $0x3c4] sm:$0xf]
      %v4551 = vld [vmem:[%s9 + $0x3c8] sm:$0xf]
      %v4552 = vld [vmem:[%s9 + $0x3cc] sm:$0xf]
      %v4553 = vld [vmem:[%s9 + $0x3d0] sm:$0xf]
      %v4554 = vld [vmem:[%s9 + $0x3d4] sm:$0xf]
      %v4555 = vld [vmem:[%s9 + $0x3d8] sm:$0xf]
      %v4556 = vld [vmem:[%s9 + $0x3dc] sm:$0xf]
      %v4557 = vld [vmem:[%s9 + $0x3e0] sm:$0xf]
      %v4558 = vld [vmem:[%s9 + $0x3e4] sm:$0xf]
      %v4559 = vld [vmem:[%s9 + $0x3e8] sm:$0xf]
      %v4560 = vld [vmem:[%s9 + $0x3ec] sm:$0xf]
      %v4561 = vld [vmem:[%s9 + $0x3f0] sm:$0xf]
      %v4562 = vld [vmem:[%s9 + $0x3f4] sm:$0xf]
      %v4563 = vld [vmem:[%s9 + $0x3f8] sm:$0xf]
      %v4564 = vld [vmem:[%s9 + $0x3fc] sm:$0xf]
      %v4565 = vld [vmem:[%s9 + $0x400] sm:$0xf]
      %v4566 = vld [vmem:[%s9 + $0x404] sm:$0xf]
      %v4567 = vld [vmem:[%s9 + $0x408] sm:$0xf]
      %v4568 = vld [vmem:[%s9 + $0x40c] sm:$0xf]
      %v4569 = vld [vmem:[%s9 + $0x410] sm:$0xf]
      %v4570 = vld [vmem:[%s9 + $0x414] sm:$0xf]
      %v4571 = vld [vmem:[%s9 + $0x418] sm:$0xf]
      %v4572 = vld [vmem:[%s9 + $0x41c] sm:$0xf]
      %v4573 = vld [vmem:[%s9 + $0x420] sm:$0xf]
      %v4574 = vld [vmem:[%s9 + $0x424] sm:$0xf]
      %v4575 = vld [vmem:[%s9 + $0x428] sm:$0xf]
      %v4576 = vld [vmem:[%s9 + $0x42c] sm:$0xf]
      %v4577 = vld [vmem:[%s9 + $0x430] sm:$0xf]
      %v4578 = vld [vmem:[%s9 + $0x434] sm:$0xf]
      %v4579 = vld [vmem:[%s9 + $0x438] sm:$0xf]
      %v4580 = vld [vmem:[%s9 + $0x43c] sm:$0xf]
      %v4581 = vld [vmem:[%s9 + $0x440] sm:$0xf]
      %v4582 = vld [vmem:[%s9 + $0x444] sm:$0xf]
      %v4583 = vld [vmem:[%s9 + $0x448] sm:$0xf]
      %v4584 = vld [vmem:[%s9 + $0x44c] sm:$0xf]
      %v4585 = vld [vmem:[%s9 + $0x450] sm:$0xf]
      %v4586 = vld [vmem:[%s9 + $0x454] sm:$0xf]
      %v4587 = vld [vmem:[%s9 + $0x458] sm:$0xf]
      %v4588 = vld [vmem:[%s9 + $0x45c] sm:$0xf]
      %v4589 = vld [vmem:[%s9 + $0x460] sm:$0xf]
      %v4590 = vld [vmem:[%s9 + $0x464] sm:$0xf]
      %v4591 = vld [vmem:[%s9 + $0x468] sm:$0xf]
      %v4592 = vld [vmem:[%s9 + $0x46c] sm:$0xf]
      %v4593 = vld [vmem:[%s9 + $0x470] sm:$0xf]
      %v4594 = vld [vmem:[%s9 + $0x474] sm:$0xf]
      %v4595 = vld [vmem:[%s9 + $0x478] sm:$0xf]
      %v4596 = vld [vmem:[%s9 + $0x47c] sm:$0xf]
      %v4597 = vld [vmem:[%s9 + $0x480] sm:$0xf]
      %v4598 = vld [vmem:[%s9 + $0x484] sm:$0xf]
      %v4599 = vld [vmem:[%s9 + $0x488] sm:$0xf]
      %v4600 = vld [vmem:[%s9 + $0x48c] sm:$0xf]
      %v4601 = vld [vmem:[%s9 + $0x490] sm:$0xf]
      %v4602 = vld [vmem:[%s9 + $0x494] sm:$0xf]
      %v4603 = vld [vmem:[%s9 + $0x498] sm:$0xf]
      %v4604 = vld [vmem:[%s9 + $0x49c] sm:$0xf]
      %v4605 = vld [vmem:[%s9 + $0x4a0] sm:$0xf]
      %v4606 = vld [vmem:[%s9 + $0x4a4] sm:$0xf]
      %v4607 = vld [vmem:[%s9 + $0x4a8] sm:$0xf]
      %v4608 = vld [vmem:[%s9 + $0x4ac] sm:$0xf]
      %v4609 = vld [vmem:[%s9 + $0x4b0] sm:$0xf]
      %v4610 = vld [vmem:[%s9 + $0x4b4] sm:$0xf]
      %v4611 = vld [vmem:[%s9 + $0x4b8] sm:$0xf]
      %v4612 = vld [vmem:[%s9 + $0x4bc] sm:$0xf]
      %v4613 = vld [vmem:[%s9 + $0x4c0] sm:$0xf]
      %v4614 = vld [vmem:[%s9 + $0x4c4] sm:$0xf]
      %v4615 = vld [vmem:[%s9 + $0x4c8] sm:$0xf]
      %v4616 = vld [vmem:[%s9 + $0x4cc] sm:$0xf]
      %v4617 = vld [vmem:[%s9 + $0x4d0] sm:$0xf]
      %v4618 = vld [vmem:[%s9 + $0x4d4] sm:$0xf]
      %v4619 = vld [vmem:[%s9 + $0x4d8] sm:$0xf]
      %v4620 = vld [vmem:[%s9 + $0x4dc] sm:$0xf]
      %v4621 = vld [vmem:[%s9 + $0x4e0] sm:$0xf]
      %v4622 = vld [vmem:[%s9 + $0x4e4] sm:$0xf]
      %v4623 = vld [vmem:[%s9 + $0x4e8] sm:$0xf]
      %v4624 = vld [vmem:[%s9 + $0x4ec] sm:$0xf]
      %v4625 = vld [vmem:[%s9 + $0x4f0] sm:$0xf]
      %v4626 = vld [vmem:[%s9 + $0x4f4] sm:$0xf]
      %v4627 = vld [vmem:[%s9 + $0x4f8] sm:$0xf]
      %v4628 = vld [vmem:[%s9 + $0x4fc] sm:$0xf]
      %v4629 = vld [vmem:[%s9 + $0x500] sm:$0xf]
      %v4630 = vld [vmem:[%s9 + $0x504] sm:$0xf]
      %v4631 = vld [vmem:[%s9 + $0x508] sm:$0xf]
      %v4632 = vld [vmem:[%s9 + $0x50c] sm:$0xf]
      %v4633 = vld [vmem:[%s9 + $0x510] sm:$0xf]
      %v4634 = vld [vmem:[%s9 + $0x514] sm:$0xf]
      %v4635 = vld [vmem:[%s9 + $0x518] sm:$0xf]
      %v4636 = vld [vmem:[%s9 + $0x51c] sm:$0xf]
      %v4637 = vld [vmem:[%s9 + $0x520] sm:$0xf]
      %v4638 = vld [vmem:[%s9 + $0x524] sm:$0xf]
      %v4639 = vld [vmem:[%s9 + $0x528] sm:$0xf]
      %v4640 = vld [vmem:[%s9 + $0x52c] sm:$0xf]
      %v4641 = vld [vmem:[%s9 + $0x530] sm:$0xf]
      %v4642 = vld [vmem:[%s9 + $0x534] sm:$0xf]
      %v4643 = vld [vmem:[%s9 + $0x538] sm:$0xf]
      %v4644 = vld [vmem:[%s9 + $0x53c] sm:$0xf]
      %v4645 = vld [vmem:[%s9 + $0x540] sm:$0xf]
      %v4646 = vld [vmem:[%s9 + $0x544] sm:$0xf]
      %v4647 = vld [vmem:[%s9 + $0x548] sm:$0xf]
      %v4648 = vld [vmem:[%s9 + $0x54c] sm:$0xf]
      %v4649 = vld [vmem:[%s9 + $0x550] sm:$0xf]
      %v4650 = vld [vmem:[%s9 + $0x554] sm:$0xf]
      %v4651 = vld [vmem:[%s9 + $0x558] sm:$0xf]
      %v4652 = vld [vmem:[%s9 + $0x55c] sm:$0xf]
      %v4653 = vld [vmem:[%s9 + $0x560] sm:$0xf]
      %v4654 = vld [vmem:[%s9 + $0x564] sm:$0xf]
      %v4655 = vld [vmem:[%s9 + $0x568] sm:$0xf]
      %v4656 = vld [vmem:[%s9 + $0x56c] sm:$0xf]
      %v4657 = vld [vmem:[%s9 + $0x570] sm:$0xf]
      %v4658 = vld [vmem:[%s9 + $0x574] sm:$0xf]
      %v4659 = vld [vmem:[%s9 + $0x578] sm:$0xf]
      %v4660 = vld [vmem:[%s9 + $0x57c] sm:$0xf]
      %v4661 = vld [vmem:[%s9 + $0x580] sm:$0xf]
      %v4662 = vld [vmem:[%s9 + $0x584] sm:$0xf]
      %v4663 = vld [vmem:[%s9 + $0x588] sm:$0xf]
      %v4664 = vld [vmem:[%s9 + $0x58c] sm:$0xf]
      %v4665 = vld [vmem:[%s9 + $0x590] sm:$0xf]
      %v4666 = vld [vmem:[%s9 + $0x594] sm:$0xf]
      %v4667 = vld [vmem:[%s9 + $0x598] sm:$0xf]
      %v4668 = vld [vmem:[%s9 + $0x59c] sm:$0xf]
      %v4669 = vld [vmem:[%s9 + $0x5a0] sm:$0xf]
      %v4670 = vld [vmem:[%s9 + $0x5a4] sm:$0xf]
      %v4671 = vld [vmem:[%s9 + $0x5a8] sm:$0xf]
      %v4672 = vld [vmem:[%s9 + $0x5ac] sm:$0xf]
      %v4673 = vld [vmem:[%s9 + $0x5b0] sm:$0xf]
      %v4674 = vld [vmem:[%s9 + $0x5b4] sm:$0xf]
      %v4675 = vld [vmem:[%s9 + $0x5b8] sm:$0xf]
      %v4676 = vld [vmem:[%s9 + $0x5bc] sm:$0xf]
      %v4677 = vld [vmem:[%s9 + $0x5c0] sm:$0xf]
      %v4678 = vld [vmem:[%s9 + $0x5c4] sm:$0xf]
      %v4679 = vld [vmem:[%s9 + $0x5c8] sm:$0xf]
      %v4680 = vld [vmem:[%s9 + $0x5cc] sm:$0xf]
      %v4681 = vld [vmem:[%s9 + $0x5d0] sm:$0xf]
      %v4682 = vld [vmem:[%s9 + $0x5d4] sm:$0xf]
      %v4683 = vld [vmem:[%s9 + $0x5d8] sm:$0xf]
      %v4684 = vld [vmem:[%s9 + $0x5dc] sm:$0xf]
      %v4685 = vld [vmem:[%s9 + $0x5e0] sm:$0xf]
      %v4686 = vld [vmem:[%s9 + $0x5e4] sm:$0xf]
      %v4687 = vld [vmem:[%s9 + $0x5e8] sm:$0xf]
      %v4688 = vld [vmem:[%s9 + $0x5ec] sm:$0xf]
      %v4689 = vld [vmem:[%s9 + $0x5f0] sm:$0xf]
      %v4690 = vld [vmem:[%s9 + $0x5f4] sm:$0xf]
      %v4691 = vld [vmem:[%s9 + $0x5f8] sm:$0xf]
      %v4692 = vld [vmem:[%s9 + $0x5fc] sm:$0xf]
      %v4693 = vld [vmem:[%s9 + $0x600] sm:$0xf]
      %v4694 = vld [vmem:[%s9 + $0x604] sm:$0xf]
      %v4695 = vld [vmem:[%s9 + $0x608] sm:$0xf]
      %v4696 = vld [vmem:[%s9 + $0x60c] sm:$0xf]
      %v4697 = vld [vmem:[%s9 + $0x610] sm:$0xf]
      %v4698 = vld [vmem:[%s9 + $0x614] sm:$0xf]
      %v4699 = vld [vmem:[%s9 + $0x618] sm:$0xf]
      %v4700 = vld [vmem:[%s9 + $0x61c] sm:$0xf]
      %v4701 = vld [vmem:[%s9 + $0x620] sm:$0xf]
      %v4702 = vld [vmem:[%s9 + $0x624] sm:$0xf]
      %v4703 = vld [vmem:[%s9 + $0x628] sm:$0xf]
      %v4704 = vld [vmem:[%s9 + $0x62c] sm:$0xf]
      %v4705 = vld [vmem:[%s9 + $0x630] sm:$0xf]
      %v4706 = vld [vmem:[%s9 + $0x634] sm:$0xf]
      %v4707 = vld [vmem:[%s9 + $0x638] sm:$0xf]
      %v4708 = vld [vmem:[%s9 + $0x63c] sm:$0xf]
      %v4709 = vld [vmem:[%s9 + $0x640] sm:$0xf]
      %v4710 = vld [vmem:[%s9 + $0x644] sm:$0xf]
      %v4711 = vld [vmem:[%s9 + $0x648] sm:$0xf]
      %v4712 = vld [vmem:[%s9 + $0x64c] sm:$0xf]
      %v4713 = vld [vmem:[%s9 + $0x650] sm:$0xf]
      %v4714 = vld [vmem:[%s9 + $0x654] sm:$0xf]
      %v4715 = vld [vmem:[%s9 + $0x658] sm:$0xf]
      %v4716 = vld [vmem:[%s9 + $0x65c] sm:$0xf]
      %v4717 = vld [vmem:[%s9 + $0x660] sm:$0xf]
      %v4718 = vld [vmem:[%s9 + $0x664] sm:$0xf]
      %v4719 = vld [vmem:[%s9 + $0x668] sm:$0xf]
      %v4720 = vld [vmem:[%s9 + $0x66c] sm:$0xf]
      %v4721 = vld [vmem:[%s9 + $0x670] sm:$0xf]
      %v4722 = vld [vmem:[%s9 + $0x674] sm:$0xf]
      %v4723 = vld [vmem:[%s9 + $0x678] sm:$0xf]
      %v4724 = vld [vmem:[%s9 + $0x67c] sm:$0xf]
      %v4725 = vld [vmem:[%s9 + $0x680] sm:$0xf]
      %v4726 = vld [vmem:[%s9 + $0x684] sm:$0xf]
      %v4727 = vld [vmem:[%s9 + $0x688] sm:$0xf]
      %v4728 = vld [vmem:[%s9 + $0x68c] sm:$0xf]
      %v4729 = vld [vmem:[%s9 + $0x690] sm:$0xf]
      %v4730 = vld [vmem:[%s9 + $0x694] sm:$0xf]
      %v4731 = vld [vmem:[%s9 + $0x698] sm:$0xf]
      %v4732 = vld [vmem:[%s9 + $0x69c] sm:$0xf]
      %v4733 = vld [vmem:[%s9 + $0x6a0] sm:$0xf]
      %v4734 = vld [vmem:[%s9 + $0x6a4] sm:$0xf]
      %v4735 = vld [vmem:[%s9 + $0x6a8] sm:$0xf]
      %v4736 = vld [vmem:[%s9 + $0x6ac] sm:$0xf]
      %v4737 = vld [vmem:[%s9 + $0x6b0] sm:$0xf]
      %v4738 = vld [vmem:[%s9 + $0x6b4] sm:$0xf]
      %v4739 = vld [vmem:[%s9 + $0x6b8] sm:$0xf]
      %v4740 = vld [vmem:[%s9 + $0x6bc] sm:$0xf]
      %v4741 = vld [vmem:[%s9 + $0x6c0] sm:$0xf]
      %v4742 = vld [vmem:[%s9 + $0x6c4] sm:$0xf]
      %v4743 = vld [vmem:[%s9 + $0x6c8] sm:$0xf]
      %v4744 = vld [vmem:[%s9 + $0x6cc] sm:$0xf]
      %v4745 = vld [vmem:[%s9 + $0x6d0] sm:$0xf]
      %v4746 = vld [vmem:[%s9 + $0x6d4] sm:$0xf]
      %v4747 = vld [vmem:[%s9 + $0x6d8] sm:$0xf]
      %v4748 = vld [vmem:[%s9 + $0x6dc] sm:$0xf]
      %v4749 = vld [vmem:[%s9 + $0x6e0] sm:$0xf]
      %v4750 = vld [vmem:[%s9 + $0x6e4] sm:$0xf]
      %v4751 = vld [vmem:[%s9 + $0x6e8] sm:$0xf]
      %v4752 = vld [vmem:[%s9 + $0x6ec] sm:$0xf]
      %v4753 = vld [vmem:[%s9 + $0x6f0] sm:$0xf]
      %v4754 = vld [vmem:[%s9 + $0x6f4] sm:$0xf]
      %v4755 = vld [vmem:[%s9 + $0x6f8] sm:$0xf]
      %v4756 = vld [vmem:[%s9 + $0x6fc] sm:$0xf]
      %v4757 = vld [vmem:[%s9 + $0x700] sm:$0xf]
      %v4758 = vld [vmem:[%s9 + $0x704] sm:$0xf]
      %v4759 = vld [vmem:[%s9 + $0x708] sm:$0xf]
      %v4760 = vld [vmem:[%s9 + $0x70c] sm:$0xf]
      %v4761 = vld [vmem:[%s9 + $0x710] sm:$0xf]
      %v4762 = vld [vmem:[%s9 + $0x714] sm:$0xf]
      %v4763 = vld [vmem:[%s9 + $0x718] sm:$0xf]
      %v4764 = vld [vmem:[%s9 + $0x71c] sm:$0xf]
      %v4765 = vld [vmem:[%s9 + $0x720] sm:$0xf]
      %v4766 = vld [vmem:[%s9 + $0x724] sm:$0xf]
      %v4767 = vld [vmem:[%s9 + $0x728] sm:$0xf]
      %v4768 = vld [vmem:[%s9 + $0x72c] sm:$0xf]
      %v4769 = vld [vmem:[%s9 + $0x730] sm:$0xf]
      %v4770 = vld [vmem:[%s9 + $0x734] sm:$0xf]
      %v4771 = vld [vmem:[%s9 + $0x738] sm:$0xf]
      %v4772 = vld [vmem:[%s9 + $0x73c] sm:$0xf]
      %v4773 = vld [vmem:[%s9 + $0x740] sm:$0xf]
      %v4774 = vld [vmem:[%s9 + $0x744] sm:$0xf]
      %v4775 = vld [vmem:[%s9 + $0x748] sm:$0xf]
      %v4776 = vld [vmem:[%s9 + $0x74c] sm:$0xf]
      %v4777 = vld [vmem:[%s9 + $0x750] sm:$0xf]
      %v4778 = vld [vmem:[%s9 + $0x754] sm:$0xf]
      %v4779 = vld [vmem:[%s9 + $0x758] sm:$0xf]
      %v4780 = vld [vmem:[%s9 + $0x75c] sm:$0xf]
      %v4781 = vld [vmem:[%s9 + $0x760] sm:$0xf]
      %v4782 = vld [vmem:[%s9 + $0x764] sm:$0xf]
      %v4783 = vld [vmem:[%s9 + $0x768] sm:$0xf]
      %v4784 = vld [vmem:[%s9 + $0x76c] sm:$0xf]
      %v4785 = vld [vmem:[%s9 + $0x770] sm:$0xf]
      %v4786 = vld [vmem:[%s9 + $0x774] sm:$0xf]
      %v4787 = vld [vmem:[%s9 + $0x778] sm:$0xf]
      %v4788 = vld [vmem:[%s9 + $0x77c] sm:$0xf]
      %v4789 = vld [vmem:[%s9 + $0x780] sm:$0xf]
      %v4790 = vld [vmem:[%s9 + $0x784] sm:$0xf]
      %v4791 = vld [vmem:[%s9 + $0x788] sm:$0xf]
      %v4792 = vld [vmem:[%s9 + $0x78c] sm:$0xf]
      %v4793 = vld [vmem:[%s9 + $0x790] sm:$0xf]
      %v4794 = vld [vmem:[%s9 + $0x794] sm:$0xf]
      %v4795 = vld [vmem:[%s9 + $0x798] sm:$0xf]
      %v4796 = vld [vmem:[%s9 + $0x79c] sm:$0xf]
      %v4797 = vld [vmem:[%s9 + $0x7a0] sm:$0xf]
      %v4798 = vld [vmem:[%s9 + $0x7a4] sm:$0xf]
      %v4799 = vld [vmem:[%s9 + $0x7a8] sm:$0xf]
      %v4800 = vld [vmem:[%s9 + $0x7ac] sm:$0xf]
      %v4801 = vld [vmem:[%s9 + $0x7b0] sm:$0xf]
      %v4802 = vld [vmem:[%s9 + $0x7b4] sm:$0xf]
      %v4803 = vld [vmem:[%s9 + $0x7b8] sm:$0xf]
      %v4804 = vld [vmem:[%s9 + $0x7bc] sm:$0xf]
      %v4805 = vld [vmem:[%s9 + $0x7c0] sm:$0xf]
      %v4806 = vld [vmem:[%s9 + $0x7c4] sm:$0xf]
      %v4807 = vld [vmem:[%s9 + $0x7c8] sm:$0xf]
      %v4808 = vld [vmem:[%s9 + $0x7cc] sm:$0xf]
      %v4809 = vld [vmem:[%s9 + $0x7d0] sm:$0xf]
      %v4810 = vld [vmem:[%s9 + $0x7d4] sm:$0xf]
      %v4811 = vld [vmem:[%s9 + $0x7d8] sm:$0xf]
      %v4812 = vld [vmem:[%s9 + $0x7dc] sm:$0xf]
      %v4813 = vld [vmem:[%s9 + $0x7e0] sm:$0xf]
      %v4814 = vld [vmem:[%s9 + $0x7e4] sm:$0xf]
      %v4815 = vld [vmem:[%s9 + $0x7e8] sm:$0xf]
      %v4816 = vld [vmem:[%s9 + $0x7ec] sm:$0xf]
      %v4817 = vld [vmem:[%s9 + $0x7f0] sm:$0xf]
      %v4818 = vld [vmem:[%s9 + $0x7f4] sm:$0xf]
      %v4819 = vld [vmem:[%s9 + $0x7f8] sm:$0xf]
      %v4820 = vld [vmem:[%s9 + $0x7fc] sm:$0xf]
      %v4821 = vld [vmem:[%s9 + $0x800] sm:$0xf]
      %v4822 = vld [vmem:[%s9 + $0x804] sm:$0xf]
      %v4823 = vld [vmem:[%s9 + $0x808] sm:$0xf]
      %v4824 = vld [vmem:[%s9 + $0x80c] sm:$0xf]
      %v4825 = vld [vmem:[%s9 + $0x810] sm:$0xf]
      %v4826 = vld [vmem:[%s9 + $0x814] sm:$0xf]
      %v4827 = vld [vmem:[%s9 + $0x818] sm:$0xf]
      %v4828 = vld [vmem:[%s9 + $0x81c] sm:$0xf]
      %v4829 = vld [vmem:[%s9 + $0x820] sm:$0xf]
      %v4830 = vld [vmem:[%s9 + $0x824] sm:$0xf]
      %v4831 = vld [vmem:[%s9 + $0x828] sm:$0xf]
      %v4832 = vld [vmem:[%s9 + $0x82c] sm:$0xf]
      %v4833 = vld [vmem:[%s9 + $0x830] sm:$0xf]
      %v4834 = vld [vmem:[%s9 + $0x834] sm:$0xf]
      %v4835 = vld [vmem:[%s9 + $0x838] sm:$0xf]
      %v4836 = vld [vmem:[%s9 + $0x83c] sm:$0xf]
      %v4837 = vld [vmem:[%s9 + $0x840] sm:$0xf]
      %v4838 = vld [vmem:[%s9 + $0x844] sm:$0xf]
      %v4839 = vld [vmem:[%s9 + $0x848] sm:$0xf]
      %v4840 = vld [vmem:[%s9 + $0x84c] sm:$0xf]
      %v4841 = vld [vmem:[%s9 + $0x850] sm:$0xf]
      %v4842 = vld [vmem:[%s9 + $0x854] sm:$0xf]
      %v4843 = vld [vmem:[%s9 + $0x858] sm:$0xf]
      %v4844 = vld [vmem:[%s9 + $0x85c] sm:$0xf]
      %v4845 = vld [vmem:[%s9 + $0x860] sm:$0xf]
      %v4846 = vld [vmem:[%s9 + $0x864] sm:$0xf]
      %v4847 = vld [vmem:[%s9 + $0x868] sm:$0xf]
      %v4848 = vld [vmem:[%s9 + $0x86c] sm:$0xf]
      %v4849 = vld [vmem:[%s9 + $0x870] sm:$0xf]
      %v4850 = vld [vmem:[%s9 + $0x874] sm:$0xf]
      %v4851 = vld [vmem:[%s9 + $0x878] sm:$0xf]
      %v4852 = vld [vmem:[%s9 + $0x87c] sm:$0xf]
      %v4853 = vld [vmem:[%s9 + $0x880] sm:$0xf]
      %v4854 = vld [vmem:[%s9 + $0x884] sm:$0xf]
      %v4855 = vld [vmem:[%s9 + $0x888] sm:$0xf]
      %v4856 = vld [vmem:[%s9 + $0x88c] sm:$0xf]
      %v4857 = vld [vmem:[%s9 + $0x890] sm:$0xf]
      %v4858 = vld [vmem:[%s9 + $0x894] sm:$0xf]
      %v4859 = vld [vmem:[%s9 + $0x898] sm:$0xf]
      %v4860 = vld [vmem:[%s9 + $0x89c] sm:$0xf]
      %v4861 = vld [vmem:[%s9 + $0x8a0] sm:$0xf]
      %v4862 = vld [vmem:[%s9 + $0x8a4] sm:$0xf]
      %v4863 = vld [vmem:[%s9 + $0x8a8] sm:$0xf]
      %v4864 = vld [vmem:[%s9 + $0x8ac] sm:$0xf]
      %v4865 = vld [vmem:[%s9 + $0x8b0] sm:$0xf]
      %v4866 = vld [vmem:[%s9 + $0x8b4] sm:$0xf]
      %v4867 = vld [vmem:[%s9 + $0x8b8] sm:$0xf]
      %v4868 = vld [vmem:[%s9 + $0x8bc] sm:$0xf]
      %v4869 = vld [vmem:[%s9 + $0x8c0] sm:$0xf]
      %v4870 = vld [vmem:[%s9 + $0x8c4] sm:$0xf]
      %v4871 = vld [vmem:[%s9 + $0x8c8] sm:$0xf]
      %v4872 = vld [vmem:[%s9 + $0x8cc] sm:$0xf]
      %v4873 = vld [vmem:[%s9 + $0x8d0] sm:$0xf]
      %v4874 = vld [vmem:[%s9 + $0x8d4] sm:$0xf]
      %v4875 = vld [vmem:[%s9 + $0x8d8] sm:$0xf]
      %v4876 = vld [vmem:[%s9 + $0x8dc] sm:$0xf]
      %v4877 = vld [vmem:[%s9 + $0x8e0] sm:$0xf]
      %v4878 = vld [vmem:[%s9 + $0x8e4] sm:$0xf]
      %v4879 = vld [vmem:[%s9 + $0x8e8] sm:$0xf]
      %v4880 = vld [vmem:[%s9 + $0x8ec] sm:$0xf]
      %v4881 = vld [vmem:[%s9 + $0x8f0] sm:$0xf]
      %v4882 = vld [vmem:[%s9 + $0x8f4] sm:$0xf]
      %v4883 = vld [vmem:[%s9 + $0x8f8] sm:$0xf]
      %v4884 = vld [vmem:[%s9 + $0x8fc] sm:$0xf]
      %v4885 = vld [vmem:[%s9 + $0x900] sm:$0xf]
      %v4886 = vld [vmem:[%s9 + $0x904] sm:$0xf]
      %v4887 = vld [vmem:[%s9 + $0x908] sm:$0xf]
      %v4888 = vld [vmem:[%s9 + $0x90c] sm:$0xf]
      %v4889 = vld [vmem:[%s9 + $0x910] sm:$0xf]
      %v4890 = vld [vmem:[%s9 + $0x914] sm:$0xf]
      %v4891 = vld [vmem:[%s9 + $0x918] sm:$0xf]
      %v4892 = vld [vmem:[%s9 + $0x91c] sm:$0xf]
      %v4893 = vld [vmem:[%s9 + $0x920] sm:$0xf]
      %v4894 = vld [vmem:[%s9 + $0x924] sm:$0xf]
      %v4895 = vld [vmem:[%s9 + $0x928] sm:$0xf]
      %v4896 = vld [vmem:[%s9 + $0x92c] sm:$0xf]
      %v4897 = vld [vmem:[%s9 + $0x930] sm:$0xf]
      %v4898 = vld [vmem:[%s9 + $0x934] sm:$0xf]
      %v4899 = vld [vmem:[%s9 + $0x938] sm:$0xf]
      %v4900 = vld [vmem:[%s9 + $0x93c] sm:$0xf]
      %v4901 = vld [vmem:[%s9 + $0x940] sm:$0xf]
      %v4902 = vld [vmem:[%s9 + $0x944] sm:$0xf]
      %v4903 = vld [vmem:[%s9 + $0x948] sm:$0xf]
      %v4904 = vld [vmem:[%s9 + $0x94c] sm:$0xf]
      %v4905 = vld [vmem:[%s9 + $0x950] sm:$0xf]
      %v4906 = vld [vmem:[%s9 + $0x954] sm:$0xf]
      %v4907 = vld [vmem:[%s9 + $0x958] sm:$0xf]
      %v4908 = vld [vmem:[%s9 + $0x95c] sm:$0xf]
      %v4909 = vld [vmem:[%s9 + $0x960] sm:$0xf]
      %v4910 = vld [vmem:[%s9 + $0x964] sm:$0xf]
      %v4911 = vld [vmem:[%s9 + $0x968] sm:$0xf]
      %v4912 = vld [vmem:[%s9 + $0x96c] sm:$0xf]
      %v4913 = vld [vmem:[%s9 + $0x970] sm:$0xf]
      %v4914 = vld [vmem:[%s9 + $0x974] sm:$0xf]
      %v4915 = vld [vmem:[%s9 + $0x978] sm:$0xf]
      %v4916 = vld [vmem:[%s9 + $0x97c] sm:$0xf]
      %v4917 = vld [vmem:[%s9 + $0x980] sm:$0xf]
      %v4918 = vld [vmem:[%s9 + $0x984] sm:$0xf]
      %v4919 = vld [vmem:[%s9 + $0x988] sm:$0xf]
      %v4920 = vld [vmem:[%s9 + $0x98c] sm:$0xf]
      %v4921 = vld [vmem:[%s9 + $0x990] sm:$0xf]
      %v4922 = vld [vmem:[%s9 + $0x994] sm:$0xf]
      %v4923 = vld [vmem:[%s9 + $0x998] sm:$0xf]
      %v4924 = vld [vmem:[%s9 + $0x99c] sm:$0xf]
      %v4925 = vld [vmem:[%s9 + $0x9a0] sm:$0xf]
      %v4926 = vld [vmem:[%s9 + $0x9a4] sm:$0xf]
      %v4927 = vld [vmem:[%s9 + $0x9a8] sm:$0xf]
      %v4928 = vld [vmem:[%s9 + $0x9ac] sm:$0xf]
      %v4929 = vld [vmem:[%s9 + $0x9b0] sm:$0xf]
      %v4930 = vld [vmem:[%s9 + $0x9b4] sm:$0xf]
      %v4931 = vld [vmem:[%s9 + $0x9b8] sm:$0xf]
      %v4932 = vld [vmem:[%s9 + $0x9bc] sm:$0xf]
      %v4933 = vld [vmem:[%s9 + $0x9c0] sm:$0xf]
      %v4934 = vld [vmem:[%s9 + $0x9c4] sm:$0xf]
      %v4935 = vld [vmem:[%s9 + $0x9c8] sm:$0xf]
      %v4936 = vld [vmem:[%s9 + $0x9cc] sm:$0xf]
      %v4937 = vld [vmem:[%s9 + $0x9d0] sm:$0xf]
      %v4938 = vld [vmem:[%s9 + $0x9d4] sm:$0xf]
      %v4939 = vld [vmem:[%s9 + $0x9d8] sm:$0xf]
      %v4940 = vld [vmem:[%s9 + $0x9dc] sm:$0xf]
      %v4941 = vld [vmem:[%s9 + $0x9e0] sm:$0xf]
      %v4942 = vld [vmem:[%s9 + $0x9e4] sm:$0xf]
      %v4943 = vld [vmem:[%s9 + $0x9e8] sm:$0xf]
      %v4944 = vld [vmem:[%s9 + $0x9ec] sm:$0xf]
      %v4945 = vld [vmem:[%s9 + $0x9f0] sm:$0xf]
      %v4946 = vld [vmem:[%s9 + $0x9f4] sm:$0xf]
      %v4947 = vld [vmem:[%s9 + $0x9f8] sm:$0xf]
      %v4948 = vld [vmem:[%s9 + $0x9fc] sm:$0xf]
      %v4949 = vld [vmem:[%s9 + $0xa00] sm:$0xf]
      %v4950 = vld [vmem:[%s9 + $0xa04] sm:$0xf]
      %v4951 = vld [vmem:[%s9 + $0xa08] sm:$0xf]
      %v4952 = vld [vmem:[%s9 + $0xa0c] sm:$0xf]
      %v4953 = vld [vmem:[%s9 + $0xa10] sm:$0xf]
      %v4954 = vld [vmem:[%s9 + $0xa14] sm:$0xf]
      %v4955 = vld [vmem:[%s9 + $0xa18] sm:$0xf]
      %v4956 = vld [vmem:[%s9 + $0xa1c] sm:$0xf]
      %v4957 = vld [vmem:[%s9 + $0xa20] sm:$0xf]
      %v4958 = vld [vmem:[%s9 + $0xa24] sm:$0xf]
      %v4959 = vld [vmem:[%s9 + $0xa28] sm:$0xf]
      %v4960 = vld [vmem:[%s9 + $0xa2c] sm:$0xf]
      %v4961 = vld [vmem:[%s9 + $0xa30] sm:$0xf]
      %v4962 = vld [vmem:[%s9 + $0xa34] sm:$0xf]
      %v4963 = vld [vmem:[%s9 + $0xa38] sm:$0xf]
      %v4964 = vld [vmem:[%s9 + $0xa3c] sm:$0xf]
      %v4965 = vld [vmem:[%s9 + $0xa40] sm:$0xf]
      %v4966 = vld [vmem:[%s9 + $0xa44] sm:$0xf]
      %v4967 = vld [vmem:[%s9 + $0xa48] sm:$0xf]
      %v4968 = vld [vmem:[%s9 + $0xa4c] sm:$0xf]
      %v4969 = vld [vmem:[%s9 + $0xa50] sm:$0xf]
      %v4970 = vld [vmem:[%s9 + $0xa54] sm:$0xf]
      %v4971 = vld [vmem:[%s9 + $0xa58] sm:$0xf]
      %v4972 = vld [vmem:[%s9 + $0xa5c] sm:$0xf]
      %v4973 = vld [vmem:[%s9 + $0xa60] sm:$0xf]
      %v4974 = vld [vmem:[%s9 + $0xa64] sm:$0xf]
      %v4975 = vld [vmem:[%s9 + $0xa68] sm:$0xf]
      %v4976 = vld [vmem:[%s9 + $0xa6c] sm:$0xf]
      %v4977 = vld [vmem:[%s9 + $0xa70] sm:$0xf]
      %v4978 = vld [vmem:[%s9 + $0xa74] sm:$0xf]
      %v4979 = vld [vmem:[%s9 + $0xa78] sm:$0xf]
      %v4980 = vld [vmem:[%s9 + $0xa7c] sm:$0xf]
      %v4981 = vld [vmem:[%s9 + $0xa80] sm:$0xf]
      %v4982 = vld [vmem:[%s9 + $0xa84] sm:$0xf]
      %v4983 = vld [vmem:[%s9 + $0xa88] sm:$0xf]
      %v4984 = vld [vmem:[%s9 + $0xa8c] sm:$0xf]
      %v4985 = vld [vmem:[%s9 + $0xa90] sm:$0xf]
      %v4986 = vld [vmem:[%s9 + $0xa94] sm:$0xf]
      %v4987 = vld [vmem:[%s9 + $0xa98] sm:$0xf]
      %v4988 = vld [vmem:[%s9 + $0xa9c] sm:$0xf]
      %v4989 = vld [vmem:[%s9 + $0xaa0] sm:$0xf]
      %v4990 = vld [vmem:[%s9 + $0xaa4] sm:$0xf]
      %v4991 = vld [vmem:[%s9 + $0xaa8] sm:$0xf]
      %v4992 = vld [vmem:[%s9 + $0xaac] sm:$0xf]
      %v4993 = vld [vmem:[%s9 + $0xab0] sm:$0xf]
      %v4994 = vld [vmem:[%s9 + $0xab4] sm:$0xf]
      %v4995 = vld [vmem:[%s9 + $0xab8] sm:$0xf]
      %v4996 = vld [vmem:[%s9 + $0xabc] sm:$0xf]
      %v4997 = vld [vmem:[%s9 + $0xac0] sm:$0xf]
      %v4998 = vld [vmem:[%s9 + $0xac4] sm:$0xf]
      %v4999 = vld [vmem:[%s9 + $0xac8] sm:$0xf]
      %v5000 = vld [vmem:[%s9 + $0xacc] sm:$0xf]
      %v5001 = vld [vmem:[%s9 + $0xad0] sm:$0xf]
      %v5002 = vld [vmem:[%s9 + $0xad4] sm:$0xf]
      %v5003 = vld [vmem:[%s9 + $0xad8] sm:$0xf]
      %v5004 = vld [vmem:[%s9 + $0xadc] sm:$0xf]
      %v5005 = vld [vmem:[%s9 + $0xae0] sm:$0xf]
      %v5006 = vld [vmem:[%s9 + $0xae4] sm:$0xf]
      %v5007 = vld [vmem:[%s9 + $0xae8] sm:$0xf]
      %v5008 = vld [vmem:[%s9 + $0xaec] sm:$0xf]
      %v5009 = vld [vmem:[%s9 + $0xaf0] sm:$0xf]
      %v5010 = vld [vmem:[%s9 + $0xaf4] sm:$0xf]
      %v5011 = vld [vmem:[%s9 + $0xaf8] sm:$0xf]
      %v5012 = vld [vmem:[%s9 + $0xafc] sm:$0xf]
      %v5013 = vld [vmem:[%s9 + $0xb00] sm:$0xf]
      %v5014 = vld [vmem:[%s9 + $0xb04] sm:$0xf]
      %v5015 = vld [vmem:[%s9 + $0xb08] sm:$0xf]
      %v5016 = vld [vmem:[%s9 + $0xb0c] sm:$0xf]
      %v5017 = vld [vmem:[%s9 + $0xb10] sm:$0xf]
      %v5018 = vld [vmem:[%s9 + $0xb14] sm:$0xf]
      %v5019 = vld [vmem:[%s9 + $0xb18] sm:$0xf]
      %v5020 = vld [vmem:[%s9 + $0xb1c] sm:$0xf]
      %v5021 = vld [vmem:[%s9 + $0xb20] sm:$0xf]
      %v5022 = vld [vmem:[%s9 + $0xb24] sm:$0xf]
      %v5023 = vld [vmem:[%s9 + $0xb28] sm:$0xf]
      %v5024 = vld [vmem:[%s9 + $0xb2c] sm:$0xf]
      %v5025 = vld [vmem:[%s9 + $0xb30] sm:$0xf]
      %v5026 = vld [vmem:[%s9 + $0xb34] sm:$0xf]
      %v5027 = vld [vmem:[%s9 + $0xb38] sm:$0xf]
      %v5028 = vld [vmem:[%s9 + $0xb3c] sm:$0xf]
      %v5029 = vld [vmem:[%s9 + $0xb40] sm:$0xf]
      %v5030 = vld [vmem:[%s9 + $0xb44] sm:$0xf]
      %v5031 = vld [vmem:[%s9 + $0xb48] sm:$0xf]
      %v5032 = vld [vmem:[%s9 + $0xb4c] sm:$0xf]
      %v5033 = vld [vmem:[%s9 + $0xb50] sm:$0xf]
      %v5034 = vld [vmem:[%s9 + $0xb54] sm:$0xf]
      %v5035 = vld [vmem:[%s9 + $0xb58] sm:$0xf]
      %v5036 = vld [vmem:[%s9 + $0xb5c] sm:$0xf]
      %v5037 = vld [vmem:[%s9 + $0xb60] sm:$0xf]
      %v5038 = vld [vmem:[%s9 + $0xb64] sm:$0xf]
      %v5039 = vld [vmem:[%s9 + $0xb68] sm:$0xf]
      %v5040 = vld [vmem:[%s9 + $0xb6c] sm:$0xf]
      %v5041 = vld [vmem:[%s9 + $0xb70] sm:$0xf]
      %v5042 = vld [vmem:[%s9 + $0xb74] sm:$0xf]
      %v5043 = vld [vmem:[%s9 + $0xb78] sm:$0xf]
      %v5044 = vld [vmem:[%s9 + $0xb7c] sm:$0xf]
      %v5045 = vld [vmem:[%s9 + $0xb80] sm:$0xf]
      %v5046 = vld [vmem:[%s9 + $0xb84] sm:$0xf]
      %v5047 = vld [vmem:[%s9 + $0xb88] sm:$0xf]
      %v5048 = vld [vmem:[%s9 + $0xb8c] sm:$0xf]
      %v5049 = vld [vmem:[%s9 + $0xb90] sm:$0xf]
      %v5050 = vld [vmem:[%s9 + $0xb94] sm:$0xf]
      %v5051 = vld [vmem:[%s9 + $0xb98] sm:$0xf]
      %v5052 = vld [vmem:[%s9 + $0xb9c] sm:$0xf]
      %v5053 = vld [vmem:[%s9 + $0xba0] sm:$0xf]
      %v5054 = vld [vmem:[%s9 + $0xba4] sm:$0xf]
      %v5055 = vld [vmem:[%s9 + $0xba8] sm:$0xf]
      %v5056 = vld [vmem:[%s9 + $0xbac] sm:$0xf]
      %v5057 = vld [vmem:[%s9 + $0xbb0] sm:$0xf]
      %v5058 = vld [vmem:[%s9 + $0xbb4] sm:$0xf]
      %v5059 = vld [vmem:[%s9 + $0xbb8] sm:$0xf]
      %v5060 = vld [vmem:[%s9 + $0xbbc] sm:$0xf]
      %v5061 = vld [vmem:[%s9 + $0xbc0] sm:$0xf]
      %v5062 = vld [vmem:[%s9 + $0xbc4] sm:$0xf]
      %v5063 = vld [vmem:[%s9 + $0xbc8] sm:$0xf]
      %v5064 = vld [vmem:[%s9 + $0xbcc] sm:$0xf]
      %v5065 = vld [vmem:[%s9 + $0xbd0] sm:$0xf]
      %v5066 = vld [vmem:[%s9 + $0xbd4] sm:$0xf]
      %v5067 = vld [vmem:[%s9 + $0xbd8] sm:$0xf]
      %v5068 = vld [vmem:[%s9 + $0xbdc] sm:$0xf]
      %v5069 = vld [vmem:[%s9 + $0xbe0] sm:$0xf]
      %v5070 = vld [vmem:[%s9 + $0xbe4] sm:$0xf]
      %v5071 = vld [vmem:[%s9 + $0xbe8] sm:$0xf]
      %v5072 = vld [vmem:[%s9 + $0xbec] sm:$0xf]
      %v5073 = vld [vmem:[%s9 + $0xbf0] sm:$0xf]
      %v5074 = vld [vmem:[%s9 + $0xbf4] sm:$0xf]
      %v5075 = vld [vmem:[%s9 + $0xbf8] sm:$0xf]
      %v5076 = vld [vmem:[%s9 + $0xbfc] sm:$0xf]
      %v5077 = vld [vmem:[%s9 + $0xc00] sm:$0xf]
      %v5078 = vld [vmem:[%s9 + $0xc04] sm:$0xf]
      %v5079 = vld [vmem:[%s9 + $0xc08] sm:$0xf]
      %v5080 = vld [vmem:[%s9 + $0xc0c] sm:$0xf]
      %v5081 = vld [vmem:[%s9 + $0xc10] sm:$0xf]
      %v5082 = vld [vmem:[%s9 + $0xc14] sm:$0xf]
      %v5083 = vld [vmem:[%s9 + $0xc18] sm:$0xf]
      %v5084 = vld [vmem:[%s9 + $0xc1c] sm:$0xf]
      %v5085 = vld [vmem:[%s9 + $0xc20] sm:$0xf]
      %v5086 = vld [vmem:[%s9 + $0xc24] sm:$0xf]
      %v5087 = vld [vmem:[%s9 + $0xc28] sm:$0xf]
      %v5088 = vld [vmem:[%s9 + $0xc2c] sm:$0xf]
      %v5089 = vld [vmem:[%s9 + $0xc30] sm:$0xf]
      %v5090 = vld [vmem:[%s9 + $0xc34] sm:$0xf]
      %v5091 = vld [vmem:[%s9 + $0xc38] sm:$0xf]
      %v5092 = vld [vmem:[%s9 + $0xc3c] sm:$0xf]
      %v5093 = vld [vmem:[%s10] sm:$0x1]
      %v5878 = vunpack.c.l.b16 %v4309
      %v5879 = vunpack.c.l.b16 %v4310
      %v5880 = vunpack.c.l.b16 %v4311
      %v5881 = vunpack.c.l.b16 %v4312
      %v5882 = vunpack.c.l.b16 %v4313
      %v5883 = vunpack.c.l.b16 %v4314
      %v5884 = vunpack.c.l.b16 %v4315
      %v5885 = vunpack.c.l.b16 %v4316
      %v5886 = vunpack.c.l.b16 %v4317
      %v5887 = vunpack.c.l.b16 %v4318
      %v5888 = vunpack.c.l.b16 %v4319
      %v5889 = vunpack.c.l.b16 %v4320
      %v5890 = vunpack.c.l.b16 %v4321
      %v5891 = vunpack.c.l.b16 %v4322
      %v5892 = vunpack.c.l.b16 %v4323
      %v5893 = vunpack.c.l.b16 %v4324
      %v5894 = vunpack.c.l.b16 %v4325
      %v5895 = vunpack.c.l.b16 %v4326
      %v5896 = vunpack.c.l.b16 %v4327
      %v5897 = vunpack.c.l.b16 %v4328
      %v5898 = vunpack.c.l.b16 %v4329
      %v5899 = vunpack.c.l.b16 %v4330
      %v5900 = vunpack.c.l.b16 %v4331
      %v5901 = vunpack.c.l.b16 %v4332
      %v5902 = vunpack.c.l.b16 %v4333
      %v5903 = vunpack.c.l.b16 %v4334
      %v5904 = vunpack.c.l.b16 %v4335
      %v5905 = vunpack.c.l.b16 %v4336
      %v5906 = vunpack.c.l.b16 %v4337
      %v5907 = vunpack.c.l.b16 %v4338
      %v5908 = vunpack.c.l.b16 %v4339
      %v5909 = vunpack.c.l.b16 %v4340
      %v5910 = vunpack.c.l.b16 %v4341
      %v5911 = vunpack.c.l.b16 %v4342
      %v5912 = vunpack.c.l.b16 %v4343
      %v5913 = vunpack.c.l.b16 %v4344
      %v5914 = vunpack.c.l.b16 %v4345
      %v5915 = vunpack.c.l.b16 %v4346
      %v5916 = vunpack.c.l.b16 %v4347
      %v5917 = vunpack.c.l.b16 %v4348
      %v5918 = vunpack.c.l.b16 %v4349
      %v5919 = vunpack.c.l.b16 %v4350
      %v5920 = vunpack.c.l.b16 %v4351
      %v5921 = vunpack.c.l.b16 %v4352
      %v5922 = vunpack.c.l.b16 %v4353
      %v5923 = vunpack.c.l.b16 %v4354
      %v5924 = vunpack.c.l.b16 %v4355
      %v5925 = vunpack.c.l.b16 %v4356
      %v5926 = vunpack.c.l.b16 %v4357
      %v5927 = vunpack.c.l.b16 %v4358
      %v5928 = vunpack.c.l.b16 %v4359
      %v5929 = vunpack.c.l.b16 %v4360
      %v5930 = vunpack.c.l.b16 %v4361
      %v5931 = vunpack.c.l.b16 %v4362
      %v5932 = vunpack.c.l.b16 %v4363
      %v5933 = vunpack.c.l.b16 %v4364
      %v5934 = vunpack.c.l.b16 %v4365
      %v5935 = vunpack.c.l.b16 %v4366
      %v5936 = vunpack.c.l.b16 %v4367
      %v5937 = vunpack.c.l.b16 %v4368
      %v5938 = vunpack.c.l.b16 %v4369
      %v5939 = vunpack.c.l.b16 %v4370
      %v5940 = vunpack.c.l.b16 %v4371
      %v5941 = vunpack.c.l.b16 %v4372
      %v5942 = vunpack.c.l.b16 %v4373
      %v5943 = vunpack.c.l.b16 %v4374
      %v5944 = vunpack.c.l.b16 %v4375
      %v5945 = vunpack.c.l.b16 %v4376
      %v5946 = vunpack.c.l.b16 %v4377
      %v5947 = vunpack.c.l.b16 %v4378
      %v5948 = vunpack.c.l.b16 %v4379
      %v5949 = vunpack.c.l.b16 %v4380
      %v5950 = vunpack.c.l.b16 %v4381
      %v5951 = vunpack.c.l.b16 %v4382
      %v5952 = vunpack.c.l.b16 %v4383
      %v5953 = vunpack.c.l.b16 %v4384
      %v5954 = vunpack.c.l.b16 %v4385
      %v5955 = vunpack.c.l.b16 %v4386
      %v5956 = vunpack.c.l.b16 %v4387
      %v5957 = vunpack.c.l.b16 %v4388
      %v5958 = vunpack.c.l.b16 %v4389
      %v5959 = vunpack.c.l.b16 %v4390
      %v5960 = vunpack.c.l.b16 %v4391
      %v5961 = vunpack.c.l.b16 %v4392
      %v5962 = vunpack.c.l.b16 %v4393
      %v5963 = vunpack.c.l.b16 %v4394
      %v5964 = vunpack.c.l.b16 %v4395
      %v5965 = vunpack.c.l.b16 %v4396
      %v5966 = vunpack.c.l.b16 %v4397
      %v5967 = vunpack.c.l.b16 %v4398
      %v5968 = vunpack.c.l.b16 %v4399
      %v5969 = vunpack.c.l.b16 %v4400
      %v5970 = vunpack.c.l.b16 %v4401
      %v5971 = vunpack.c.l.b16 %v4402
      %v5972 = vunpack.c.l.b16 %v4403
      %v5973 = vunpack.c.l.b16 %v4404
      %v5974 = vunpack.c.l.b16 %v4405
      %v5975 = vunpack.c.l.b16 %v4406
      %v5976 = vunpack.c.l.b16 %v4407
      %v5977 = vunpack.c.l.b16 %v4408
      %v5978 = vunpack.c.l.b16 %v4409
      %v5979 = vunpack.c.l.b16 %v4410
      %v5980 = vunpack.c.l.b16 %v4411
      %v5981 = vunpack.c.l.b16 %v4412
      %v5982 = vunpack.c.l.b16 %v4413
      %v5983 = vunpack.c.l.b16 %v4414
      %v5984 = vunpack.c.l.b16 %v4415
      %v5985 = vunpack.c.l.b16 %v4416
      %v5986 = vunpack.c.l.b16 %v4417
      %v5987 = vunpack.c.l.b16 %v4418
      %v5988 = vunpack.c.l.b16 %v4419
      %v5989 = vunpack.c.l.b16 %v4420
      %v5990 = vunpack.c.l.b16 %v4421
      %v5991 = vunpack.c.l.b16 %v4422
      %v5992 = vunpack.c.l.b16 %v4423
      %v5993 = vunpack.c.l.b16 %v4424
      %v5994 = vunpack.c.l.b16 %v4425
      %v5995 = vunpack.c.l.b16 %v4426
      %v5996 = vunpack.c.l.b16 %v4427
      %v5997 = vunpack.c.l.b16 %v4428
      %v5998 = vunpack.c.l.b16 %v4429
      %v5999 = vunpack.c.l.b16 %v4430
      %v6000 = vunpack.c.l.b16 %v4431
      %v6001 = vunpack.c.l.b16 %v4432
      %v6002 = vunpack.c.l.b16 %v4433
      %v6003 = vunpack.c.l.b16 %v4434
      %v6004 = vunpack.c.l.b16 %v4435
      %v6005 = vunpack.c.l.b16 %v4436
      %v6006 = vunpack.c.l.b16 %v4437
      %v6007 = vunpack.c.l.b16 %v4438
      %v6008 = vunpack.c.l.b16 %v4439
      %v6009 = vunpack.c.l.b16 %v4440
      %v6010 = vunpack.c.l.b16 %v4441
      %v6011 = vunpack.c.l.b16 %v4442
      %v6012 = vunpack.c.l.b16 %v4443
      %v6013 = vunpack.c.l.b16 %v4444
      %v6014 = vunpack.c.l.b16 %v4445
      %v6015 = vunpack.c.l.b16 %v4446
      %v6016 = vunpack.c.l.b16 %v4447
      %v6017 = vunpack.c.l.b16 %v4448
      %v6018 = vunpack.c.l.b16 %v4449
      %v6019 = vunpack.c.l.b16 %v4450
      %v6020 = vunpack.c.l.b16 %v4451
      %v6021 = vunpack.c.l.b16 %v4452
      %v6022 = vunpack.c.l.b16 %v4453
      %v6023 = vunpack.c.l.b16 %v4454
      %v6024 = vunpack.c.l.b16 %v4455
      %v6025 = vunpack.c.l.b16 %v4456
      %v6026 = vunpack.c.l.b16 %v4457
      %v6027 = vunpack.c.l.b16 %v4458
      %v6028 = vunpack.c.l.b16 %v4459
      %v6029 = vunpack.c.l.b16 %v4460
      %v6030 = vunpack.c.l.b16 %v4461
      %v6031 = vunpack.c.l.b16 %v4462
      %v6032 = vunpack.c.l.b16 %v4463
      %v6033 = vunpack.c.l.b16 %v4464
      %v6034 = vunpack.c.l.b16 %v4465
      %v6035 = vunpack.c.l.b16 %v4466
      %v6036 = vunpack.c.l.b16 %v4467
      %v6037 = vunpack.c.l.b16 %v4468
      %v6038 = vunpack.c.l.b16 %v4469
      %v6039 = vunpack.c.l.b16 %v4470
      %v6040 = vunpack.c.l.b16 %v4471
      %v6041 = vunpack.c.l.b16 %v4472
      %v6042 = vunpack.c.l.b16 %v4473
      %v6043 = vunpack.c.l.b16 %v4474
      %v6044 = vunpack.c.l.b16 %v4475
      %v6045 = vunpack.c.l.b16 %v4476
      %v6046 = vunpack.c.l.b16 %v4477
      %v6047 = vunpack.c.l.b16 %v4478
      %v6048 = vunpack.c.l.b16 %v4479
      %v6049 = vunpack.c.l.b16 %v4480
      %v6050 = vunpack.c.l.b16 %v4481
      %v6051 = vunpack.c.l.b16 %v4482
      %v6052 = vunpack.c.l.b16 %v4483
      %v6053 = vunpack.c.l.b16 %v4484
      %v6054 = vunpack.c.l.b16 %v4485
      %v6055 = vunpack.c.l.b16 %v4486
      %v6056 = vunpack.c.l.b16 %v4487
      %v6057 = vunpack.c.l.b16 %v4488
      %v6058 = vunpack.c.l.b16 %v4489
      %v6059 = vunpack.c.l.b16 %v4490
      %v6060 = vunpack.c.l.b16 %v4491
      %v6061 = vunpack.c.l.b16 %v4492
      %v6062 = vunpack.c.l.b16 %v4493
      %v6063 = vunpack.c.l.b16 %v4494
      %v6064 = vunpack.c.l.b16 %v4495
      %v6065 = vunpack.c.l.b16 %v4496
      %v6066 = vunpack.c.l.b16 %v4497
      %v6067 = vunpack.c.l.b16 %v4498
      %v6068 = vunpack.c.l.b16 %v4499
      %v6069 = vunpack.c.l.b16 %v4500
      %v6070 = vunpack.c.l.b16 %v4501
      %v6071 = vunpack.c.l.b16 %v4502
      %v6072 = vunpack.c.l.b16 %v4503
      %v6073 = vunpack.c.l.b16 %v4504
      %v6074 = vunpack.c.l.b16 %v4505
      %v6075 = vunpack.c.l.b16 %v4506
      %v6076 = vunpack.c.l.b16 %v4507
      %v6077 = vunpack.c.l.b16 %v4508
      %v6078 = vunpack.c.l.b16 %v4509
      %v6079 = vunpack.c.l.b16 %v4510
      %v6080 = vunpack.c.l.b16 %v4511
      %v6081 = vunpack.c.l.b16 %v4512
      %v6082 = vunpack.c.l.b16 %v4513
      %v6083 = vunpack.c.l.b16 %v4514
      %v6084 = vunpack.c.l.b16 %v4515
      %v6085 = vunpack.c.l.b16 %v4516
      %v6086 = vunpack.c.l.b16 %v4517
      %v6087 = vunpack.c.l.b16 %v4518
      %v6088 = vunpack.c.l.b16 %v4519
      %v6089 = vunpack.c.l.b16 %v4520
      %v6090 = vunpack.c.l.b16 %v4521
      %v6091 = vunpack.c.l.b16 %v4522
      %v6092 = vunpack.c.l.b16 %v4523
      %v6093 = vunpack.c.l.b16 %v4524
      %v6094 = vunpack.c.l.b16 %v4525
      %v6095 = vunpack.c.l.b16 %v4526
      %v6096 = vunpack.c.l.b16 %v4527
      %v6097 = vunpack.c.l.b16 %v4528
      %v6098 = vunpack.c.l.b16 %v4529
      %v6099 = vunpack.c.l.b16 %v4530
      %v6100 = vunpack.c.l.b16 %v4531
      %v6101 = vunpack.c.l.b16 %v4532
      %v6102 = vunpack.c.l.b16 %v4533
      %v6103 = vunpack.c.l.b16 %v4534
      %v6104 = vunpack.c.l.b16 %v4535
      %v6105 = vunpack.c.l.b16 %v4536
      %v6106 = vunpack.c.l.b16 %v4537
      %v6107 = vunpack.c.l.b16 %v4538
      %v6108 = vunpack.c.l.b16 %v4539
      %v6109 = vunpack.c.l.b16 %v4540
      %v6110 = vunpack.c.l.b16 %v4541
      %v6111 = vunpack.c.l.b16 %v4542
      %v6112 = vunpack.c.l.b16 %v4543
      %v6113 = vunpack.c.l.b16 %v4544
      %v6114 = vunpack.c.l.b16 %v4545
      %v6115 = vunpack.c.l.b16 %v4546
      %v6116 = vunpack.c.l.b16 %v4547
      %v6117 = vunpack.c.l.b16 %v4548
      %v6118 = vunpack.c.l.b16 %v4549
      %v6119 = vunpack.c.l.b16 %v4550
      %v6120 = vunpack.c.l.b16 %v4551
      %v6121 = vunpack.c.l.b16 %v4552
      %v6122 = vunpack.c.l.b16 %v4553
      %v6123 = vunpack.c.l.b16 %v4554
      %v6124 = vunpack.c.l.b16 %v4555
      %v6125 = vunpack.c.l.b16 %v4556
      %v6126 = vunpack.c.l.b16 %v4557
      %v6127 = vunpack.c.l.b16 %v4558
      %v6128 = vunpack.c.l.b16 %v4559
      %v6129 = vunpack.c.l.b16 %v4560
      %v6130 = vunpack.c.l.b16 %v4561
      %v6131 = vunpack.c.l.b16 %v4562
      %v6132 = vunpack.c.l.b16 %v4563
      %v6133 = vunpack.c.l.b16 %v4564
      %v6134 = vunpack.c.l.b16 %v4565
      %v6135 = vunpack.c.l.b16 %v4566
      %v6136 = vunpack.c.l.b16 %v4567
      %v6137 = vunpack.c.l.b16 %v4568
      %v6138 = vunpack.c.l.b16 %v4569
      %v6139 = vunpack.c.l.b16 %v4570
      %v6140 = vunpack.c.l.b16 %v4571
      %v6141 = vunpack.c.l.b16 %v4572
      %v6142 = vunpack.c.l.b16 %v4573
      %v6143 = vunpack.c.l.b16 %v4574
      %v6144 = vunpack.c.l.b16 %v4575
      %v6145 = vunpack.c.l.b16 %v4576
      %v6146 = vunpack.c.l.b16 %v4577
      %v6147 = vunpack.c.l.b16 %v4578
      %v6148 = vunpack.c.l.b16 %v4579
      %v6149 = vunpack.c.l.b16 %v4580
      %v6150 = vunpack.c.l.b16 %v4581
      %v6151 = vunpack.c.l.b16 %v4582
      %v6152 = vunpack.c.l.b16 %v4583
      %v6153 = vunpack.c.l.b16 %v4584
      %v6154 = vunpack.c.l.b16 %v4585
      %v6155 = vunpack.c.l.b16 %v4586
      %v6156 = vunpack.c.l.b16 %v4587
      %v6157 = vunpack.c.l.b16 %v4588
      %v6158 = vunpack.c.l.b16 %v4589
      %v6159 = vunpack.c.l.b16 %v4590
      %v6160 = vunpack.c.l.b16 %v4591
      %v6161 = vunpack.c.l.b16 %v4592
      %v6162 = vunpack.c.l.b16 %v4593
      %v6163 = vunpack.c.l.b16 %v4594
      %v6164 = vunpack.c.l.b16 %v4595
      %v6165 = vunpack.c.l.b16 %v4596
      %v6166 = vunpack.c.l.b16 %v4597
      %v6167 = vunpack.c.l.b16 %v4598
      %v6168 = vunpack.c.l.b16 %v4599
      %v6169 = vunpack.c.l.b16 %v4600
      %v6170 = vunpack.c.l.b16 %v4601
      %v6171 = vunpack.c.l.b16 %v4602
      %v6172 = vunpack.c.l.b16 %v4603
      %v6173 = vunpack.c.l.b16 %v4604
      %v6174 = vunpack.c.l.b16 %v4605
      %v6175 = vunpack.c.l.b16 %v4606
      %v6176 = vunpack.c.l.b16 %v4607
      %v6177 = vunpack.c.l.b16 %v4608
      %v6178 = vunpack.c.l.b16 %v4609
      %v6179 = vunpack.c.l.b16 %v4610
      %v6180 = vunpack.c.l.b16 %v4611
      %v6181 = vunpack.c.l.b16 %v4612
      %v6182 = vunpack.c.l.b16 %v4613
      %v6183 = vunpack.c.l.b16 %v4614
      %v6184 = vunpack.c.l.b16 %v4615
      %v6185 = vunpack.c.l.b16 %v4616
      %v6186 = vunpack.c.l.b16 %v4617
      %v6187 = vunpack.c.l.b16 %v4618
      %v6188 = vunpack.c.l.b16 %v4619
      %v6189 = vunpack.c.l.b16 %v4620
      %v6190 = vunpack.c.l.b16 %v4621
      %v6191 = vunpack.c.l.b16 %v4622
      %v6192 = vunpack.c.l.b16 %v4623
      %v6193 = vunpack.c.l.b16 %v4624
      %v6194 = vunpack.c.l.b16 %v4625
      %v6195 = vunpack.c.l.b16 %v4626
      %v6196 = vunpack.c.l.b16 %v4627
      %v6197 = vunpack.c.l.b16 %v4628
      %v6198 = vunpack.c.l.b16 %v4629
      %v6199 = vunpack.c.l.b16 %v4630
      %v6200 = vunpack.c.l.b16 %v4631
      %v6201 = vunpack.c.l.b16 %v4632
      %v6202 = vunpack.c.l.b16 %v4633
      %v6203 = vunpack.c.l.b16 %v4634
      %v6204 = vunpack.c.l.b16 %v4635
      %v6205 = vunpack.c.l.b16 %v4636
      %v6206 = vunpack.c.l.b16 %v4637
      %v6207 = vunpack.c.l.b16 %v4638
      %v6208 = vunpack.c.l.b16 %v4639
      %v6209 = vunpack.c.l.b16 %v4640
      %v6210 = vunpack.c.l.b16 %v4641
      %v6211 = vunpack.c.l.b16 %v4642
      %v6212 = vunpack.c.l.b16 %v4643
      %v6213 = vunpack.c.l.b16 %v4644
      %v6214 = vunpack.c.l.b16 %v4645
      %v6215 = vunpack.c.l.b16 %v4646
      %v6216 = vunpack.c.l.b16 %v4647
      %v6217 = vunpack.c.l.b16 %v4648
      %v6218 = vunpack.c.l.b16 %v4649
      %v6219 = vunpack.c.l.b16 %v4650
      %v6220 = vunpack.c.l.b16 %v4651
      %v6221 = vunpack.c.l.b16 %v4652
      %v6222 = vunpack.c.l.b16 %v4653
      %v6223 = vunpack.c.l.b16 %v4654
      %v6224 = vunpack.c.l.b16 %v4655
      %v6225 = vunpack.c.l.b16 %v4656
      %v6226 = vunpack.c.l.b16 %v4657
      %v6227 = vunpack.c.l.b16 %v4658
      %v6228 = vunpack.c.l.b16 %v4659
      %v6229 = vunpack.c.l.b16 %v4660
      %v6230 = vunpack.c.l.b16 %v4661
      %v6231 = vunpack.c.l.b16 %v4662
      %v6232 = vunpack.c.l.b16 %v4663
      %v6233 = vunpack.c.l.b16 %v4664
      %v6234 = vunpack.c.l.b16 %v4665
      %v6235 = vunpack.c.l.b16 %v4666
      %v6236 = vunpack.c.l.b16 %v4667
      %v6237 = vunpack.c.l.b16 %v4668
      %v6238 = vunpack.c.l.b16 %v4669
      %v6239 = vunpack.c.l.b16 %v4670
      %v6240 = vunpack.c.l.b16 %v4671
      %v6241 = vunpack.c.l.b16 %v4672
      %v6242 = vunpack.c.l.b16 %v4673
      %v6243 = vunpack.c.l.b16 %v4674
      %v6244 = vunpack.c.l.b16 %v4675
      %v6245 = vunpack.c.l.b16 %v4676
      %v6246 = vunpack.c.l.b16 %v4677
      %v6247 = vunpack.c.l.b16 %v4678
      %v6248 = vunpack.c.l.b16 %v4679
      %v6249 = vunpack.c.l.b16 %v4680
      %v6250 = vunpack.c.l.b16 %v4681
      %v6251 = vunpack.c.l.b16 %v4682
      %v6252 = vunpack.c.l.b16 %v4683
      %v6253 = vunpack.c.l.b16 %v4684
      %v6254 = vunpack.c.l.b16 %v4685
      %v6255 = vunpack.c.l.b16 %v4686
      %v6256 = vunpack.c.l.b16 %v4687
      %v6257 = vunpack.c.l.b16 %v4688
      %v6258 = vunpack.c.l.b16 %v4689
      %v6259 = vunpack.c.l.b16 %v4690
      %v6260 = vunpack.c.l.b16 %v4691
      %v6261 = vunpack.c.l.b16 %v4692
      %v6262 = vunpack.c.l.b16 %v4693
      %v6263 = vunpack.c.l.b16 %v4694
      %v6264 = vunpack.c.l.b16 %v4695
      %v6265 = vunpack.c.l.b16 %v4696
      %v6266 = vunpack.c.l.b16 %v4697
      %v6267 = vunpack.c.l.b16 %v4698
      %v6268 = vunpack.c.l.b16 %v4699
      %v6269 = vunpack.c.l.b16 %v4700
      %v6270 = vunpack.c.l.b16 %v4701
      %v6271 = vunpack.c.l.b16 %v4702
      %v6272 = vunpack.c.l.b16 %v4703
      %v6273 = vunpack.c.l.b16 %v4704
      %v6274 = vunpack.c.l.b16 %v4705
      %v6275 = vunpack.c.l.b16 %v4706
      %v6276 = vunpack.c.l.b16 %v4707
      %v6277 = vunpack.c.l.b16 %v4708
      %v6278 = vunpack.c.l.b16 %v4709
      %v6279 = vunpack.c.l.b16 %v4710
      %v6280 = vunpack.c.l.b16 %v4711
      %v6281 = vunpack.c.l.b16 %v4712
      %v6282 = vunpack.c.l.b16 %v4713
      %v6283 = vunpack.c.l.b16 %v4714
      %v6284 = vunpack.c.l.b16 %v4715
      %v6285 = vunpack.c.l.b16 %v4716
      %v6286 = vunpack.c.l.b16 %v4717
      %v6287 = vunpack.c.l.b16 %v4718
      %v6288 = vunpack.c.l.b16 %v4719
      %v6289 = vunpack.c.l.b16 %v4720
      %v6290 = vunpack.c.l.b16 %v4721
      %v6291 = vunpack.c.l.b16 %v4722
      %v6292 = vunpack.c.l.b16 %v4723
      %v6293 = vunpack.c.l.b16 %v4724
      %v6294 = vunpack.c.l.b16 %v4725
      %v6295 = vunpack.c.l.b16 %v4726
      %v6296 = vunpack.c.l.b16 %v4727
      %v6297 = vunpack.c.l.b16 %v4728
      %v6298 = vunpack.c.l.b16 %v4729
      %v6299 = vunpack.c.l.b16 %v4730
      %v6300 = vunpack.c.l.b16 %v4731
      %v6301 = vunpack.c.l.b16 %v4732
      %v6302 = vunpack.c.l.b16 %v4733
      %v6303 = vunpack.c.l.b16 %v4734
      %v6304 = vunpack.c.l.b16 %v4735
      %v6305 = vunpack.c.l.b16 %v4736
      %v6306 = vunpack.c.l.b16 %v4737
      %v6307 = vunpack.c.l.b16 %v4738
      %v6308 = vunpack.c.l.b16 %v4739
      %v6309 = vunpack.c.l.b16 %v4740
      %v6310 = vunpack.c.l.b16 %v4741
      %v6311 = vunpack.c.l.b16 %v4742
      %v6312 = vunpack.c.l.b16 %v4743
      %v6313 = vunpack.c.l.b16 %v4744
      %v6314 = vunpack.c.l.b16 %v4745
      %v6315 = vunpack.c.l.b16 %v4746
      %v6316 = vunpack.c.l.b16 %v4747
      %v6317 = vunpack.c.l.b16 %v4748
      %v6318 = vunpack.c.l.b16 %v4749
      %v6319 = vunpack.c.l.b16 %v4750
      %v6320 = vunpack.c.l.b16 %v4751
      %v6321 = vunpack.c.l.b16 %v4752
      %v6322 = vunpack.c.l.b16 %v4753
      %v6323 = vunpack.c.l.b16 %v4754
      %v6324 = vunpack.c.l.b16 %v4755
      %v6325 = vunpack.c.l.b16 %v4756
      %v6326 = vunpack.c.l.b16 %v4757
      %v6327 = vunpack.c.l.b16 %v4758
      %v6328 = vunpack.c.l.b16 %v4759
      %v6329 = vunpack.c.l.b16 %v4760
      %v6330 = vunpack.c.l.b16 %v4761
      %v6331 = vunpack.c.l.b16 %v4762
      %v6332 = vunpack.c.l.b16 %v4763
      %v6333 = vunpack.c.l.b16 %v4764
      %v6334 = vunpack.c.l.b16 %v4765
      %v6335 = vunpack.c.l.b16 %v4766
      %v6336 = vunpack.c.l.b16 %v4767
      %v6337 = vunpack.c.l.b16 %v4768
      %v6338 = vunpack.c.l.b16 %v4769
      %v6339 = vunpack.c.l.b16 %v4770
      %v6340 = vunpack.c.l.b16 %v4771
      %v6341 = vunpack.c.l.b16 %v4772
      %v6342 = vunpack.c.l.b16 %v4773
      %v6343 = vunpack.c.l.b16 %v4774
      %v6344 = vunpack.c.l.b16 %v4775
      %v6345 = vunpack.c.l.b16 %v4776
      %v6346 = vunpack.c.l.b16 %v4777
      %v6347 = vunpack.c.l.b16 %v4778
      %v6348 = vunpack.c.l.b16 %v4779
      %v6349 = vunpack.c.l.b16 %v4780
      %v6350 = vunpack.c.l.b16 %v4781
      %v6351 = vunpack.c.l.b16 %v4782
      %v6352 = vunpack.c.l.b16 %v4783
      %v6353 = vunpack.c.l.b16 %v4784
      %v6354 = vunpack.c.l.b16 %v4785
      %v6355 = vunpack.c.l.b16 %v4786
      %v6356 = vunpack.c.l.b16 %v4787
      %v6357 = vunpack.c.l.b16 %v4788
      %v6358 = vunpack.c.l.b16 %v4789
      %v6359 = vunpack.c.l.b16 %v4790
      %v6360 = vunpack.c.l.b16 %v4791
      %v6361 = vunpack.c.l.b16 %v4792
      %v6362 = vunpack.c.l.b16 %v4793
      %v6363 = vunpack.c.l.b16 %v4794
      %v6364 = vunpack.c.l.b16 %v4795
      %v6365 = vunpack.c.l.b16 %v4796
      %v6366 = vunpack.c.l.b16 %v4797
      %v6367 = vunpack.c.l.b16 %v4798
      %v6368 = vunpack.c.l.b16 %v4799
      %v6369 = vunpack.c.l.b16 %v4800
      %v6370 = vunpack.c.l.b16 %v4801
      %v6371 = vunpack.c.l.b16 %v4802
      %v6372 = vunpack.c.l.b16 %v4803
      %v6373 = vunpack.c.l.b16 %v4804
      %v6374 = vunpack.c.l.b16 %v4805
      %v6375 = vunpack.c.l.b16 %v4806
      %v6376 = vunpack.c.l.b16 %v4807
      %v6377 = vunpack.c.l.b16 %v4808
      %v6378 = vunpack.c.l.b16 %v4809
      %v6379 = vunpack.c.l.b16 %v4810
      %v6380 = vunpack.c.l.b16 %v4811
      %v6381 = vunpack.c.l.b16 %v4812
      %v6382 = vunpack.c.l.b16 %v4813
      %v6383 = vunpack.c.l.b16 %v4814
      %v6384 = vunpack.c.l.b16 %v4815
      %v6385 = vunpack.c.l.b16 %v4816
      %v6386 = vunpack.c.l.b16 %v4817
      %v6387 = vunpack.c.l.b16 %v4818
      %v6388 = vunpack.c.l.b16 %v4819
      %v6389 = vunpack.c.l.b16 %v4820
      %v6390 = vunpack.c.l.b16 %v4821
      %v6391 = vunpack.c.l.b16 %v4822
      %v6392 = vunpack.c.l.b16 %v4823
      %v6393 = vunpack.c.l.b16 %v4824
      %v6394 = vunpack.c.l.b16 %v4825
      %v6395 = vunpack.c.l.b16 %v4826
      %v6396 = vunpack.c.l.b16 %v4827
      %v6397 = vunpack.c.l.b16 %v4828
      %v6398 = vunpack.c.l.b16 %v4829
      %v6399 = vunpack.c.l.b16 %v4830
      %v6400 = vunpack.c.l.b16 %v4831
      %v6401 = vunpack.c.l.b16 %v4832
      %v6402 = vunpack.c.l.b16 %v4833
      %v6403 = vunpack.c.l.b16 %v4834
      %v6404 = vunpack.c.l.b16 %v4835
      %v6405 = vunpack.c.l.b16 %v4836
      %v6406 = vunpack.c.l.b16 %v4837
      %v6407 = vunpack.c.l.b16 %v4838
      %v6408 = vunpack.c.l.b16 %v4839
      %v6409 = vunpack.c.l.b16 %v4840
      %v6410 = vunpack.c.l.b16 %v4841
      %v6411 = vunpack.c.l.b16 %v4842
      %v6412 = vunpack.c.l.b16 %v4843
      %v6413 = vunpack.c.l.b16 %v4844
      %v6414 = vunpack.c.l.b16 %v4845
      %v6415 = vunpack.c.l.b16 %v4846
      %v6416 = vunpack.c.l.b16 %v4847
      %v6417 = vunpack.c.l.b16 %v4848
      %v6418 = vunpack.c.l.b16 %v4849
      %v6419 = vunpack.c.l.b16 %v4850
      %v6420 = vunpack.c.l.b16 %v4851
      %v6421 = vunpack.c.l.b16 %v4852
      %v6422 = vunpack.c.l.b16 %v4853
      %v6423 = vunpack.c.l.b16 %v4854
      %v6424 = vunpack.c.l.b16 %v4855
      %v6425 = vunpack.c.l.b16 %v4856
      %v6426 = vunpack.c.l.b16 %v4857
      %v6427 = vunpack.c.l.b16 %v4858
      %v6428 = vunpack.c.l.b16 %v4859
      %v6429 = vunpack.c.l.b16 %v4860
      %v6430 = vunpack.c.l.b16 %v4861
      %v6431 = vunpack.c.l.b16 %v4862
      %v6432 = vunpack.c.l.b16 %v4863
      %v6433 = vunpack.c.l.b16 %v4864
      %v6434 = vunpack.c.l.b16 %v4865
      %v6435 = vunpack.c.l.b16 %v4866
      %v6436 = vunpack.c.l.b16 %v4867
      %v6437 = vunpack.c.l.b16 %v4868
      %v6438 = vunpack.c.l.b16 %v4869
      %v6439 = vunpack.c.l.b16 %v4870
      %v6440 = vunpack.c.l.b16 %v4871
      %v6441 = vunpack.c.l.b16 %v4872
      %v6442 = vunpack.c.l.b16 %v4873
      %v6443 = vunpack.c.l.b16 %v4874
      %v6444 = vunpack.c.l.b16 %v4875
      %v6445 = vunpack.c.l.b16 %v4876
      %v6446 = vunpack.c.l.b16 %v4877
      %v6447 = vunpack.c.l.b16 %v4878
      %v6448 = vunpack.c.l.b16 %v4879
      %v6449 = vunpack.c.l.b16 %v4880
      %v6450 = vunpack.c.l.b16 %v4881
      %v6451 = vunpack.c.l.b16 %v4882
      %v6452 = vunpack.c.l.b16 %v4883
      %v6453 = vunpack.c.l.b16 %v4884
      %v6454 = vunpack.c.l.b16 %v4885
      %v6455 = vunpack.c.l.b16 %v4886
      %v6456 = vunpack.c.l.b16 %v4887
      %v6457 = vunpack.c.l.b16 %v4888
      %v6458 = vunpack.c.l.b16 %v4889
      %v6459 = vunpack.c.l.b16 %v4890
      %v6460 = vunpack.c.l.b16 %v4891
      %v6461 = vunpack.c.l.b16 %v4892
      %v6462 = vunpack.c.l.b16 %v4893
      %v6463 = vunpack.c.l.b16 %v4894
      %v6464 = vunpack.c.l.b16 %v4895
      %v6465 = vunpack.c.l.b16 %v4896
      %v6466 = vunpack.c.l.b16 %v4897
      %v6467 = vunpack.c.l.b16 %v4898
      %v6468 = vunpack.c.l.b16 %v4899
      %v6469 = vunpack.c.l.b16 %v4900
      %v6470 = vunpack.c.l.b16 %v4901
      %v6471 = vunpack.c.l.b16 %v4902
      %v6472 = vunpack.c.l.b16 %v4903
      %v6473 = vunpack.c.l.b16 %v4904
      %v6474 = vunpack.c.l.b16 %v4905
      %v6475 = vunpack.c.l.b16 %v4906
      %v6476 = vunpack.c.l.b16 %v4907
      %v6477 = vunpack.c.l.b16 %v4908
      %v6478 = vunpack.c.l.b16 %v4909
      %v6479 = vunpack.c.l.b16 %v4910
      %v6480 = vunpack.c.l.b16 %v4911
      %v6481 = vunpack.c.l.b16 %v4912
      %v6482 = vunpack.c.l.b16 %v4913
      %v6483 = vunpack.c.l.b16 %v4914
      %v6484 = vunpack.c.l.b16 %v4915
      %v6485 = vunpack.c.l.b16 %v4916
      %v6486 = vunpack.c.l.b16 %v4917
      %v6487 = vunpack.c.l.b16 %v4918
      %v6488 = vunpack.c.l.b16 %v4919
      %v6489 = vunpack.c.l.b16 %v4920
      %v6490 = vunpack.c.l.b16 %v4921
      %v6491 = vunpack.c.l.b16 %v4922
      %v6492 = vunpack.c.l.b16 %v4923
      %v6493 = vunpack.c.l.b16 %v4924
      %v6494 = vunpack.c.l.b16 %v4925
      %v6495 = vunpack.c.l.b16 %v4926
      %v6496 = vunpack.c.l.b16 %v4927
      %v6497 = vunpack.c.l.b16 %v4928
      %v6498 = vunpack.c.l.b16 %v4929
      %v6499 = vunpack.c.l.b16 %v4930
      %v6500 = vunpack.c.l.b16 %v4931
      %v6501 = vunpack.c.l.b16 %v4932
      %v6502 = vunpack.c.l.b16 %v4933
      %v6503 = vunpack.c.l.b16 %v4934
      %v6504 = vunpack.c.l.b16 %v4935
      %v6505 = vunpack.c.l.b16 %v4936
      %v6506 = vunpack.c.l.b16 %v4937
      %v6507 = vunpack.c.l.b16 %v4938
      %v6508 = vunpack.c.l.b16 %v4939
      %v6509 = vunpack.c.l.b16 %v4940
      %v6510 = vunpack.c.l.b16 %v4941
      %v6511 = vunpack.c.l.b16 %v4942
      %v6512 = vunpack.c.l.b16 %v4943
      %v6513 = vunpack.c.l.b16 %v4944
      %v6514 = vunpack.c.l.b16 %v4945
      %v6515 = vunpack.c.l.b16 %v4946
      %v6516 = vunpack.c.l.b16 %v4947
      %v6517 = vunpack.c.l.b16 %v4948
      %v6518 = vunpack.c.l.b16 %v4949
      %v6519 = vunpack.c.l.b16 %v4950
      %v6520 = vunpack.c.l.b16 %v4951
      %v6521 = vunpack.c.l.b16 %v4952
      %v6522 = vunpack.c.l.b16 %v4953
      %v6523 = vunpack.c.l.b16 %v4954
      %v6524 = vunpack.c.l.b16 %v4955
      %v6525 = vunpack.c.l.b16 %v4956
      %v6526 = vunpack.c.l.b16 %v4957
      %v6527 = vunpack.c.l.b16 %v4958
      %v6528 = vunpack.c.l.b16 %v4959
      %v6529 = vunpack.c.l.b16 %v4960
      %v6530 = vunpack.c.l.b16 %v4961
      %v6531 = vunpack.c.l.b16 %v4962
      %v6532 = vunpack.c.l.b16 %v4963
      %v6533 = vunpack.c.l.b16 %v4964
      %v6534 = vunpack.c.l.b16 %v4965
      %v6535 = vunpack.c.l.b16 %v4966
      %v6536 = vunpack.c.l.b16 %v4967
      %v6537 = vunpack.c.l.b16 %v4968
      %v6538 = vunpack.c.l.b16 %v4969
      %v6539 = vunpack.c.l.b16 %v4970
      %v6540 = vunpack.c.l.b16 %v4971
      %v6541 = vunpack.c.l.b16 %v4972
      %v6542 = vunpack.c.l.b16 %v4973
      %v6543 = vunpack.c.l.b16 %v4974
      %v6544 = vunpack.c.l.b16 %v4975
      %v6545 = vunpack.c.l.b16 %v4976
      %v6546 = vunpack.c.l.b16 %v4977
      %v6547 = vunpack.c.l.b16 %v4978
      %v6548 = vunpack.c.l.b16 %v4979
      %v6549 = vunpack.c.l.b16 %v4980
      %v6550 = vunpack.c.l.b16 %v4981
      %v6551 = vunpack.c.l.b16 %v4982
      %v6552 = vunpack.c.l.b16 %v4983
      %v6553 = vunpack.c.l.b16 %v4984
      %v6554 = vunpack.c.l.b16 %v4985
      %v6555 = vunpack.c.l.b16 %v4986
      %v6556 = vunpack.c.l.b16 %v4987
      %v6557 = vunpack.c.l.b16 %v4988
      %v6558 = vunpack.c.l.b16 %v4989
      %v6559 = vunpack.c.l.b16 %v4990
      %v6560 = vunpack.c.l.b16 %v4991
      %v6561 = vunpack.c.l.b16 %v4992
      %v6562 = vunpack.c.l.b16 %v4993
      %v6563 = vunpack.c.l.b16 %v4994
      %v6564 = vunpack.c.l.b16 %v4995
      %v6565 = vunpack.c.l.b16 %v4996
      %v6566 = vunpack.c.l.b16 %v4997
      %v6567 = vunpack.c.l.b16 %v4998
      %v6568 = vunpack.c.l.b16 %v4999
      %v6569 = vunpack.c.l.b16 %v5000
      %v6570 = vunpack.c.l.b16 %v5001
      %v6571 = vunpack.c.l.b16 %v5002
      %v6572 = vunpack.c.l.b16 %v5003
      %v6573 = vunpack.c.l.b16 %v5004
      %v6574 = vunpack.c.l.b16 %v5005
      %v6575 = vunpack.c.l.b16 %v5006
      %v6576 = vunpack.c.l.b16 %v5007
      %v6577 = vunpack.c.l.b16 %v5008
      %v6578 = vunpack.c.l.b16 %v5009
      %v6579 = vunpack.c.l.b16 %v5010
      %v6580 = vunpack.c.l.b16 %v5011
      %v6581 = vunpack.c.l.b16 %v5012
      %v6582 = vunpack.c.l.b16 %v5013
      %v6583 = vunpack.c.l.b16 %v5014
      %v6584 = vunpack.c.l.b16 %v5015
      %v6585 = vunpack.c.l.b16 %v5016
      %v6586 = vunpack.c.l.b16 %v5017
      %v6587 = vunpack.c.l.b16 %v5018
      %v6588 = vunpack.c.l.b16 %v5019
      %v6589 = vunpack.c.l.b16 %v5020
      %v6590 = vunpack.c.l.b16 %v5021
      %v6591 = vunpack.c.l.b16 %v5022
      %v6592 = vunpack.c.l.b16 %v5023
      %v6593 = vunpack.c.l.b16 %v5024
      %v6594 = vunpack.c.l.b16 %v5025
      %v6595 = vunpack.c.l.b16 %v5026
      %v6596 = vunpack.c.l.b16 %v5027
      %v6597 = vunpack.c.l.b16 %v5028
      %v6598 = vunpack.c.l.b16 %v5029
      %v6599 = vunpack.c.l.b16 %v5030
      %v6600 = vunpack.c.l.b16 %v5031
      %v6601 = vunpack.c.l.b16 %v5032
      %v6602 = vunpack.c.l.b16 %v5033
      %v6603 = vunpack.c.l.b16 %v5034
      %v6604 = vunpack.c.l.b16 %v5035
      %v6605 = vunpack.c.l.b16 %v5036
      %v6606 = vunpack.c.l.b16 %v5037
      %v6607 = vunpack.c.l.b16 %v5038
      %v6608 = vunpack.c.l.b16 %v5039
      %v6609 = vunpack.c.l.b16 %v5040
      %v6610 = vunpack.c.l.b16 %v5041
      %v6611 = vunpack.c.l.b16 %v5042
      %v6612 = vunpack.c.l.b16 %v5043
      %v6613 = vunpack.c.l.b16 %v5044
      %v6614 = vunpack.c.l.b16 %v5045
      %v6615 = vunpack.c.l.b16 %v5046
      %v6616 = vunpack.c.l.b16 %v5047
      %v6617 = vunpack.c.l.b16 %v5048
      %v6618 = vunpack.c.l.b16 %v5049
      %v6619 = vunpack.c.l.b16 %v5050
      %v6620 = vunpack.c.l.b16 %v5051
      %v6621 = vunpack.c.l.b16 %v5052
      %v6622 = vunpack.c.l.b16 %v5053
      %v6623 = vunpack.c.l.b16 %v5054
      %v6624 = vunpack.c.l.b16 %v5055
      %v6625 = vunpack.c.l.b16 %v5056
      %v6626 = vunpack.c.l.b16 %v5057
      %v6627 = vunpack.c.l.b16 %v5058
      %v6628 = vunpack.c.l.b16 %v5059
      %v6629 = vunpack.c.l.b16 %v5060
      %v6630 = vunpack.c.l.b16 %v5061
      %v6631 = vunpack.c.l.b16 %v5062
      %v6632 = vunpack.c.l.b16 %v5063
      %v6633 = vunpack.c.l.b16 %v5064
      %v6634 = vunpack.c.l.b16 %v5065
      %v6635 = vunpack.c.l.b16 %v5066
      %v6636 = vunpack.c.l.b16 %v5067
      %v6637 = vunpack.c.l.b16 %v5068
      %v6638 = vunpack.c.l.b16 %v5069
      %v6639 = vunpack.c.l.b16 %v5070
      %v6640 = vunpack.c.l.b16 %v5071
      %v6641 = vunpack.c.l.b16 %v5072
      %v6642 = vunpack.c.l.b16 %v5073
      %v6643 = vunpack.c.l.b16 %v5074
      %v6644 = vunpack.c.l.b16 %v5075
      %v6645 = vunpack.c.l.b16 %v5076
      %v6646 = vunpack.c.l.b16 %v5077
      %v6647 = vunpack.c.l.b16 %v5078
      %v6648 = vunpack.c.l.b16 %v5079
      %v6649 = vunpack.c.l.b16 %v5080
      %v6650 = vunpack.c.l.b16 %v5081
      %v6651 = vunpack.c.l.b16 %v5082
      %v6652 = vunpack.c.l.b16 %v5083
      %v6653 = vunpack.c.l.b16 %v5084
      %v6654 = vunpack.c.l.b16 %v5085
      %v6655 = vunpack.c.l.b16 %v5086
      %v6656 = vunpack.c.l.b16 %v5087
      %v6657 = vunpack.c.l.b16 %v5088
      %v6658 = vunpack.c.l.b16 %v5089
      %v6659 = vunpack.c.l.b16 %v5090
      %v6660 = vunpack.c.l.b16 %v5091
      %v6661 = vunpack.c.l.b16 %v5092
      %v6662 = vpack.c.b16 %v5879, %v5878
      %v6663 = vpack.c.b16 %v5881, %v5880
      %v6664 = vpack.c.b16 %v5883, %v5882
      %v6665 = vpack.c.b16 %v5885, %v5884
      %v6666 = vpack.c.b16 %v5887, %v5886
      %v6667 = vpack.c.b16 %v5889, %v5888
      %v6668 = vpack.c.b16 %v5891, %v5890
      %v6669 = vpack.c.b16 %v5893, %v5892
      %v6670 = vpack.c.b16 %v5895, %v5894
      %v6671 = vpack.c.b16 %v5897, %v5896
      %v6672 = vpack.c.b16 %v5899, %v5898
      %v6673 = vpack.c.b16 %v5901, %v5900
      %v6674 = vpack.c.b16 %v5903, %v5902
      %v6675 = vpack.c.b16 %v5905, %v5904
      %v6676 = vpack.c.b16 %v5907, %v5906
      %v6677 = vpack.c.b16 %v5909, %v5908
      %v6678 = vpack.c.b16 %v5911, %v5910
      %v6679 = vpack.c.b16 %v5913, %v5912
      %v6680 = vpack.c.b16 %v5915, %v5914
      %v6681 = vpack.c.b16 %v5917, %v5916
      %v6682 = vpack.c.b16 %v5919, %v5918
      %v6683 = vpack.c.b16 %v5921, %v5920
      %v6684 = vpack.c.b16 %v5923, %v5922
      %v6685 = vpack.c.b16 %v5925, %v5924
      %v6686 = vpack.c.b16 %v5927, %v5926
      %v6687 = vpack.c.b16 %v5929, %v5928
      %v6688 = vpack.c.b16 %v5931, %v5930
      %v6689 = vpack.c.b16 %v5933, %v5932
      %v6690 = vpack.c.b16 %v5935, %v5934
      %v6691 = vpack.c.b16 %v5937, %v5936
      %v6692 = vpack.c.b16 %v5939, %v5938
      %v6693 = vpack.c.b16 %v5941, %v5940
      %v6694 = vpack.c.b16 %v5943, %v5942
      %v6695 = vpack.c.b16 %v5945, %v5944
      %v6696 = vpack.c.b16 %v5947, %v5946
      %v6697 = vpack.c.b16 %v5949, %v5948
      %v6698 = vpack.c.b16 %v5951, %v5950
      %v6699 = vpack.c.b16 %v5953, %v5952
      %v6700 = vpack.c.b16 %v5955, %v5954
      %v6701 = vpack.c.b16 %v5957, %v5956
      %v6702 = vpack.c.b16 %v5959, %v5958
      %v6703 = vpack.c.b16 %v5961, %v5960
      %v6704 = vpack.c.b16 %v5963, %v5962
      %v6705 = vpack.c.b16 %v5965, %v5964
      %v6706 = vpack.c.b16 %v5967, %v5966
      %v6707 = vpack.c.b16 %v5969, %v5968
      %v6708 = vpack.c.b16 %v5971, %v5970
      %v6709 = vpack.c.b16 %v5973, %v5972
      %v6710 = vpack.c.b16 %v5975, %v5974
      %v6711 = vpack.c.b16 %v5977, %v5976
      %v6712 = vpack.c.b16 %v5979, %v5978
      %v6713 = vpack.c.b16 %v5981, %v5980
      %v6714 = vpack.c.b16 %v5983, %v5982
      %v6715 = vpack.c.b16 %v5985, %v5984
      %v6716 = vpack.c.b16 %v5987, %v5986
      %v6717 = vpack.c.b16 %v5989, %v5988
      %v6718 = vpack.c.b16 %v5991, %v5990
      %v6719 = vpack.c.b16 %v5993, %v5992
      %v6720 = vpack.c.b16 %v5995, %v5994
      %v6721 = vpack.c.b16 %v5997, %v5996
      %v6722 = vpack.c.b16 %v5999, %v5998
      %v6723 = vpack.c.b16 %v6001, %v6000
      %v6724 = vpack.c.b16 %v6003, %v6002
      %v6725 = vpack.c.b16 %v6005, %v6004
      %v6726 = vpack.c.b16 %v6007, %v6006
      %v6727 = vpack.c.b16 %v6009, %v6008
      %v6728 = vpack.c.b16 %v6011, %v6010
      %v6729 = vpack.c.b16 %v6013, %v6012
      %v6730 = vpack.c.b16 %v6015, %v6014
      %v6731 = vpack.c.b16 %v6017, %v6016
      %v6732 = vpack.c.b16 %v6019, %v6018
      %v6733 = vpack.c.b16 %v6021, %v6020
      %v6734 = vpack.c.b16 %v6023, %v6022
      %v6735 = vpack.c.b16 %v6025, %v6024
      %v6736 = vpack.c.b16 %v6027, %v6026
      %v6737 = vpack.c.b16 %v6029, %v6028
      %v6738 = vpack.c.b16 %v6031, %v6030
      %v6739 = vpack.c.b16 %v6033, %v6032
      %v6740 = vpack.c.b16 %v6035, %v6034
      %v6741 = vpack.c.b16 %v6037, %v6036
      %v6742 = vpack.c.b16 %v6039, %v6038
      %v6743 = vpack.c.b16 %v6041, %v6040
      %v6744 = vpack.c.b16 %v6043, %v6042
      %v6745 = vpack.c.b16 %v6045, %v6044
      %v6746 = vpack.c.b16 %v6047, %v6046
      %v6747 = vpack.c.b16 %v6049, %v6048
      %v6748 = vpack.c.b16 %v6051, %v6050
      %v6749 = vpack.c.b16 %v6053, %v6052
      %v6750 = vpack.c.b16 %v6055, %v6054
      %v6751 = vpack.c.b16 %v6057, %v6056
      %v6752 = vpack.c.b16 %v6059, %v6058
      %v6753 = vpack.c.b16 %v6061, %v6060
      %v6754 = vpack.c.b16 %v6063, %v6062
      %v6755 = vpack.c.b16 %v6065, %v6064
      %v6756 = vpack.c.b16 %v6067, %v6066
      %v6757 = vpack.c.b16 %v6069, %v6068
      %v6758 = vpack.c.b16 %v6071, %v6070
      %v6759 = vpack.c.b16 %v6073, %v6072
      %v6760 = vpack.c.b16 %v6075, %v6074
      %v6761 = vpack.c.b16 %v6077, %v6076
      %v6762 = vpack.c.b16 %v6079, %v6078
      %v6763 = vpack.c.b16 %v6081, %v6080
      %v6764 = vpack.c.b16 %v6083, %v6082
      %v6765 = vpack.c.b16 %v6085, %v6084
      %v6766 = vpack.c.b16 %v6087, %v6086
      %v6767 = vpack.c.b16 %v6089, %v6088
      %v6768 = vpack.c.b16 %v6091, %v6090
      %v6769 = vpack.c.b16 %v6093, %v6092
      %v6770 = vpack.c.b16 %v6095, %v6094
      %v6771 = vpack.c.b16 %v6097, %v6096
      %v6772 = vpack.c.b16 %v6099, %v6098
      %v6773 = vpack.c.b16 %v6101, %v6100
      %v6774 = vpack.c.b16 %v6103, %v6102
      %v6775 = vpack.c.b16 %v6105, %v6104
      %v6776 = vpack.c.b16 %v6107, %v6106
      %v6777 = vpack.c.b16 %v6109, %v6108
      %v6778 = vpack.c.b16 %v6111, %v6110
      %v6779 = vpack.c.b16 %v6113, %v6112
      %v6780 = vpack.c.b16 %v6115, %v6114
      %v6781 = vpack.c.b16 %v6117, %v6116
      %v6782 = vpack.c.b16 %v6119, %v6118
      %v6783 = vpack.c.b16 %v6121, %v6120
      %v6784 = vpack.c.b16 %v6123, %v6122
      %v6785 = vpack.c.b16 %v6125, %v6124
      %v6786 = vpack.c.b16 %v6127, %v6126
      %v6787 = vpack.c.b16 %v6129, %v6128
      %v6788 = vpack.c.b16 %v6131, %v6130
      %v6789 = vpack.c.b16 %v6133, %v6132
      %v6790 = vpack.c.b16 %v6135, %v6134
      %v6791 = vpack.c.b16 %v6137, %v6136
      %v6792 = vpack.c.b16 %v6139, %v6138
      %v6793 = vpack.c.b16 %v6141, %v6140
      %v6794 = vpack.c.b16 %v6143, %v6142
      %v6795 = vpack.c.b16 %v6145, %v6144
      %v6796 = vpack.c.b16 %v6147, %v6146
      %v6797 = vpack.c.b16 %v6149, %v6148
      %v6798 = vpack.c.b16 %v6151, %v6150
      %v6799 = vpack.c.b16 %v6153, %v6152
      %v6800 = vpack.c.b16 %v6155, %v6154
      %v6801 = vpack.c.b16 %v6157, %v6156
      %v6802 = vpack.c.b16 %v6159, %v6158
      %v6803 = vpack.c.b16 %v6161, %v6160
      %v6804 = vpack.c.b16 %v6163, %v6162
      %v6805 = vpack.c.b16 %v6165, %v6164
      %v6806 = vpack.c.b16 %v6167, %v6166
      %v6807 = vpack.c.b16 %v6169, %v6168
      %v6808 = vpack.c.b16 %v6171, %v6170
      %v6809 = vpack.c.b16 %v6173, %v6172
      %v6810 = vpack.c.b16 %v6175, %v6174
      %v6811 = vpack.c.b16 %v6177, %v6176
      %v6812 = vpack.c.b16 %v6179, %v6178
      %v6813 = vpack.c.b16 %v6181, %v6180
      %v6814 = vpack.c.b16 %v6183, %v6182
      %v6815 = vpack.c.b16 %v6185, %v6184
      %v6816 = vpack.c.b16 %v6187, %v6186
      %v6817 = vpack.c.b16 %v6189, %v6188
      %v6818 = vpack.c.b16 %v6191, %v6190
      %v6819 = vpack.c.b16 %v6193, %v6192
      %v6820 = vpack.c.b16 %v6195, %v6194
      %v6821 = vpack.c.b16 %v6197, %v6196
      %v6822 = vpack.c.b16 %v6199, %v6198
      %v6823 = vpack.c.b16 %v6201, %v6200
      %v6824 = vpack.c.b16 %v6203, %v6202
      %v6825 = vpack.c.b16 %v6205, %v6204
      %v6826 = vpack.c.b16 %v6207, %v6206
      %v6827 = vpack.c.b16 %v6209, %v6208
      %v6828 = vpack.c.b16 %v6211, %v6210
      %v6829 = vpack.c.b16 %v6213, %v6212
      %v6830 = vpack.c.b16 %v6215, %v6214
      %v6831 = vpack.c.b16 %v6217, %v6216
      %v6832 = vpack.c.b16 %v6219, %v6218
      %v6833 = vpack.c.b16 %v6221, %v6220
      %v6834 = vpack.c.b16 %v6223, %v6222
      %v6835 = vpack.c.b16 %v6225, %v6224
      %v6836 = vpack.c.b16 %v6227, %v6226
      %v6837 = vpack.c.b16 %v6229, %v6228
      %v6838 = vpack.c.b16 %v6231, %v6230
      %v6839 = vpack.c.b16 %v6233, %v6232
      %v6840 = vpack.c.b16 %v6235, %v6234
      %v6841 = vpack.c.b16 %v6237, %v6236
      %v6842 = vpack.c.b16 %v6239, %v6238
      %v6843 = vpack.c.b16 %v6241, %v6240
      %v6844 = vpack.c.b16 %v6243, %v6242
      %v6845 = vpack.c.b16 %v6245, %v6244
      %v6846 = vpack.c.b16 %v6247, %v6246
      %v6847 = vpack.c.b16 %v6249, %v6248
      %v6848 = vpack.c.b16 %v6251, %v6250
      %v6849 = vpack.c.b16 %v6253, %v6252
      %v6850 = vpack.c.b16 %v6255, %v6254
      %v6851 = vpack.c.b16 %v6257, %v6256
      %v6852 = vpack.c.b16 %v6259, %v6258
      %v6853 = vpack.c.b16 %v6261, %v6260
      %v6854 = vpack.c.b16 %v6263, %v6262
      %v6855 = vpack.c.b16 %v6265, %v6264
      %v6856 = vpack.c.b16 %v6267, %v6266
      %v6857 = vpack.c.b16 %v6269, %v6268
      %v6858 = vpack.c.b16 %v6271, %v6270
      %v6859 = vpack.c.b16 %v6273, %v6272
      %v6860 = vpack.c.b16 %v6275, %v6274
      %v6861 = vpack.c.b16 %v6277, %v6276
      %v6862 = vpack.c.b16 %v6279, %v6278
      %v6863 = vpack.c.b16 %v6281, %v6280
      %v6864 = vpack.c.b16 %v6283, %v6282
      %v6865 = vpack.c.b16 %v6285, %v6284
      %v6866 = vpack.c.b16 %v6287, %v6286
      %v6867 = vpack.c.b16 %v6289, %v6288
      %v6868 = vpack.c.b16 %v6291, %v6290
      %v6869 = vpack.c.b16 %v6293, %v6292
      %v6870 = vpack.c.b16 %v6295, %v6294
      %v6871 = vpack.c.b16 %v6297, %v6296
      %v6872 = vpack.c.b16 %v6299, %v6298
      %v6873 = vpack.c.b16 %v6301, %v6300
      %v6874 = vpack.c.b16 %v6303, %v6302
      %v6875 = vpack.c.b16 %v6305, %v6304
      %v6876 = vpack.c.b16 %v6307, %v6306
      %v6877 = vpack.c.b16 %v6309, %v6308
      %v6878 = vpack.c.b16 %v6311, %v6310
      %v6879 = vpack.c.b16 %v6313, %v6312
      %v6880 = vpack.c.b16 %v6315, %v6314
      %v6881 = vpack.c.b16 %v6317, %v6316
      %v6882 = vpack.c.b16 %v6319, %v6318
      %v6883 = vpack.c.b16 %v6321, %v6320
      %v6884 = vpack.c.b16 %v6323, %v6322
      %v6885 = vpack.c.b16 %v6325, %v6324
      %v6886 = vpack.c.b16 %v6327, %v6326
      %v6887 = vpack.c.b16 %v6329, %v6328
      %v6888 = vpack.c.b16 %v6331, %v6330
      %v6889 = vpack.c.b16 %v6333, %v6332
      %v6890 = vpack.c.b16 %v6335, %v6334
      %v6891 = vpack.c.b16 %v6337, %v6336
      %v6892 = vpack.c.b16 %v6339, %v6338
      %v6893 = vpack.c.b16 %v6341, %v6340
      %v6894 = vpack.c.b16 %v6343, %v6342
      %v6895 = vpack.c.b16 %v6345, %v6344
      %v6896 = vpack.c.b16 %v6347, %v6346
      %v6897 = vpack.c.b16 %v6349, %v6348
      %v6898 = vpack.c.b16 %v6351, %v6350
      %v6899 = vpack.c.b16 %v6353, %v6352
      %v6900 = vpack.c.b16 %v6355, %v6354
      %v6901 = vpack.c.b16 %v6357, %v6356
      %v6902 = vpack.c.b16 %v6359, %v6358
      %v6903 = vpack.c.b16 %v6361, %v6360
      %v6904 = vpack.c.b16 %v6363, %v6362
      %v6905 = vpack.c.b16 %v6365, %v6364
      %v6906 = vpack.c.b16 %v6367, %v6366
      %v6907 = vpack.c.b16 %v6369, %v6368
      %v6908 = vpack.c.b16 %v6371, %v6370
      %v6909 = vpack.c.b16 %v6373, %v6372
      %v6910 = vpack.c.b16 %v6375, %v6374
      %v6911 = vpack.c.b16 %v6377, %v6376
      %v6912 = vpack.c.b16 %v6379, %v6378
      %v6913 = vpack.c.b16 %v6381, %v6380
      %v6914 = vpack.c.b16 %v6383, %v6382
      %v6915 = vpack.c.b16 %v6385, %v6384
      %v6916 = vpack.c.b16 %v6387, %v6386
      %v6917 = vpack.c.b16 %v6389, %v6388
      %v6918 = vpack.c.b16 %v6391, %v6390
      %v6919 = vpack.c.b16 %v6393, %v6392
      %v6920 = vpack.c.b16 %v6395, %v6394
      %v6921 = vpack.c.b16 %v6397, %v6396
      %v6922 = vpack.c.b16 %v6399, %v6398
      %v6923 = vpack.c.b16 %v6401, %v6400
      %v6924 = vpack.c.b16 %v6403, %v6402
      %v6925 = vpack.c.b16 %v6405, %v6404
      %v6926 = vpack.c.b16 %v6407, %v6406
      %v6927 = vpack.c.b16 %v6409, %v6408
      %v6928 = vpack.c.b16 %v6411, %v6410
      %v6929 = vpack.c.b16 %v6413, %v6412
      %v6930 = vpack.c.b16 %v6415, %v6414
      %v6931 = vpack.c.b16 %v6417, %v6416
      %v6932 = vpack.c.b16 %v6419, %v6418
      %v6933 = vpack.c.b16 %v6421, %v6420
      %v6934 = vpack.c.b16 %v6423, %v6422
      %v6935 = vpack.c.b16 %v6425, %v6424
      %v6936 = vpack.c.b16 %v6427, %v6426
      %v6937 = vpack.c.b16 %v6429, %v6428
      %v6938 = vpack.c.b16 %v6431, %v6430
      %v6939 = vpack.c.b16 %v6433, %v6432
      %v6940 = vpack.c.b16 %v6435, %v6434
      %v6941 = vpack.c.b16 %v6437, %v6436
      %v6942 = vpack.c.b16 %v6439, %v6438
      %v6943 = vpack.c.b16 %v6441, %v6440
      %v6944 = vpack.c.b16 %v6443, %v6442
      %v6945 = vpack.c.b16 %v6445, %v6444
      %v6946 = vpack.c.b16 %v6447, %v6446
      %v6947 = vpack.c.b16 %v6449, %v6448
      %v6948 = vpack.c.b16 %v6451, %v6450
      %v6949 = vpack.c.b16 %v6453, %v6452
      %v6950 = vpack.c.b16 %v6455, %v6454
      %v6951 = vpack.c.b16 %v6457, %v6456
      %v6952 = vpack.c.b16 %v6459, %v6458
      %v6953 = vpack.c.b16 %v6461, %v6460
      %v6954 = vpack.c.b16 %v6463, %v6462
      %v6955 = vpack.c.b16 %v6465, %v6464
      %v6956 = vpack.c.b16 %v6467, %v6466
      %v6957 = vpack.c.b16 %v6469, %v6468
      %v6958 = vpack.c.b16 %v6471, %v6470
      %v6959 = vpack.c.b16 %v6473, %v6472
      %v6960 = vpack.c.b16 %v6475, %v6474
      %v6961 = vpack.c.b16 %v6477, %v6476
      %v6962 = vpack.c.b16 %v6479, %v6478
      %v6963 = vpack.c.b16 %v6481, %v6480
      %v6964 = vpack.c.b16 %v6483, %v6482
      %v6965 = vpack.c.b16 %v6485, %v6484
      %v6966 = vpack.c.b16 %v6487, %v6486
      %v6967 = vpack.c.b16 %v6489, %v6488
      %v6968 = vpack.c.b16 %v6491, %v6490
      %v6969 = vpack.c.b16 %v6493, %v6492
      %v6970 = vpack.c.b16 %v6495, %v6494
      %v6971 = vpack.c.b16 %v6497, %v6496
      %v6972 = vpack.c.b16 %v6499, %v6498
      %v6973 = vpack.c.b16 %v6501, %v6500
      %v6974 = vpack.c.b16 %v6503, %v6502
      %v6975 = vpack.c.b16 %v6505, %v6504
      %v6976 = vpack.c.b16 %v6507, %v6506
      %v6977 = vpack.c.b16 %v6509, %v6508
      %v6978 = vpack.c.b16 %v6511, %v6510
      %v6979 = vpack.c.b16 %v6513, %v6512
      %v6980 = vpack.c.b16 %v6515, %v6514
      %v6981 = vpack.c.b16 %v6517, %v6516
      %v6982 = vpack.c.b16 %v6519, %v6518
      %v6983 = vpack.c.b16 %v6521, %v6520
      %v6984 = vpack.c.b16 %v6523, %v6522
      %v6985 = vpack.c.b16 %v6525, %v6524
      %v6986 = vpack.c.b16 %v6527, %v6526
      %v6987 = vpack.c.b16 %v6529, %v6528
      %v6988 = vpack.c.b16 %v6531, %v6530
      %v6989 = vpack.c.b16 %v6533, %v6532
      %v6990 = vpack.c.b16 %v6535, %v6534
      %v6991 = vpack.c.b16 %v6537, %v6536
      %v6992 = vpack.c.b16 %v6539, %v6538
      %v6993 = vpack.c.b16 %v6541, %v6540
      %v6994 = vpack.c.b16 %v6543, %v6542
      %v6995 = vpack.c.b16 %v6545, %v6544
      %v6996 = vpack.c.b16 %v6547, %v6546
      %v6997 = vpack.c.b16 %v6549, %v6548
      %v6998 = vpack.c.b16 %v6551, %v6550
      %v6999 = vpack.c.b16 %v6553, %v6552
      %v7000 = vpack.c.b16 %v6555, %v6554
      %v7001 = vpack.c.b16 %v6557, %v6556
      %v7002 = vpack.c.b16 %v6559, %v6558
      %v7003 = vpack.c.b16 %v6561, %v6560
      %v7004 = vpack.c.b16 %v6563, %v6562
      %v7005 = vpack.c.b16 %v6565, %v6564
      %v7006 = vpack.c.b16 %v6567, %v6566
      %v7007 = vpack.c.b16 %v6569, %v6568
      %v7008 = vpack.c.b16 %v6571, %v6570
      %v7009 = vpack.c.b16 %v6573, %v6572
      %v7010 = vpack.c.b16 %v6575, %v6574
      %v7011 = vpack.c.b16 %v6577, %v6576
      %v7012 = vpack.c.b16 %v6579, %v6578
      %v7013 = vpack.c.b16 %v6581, %v6580
      %v7014 = vpack.c.b16 %v6583, %v6582
      %v7015 = vpack.c.b16 %v6585, %v6584
      %v7016 = vpack.c.b16 %v6587, %v6586
      %v7017 = vpack.c.b16 %v6589, %v6588
      %v7018 = vpack.c.b16 %v6591, %v6590
      %v7019 = vpack.c.b16 %v6593, %v6592
      %v7020 = vpack.c.b16 %v6595, %v6594
      %v7021 = vpack.c.b16 %v6597, %v6596
      %v7022 = vpack.c.b16 %v6599, %v6598
      %v7023 = vpack.c.b16 %v6601, %v6600
      %v7024 = vpack.c.b16 %v6603, %v6602
      %v7025 = vpack.c.b16 %v6605, %v6604
      %v7026 = vpack.c.b16 %v6607, %v6606
      %v7027 = vpack.c.b16 %v6609, %v6608
      %v7028 = vpack.c.b16 %v6611, %v6610
      %v7029 = vpack.c.b16 %v6613, %v6612
      %v7030 = vpack.c.b16 %v6615, %v6614
      %v7031 = vpack.c.b16 %v6617, %v6616
      %v7032 = vpack.c.b16 %v6619, %v6618
      %v7033 = vpack.c.b16 %v6621, %v6620
      %v7034 = vpack.c.b16 %v6623, %v6622
      %v7035 = vpack.c.b16 %v6625, %v6624
      %v7036 = vpack.c.b16 %v6627, %v6626
      %v7037 = vpack.c.b16 %v6629, %v6628
      %v7038 = vpack.c.b16 %v6631, %v6630
      %v7039 = vpack.c.b16 %v6633, %v6632
      %v7040 = vpack.c.b16 %v6635, %v6634
      %v7041 = vpack.c.b16 %v6637, %v6636
      %v7042 = vpack.c.b16 %v6639, %v6638
      %v7043 = vpack.c.b16 %v6641, %v6640
      %v7044 = vpack.c.b16 %v6643, %v6642
      %v7045 = vpack.c.b16 %v6645, %v6644
      %v7046 = vpack.c.b16 %v6647, %v6646
      %v7047 = vpack.c.b16 %v6649, %v6648
      %v7048 = vpack.c.b16 %v6651, %v6650
      %v7049 = vpack.c.b16 %v6653, %v6652
      %v7050 = vpack.c.b16 %v6655, %v6654
      %v7051 = vpack.c.b16 %v6657, %v6656
      %v7052 = vpack.c.b16 %v6659, %v6658
      %v7053 = vpack.c.b16 %v6661, %v6660
      %7446 = vmatprep.subr.bf16.mxu0 0
      %7447 = vmatpush1.bf16.msra.mxu0 %v6662
      %7448 = vmatprep.subr.bf16.mxu0 0
      %7449 = vmatpush1.bf16.msra.mxu0 %v6663
      %7450 = vmatprep.subr.bf16.mxu0 0
      %7451 = vmatpush1.bf16.msra.mxu0 %v6664
      %7452 = vmatprep.subr.bf16.mxu0 0
      %7453 = vmatpush1.bf16.msra.mxu0 %v6665
      %7454 = vmatprep.subr.bf16.mxu0 0
      %7455 = vmatpush1.bf16.msra.mxu0 %v6666
      %7456 = vmatprep.subr.bf16.mxu0 0
      %7457 = vmatpush1.bf16.msra.mxu0 %v6667
      %7458 = vmatprep.subr.bf16.mxu0 0
      %7459 = vmatpush1.bf16.msra.mxu0 %v6668
      %7460 = vmatprep.subr.bf16.mxu0 0
      %7461 = vmatpush1.bf16.msra.mxu0 %v6669
      %7462 = vmatprep.subr.bf16.mxu0 0
      %7463 = vmatpush1.bf16.msra.mxu0 %v6670
      %7464 = vmatprep.subr.bf16.mxu0 0
      %7465 = vmatpush1.bf16.msra.mxu0 %v6671
      %7466 = vmatprep.subr.bf16.mxu0 0
      %7467 = vmatpush1.bf16.msra.mxu0 %v6672
      %7468 = vmatprep.subr.bf16.mxu0 0
      %7469 = vmatpush1.bf16.msra.mxu0 %v6673
      %7470 = vmatprep.subr.bf16.mxu0 0
      %7471 = vmatpush1.bf16.msra.mxu0 %v6674
      %7472 = vmatprep.subr.bf16.mxu0 0
      %7473 = vmatpush1.bf16.msra.mxu0 %v6675
      %7474 = vmatprep.subr.bf16.mxu0 0
      %7475 = vmatpush1.bf16.msra.mxu0 %v6676
      %7476 = vmatprep.subr.bf16.mxu0 0
      %7477 = vmatpush1.bf16.msra.mxu0 %v6677
      %7478 = vmatprep.mubr.bf16.mxu0 %v4211
      %7479 = vmatmul.mubr.bf16.gmra.mrb[0].mxu0 %v4206
      %v7480 = vpop.f32.mrb[0].mxu0
      %v7481 = vadd.f32 %v5093, %v7480
      %v7482 = vpop.f32.mrb[0].mxu0
      %v7483 = vpop.f32.mrb[0].mxu0
      %v7484 = vpop.f32.mrb[0].mxu0
      %7485 = vdwg.mxu0
      %7486 = vmatprep.subr.bf16.mxu0 0
      %7487 = vmatpush1.bf16.msra.mxu0 %v6678
      %7488 = vmatprep.subr.bf16.mxu0 0
      %7489 = vmatpush1.bf16.msra.mxu0 %v6679
      %7490 = vmatprep.subr.bf16.mxu0 0
      %7491 = vmatpush1.bf16.msra.mxu0 %v6680
      %7492 = vmatprep.subr.bf16.mxu0 0
      %7493 = vmatpush1.bf16.msra.mxu0 %v6681
      %7494 = vmatprep.subr.bf16.mxu0 0
      %7495 = vmatpush1.bf16.msra.mxu0 %v6682
      %7496 = vmatprep.subr.bf16.mxu0 0
      %7497 = vmatpush1.bf16.msra.mxu0 %v6683
      %7498 = vmatprep.subr.bf16.mxu0 0
      %7499 = vmatpush1.bf16.msra.mxu0 %v6684
      %7500 = vmatprep.subr.bf16.mxu0 0
      %7501 = vmatpush1.bf16.msra.mxu0 %v6685
      %7502 = vmatprep.subr.bf16.mxu0 0
      %7503 = vmatpush1.bf16.msra.mxu0 %v6686
      %7504 = vmatprep.subr.bf16.mxu0 0
      %7505 = vmatpush1.bf16.msra.mxu0 %v6687
      %7506 = vmatprep.subr.bf16.mxu0 0
      %7507 = vmatpush1.bf16.msra.mxu0 %v6688
      %7508 = vmatprep.subr.bf16.mxu0 0
      %7509 = vmatpush1.bf16.msra.mxu0 %v6689
      %7510 = vmatprep.subr.bf16.mxu0 0
      %7511 = vmatpush1.bf16.msra.mxu0 %v6690
      %7512 = vmatprep.subr.bf16.mxu0 0
      %7513 = vmatpush1.bf16.msra.mxu0 %v6691
      %7514 = vmatprep.subr.bf16.mxu0 0
      %7515 = vmatpush1.bf16.msra.mxu0 %v6692
      %7516 = vmatprep.subr.bf16.mxu0 0
      %7517 = vmatpush1.bf16.msra.mxu0 %v6693
      %7518 = vmatprep.mubr.bf16.mxu0 %v4217
      %7519 = vmatmul.mubr.bf16.gmra.mrb[0].mxu0 %v4215
      %v7520 = vpop.f32.mrb[0].mxu0
      %v7521 = vadd.f32 %v7481, %v7520
      %v7522 = vpop.f32.mrb[0].mxu0
      %v7523 = vpop.f32.mrb[0].mxu0
      %v7524 = vpop.f32.mrb[0].mxu0
      %7525 = vdwg.mxu0
      %7526 = vmatprep.subr.bf16.mxu0 0
      %7527 = vmatpush1.bf16.msra.mxu0 %v6694
      %7528 = vmatprep.subr.bf16.mxu0 0
      %7529 = vmatpush1.bf16.msra.mxu0 %v6695
      %7530 = vmatprep.subr.bf16.mxu0 0
      %7531 = vmatpush1.bf16.msra.mxu0 %v6696
      %7532 = vmatprep.subr.bf16.mxu0 0
      %7533 = vmatpush1.bf16.msra.mxu0 %v6697
      %7534 = vmatprep.subr.bf16.mxu0 0
      %7535 = vmatpush1.bf16.msra.mxu0 %v6698
      %7536 = vmatprep.subr.bf16.mxu0 0
      %7537 = vmatpush1.bf16.msra.mxu0 %v6699
      %7538 = vmatprep.subr.bf16.mxu0 0
      %7539 = vmatpush1.bf16.msra.mxu0 %v6700
      %7540 = vmatprep.subr.bf16.mxu0 0
      %7541 = vmatpush1.bf16.msra.mxu0 %v6701
      %7542 = vmatprep.subr.bf16.mxu0 0
      %7543 = vmatpush1.bf16.msra.mxu0 %v6702
      %7544 = vmatprep.subr.bf16.mxu0 0
      %7545 = vmatpush1.bf16.msra.mxu0 %v6703
      %7546 = vmatprep.subr.bf16.mxu0 0
      %7547 = vmatpush1.bf16.msra.mxu0 %v6704
      %7548 = vmatprep.subr.bf16.mxu0 0
      %7549 = vmatpush1.bf16.msra.mxu0 %v6705
      %7550 = vmatprep.subr.bf16.mxu0 0
      %7551 = vmatpush1.bf16.msra.mxu0 %v6706
      %7552 = vmatprep.subr.bf16.mxu0 0
      %7553 = vmatpush1.bf16.msra.mxu0 %v6707
      %7554 = vmatprep.subr.bf16.mxu0 0
      %7555 = vmatpush1.bf16.msra.mxu0 %v6708
      %7556 = vmatprep.subr.bf16.mxu0 0
      %7557 = vmatpush1.bf16.msra.mxu0 %v6709
      %7558 = vmatprep.mubr.bf16.mxu0 %v4221
      %7559 = vmatmul.mubr.bf16.gmra.mrb[0].mxu0 %v4219
      %v7560 = vpop.f32.mrb[0].mxu0
      %v7561 = vadd.f32 %v7521, %v7560
      %v7562 = vpop.f32.mrb[0].mxu0
      %v7563 = vpop.f32.mrb[0].mxu0
      %v7564 = vpop.f32.mrb[0].mxu0
      %7565 = vdwg.mxu0
      %7566 = vmatprep.subr.bf16.mxu0 0
      %7567 = vmatpush1.bf16.msra.mxu0 %v6710
      %7568 = vmatprep.subr.bf16.mxu0 0
      %7569 = vmatpush1.bf16.msra.mxu0 %v6711
      %7570 = vmatprep.subr.bf16.mxu0 0
      %7571 = vmatpush1.bf16.msra.mxu0 %v6712
      %7572 = vmatprep.subr.bf16.mxu0 0
      %7573 = vmatpush1.bf16.msra.mxu0 %v6713
      %7574 = vmatprep.subr.bf16.mxu0 0
      %7575 = vmatpush1.bf16.msra.mxu0 %v6714
      %7576 = vmatprep.subr.bf16.mxu0 0
      %7577 = vmatpush1.bf16.msra.mxu0 %v6715
      %7578 = vmatprep.subr.bf16.mxu0 0
      %7579 = vmatpush1.bf16.msra.mxu0 %v6716
      %7580 = vmatprep.subr.bf16.mxu0 0
      %7581 = vmatpush1.bf16.msra.mxu0 %v6717
      %7582 = vmatprep.subr.bf16.mxu0 0
      %7583 = vmatpush1.bf16.msra.mxu0 %v6718
      %7584 = vmatprep.subr.bf16.mxu0 0
      %7585 = vmatpush1.bf16.msra.mxu0 %v6719
      %7586 = vmatprep.subr.bf16.mxu0 0
      %7587 = vmatpush1.bf16.msra.mxu0 %v6720
      %7588 = vmatprep.subr.bf16.mxu0 0
      %7589 = vmatpush1.bf16.msra.mxu0 %v6721
      %7590 = vmatprep.subr.bf16.mxu0 0
      %7591 = vmatpush1.bf16.msra.mxu0 %v6722
      %7592 = vmatprep.subr.bf16.mxu0 0
      %7593 = vmatpush1.bf16.msra.mxu0 %v6723
      %7594 = vmatprep.subr.bf16.mxu0 0
      %7595 = vmatpush1.bf16.msra.mxu0 %v6724
      %7596 = vmatprep.subr.bf16.mxu0 0
      %7597 = vmatpush1.bf16.msra.mxu0 %v6725
      %7598 = vmatprep.mubr.bf16.mxu0 %v4225
      %7599 = vmatmul.mubr.bf16.gmra.mrb[0].mxu0 %v4223
      %v7600 = vpop.f32.mrb[0].mxu0
      %v7601 = vadd.f32 %v7561, %v7600
      %v7602 = vpop.f32.mrb[0].mxu0
      %v7603 = vpop.f32.mrb[0].mxu0
      %v7604 = vpop.f32.mrb[0].mxu0
      %7605 = vdwg.mxu0
      %7606 = vmatprep.subr.bf16.mxu0 0
      %7607 = vmatpush1.bf16.msra.mxu0 %v6726
      %7608 = vmatprep.subr.bf16.mxu0 0
      %7609 = vmatpush1.bf16.msra.mxu0 %v6727
      %7610 = vmatprep.subr.bf16.mxu0 0
      %7611 = vmatpush1.bf16.msra.mxu0 %v6728
      %7612 = vmatprep.subr.bf16.mxu0 0
      %7613 = vmatpush1.bf16.msra.mxu0 %v6729
      %7614 = vmatprep.subr.bf16.mxu0 0
      %7615 = vmatpush1.bf16.msra.mxu0 %v6730
      %7616 = vmatprep.subr.bf16.mxu0 0
      %7617 = vmatpush1.bf16.msra.mxu0 %v6731
      %7618 = vmatprep.subr.bf16.mxu0 0
      %7619 = vmatpush1.bf16.msra.mxu0 %v6732
      %7620 = vmatprep.subr.bf16.mxu0 0
      %7621 = vmatpush1.bf16.msra.mxu0 %v6733
      %7622 = vmatprep.subr.bf16.mxu0 0
      %7623 = vmatpush1.bf16.msra.mxu0 %v6734
      %7624 = vmatprep.subr.bf16.mxu0 0
      %7625 = vmatpush1.bf16.msra.mxu0 %v6735
      %7626 = vmatprep.subr.bf16.mxu0 0
      %7627 = vmatpush1.bf16.msra.mxu0 %v6736
      %7628 = vmatprep.subr.bf16.mxu0 0
      %7629 = vmatpush1.bf16.msra.mxu0 %v6737
      %7630 = vmatprep.subr.bf16.mxu0 0
      %7631 = vmatpush1.bf16.msra.mxu0 %v6738
      %7632 = vmatprep.subr.bf16.mxu0 0
      %7633 = vmatpush1.bf16.msra.mxu0 %v6739
      %7634 = vmatprep.subr.bf16.mxu0 0
      %7635 = vmatpush1.bf16.msra.mxu0 %v6740
      %7636 = vmatprep.subr.bf16.mxu0 0
      %7637 = vmatpush1.bf16.msra.mxu0 %v6741
      %7638 = vmatprep.mubr.bf16.mxu0 %v4229
      %7639 = vmatmul.mubr.bf16.gmra.mrb[0].mxu0 %v4227
      %v7640 = vpop.f32.mrb[0].mxu0
      %v7641 = vadd.f32 %v7601, %v7640
      %v7642 = vpop.f32.mrb[0].mxu0
      %v7643 = vpop.f32.mrb[0].mxu0
      %v7644 = vpop.f32.mrb[0].mxu0
      %7645 = vdwg.mxu0
      %7646 = vmatprep.subr.bf16.mxu0 0
      %7647 = vmatpush1.bf16.msra.mxu0 %v6742
      %7648 = vmatprep.subr.bf16.mxu0 0
      %7649 = vmatpush1.bf16.msra.mxu0 %v6743
      %7650 = vmatprep.subr.bf16.mxu0 0
      %7651 = vmatpush1.bf16.msra.mxu0 %v6744
      %7652 = vmatprep.subr.bf16.mxu0 0
      %7653 = vmatpush1.bf16.msra.mxu0 %v6745
      %7654 = vmatprep.subr.bf16.mxu0 0
      %7655 = vmatpush1.bf16.msra.mxu0 %v6746
      %7656 = vmatprep.subr.bf16.mxu0 0
      %7657 = vmatpush1.bf16.msra.mxu0 %v6747
      %7658 = vmatprep.subr.bf16.mxu0 0
      %7659 = vmatpush1.bf16.msra.mxu0 %v6748
      %7660 = vmatprep.subr.bf16.mxu0 0
      %7661 = vmatpush1.bf16.msra.mxu0 %v6749
      %7662 = vmatprep.subr.bf16.mxu0 0
      %7663 = vmatpush1.bf16.msra.mxu0 %v6750
      %7664 = vmatprep.subr.bf16.mxu0 0
      %7665 = vmatpush1.bf16.msra.mxu0 %v6751
      %7666 = vmatprep.subr.bf16.mxu0 0
      %7667 = vmatpush1.bf16.msra.mxu0 %v6752
      %7668 = vmatprep.subr.bf16.mxu0 0
      %7669 = vmatpush1.bf16.msra.mxu0 %v6753
      %7670 = vmatprep.subr.bf16.mxu0 0
      %7671 = vmatpush1.bf16.msra.mxu0 %v6754
      %7672 = vmatprep.subr.bf16.mxu0 0
      %7673 = vmatpush1.bf16.msra.mxu0 %v6755
      %7674 = vmatprep.subr.bf16.mxu0 0
      %7675 = vmatpush1.bf16.msra.mxu0 %v6756
      %7676 = vmatprep.subr.bf16.mxu0 0
      %7677 = vmatpush1.bf16.msra.mxu0 %v6757
      %7678 = vmatprep.mubr.bf16.mxu0 %v4233
      %7679 = vmatmul.mubr.bf16.gmra.mrb[0].mxu0 %v4231
      %v7680 = vpop.f32.mrb[0].mxu0
      %v7681 = vadd.f32 %v7641, %v7680
      %v7682 = vpop.f32.mrb[0].mxu0
      %v7683 = vpop.f32.mrb[0].mxu0
      %v7684 = vpop.f32.mrb[0].mxu0
      %7685 = vdwg.mxu0
      %7686 = vmatprep.subr.bf16.mxu0 0
      %7687 = vmatpush1.bf16.msra.mxu0 %v6758
      %7688 = vmatprep.subr.bf16.mxu0 0
      %7689 = vmatpush1.bf16.msra.mxu0 %v6759
      %7690 = vmatprep.subr.bf16.mxu0 0
      %7691 = vmatpush1.bf16.msra.mxu0 %v6760
      %7692 = vmatprep.subr.bf16.mxu0 0
      %7693 = vmatpush1.bf16.msra.mxu0 %v6761
      %7694 = vmatprep.subr.bf16.mxu0 0
      %7695 = vmatpush1.bf16.msra.mxu0 %v6762
      %7696 = vmatprep.subr.bf16.mxu0 0
      %7697 = vmatpush1.bf16.msra.mxu0 %v6763
      %7698 = vmatprep.subr.bf16.mxu0 0
      %7699 = vmatpush1.bf16.msra.mxu0 %v6764
      %7700 = vmatprep.subr.bf16.mxu0 0
      %7701 = vmatpush1.bf16.msra.mxu0 %v6765
      %7702 = vmatprep.subr.bf16.mxu0 0
      %7703 = vmatpush1.bf16.msra.mxu0 %v6766
      %7704 = vmatprep.subr.bf16.mxu0 0
      %7705 = vmatpush1.bf16.msra.mxu0 %v6767
      %7706 = vmatprep.subr.bf16.mxu0 0
      %7707 = vmatpush1.bf16.msra.mxu0 %v6768
      %7708 = vmatprep.subr.bf16.mxu0 0
      %7709 = vmatpush1.bf16.msra.mxu0 %v6769
      %7710 = vmatprep.subr.bf16.mxu0 0
      %7711 = vmatpush1.bf16.msra.mxu0 %v6770
      %7712 = vmatprep.subr.bf16.mxu0 0
      %7713 = vmatpush1.bf16.msra.mxu0 %v6771
      %7714 = vmatprep.subr.bf16.mxu0 0
      %7715 = vmatpush1.bf16.msra.mxu0 %v6772
      %7716 = vmatprep.subr.bf16.mxu0 0
      %7717 = vmatpush1.bf16.msra.mxu0 %v6773
      %7718 = vmatprep.mubr.bf16.mxu0 %v4237
      %7719 = vmatmul.mubr.bf16.gmra.mrb[0].mxu0 %v4235
      %v7720 = vpop.f32.mrb[0].mxu0
      %v7721 = vadd.f32 %v7681, %v7720
      %v7722 = vpop.f32.mrb[0].mxu0
      %v7723 = vpop.f32.mrb[0].mxu0
      %v7724 = vpop.f32.mrb[0].mxu0
      %7725 = vdwg.mxu0
      %7726 = vmatprep.subr.bf16.mxu0 0
      %7727 = vmatpush1.bf16.msra.mxu0 %v6774
      %7728 = vmatprep.subr.bf16.mxu0 0
      %7729 = vmatpush1.bf16.msra.mxu0 %v6775
      %7730 = vmatprep.subr.bf16.mxu0 0
      %7731 = vmatpush1.bf16.msra.mxu0 %v6776
      %7732 = vmatprep.subr.bf16.mxu0 0
      %7733 = vmatpush1.bf16.msra.mxu0 %v6777
      %7734 = vmatprep.subr.bf16.mxu0 0
      %7735 = vmatpush1.bf16.msra.mxu0 %v6778
      %7736 = vmatprep.subr.bf16.mxu0 0
      %7737 = vmatpush1.bf16.msra.mxu0 %v6779
      %7738 = vmatprep.subr.bf16.mxu0 0
      %7739 = vmatpush1.bf16.msra.mxu0 %v6780
      %7740 = vmatprep.subr.bf16.mxu0 0
      %7741 = vmatpush1.bf16.msra.mxu0 %v6781
      %7742 = vmatprep.subr.bf16.mxu0 0
      %7743 = vmatpush1.bf16.msra.mxu0 %v6782
      %7744 = vmatprep.subr.bf16.mxu0 0
      %7745 = vmatpush1.bf16.msra.mxu0 %v6783
      %7746 = vmatprep.subr.bf16.mxu0 0
      %7747 = vmatpush1.bf16.msra.mxu0 %v6784
      %7748 = vmatprep.subr.bf16.mxu0 0
      %7749 = vmatpush1.bf16.msra.mxu0 %v6785
      %7750 = vmatprep.subr.bf16.mxu0 0
      %7751 = vmatpush1.bf16.msra.mxu0 %v6786
      %7752 = vmatprep.subr.bf16.mxu0 0
      %7753 = vmatpush1.bf16.msra.mxu0 %v6787
      %7754 = vmatprep.subr.bf16.mxu0 0
      %7755 = vmatpush1.bf16.msra.mxu0 %v6788
      %7756 = vmatprep.subr.bf16.mxu0 0
      %7757 = vmatpush1.bf16.msra.mxu0 %v6789
      %7758 = vmatprep.mubr.bf16.mxu0 %v4241
      %7759 = vmatmul.mubr.bf16.gmra.mrb[0].mxu0 %v4239
      %v7760 = vpop.f32.mrb[0].mxu0
      %v7761 = vadd.f32 %v7721, %v7760
      %v7762 = vpop.f32.mrb[0].mxu0
      %v7763 = vpop.f32.mrb[0].mxu0
      %v7764 = vpop.f32.mrb[0].mxu0
      %7765 = vdwg.mxu0
      %7766 = vmatprep.subr.bf16.mxu0 0
      %7767 = vmatpush1.bf16.msra.mxu0 %v6790
      %7768 = vmatprep.subr.bf16.mxu0 0
      %7769 = vmatpush1.bf16.msra.mxu0 %v6791
      %7770 = vmatprep.subr.bf16.mxu0 0
      %7771 = vmatpush1.bf16.msra.mxu0 %v6792
      %7772 = vmatprep.subr.bf16.mxu0 0
      %7773 = vmatpush1.bf16.msra.mxu0 %v6793
      %7774 = vmatprep.subr.bf16.mxu0 0
      %7775 = vmatpush1.bf16.msra.mxu0 %v6794
      %7776 = vmatprep.subr.bf16.mxu0 0
      %7777 = vmatpush1.bf16.msra.mxu0 %v6795
      %7778 = vmatprep.subr.bf16.mxu0 0
      %7779 = vmatpush1.bf16.msra.mxu0 %v6796
      %7780 = vmatprep.subr.bf16.mxu0 0
      %7781 = vmatpush1.bf16.msra.mxu0 %v6797
      %7782 = vmatprep.subr.bf16.mxu0 0
      %7783 = vmatpush1.bf16.msra.mxu0 %v6798
      %7784 = vmatprep.subr.bf16.mxu0 0
      %7785 = vmatpush1.bf16.msra.mxu0 %v6799
      %7786 = vmatprep.subr.bf16.mxu0 0
      %7787 = vmatpush1.bf16.msra.mxu0 %v6800
      %7788 = vmatprep.subr.bf16.mxu0 0
      %7789 = vmatpush1.bf16.msra.mxu0 %v6801
      %7790 = vmatprep.subr.bf16.mxu0 0
      %7791 = vmatpush1.bf16.msra.mxu0 %v6802
      %7792 = vmatprep.subr.bf16.mxu0 0
      %7793 = vmatpush1.bf16.msra.mxu0 %v6803
      %7794 = vmatprep.subr.bf16.mxu0 0
      %7795 = vmatpush1.bf16.msra.mxu0 %v6804
      %7796 = vmatprep.subr.bf16.mxu0 0
      %7797 = vmatpush1.bf16.msra.mxu0 %v6805
      %7798 = vmatprep.mubr.bf16.mxu0 %v4244
      %7799 = vmatmul.mubr.bf16.gmra.mrb[0].mxu0 %v4207
      %v7800 = vpop.f32.mrb[0].mxu0
      %v7801 = vadd.f32 %v7761, %v7800
      %v7802 = vpop.f32.mrb[0].mxu0
      %v7803 = vpop.f32.mrb[0].mxu0
      %v7804 = vpop.f32.mrb[0].mxu0
      %7805 = vdwg.mxu0
      %7806 = vmatprep.subr.bf16.mxu0 0
      %7807 = vmatpush1.bf16.msra.mxu0 %v6806
      %7808 = vmatprep.subr.bf16.mxu0 0
      %7809 = vmatpush1.bf16.msra.mxu0 %v6807
      %7810 = vmatprep.subr.bf16.mxu0 0
      %7811 = vmatpush1.bf16.msra.mxu0 %v6808
      %7812 = vmatprep.subr.bf16.mxu0 0
      %7813 = vmatpush1.bf16.msra.mxu0 %v6809
      %7814 = vmatprep.subr.bf16.mxu0 0
      %7815 = vmatpush1.bf16.msra.mxu0 %v6810
      %7816 = vmatprep.subr.bf16.mxu0 0
      %7817 = vmatpush1.bf16.msra.mxu0 %v6811
      %7818 = vmatprep.subr.bf16.mxu0 0
      %7819 = vmatpush1.bf16.msra.mxu0 %v6812
      %7820 = vmatprep.subr.bf16.mxu0 0
      %7821 = vmatpush1.bf16.msra.mxu0 %v6813
      %7822 = vmatprep.subr.bf16.mxu0 0
      %7823 = vmatpush1.bf16.msra.mxu0 %v6814
      %7824 = vmatprep.subr.bf16.mxu0 0
      %7825 = vmatpush1.bf16.msra.mxu0 %v6815
      %7826 = vmatprep.subr.bf16.mxu0 0
      %7827 = vmatpush1.bf16.msra.mxu0 %v6816
      %7828 = vmatprep.subr.bf16.mxu0 0
      %7829 = vmatpush1.bf16.msra.mxu0 %v6817
      %7830 = vmatprep.subr.bf16.mxu0 0
      %7831 = vmatpush1.bf16.msra.mxu0 %v6818
      %7832 = vmatprep.subr.bf16.mxu0 0
      %7833 = vmatpush1.bf16.msra.mxu0 %v6819
      %7834 = vmatprep.subr.bf16.mxu0 0
      %7835 = vmatpush1.bf16.msra.mxu0 %v6820
      %7836 = vmatprep.subr.bf16.mxu0 0
      %7837 = vmatpush1.bf16.msra.mxu0 %v6821
      %7838 = vmatprep.mubr.bf16.mxu0 %v4250
      %7839 = vmatmul.mubr.bf16.gmra.mrb[0].mxu0 %v4248
      %v7840 = vpop.f32.mrb[0].mxu0
      %v7841 = vadd.f32 %v7801, %v7840
      %v7842 = vpop.f32.mrb[0].mxu0
      %v7843 = vpop.f32.mrb[0].mxu0
      %v7844 = vpop.f32.mrb[0].mxu0
      %7845 = vdwg.mxu0
      %7846 = vmatprep.subr.bf16.mxu0 0
      %7847 = vmatpush1.bf16.msra.mxu0 %v6822
      %7848 = vmatprep.subr.bf16.mxu0 0
      %7849 = vmatpush1.bf16.msra.mxu0 %v6823
      %7850 = vmatprep.subr.bf16.mxu0 0
      %7851 = vmatpush1.bf16.msra.mxu0 %v6824
      %7852 = vmatprep.subr.bf16.mxu0 0
      %7853 = vmatpush1.bf16.msra.mxu0 %v6825
      %7854 = vmatprep.subr.bf16.mxu0 0
      %7855 = vmatpush1.bf16.msra.mxu0 %v6826
      %7856 = vmatprep.subr.bf16.mxu0 0
      %7857 = vmatpush1.bf16.msra.mxu0 %v6827
      %7858 = vmatprep.subr.bf16.mxu0 0
      %7859 = vmatpush1.bf16.msra.mxu0 %v6828
      %7860 = vmatprep.subr.bf16.mxu0 0
      %7861 = vmatpush1.bf16.msra.mxu0 %v6829
      %7862 = vmatprep.subr.bf16.mxu0 0
      %7863 = vmatpush1.bf16.msra.mxu0 %v6830
      %7864 = vmatprep.subr.bf16.mxu0 0
      %7865 = vmatpush1.bf16.msra.mxu0 %v6831
      %7866 = vmatprep.subr.bf16.mxu0 0
      %7867 = vmatpush1.bf16.msra.mxu0 %v6832
      %7868 = vmatprep.subr.bf16.mxu0 0
      %7869 = vmatpush1.bf16.msra.mxu0 %v6833
      %7870 = vmatprep.subr.bf16.mxu0 0
      %7871 = vmatpush1.bf16.msra.mxu0 %v6834
      %7872 = vmatprep.subr.bf16.mxu0 0
      %7873 = vmatpush1.bf16.msra.mxu0 %v6835
      %7874 = vmatprep.subr.bf16.mxu0 0
      %7875 = vmatpush1.bf16.msra.mxu0 %v6836
      %7876 = vmatprep.subr.bf16.mxu0 0
      %7877 = vmatpush1.bf16.msra.mxu0 %v6837
      %7878 = vmatprep.mubr.bf16.mxu0 %v4254
      %7879 = vmatmul.mubr.bf16.gmra.mrb[0].mxu0 %v4252
      %v7880 = vpop.f32.mrb[0].mxu0
      %v7881 = vadd.f32 %v7841, %v7880
      %v7882 = vpop.f32.mrb[0].mxu0
      %v7883 = vpop.f32.mrb[0].mxu0
      %v7884 = vpop.f32.mrb[0].mxu0
      %7885 = vdwg.mxu0
      %7886 = vmatprep.subr.bf16.mxu0 0
      %7887 = vmatpush1.bf16.msra.mxu0 %v6838
      %7888 = vmatprep.subr.bf16.mxu0 0
      %7889 = vmatpush1.bf16.msra.mxu0 %v6839
      %7890 = vmatprep.subr.bf16.mxu0 0
      %7891 = vmatpush1.bf16.msra.mxu0 %v6840
      %7892 = vmatprep.subr.bf16.mxu0 0
      %7893 = vmatpush1.bf16.msra.mxu0 %v6841
      %7894 = vmatprep.subr.bf16.mxu0 0
      %7895 = vmatpush1.bf16.msra.mxu0 %v6842
      %7896 = vmatprep.subr.bf16.mxu0 0
      %7897 = vmatpush1.bf16.msra.mxu0 %v6843
      %7898 = vmatprep.subr.bf16.mxu0 0
      %7899 = vmatpush1.bf16.msra.mxu0 %v6844
      %7900 = vmatprep.subr.bf16.mxu0 0
      %7901 = vmatpush1.bf16.msra.mxu0 %v6845
      %7902 = vmatprep.subr.bf16.mxu0 0
      %7903 = vmatpush1.bf16.msra.mxu0 %v6846
      %7904 = vmatprep.subr.bf16.mxu0 0
      %7905 = vmatpush1.bf16.msra.mxu0 %v6847
      %7906 = vmatprep.subr.bf16.mxu0 0
      %7907 = vmatpush1.bf16.msra.mxu0 %v6848
      %7908 = vmatprep.subr.bf16.mxu0 0
      %7909 = vmatpush1.bf16.msra.mxu0 %v6849
      %7910 = vmatprep.subr.bf16.mxu0 0
      %7911 = vmatpush1.bf16.msra.mxu0 %v6850
      %7912 = vmatprep.subr.bf16.mxu0 0
      %7913 = vmatpush1.bf16.msra.mxu0 %v6851
      %7914 = vmatprep.subr.bf16.mxu0 0
      %7915 = vmatpush1.bf16.msra.mxu0 %v6852
      %7916 = vmatprep.subr.bf16.mxu0 0
      %7917 = vmatpush1.bf16.msra.mxu0 %v6853
      %7918 = vmatprep.mubr.bf16.mxu0 %v4258
      %7919 = vmatmul.mubr.bf16.gmra.mrb[0].mxu0 %v4256
      %v7920 = vpop.f32.mrb[0].mxu0
      %v7921 = vadd.f32 %v7881, %v7920
      %v7922 = vpop.f32.mrb[0].mxu0
      %v7923 = vpop.f32.mrb[0].mxu0
      %v7924 = vpop.f32.mrb[0].mxu0
      %7925 = vdwg.mxu0
      %7926 = vmatprep.subr.bf16.mxu0 0
      %7927 = vmatpush1.bf16.msra.mxu0 %v6854
      %7928 = vmatprep.subr.bf16.mxu0 0
      %7929 = vmatpush1.bf16.msra.mxu0 %v6855
      %7930 = vmatprep.subr.bf16.mxu0 0
      %7931 = vmatpush1.bf16.msra.mxu0 %v6856
      %7932 = vmatprep.subr.bf16.mxu0 0
      %7933 = vmatpush1.bf16.msra.mxu0 %v6857
      %7934 = vmatprep.subr.bf16.mxu0 0
      %7935 = vmatpush1.bf16.msra.mxu0 %v6858
      %7936 = vmatprep.subr.bf16.mxu0 0
      %7937 = vmatpush1.bf16.msra.mxu0 %v6859
      %7938 = vmatprep.subr.bf16.mxu0 0
      %7939 = vmatpush1.bf16.msra.mxu0 %v6860
      %7940 = vmatprep.subr.bf16.mxu0 0
      %7941 = vmatpush1.bf16.msra.mxu0 %v6861
      %7942 = vmatprep.subr.bf16.mxu0 0
      %7943 = vmatpush1.bf16.msra.mxu0 %v6862
      %7944 = vmatprep.subr.bf16.mxu0 0
      %7945 = vmatpush1.bf16.msra.mxu0 %v6863
      %7946 = vmatprep.subr.bf16.mxu0 0
      %7947 = vmatpush1.bf16.msra.mxu0 %v6864
      %7948 = vmatprep.subr.bf16.mxu0 0
      %7949 = vmatpush1.bf16.msra.mxu0 %v6865
      %7950 = vmatprep.subr.bf16.mxu0 0
      %7951 = vmatpush1.bf16.msra.mxu0 %v6866
      %7952 = vmatprep.subr.bf16.mxu0 0
      %7953 = vmatpush1.bf16.msra.mxu0 %v6867
      %7954 = vmatprep.subr.bf16.mxu0 0
      %7955 = vmatpush1.bf16.msra.mxu0 %v6868
      %7956 = vmatprep.subr.bf16.mxu0 0
      %7957 = vmatpush1.bf16.msra.mxu0 %v6869
      %7958 = vmatprep.mubr.bf16.mxu0 %v4262
      %7959 = vmatmul.mubr.bf16.gmra.mrb[0].mxu0 %v4260
      %v7960 = vpop.f32.mrb[0].mxu0
      %v7961 = vadd.f32 %v7921, %v7960
      %v7962 = vpop.f32.mrb[0].mxu0
      %v7963 = vpop.f32.mrb[0].mxu0
      %v7964 = vpop.f32.mrb[0].mxu0
      %7965 = vdwg.mxu0
      %7966 = vmatprep.subr.bf16.mxu0 0
      %7967 = vmatpush1.bf16.msra.mxu0 %v6870
      %7968 = vmatprep.subr.bf16.mxu0 0
      %7969 = vmatpush1.bf16.msra.mxu0 %v6871
      %7970 = vmatprep.subr.bf16.mxu0 0
      %7971 = vmatpush1.bf16.msra.mxu0 %v6872
      %7972 = vmatprep.subr.bf16.mxu0 0
      %7973 = vmatpush1.bf16.msra.mxu0 %v6873
      %7974 = vmatprep.subr.bf16.mxu0 0
      %7975 = vmatpush1.bf16.msra.mxu0 %v6874
      %7976 = vmatprep.subr.bf16.mxu0 0
      %7977 = vmatpush1.bf16.msra.mxu0 %v6875
      %7978 = vmatprep.subr.bf16.mxu0 0
      %7979 = vmatpush1.bf16.msra.mxu0 %v6876
      %7980 = vmatprep.subr.bf16.mxu0 0
      %7981 = vmatpush1.bf16.msra.mxu0 %v6877
      %7982 = vmatprep.subr.bf16.mxu0 0
      %7983 = vmatpush1.bf16.msra.mxu0 %v6878
      %7984 = vmatprep.subr.bf16.mxu0 0
      %7985 = vmatpush1.bf16.msra.mxu0 %v6879
      %7986 = vmatprep.subr.bf16.mxu0 0
      %7987 = vmatpush1.bf16.msra.mxu0 %v6880
      %7988 = vmatprep.subr.bf16.mxu0 0
      %7989 = vmatpush1.bf16.msra.mxu0 %v6881
      %7990 = vmatprep.subr.bf16.mxu0 0
      %7991 = vmatpush1.bf16.msra.mxu0 %v6882
      %7992 = vmatprep.subr.bf16.mxu0 0
      %7993 = vmatpush1.bf16.msra.mxu0 %v6883
      %7994 = vmatprep.subr.bf16.mxu0 0
      %7995 = vmatpush1.bf16.msra.mxu0 %v6884
      %7996 = vmatprep.subr.bf16.mxu0 0
      %7997 = vmatpush1.bf16.msra.mxu0 %v6885
      %7998 = vmatprep.mubr.bf16.mxu0 %v4266
      %7999 = vmatmul.mubr.bf16.gmra.mrb[0].mxu0 %v4264
      %v8000 = vpop.f32.mrb[0].mxu0
      %v8001 = vadd.f32 %v7961, %v8000
      %v8002 = vpop.f32.mrb[0].mxu0
      %v8003 = vpop.f32.mrb[0].mxu0
      %v8004 = vpop.f32.mrb[0].mxu0
      %8005 = vdwg.mxu0
      %8006 = vmatprep.subr.bf16.mxu0 0
      %8007 = vmatpush1.bf16.msra.mxu0 %v6886
      %8008 = vmatprep.subr.bf16.mxu0 0
      %8009 = vmatpush1.bf16.msra.mxu0 %v6887
      %8010 = vmatprep.subr.bf16.mxu0 0
      %8011 = vmatpush1.bf16.msra.mxu0 %v6888
      %8012 = vmatprep.subr.bf16.mxu0 0
      %8013 = vmatpush1.bf16.msra.mxu0 %v6889
      %8014 = vmatprep.subr.bf16.mxu0 0
      %8015 = vmatpush1.bf16.msra.mxu0 %v6890
      %8016 = vmatprep.subr.bf16.mxu0 0
      %8017 = vmatpush1.bf16.msra.mxu0 %v6891
      %8018 = vmatprep.subr.bf16.mxu0 0
      %8019 = vmatpush1.bf16.msra.mxu0 %v6892
      %8020 = vmatprep.subr.bf16.mxu0 0
      %8021 = vmatpush1.bf16.msra.mxu0 %v6893
      %8022 = vmatprep.subr.bf16.mxu0 0
      %8023 = vmatpush1.bf16.msra.mxu0 %v6894
      %8024 = vmatprep.subr.bf16.mxu0 0
      %8025 = vmatpush1.bf16.msra.mxu0 %v6895
      %8026 = vmatprep.subr.bf16.mxu0 0
      %8027 = vmatpush1.bf16.msra.mxu0 %v6896
      %8028 = vmatprep.subr.bf16.mxu0 0
      %8029 = vmatpush1.bf16.msra.mxu0 %v6897
      %8030 = vmatprep.subr.bf16.mxu0 0
      %8031 = vmatpush1.bf16.msra.mxu0 %v6898
      %8032 = vmatprep.subr.bf16.mxu0 0
      %8033 = vmatpush1.bf16.msra.mxu0 %v6899
      %8034 = vmatprep.subr.bf16.mxu0 0
      %8035 = vmatpush1.bf16.msra.mxu0 %v6900
      %8036 = vmatprep.subr.bf16.mxu0 0
      %8037 = vmatpush1.bf16.msra.mxu0 %v6901
      %8038 = vmatprep.mubr.bf16.mxu0 %v4270
      %8039 = vmatmul.mubr.bf16.gmra.mrb[0].mxu0 %v4268
      %v8040 = vpop.f32.mrb[0].mxu0
      %v8041 = vadd.f32 %v8001, %v8040
      %v8042 = vpop.f32.mrb[0].mxu0
      %v8043 = vpop.f32.mrb[0].mxu0
      %v8044 = vpop.f32.mrb[0].mxu0
      %8045 = vdwg.mxu0
      %8046 = vmatprep.subr.bf16.mxu0 0
      %8047 = vmatpush1.bf16.msra.mxu0 %v6902
      %8048 = vmatprep.subr.bf16.mxu0 0
      %8049 = vmatpush1.bf16.msra.mxu0 %v6903
      %8050 = vmatprep.subr.bf16.mxu0 0
      %8051 = vmatpush1.bf16.msra.mxu0 %v6904
      %8052 = vmatprep.subr.bf16.mxu0 0
      %8053 = vmatpush1.bf16.msra.mxu0 %v6905
      %8054 = vmatprep.subr.bf16.mxu0 0
      %8055 = vmatpush1.bf16.msra.mxu0 %v6906
      %8056 = vmatprep.subr.bf16.mxu0 0
      %8057 = vmatpush1.bf16.msra.mxu0 %v6907
      %8058 = vmatprep.subr.bf16.mxu0 0
      %8059 = vmatpush1.bf16.msra.mxu0 %v6908
      %8060 = vmatprep.subr.bf16.mxu0 0
      %8061 = vmatpush1.bf16.msra.mxu0 %v6909
      %8062 = vmatprep.subr.bf16.mxu0 0
      %8063 = vmatpush1.bf16.msra.mxu0 %v6910
      %8064 = vmatprep.subr.bf16.mxu0 0
      %8065 = vmatpush1.bf16.msra.mxu0 %v6911
      %8066 = vmatprep.subr.bf16.mxu0 0
      %8067 = vmatpush1.bf16.msra.mxu0 %v6912
      %8068 = vmatprep.subr.bf16.mxu0 0
      %8069 = vmatpush1.bf16.msra.mxu0 %v6913
      %8070 = vmatprep.subr.bf16.mxu0 0
      %8071 = vmatpush1.bf16.msra.mxu0 %v6914
      %8072 = vmatprep.subr.bf16.mxu0 0
      %8073 = vmatpush1.bf16.msra.mxu0 %v6915
      %8074 = vmatprep.subr.bf16.mxu0 0
      %8075 = vmatpush1.bf16.msra.mxu0 %v6916
      %8076 = vmatprep.subr.bf16.mxu0 0
      %8077 = vmatpush1.bf16.msra.mxu0 %v6917
      %8078 = vmatprep.mubr.bf16.mxu0 %v4274
      %8079 = vmatmul.mubr.bf16.gmra.mrb[0].mxu0 %v4272
      %v8080 = vpop.f32.mrb[0].mxu0
      %v8081 = vadd.f32 %v8041, %v8080
      %v8082 = vpop.f32.mrb[0].mxu0
      %v8083 = vpop.f32.mrb[0].mxu0
      %v8084 = vpop.f32.mrb[0].mxu0
      %8085 = vdwg.mxu0
      %8086 = vmatprep.subr.bf16.mxu0 0
      %8087 = vmatpush1.bf16.msra.mxu0 %v6918
      %8088 = vmatprep.subr.bf16.mxu0 0
      %8089 = vmatpush1.bf16.msra.mxu0 %v6919
      %8090 = vmatprep.subr.bf16.mxu0 0
      %8091 = vmatpush1.bf16.msra.mxu0 %v6920
      %8092 = vmatprep.subr.bf16.mxu0 0
      %8093 = vmatpush1.bf16.msra.mxu0 %v6921
      %8094 = vmatprep.subr.bf16.mxu0 0
      %8095 = vmatpush1.bf16.msra.mxu0 %v6922
      %8096 = vmatprep.subr.bf16.mxu0 0
      %8097 = vmatpush1.bf16.msra.mxu0 %v6923
      %8098 = vmatprep.subr.bf16.mxu0 0
      %8099 = vmatpush1.bf16.msra.mxu0 %v6924
      %8100 = vmatprep.subr.bf16.mxu0 0
      %8101 = vmatpush1.bf16.msra.mxu0 %v6925
      %8102 = vmatprep.subr.bf16.mxu0 0
      %8103 = vmatpush1.bf16.msra.mxu0 %v6926
      %8104 = vmatprep.subr.bf16.mxu0 0
      %8105 = vmatpush1.bf16.msra.mxu0 %v6927
      %8106 = vmatprep.subr.bf16.mxu0 0
      %8107 = vmatpush1.bf16.msra.mxu0 %v6928
      %8108 = vmatprep.subr.bf16.mxu0 0
      %8109 = vmatpush1.bf16.msra.mxu0 %v6929
      %8110 = vmatprep.subr.bf16.mxu0 0
      %8111 = vmatpush1.bf16.msra.mxu0 %v6930
      %8112 = vmatprep.subr.bf16.mxu0 0
      %8113 = vmatpush1.bf16.msra.mxu0 %v6931
      %8114 = vmatprep.subr.bf16.mxu0 0
      %8115 = vmatpush1.bf16.msra.mxu0 %v6932
      %8116 = vmatprep.subr.bf16.mxu0 0
      %8117 = vmatpush1.bf16.msra.mxu0 %v6933
      %8118 = vmatprep.mubr.bf16.mxu0 %v4277
      %8119 = vmatmul.mubr.bf16.gmra.mrb[0].mxu0 %v4208
      %v8120 = vpop.f32.mrb[0].mxu0
      %v8121 = vadd.f32 %v8081, %v8120
      %v8122 = vpop.f32.mrb[0].mxu0
      %v8123 = vpop.f32.mrb[0].mxu0
      %v8124 = vpop.f32.mrb[0].mxu0
      %8125 = vdwg.mxu0
      %8126 = vmatprep.subr.bf16.mxu0 0
      %8127 = vmatpush1.bf16.msra.mxu0 %v6934
      %8128 = vmatprep.subr.bf16.mxu0 0
      %8129 = vmatpush1.bf16.msra.mxu0 %v6935
      %8130 = vmatprep.subr.bf16.mxu0 0
      %8131 = vmatpush1.bf16.msra.mxu0 %v6936
      %8132 = vmatprep.subr.bf16.mxu0 0
      %8133 = vmatpush1.bf16.msra.mxu0 %v6937
      %8134 = vmatprep.subr.bf16.mxu0 0
      %8135 = vmatpush1.bf16.msra.mxu0 %v6938
      %8136 = vmatprep.subr.bf16.mxu0 0
      %8137 = vmatpush1.bf16.msra.mxu0 %v6939
      %8138 = vmatprep.subr.bf16.mxu0 0
      %8139 = vmatpush1.bf16.msra.mxu0 %v6940
      %8140 = vmatprep.subr.bf16.mxu0 0
      %8141 = vmatpush1.bf16.msra.mxu0 %v6941
      %8142 = vmatprep.subr.bf16.mxu0 0
      %8143 = vmatpush1.bf16.msra.mxu0 %v6942
      %8144 = vmatprep.subr.bf16.mxu0 0
      %8145 = vmatpush1.bf16.msra.mxu0 %v6943
      %8146 = vmatprep.subr.bf16.mxu0 0
      %8147 = vmatpush1.bf16.msra.mxu0 %v6944
      %8148 = vmatprep.subr.bf16.mxu0 0
      %8149 = vmatpush1.bf16.msra.mxu0 %v6945
      %8150 = vmatprep.subr.bf16.mxu0 0
      %8151 = vmatpush1.bf16.msra.mxu0 %v6946
      %8152 = vmatprep.subr.bf16.mxu0 0
      %8153 = vmatpush1.bf16.msra.mxu0 %v6947
      %8154 = vmatprep.subr.bf16.mxu0 0
      %8155 = vmatpush1.bf16.msra.mxu0 %v6948
      %8156 = vmatprep.subr.bf16.mxu0 0
      %8157 = vmatpush1.bf16.msra.mxu0 %v6949
      %8158 = vmatprep.mubr.bf16.mxu0 %v4283
      %8159 = vmatmul.mubr.bf16.gmra.mrb[0].mxu0 %v4281
      %v8160 = vpop.f32.mrb[0].mxu0
      %v8161 = vadd.f32 %v8121, %v8160
      %v8162 = vpop.f32.mrb[0].mxu0
      %v8163 = vpop.f32.mrb[0].mxu0
      %v8164 = vpop.f32.mrb[0].mxu0
      %8165 = vdwg.mxu0
      %8166 = vmatprep.subr.bf16.mxu0 0
      %8167 = vmatpush1.bf16.msra.mxu0 %v6950
      %8168 = vmatprep.subr.bf16.mxu0 0
      %8169 = vmatpush1.bf16.msra.mxu0 %v6951
      %8170 = vmatprep.subr.bf16.mxu0 0
      %8171 = vmatpush1.bf16.msra.mxu0 %v6952
      %8172 = vmatprep.subr.bf16.mxu0 0
      %8173 = vmatpush1.bf16.msra.mxu0 %v6953
      %8174 = vmatprep.subr.bf16.mxu0 0
      %8175 = vmatpush1.bf16.msra.mxu0 %v6954
      %8176 = vmatprep.subr.bf16.mxu0 0
      %8177 = vmatpush1.bf16.msra.mxu0 %v6955
      %8178 = vmatprep.subr.bf16.mxu0 0
      %8179 = vmatpush1.bf16.msra.mxu0 %v6956
      %8180 = vmatprep.subr.bf16.mxu0 0
      %8181 = vmatpush1.bf16.msra.mxu0 %v6957
      %8182 = vmatprep.subr.bf16.mxu0 0
      %8183 = vmatpush1.bf16.msra.mxu0 %v6958
      %8184 = vmatprep.subr.bf16.mxu0 0
      %8185 = vmatpush1.bf16.msra.mxu0 %v6959
      %8186 = vmatprep.subr.bf16.mxu0 0
      %8187 = vmatpush1.bf16.msra.mxu0 %v6960
      %8188 = vmatprep.subr.bf16.mxu0 0
      %8189 = vmatpush1.bf16.msra.mxu0 %v6961
      %8190 = vmatprep.subr.bf16.mxu0 0
      %8191 = vmatpush1.bf16.msra.mxu0 %v6962
      %8192 = vmatprep.subr.bf16.mxu0 0
      %8193 = vmatpush1.bf16.msra.mxu0 %v6963
      %8194 = vmatprep.subr.bf16.mxu0 0
      %8195 = vmatpush1.bf16.msra.mxu0 %v6964
      %8196 = vmatprep.subr.bf16.mxu0 0
      %8197 = vmatpush1.bf16.msra.mxu0 %v6965
      %8198 = vmatprep.mubr.bf16.mxu0 %v4287
      %8199 = vmatmul.mubr.bf16.gmra.mrb[0].mxu0 %v4285
      %v8200 = vpop.f32.mrb[0].mxu0
      %v8201 = vadd.f32 %v8161, %v8200
      %v8202 = vpop.f32.mrb[0].mxu0
      %v8203 = vpop.f32.mrb[0].mxu0
      %v8204 = vpop.f32.mrb[0].mxu0
      %8205 = vdwg.mxu0
      %8206 = vmatprep.subr.bf16.mxu0 0
      %8207 = vmatpush1.bf16.msra.mxu0 %v6966
      %8208 = vmatprep.subr.bf16.mxu0 0
      %8209 = vmatpush1.bf16.msra.mxu0 %v6967
      %8210 = vmatprep.subr.bf16.mxu0 0
      %8211 = vmatpush1.bf16.msra.mxu0 %v6968
      %8212 = vmatprep.subr.bf16.mxu0 0
      %8213 = vmatpush1.bf16.msra.mxu0 %v6969
      %8214 = vmatprep.subr.bf16.mxu0 0
      %8215 = vmatpush1.bf16.msra.mxu0 %v6970
      %8216 = vmatprep.subr.bf16.mxu0 0
      %8217 = vmatpush1.bf16.msra.mxu0 %v6971
      %8218 = vmatprep.subr.bf16.mxu0 0
      %8219 = vmatpush1.bf16.msra.mxu0 %v6972
      %8220 = vmatprep.subr.bf16.mxu0 0
      %8221 = vmatpush1.bf16.msra.mxu0 %v6973
      %8222 = vmatprep.subr.bf16.mxu0 0
      %8223 = vmatpush1.bf16.msra.mxu0 %v6974
      %8224 = vmatprep.subr.bf16.mxu0 0
      %8225 = vmatpush1.bf16.msra.mxu0 %v6975
      %8226 = vmatprep.subr.bf16.mxu0 0
      %8227 = vmatpush1.bf16.msra.mxu0 %v6976
      %8228 = vmatprep.subr.bf16.mxu0 0
      %8229 = vmatpush1.bf16.msra.mxu0 %v6977
      %8230 = vmatprep.subr.bf16.mxu0 0
      %8231 = vmatpush1.bf16.msra.mxu0 %v6978
      %8232 = vmatprep.subr.bf16.mxu0 0
      %8233 = vmatpush1.bf16.msra.mxu0 %v6979
      %8234 = vmatprep.subr.bf16.mxu0 0
      %8235 = vmatpush1.bf16.msra.mxu0 %v6980
      %8236 = vmatprep.subr.bf16.mxu0 0
      %8237 = vmatpush1.bf16.msra.mxu0 %v6981
      %8238 = vmatprep.mubr.bf16.mxu0 %v4291
      %8239 = vmatmul.mubr.bf16.gmra.mrb[0].mxu0 %v4289
      %v8240 = vpop.f32.mrb[0].mxu0
      %v8241 = vadd.f32 %v8201, %v8240
      %v8242 = vpop.f32.mrb[0].mxu0
      %v8243 = vpop.f32.mrb[0].mxu0
      %v8244 = vpop.f32.mrb[0].mxu0
      %8245 = vdwg.mxu0
      %8246 = vmatprep.subr.bf16.mxu0 0
      %8247 = vmatpush1.bf16.msra.mxu0 %v6982
      %8248 = vmatprep.subr.bf16.mxu0 0
      %8249 = vmatpush1.bf16.msra.mxu0 %v6983
      %8250 = vmatprep.subr.bf16.mxu0 0
      %8251 = vmatpush1.bf16.msra.mxu0 %v6984
      %8252 = vmatprep.subr.bf16.mxu0 0
      %8253 = vmatpush1.bf16.msra.mxu0 %v6985
      %8254 = vmatprep.subr.bf16.mxu0 0
      %8255 = vmatpush1.bf16.msra.mxu0 %v6986
      %8256 = vmatprep.subr.bf16.mxu0 0
      %8257 = vmatpush1.bf16.msra.mxu0 %v6987
      %8258 = vmatprep.subr.bf16.mxu0 0
      %8259 = vmatpush1.bf16.msra.mxu0 %v6988
      %8260 = vmatprep.subr.bf16.mxu0 0
      %8261 = vmatpush1.bf16.msra.mxu0 %v6989
      %8262 = vmatprep.subr.bf16.mxu0 0
      %8263 = vmatpush1.bf16.msra.mxu0 %v6990
      %8264 = vmatprep.subr.bf16.mxu0 0
      %8265 = vmatpush1.bf16.msra.mxu0 %v6991
      %8266 = vmatprep.subr.bf16.mxu0 0
      %8267 = vmatpush1.bf16.msra.mxu0 %v6992
      %8268 = vmatprep.subr.bf16.mxu0 0
      %8269 = vmatpush1.bf16.msra.mxu0 %v6993
      %8270 = vmatprep.subr.bf16.mxu0 0
      %8271 = vmatpush1.bf16.msra.mxu0 %v6994
      %8272 = vmatprep.subr.bf16.mxu0 0
      %8273 = vmatpush1.bf16.msra.mxu0 %v6995
      %8274 = vmatprep.subr.bf16.mxu0 0
      %8275 = vmatpush1.bf16.msra.mxu0 %v6996
      %8276 = vmatprep.subr.bf16.mxu0 0
      %8277 = vmatpush1.bf16.msra.mxu0 %v6997
      %8278 = vmatprep.mubr.bf16.mxu0 %v4295
      %8279 = vmatmul.mubr.bf16.gmra.mrb[0].mxu0 %v4293
      %v8280 = vpop.f32.mrb[0].mxu0
      %v8281 = vadd.f32 %v8241, %v8280
      %v8282 = vpop.f32.mrb[0].mxu0
      %v8283 = vpop.f32.mrb[0].mxu0
      %v8284 = vpop.f32.mrb[0].mxu0
      %8285 = vdwg.mxu0
      %8286 = vmatprep.subr.bf16.mxu0 0
      %8287 = vmatpush1.bf16.msra.mxu0 %v6998
      %8288 = vmatprep.subr.bf16.mxu0 0
      %8289 = vmatpush1.bf16.msra.mxu0 %v6999
      %8290 = vmatprep.subr.bf16.mxu0 0
      %8291 = vmatpush1.bf16.msra.mxu0 %v7000
      %8292 = vmatprep.subr.bf16.mxu0 0
      %8293 = vmatpush1.bf16.msra.mxu0 %v7001
      %8294 = vmatprep.subr.bf16.mxu0 0
      %8295 = vmatpush1.bf16.msra.mxu0 %v7002
      %8296 = vmatprep.subr.bf16.mxu0 0
      %8297 = vmatpush1.bf16.msra.mxu0 %v7003
      %8298 = vmatprep.subr.bf16.mxu0 0
      %8299 = vmatpush1.bf16.msra.mxu0 %v7004
      %8300 = vmatprep.subr.bf16.mxu0 0
      %8301 = vmatpush1.bf16.msra.mxu0 %v7005
      %8302 = vmatprep.subr.bf16.mxu0 0
      %8303 = vmatpush1.bf16.msra.mxu0 %v7006
      %8304 = vmatprep.subr.bf16.mxu0 0
      %8305 = vmatpush1.bf16.msra.mxu0 %v7007
      %8306 = vmatprep.subr.bf16.mxu0 0
      %8307 = vmatpush1.bf16.msra.mxu0 %v7008
      %8308 = vmatprep.subr.bf16.mxu0 0
      %8309 = vmatpush1.bf16.msra.mxu0 %v7009
      %8310 = vmatprep.subr.bf16.mxu0 0
      %8311 = vmatpush1.bf16.msra.mxu0 %v7010
      %8312 = vmatprep.subr.bf16.mxu0 0
      %8313 = vmatpush1.bf16.msra.mxu0 %v7011
      %8314 = vmatprep.subr.bf16.mxu0 0
      %8315 = vmatpush1.bf16.msra.mxu0 %v7012
      %8316 = vmatprep.subr.bf16.mxu0 0
      %8317 = vmatpush1.bf16.msra.mxu0 %v7013
      %8318 = vmatprep.mubr.bf16.mxu0 %v4299
      %8319 = vmatmul.mubr.bf16.gmra.mrb[0].mxu0 %v4297
      %v8320 = vpop.f32.mrb[0].mxu0
      %v8321 = vadd.f32 %v8281, %v8320
      %v8322 = vpop.f32.mrb[0].mxu0
      %v8323 = vpop.f32.mrb[0].mxu0
      %v8324 = vpop.f32.mrb[0].mxu0
      %8325 = vdwg.mxu0
      %8326 = vmatprep.subr.bf16.mxu0 0
      %8327 = vmatpush1.bf16.msra.mxu0 %v7014
      %8328 = vmatprep.subr.bf16.mxu0 0
      %8329 = vmatpush1.bf16.msra.mxu0 %v7015
      %8330 = vmatprep.subr.bf16.mxu0 0
      %8331 = vmatpush1.bf16.msra.mxu0 %v7016
      %8332 = vmatprep.subr.bf16.mxu0 0
      %8333 = vmatpush1.bf16.msra.mxu0 %v7017
      %8334 = vmatprep.subr.bf16.mxu0 0
      %8335 = vmatpush1.bf16.msra.mxu0 %v7018
      %8336 = vmatprep.subr.bf16.mxu0 0
      %8337 = vmatpush1.bf16.msra.mxu0 %v7019
      %8338 = vmatprep.subr.bf16.mxu0 0
      %8339 = vmatpush1.bf16.msra.mxu0 %v7020
      %8340 = vmatprep.subr.bf16.mxu0 0
      %8341 = vmatpush1.bf16.msra.mxu0 %v7021
      %8342 = vmatprep.subr.bf16.mxu0 0
      %8343 = vmatpush1.bf16.msra.mxu0 %v7022
      %8344 = vmatprep.subr.bf16.mxu0 0
      %8345 = vmatpush1.bf16.msra.mxu0 %v7023
      %8346 = vmatprep.subr.bf16.mxu0 0
      %8347 = vmatpush1.bf16.msra.mxu0 %v7024
      %8348 = vmatprep.subr.bf16.mxu0 0
      %8349 = vmatpush1.bf16.msra.mxu0 %v7025
      %8350 = vmatprep.subr.bf16.mxu0 0
      %8351 = vmatpush1.bf16.msra.mxu0 %v7026
      %8352 = vmatprep.subr.bf16.mxu0 0
      %8353 = vmatpush1.bf16.msra.mxu0 %v7027
      %8354 = vmatprep.subr.bf16.mxu0 0
      %8355 = vmatpush1.bf16.msra.mxu0 %v7028
      %8356 = vmatprep.subr.bf16.mxu0 0
      %8357 = vmatpush1.bf16.msra.mxu0 %v7029
      %8358 = vmatprep.mubr.bf16.mxu0 %v4303
      %8359 = vmatmul.mubr.bf16.gmra.mrb[0].mxu0 %v4301
      %v8360 = vpop.f32.mrb[0].mxu0
      %v8361 = vadd.f32 %v8321, %v8360
      %v8362 = vpop.f32.mrb[0].mxu0
      %v8363 = vpop.f32.mrb[0].mxu0
      %v8364 = vpop.f32.mrb[0].mxu0
      %8365 = vdwg.mxu0
      %8366 = vmatprep.subr.bf16.mxu0 0
      %8367 = vmatpush1.bf16.msra.mxu0 %v7030
      %8368 = vmatprep.subr.bf16.mxu0 0
      %8369 = vmatpush1.bf16.msra.mxu0 %v7031
      %8370 = vmatprep.subr.bf16.mxu0 0
      %8371 = vmatpush1.bf16.msra.mxu0 %v7032
      %8372 = vmatprep.subr.bf16.mxu0 0
      %8373 = vmatpush1.bf16.msra.mxu0 %v7033
      %8374 = vmatprep.subr.bf16.mxu0 0
      %8375 = vmatpush1.bf16.msra.mxu0 %v7034
      %8376 = vmatprep.subr.bf16.mxu0 0
      %8377 = vmatpush1.bf16.msra.mxu0 %v7035
      %8378 = vmatprep.subr.bf16.mxu0 0
      %8379 = vmatpush1.bf16.msra.mxu0 %v7036
      %8380 = vmatprep.subr.bf16.mxu0 0
      %8381 = vmatpush1.bf16.msra.mxu0 %v7037
      %8382 = vmatprep.subr.bf16.mxu0 0
      %8383 = vmatpush1.bf16.msra.mxu0 %v7038
      %8384 = vmatprep.subr.bf16.mxu0 0
      %8385 = vmatpush1.bf16.msra.mxu0 %v7039
      %8386 = vmatprep.subr.bf16.mxu0 0
      %8387 = vmatpush1.bf16.msra.mxu0 %v7040
      %8388 = vmatprep.subr.bf16.mxu0 0
      %8389 = vmatpush1.bf16.msra.mxu0 %v7041
      %8390 = vmatprep.subr.bf16.mxu0 0
      %8391 = vmatpush1.bf16.msra.mxu0 %v7042
      %8392 = vmatprep.subr.bf16.mxu0 0
      %8393 = vmatpush1.bf16.msra.mxu0 %v7043
      %8394 = vmatprep.subr.bf16.mxu0 0
      %8395 = vmatpush1.bf16.msra.mxu0 %v7044
      %8396 = vmatprep.subr.bf16.mxu0 0
      %8397 = vmatpush1.bf16.msra.mxu0 %v7045
      %8398 = vmatprep.mubr.bf16.mxu0 %v4307
      %8399 = vmatmul.mubr.bf16.gmra.mrb[0].mxu0 %v4305
      %v8400 = vpop.f32.mrb[0].mxu0
      %v8401 = vadd.f32 %v8361, %v8400
      %v8402 = vpop.f32.mrb[0].mxu0
      %v8403 = vpop.f32.mrb[0].mxu0
      %v8404 = vpop.f32.mrb[0].mxu0
      %8405 = vdwg.mxu0
      %8406 = vmatprep.subr.bf16.mxu0 0
      %8407 = vmatpush1.bf16.msra.mxu0 %v7046
      %8408 = vmatprep.subr.bf16.mxu0 0
      %8409 = vmatpush1.bf16.msra.mxu0 %v7047
      %8410 = vmatprep.subr.bf16.mxu0 0
      %8411 = vmatpush1.bf16.msra.mxu0 %v7048
      %8412 = vmatprep.subr.bf16.mxu0 0
      %8413 = vmatpush1.bf16.msra.mxu0 %v7049
      %8414 = vmatprep.subr.bf16.mxu0 0
      %8415 = vmatpush1.bf16.msra.mxu0 %v7050
      %8416 = vmatprep.subr.bf16.mxu0 0
      %8417 = vmatpush1.bf16.msra.mxu0 %v7051
      %8418 = vmatprep.subr.bf16.mxu0 0
      %8419 = vmatpush1.bf16.msra.mxu0 %v7052
      %8420 = vmatprep.subr.bf16.mxu0 0
      %8421 = vmatpush1.bf16.msra.mxu0 %v7053
      %8422 = vmatprep.subr.bf16.mxu0 0
      %8423 = vmatpush1.bf16.msra.mxu0 0
      %8424 = vmatprep.subr.bf16.mxu0 0
      %8425 = vmatpush1.bf16.msra.mxu0 0
      %8426 = vmatprep.subr.bf16.mxu0 0
      %8427 = vmatpush1.bf16.msra.mxu0 0
      %8428 = vmatprep.subr.bf16.mxu0 0
      %8429 = vmatpush1.bf16.msra.mxu0 0
      %8430 = vmatprep.subr.bf16.mxu0 0
      %8431 = vmatpush1.bf16.msra.mxu0 0
      %8432 = vmatprep.subr.bf16.mxu0 0
      %8433 = vmatpush1.bf16.msra.mxu0 0
      %8434 = vmatprep.subr.bf16.mxu0 0
      %8435 = vmatpush1.bf16.msra.mxu0 0
      %8436 = vmatprep.subr.bf16.mxu0 0
      %8437 = vmatpush1.bf16.msra.mxu0 0
      %8438 = vmatprep.mubr.bf16.mxu0 0
      %8439 = vmatmul.mubr.bf16.gmra.mrb[0].mxu0 %v4209
      %v8440 = vpop.f32.mrb[0].mxu0
      %v8441 = vadd.f32 %v8401, %v8440
      %v8442 = vpop.f32.mrb[0].mxu0
      %v8443 = vpop.f32.mrb[0].mxu0
      %v8444 = vpop.f32.mrb[0].mxu0
      %8445 = vdwg.mxu0
      %8446 = vst [vmem:[%s382] sm:$0x1] %v8441
      %p8447 = scmp.lt.s32.totalorder %s22, 1
      %s8448 = scalar_select %p8447, %s22, 1
      %s8449 = scalar_lea.vmem %s11, %s8448
      // Predicated region
      $region65: #{encoder_forward.1} parent=63 // pred_check
        %p8450 = pneg %p276
      $region66: #{encoder_forward.1} parent=63 // pred_check_branch
        %8452 = sbr.rel (%p8450) target = $region68
      $region67: #{encoder_forward.1} parent=63 // pred_region
        _
      $region68: #{encoder_forward.1} parent=63 // pred_fallthru
        _
    $region64: #{encoder_forward.1} parent=5 // pred_fallthru
      _
    %p8453 = scmp.le.s32.totalorder 2, %s17
    // Predicated region
    $region69: #{encoder_forward.1} parent=5 // pred_check
      %p8454 = pneg %p8453
    $region70: #{encoder_forward.1} parent=5 // pred_check_branch
      %8456 = sbr.rel (%p8454) target = $region72
    $region71: #{encoder_forward.1} parent=5 // pred_region
      %s8457 = ssub.s32 %s17, 2
      // Predicated region
      $region73: #{encoder_forward.1} parent=71 // pred_check
        %p8458 = pneg %p282
      $region74: #{encoder_forward.1} parent=71 // pred_check_branch
        %8460 = sbr.rel (%p8458) target = $region76
      $region75: #{encoder_forward.1} parent=71 // pred_region
        %p8461 = scmp.lt.s32.totalorder %s23, 1
        %s8462 = scalar_select %p8461, %s23, 1
        %s8463 = scalar_lea.vmem %s11, %s8462
      $region76: #{encoder_forward.1} parent=71 // pred_fallthru
        _
    $region72: #{encoder_forward.1} parent=5 // pred_fallthru
      _
  $region6: #{encoder_forward.1} parent=0 // loop_footer
    %s21 = sadd.s32 1, %s17
  $region7: #{encoder_forward.1} parent=0 // loop_footer_branch
    %16 = sbr.rel target = $region3
  $region8: #{encoder_forward.1} parent=0 // loop_exit
    _

</llo_original>
